<compile_context>
chip_gen: v6e
topology: v6e:2x2x1
jax: 0.10.0
libtpu: 0.0.40
codegen_flags: <defaults>
</compile_context>

<pallas_src>
import jax
import jax.numpy as jnp
from jax import lax
from jax.experimental import pallas as pl
from jax.experimental.pallas import tpu as pltpu


# ----------------------------------------------------------------------------
# Fused Pallas kernel (one sample per grid step)
# ----------------------------------------------------------------------------

def _cnn_fused_kernel(
    xe_ref,      # (30, 30, 16)   zero-padded input, pre-broadcast over 16 channels
    w1_ref,      # (9, 16)        conv1 weights, row = kh*3+kw
    b1_ref,      # (1, 16)
    w2_ref,      # (144, 32)      conv2 weights, row = (kh*3+kw)*16 + cin
    b2_ref,      # (1, 32)
    wk1_ref,     # (7, 224, 16)   fc1 weights, [h, w*32+c, o]  (PyTorch C,H,W flatten)
    bf1_ref,     # (1, 16)
    wf2_ref,     # (16, 10)
    bf2_ref,     # (1, 10)
    o_ref,       # (1, 10)        logits for this sample
    # --- VMEM scratch ---
    t1_ref,      # (14, 28, 16)   conv1 output pooled along H
    xp2_ref,     # (16, 16, 16)   zero-padded pool1 (conv2 input)
    t2_ref,      # (7, 14, 32)    conv2 output pooled along H
    f_ref,       # (7, 224)       pool2, flattened as [h, w*32+c]
):
    f32 = jnp.float32

    # ---------------- conv1: 9 shifted VPU FMAs (input already padded/broadcast)
    w1 = w1_ref[...]                                        # (9, 16)
    acc1 = jnp.broadcast_to(b1_ref[...], (28, 28, 16))
    for k in range(9):
        kh, kw = divmod(k, 3)
        acc1 = acc1 + xe_ref[kh:kh + 28, kw:kw + 28, :] * w1[k]

    # ---------------- maxpool 2x2/2: H-pool fused on the conv1 value ---------
    for i in range(14):
        t1_ref[i] = jnp.maximum(acc1[2 * i], acc1[2 * i + 1])

    # W-pool written straight into the zero-padded conv2 input tile
    xp2_ref[...] = jnp.zeros((16, 16, 16), f32)
    for j in range(14):
        xp2_ref[1:15, 1 + j, :] = jnp.maximum(t1_ref[:, 2 * j, :],
                                              t1_ref[:, 2 * j + 1, :])

    # ---------------- conv2: per-row im2col (lane concat) + 2D MXU matmuls ---
    # H-pooling of conv2 is fused (max of adjacent output rows before bias).
    w2 = w2_ref[...]                                        # (144, 32)
    for i in range(7):
        rows = []
        for r in (2 * i, 2 * i + 1):
            patch = jnp.concatenate(
                [xp2_ref[r + kh, kw:kw + 14, :]
                 for kh in range(3) for kw in range(3)], axis=-1)          # (14, 144)
            rows.append(jnp.dot(patch, w2, preferred_element_type=f32))    # (14, 32)
        t2_ref[i] = jnp.maximum(rows[0], rows[1]) + b2_ref[...]

    # W-pool of conv2 -> flattened features [h, w*32 + c]
    for j in range(7):
        f_ref[:, j * 32:(j + 1) * 32] = jnp.maximum(t2_ref[:, 2 * j, :],
                                                    t2_ref[:, 2 * j + 1, :])

    # ---------------- MLP head: Linear(1568,16) -> ReLU -> Linear(16,10) -----
    h = bf1_ref[...]                                        # (1, 16)
    for i in range(7):
        h = h + jnp.dot(f_ref[i:i + 1, :], wk1_ref[i],
                        preferred_element_type=f32)         # (1,224)@(224,16)
    h = jnp.maximum(h, 0.0)                                 # ReLU
    logits = jnp.dot(h, wf2_ref[...], preferred_element_type=f32) + bf2_ref[...]
    o_ref[...] = logits.astype(o_ref.dtype)


# ----------------------------------------------------------------------------
# Wrapper
# ----------------------------------------------------------------------------

def cnn_forward(x_nchw, p):
    """x_nchw: (N, 1, 28, 28) float32 -> logits (N, 10)."""
    N = x_nchw.shape[0]
    f32 = jnp.float32

    # Layout plumbing at trace time: pad once and broadcast along the 16 conv1
    # channels so the kernel's conv1 FMAs need no in-kernel relayout.
    x = x_nchw.reshape(N, 28, 28).astype(f32)
    xe = jnp.broadcast_to(
        jnp.pad(x, ((0, 0), (1, 1), (1, 1)))[..., None], (N, 30, 30, 16))

    # Parameter repacking so no in-kernel transposes are needed and the
    # PyTorch (C,H,W) flatten order of fc1 is preserved.
    w1r = p["w1"].reshape(9, 16).astype(f32)                          # [kh*3+kw, cout]
    b1r = p["b1"].reshape(1, 16).astype(f32)
    w2r = p["w2"].reshape(9 * 16, 32).astype(f32)                     # [(kh*3+kw)*16+cin, cout]
    b2r = p["b2"].reshape(1, 32).astype(f32)
    wk1 = (p["wf1"].reshape(32, 7, 7, 16)                             # [c, h, w, o]
           .transpose(1, 2, 0, 3)                                     # [h, w, c, o]
           .reshape(7, 7 * 32, 16).astype(f32))                       # [h, w*32+c, o]
    bf1r = p["bf1"].reshape(1, 16).astype(f32)
    wf2 = p["wf2"].astype(f32)                                        # (16, 10)
    bf2r = p["bf2"].reshape(1, 10).astype(f32)

    def const(*shape):
        return pl.BlockSpec(shape, lambda n: (0,) * len(shape))

    out = pl.pallas_call(
        _cnn_fused_kernel,
        out_shape=jax.ShapeDtypeStruct((N, 1, 10), f32),
        grid=(N,),
        in_specs=[
            pl.BlockSpec((None, 30, 30, 16), lambda n: (n, 0, 0, 0)),     # xe
            const(9, 16), const(1, 16),                                   # conv1
            const(144, 32), const(1, 32),                                 # conv2
            const(7, 224, 16), const(1, 16),                              # fc1
            const(16, 10), const(1, 10),                                  # fc2
        ],
        out_specs=pl.BlockSpec((None, 1, 10), lambda n: (n, 0, 0)),
        scratch_shapes=[
            pltpu.VMEM((14, 28, 16), f32),
            pltpu.VMEM((16, 16, 16), f32),
            pltpu.VMEM((7, 14, 32), f32),
            pltpu.VMEM((7, 224), f32),
        ],
        compiler_params=pltpu.CompilerParams(
            dimension_semantics=("parallel",)),
    )(xe, w1r, b1r, w2r, b2r, wk1, bf1r, wf2, bf2r)
    return out.reshape(N, 10)


# ----------------------------------------------------------------------------
# Pure-JAX reference (sanity check)
# ----------------------------------------------------------------------------

def cnn_reference(x_nchw, p):
    x = jnp.transpose(x_nchw, (0, 2, 3, 1))

    def conv(x, w, b):
        dn = lax.conv_dimension_numbers(x.shape, w.shape, ("NHWC", "HWIO", "NHWC"))
        return lax.conv_general_dilated(x, w, (1, 1), "SAME",
                                        dimension_numbers=dn) + b

    def pool(x):
        N, H, W, C = x.shape
        return x.reshape(N, H // 2, 2, W // 2, 2, C).max(axis=(2, 4))

    y = pool(conv(x, p["w1"], p["b1"]))
    y = pool(conv(y, p["w2"], p["b2"]))
    N = y.shape[0]
    flat = jnp.transpose(y, (0, 3, 1, 2)).reshape(N, -1)     # PyTorch C,H,W flatten
    h = jnp.maximum(flat @ p["wf1"] + p["bf1"], 0.0)
    return h @ p["wf2"] + p["bf2"]


# ----------------------------------------------------------------------------
# Deterministic parameter init
# ----------------------------------------------------------------------------

def init_params(key):
    ks = jax.random.split(key, 8)

    def w(k, shape, fan_in):
        return jax.random.normal(k, shape, jnp.float32) / jnp.sqrt(fan_in)

    return {
        "w1": w(ks[0], (3, 3, 1, 16), 9.0),
        "b1": 0.01 * jax.random.normal(ks[1], (16,), jnp.float32),
        "w2": w(ks[2], (3, 3, 16, 32), 9.0 * 16.0),
        "b2": 0.01 * jax.random.normal(ks[3], (32,), jnp.float32),
        "wf1": w(ks[4], (32 * 7 * 7, 16), 32.0 * 7.0 * 7.0),
        "bf1": 0.01 * jax.random.normal(ks[5], (16,), jnp.float32),
        "wf2": w(ks[6], (16, 10), 16.0),
        "bf2": 0.01 * jax.random.normal(ks[7], (10,), jnp.float32),
    }


if __name__ == "__main__":
    key = jax.random.PRNGKey(0)
    k_param, k_x = jax.random.split(key)
    params = init_params(k_param)

    # Input shape dictated by Linear(32*7*7): 28x28 single-channel images.
    x = jax.random.normal(k_x, (2, 1, 28, 28), jnp.float32)

    out = jax.jit(cnn_forward)(x, params)
    out = jax.block_until_ready(out)
    assert out.shape == (2, 10), out.shape
    assert bool(jnp.all(jnp.isfinite(out)))

    ref = jax.block_until_ready(cnn_reference(x, params))
    assert bool(jnp.allclose(out, ref, atol=5e-2, rtol=5e-2)), (out, ref)

    print("KERNEL_OK")
</pallas_src>

<mosaic_0001>
module attributes {stable_mosaic.version = 11 : i64} {
  func.func @_cnn_fused_kernel(%arg0: i32, %arg1: memref<1x30x30x16xf32, #tpu.memory_space<vmem>>, %arg2: memref<9x16xf32, #tpu.memory_space<vmem>>, %arg3: memref<1x16xf32, #tpu.memory_space<vmem>>, %arg4: memref<144x32xf32, #tpu.memory_space<vmem>>, %arg5: memref<1x32xf32, #tpu.memory_space<vmem>>, %arg6: memref<7x224x16xf32, #tpu.memory_space<vmem>>, %arg7: memref<1x16xf32, #tpu.memory_space<vmem>>, %arg8: memref<16x10xf32, #tpu.memory_space<vmem>>, %arg9: memref<1x10xf32, #tpu.memory_space<vmem>>, %arg10: memref<1x1x10xf32, #tpu.memory_space<vmem>>, %arg11: memref<14x28x16xf32, #tpu.memory_space<vmem>>, %arg12: memref<16x16x16xf32, #tpu.memory_space<vmem>>, %arg13: memref<7x14x32xf32, #tpu.memory_space<vmem>>, %arg14: memref<7x224xf32, #tpu.memory_space<vmem>>) attributes {dimension_semantics = [#tpu.dimension_semantics<parallel>], iteration_bounds = array<i64: 2>, scalar_prefetch = 0 : i64, scratch_operands = 4 : i64, tpu.core_type = #tpu.core_type<tc>, window_params = [{transform_indices = @transform_0, window_bounds = array<i64: 1, 30, 30, 16>}, {pipeline_mode = #tpu.pipeline_mode<synchronous>, transform_indices = @transform_1, window_bounds = array<i64: 9, 16>}, {pipeline_mode = #tpu.pipeline_mode<synchronous>, transform_indices = @transform_2, window_bounds = array<i64: 1, 16>}, {pipeline_mode = #tpu.pipeline_mode<synchronous>, transform_indices = @transform_3, window_bounds = array<i64: 144, 32>}, {pipeline_mode = #tpu.pipeline_mode<synchronous>, transform_indices = @transform_4, window_bounds = array<i64: 1, 32>}, {pipeline_mode = #tpu.pipeline_mode<synchronous>, transform_indices = @transform_5, window_bounds = array<i64: 7, 224, 16>}, {pipeline_mode = #tpu.pipeline_mode<synchronous>, transform_indices = @transform_6, window_bounds = array<i64: 1, 16>}, {pipeline_mode = #tpu.pipeline_mode<synchronous>, transform_indices = @transform_7, window_bounds = array<i64: 16, 10>}, {pipeline_mode = #tpu.pipeline_mode<synchronous>, transform_indices = @transform_8, window_bounds = array<i64: 1, 10>}, {transform_indices = @transform_9, window_bounds = array<i64: 1, 1, 10>}]} {
    %c0 = arith.constant 0 : index
    %c0_0 = arith.constant 0 : index
    %0 = vector.load %arg2[%c0, %c0_0] : memref<9x16xf32, #tpu.memory_space<vmem>>, vector<9x16xf32>
    %c0_1 = arith.constant 0 : index
    %c0_2 = arith.constant 0 : index
    %1 = vector.load %arg3[%c0_1, %c0_2] : memref<1x16xf32, #tpu.memory_space<vmem>>, vector<1x16xf32>
    %2 = vector.shape_cast %1 : vector<1x16xf32> to vector<1x1x16xf32>
    %3 = vector.broadcast %2 : vector<1x1x16xf32> to vector<28x28x16xf32>
    %c0_3 = arith.constant 0 : index
    %c0_4 = arith.constant 0 : index
    %c0_5 = arith.constant 0 : index
    %c0_6 = arith.constant 0 : index
    %4 = vector.load %arg1[%c0_3, %c0_4, %c0_5, %c0_6] : memref<1x30x30x16xf32, #tpu.memory_space<vmem>>, vector<1x28x28x16xf32>
    %5 = vector.shape_cast %4 : vector<1x28x28x16xf32> to vector<28x28x16xf32>
    %6 = vector.extract_strided_slice %0 {offsets = [0, 0], sizes = [1, 16], strides = [1, 1]} : vector<9x16xf32> to vector<1x16xf32>
    %7 = vector.shape_cast %6 : vector<1x16xf32> to vector<16xf32>
    %8 = vector.shape_cast %7 : vector<16xf32> to vector<1x1x16xf32>
    %9 = vector.broadcast %8 : vector<1x1x16xf32> to vector<28x28x16xf32>
    %10 = arith.mulf %5, %9 : vector<28x28x16xf32>
    %11 = arith.addf %3, %10 : vector<28x28x16xf32>
    %c0_7 = arith.constant 0 : index
    %c0_8 = arith.constant 0 : index
    %c1 = arith.constant 1 : index
    %c0_9 = arith.constant 0 : index
    %12 = vector.load %arg1[%c0_7, %c0_8, %c1, %c0_9] : memref<1x30x30x16xf32, #tpu.memory_space<vmem>>, vector<1x28x28x16xf32>
    %13 = vector.shape_cast %12 : vector<1x28x28x16xf32> to vector<28x28x16xf32>
    %14 = vector.extract_strided_slice %0 {offsets = [1, 0], sizes = [1, 16], strides = [1, 1]} : vector<9x16xf32> to vector<1x16xf32>
    %15 = vector.shape_cast %14 : vector<1x16xf32> to vector<16xf32>
    %16 = vector.shape_cast %15 : vector<16xf32> to vector<1x1x16xf32>
    %17 = vector.broadcast %16 : vector<1x1x16xf32> to vector<28x28x16xf32>
    %18 = arith.mulf %13, %17 : vector<28x28x16xf32>
    %19 = arith.addf %11, %18 : vector<28x28x16xf32>
    %c0_10 = arith.constant 0 : index
    %c0_11 = arith.constant 0 : index
    %c2 = arith.constant 2 : index
    %c0_12 = arith.constant 0 : index
    %20 = vector.load %arg1[%c0_10, %c0_11, %c2, %c0_12] : memref<1x30x30x16xf32, #tpu.memory_space<vmem>>, vector<1x28x28x16xf32>
    %21 = vector.shape_cast %20 : vector<1x28x28x16xf32> to vector<28x28x16xf32>
    %22 = vector.extract_strided_slice %0 {offsets = [2, 0], sizes = [1, 16], strides = [1, 1]} : vector<9x16xf32> to vector<1x16xf32>
    %23 = vector.shape_cast %22 : vector<1x16xf32> to vector<16xf32>
    %24 = vector.shape_cast %23 : vector<16xf32> to vector<1x1x16xf32>
    %25 = vector.broadcast %24 : vector<1x1x16xf32> to vector<28x28x16xf32>
    %26 = arith.mulf %21, %25 : vector<28x28x16xf32>
    %27 = arith.addf %19, %26 : vector<28x28x16xf32>
    %c0_13 = arith.constant 0 : index
    %c1_14 = arith.constant 1 : index
    %c0_15 = arith.constant 0 : index
    %c0_16 = arith.constant 0 : index
    %28 = vector.load %arg1[%c0_13, %c1_14, %c0_15, %c0_16] : memref<1x30x30x16xf32, #tpu.memory_space<vmem>>, vector<1x28x28x16xf32>
    %29 = vector.shape_cast %28 : vector<1x28x28x16xf32> to vector<28x28x16xf32>
    %30 = vector.extract_strided_slice %0 {offsets = [3, 0], sizes = [1, 16], strides = [1, 1]} : vector<9x16xf32> to vector<1x16xf32>
    %31 = vector.shape_cast %30 : vector<1x16xf32> to vector<16xf32>
    %32 = vector.shape_cast %31 : vector<16xf32> to vector<1x1x16xf32>
    %33 = vector.broadcast %32 : vector<1x1x16xf32> to vector<28x28x16xf32>
    %34 = arith.mulf %29, %33 : vector<28x28x16xf32>
    %35 = arith.addf %27, %34 : vector<28x28x16xf32>
    %c0_17 = arith.constant 0 : index
    %c1_18 = arith.constant 1 : index
    %c1_19 = arith.constant 1 : index
    %c0_20 = arith.constant 0 : index
    %36 = vector.load %arg1[%c0_17, %c1_18, %c1_19, %c0_20] : memref<1x30x30x16xf32, #tpu.memory_space<vmem>>, vector<1x28x28x16xf32>
    %37 = vector.shape_cast %36 : vector<1x28x28x16xf32> to vector<28x28x16xf32>
    %38 = vector.extract_strided_slice %0 {offsets = [4, 0], sizes = [1, 16], strides = [1, 1]} : vector<9x16xf32> to vector<1x16xf32>
    %39 = vector.shape_cast %38 : vector<1x16xf32> to vector<16xf32>
    %40 = vector.shape_cast %39 : vector<16xf32> to vector<1x1x16xf32>
    %41 = vector.broadcast %40 : vector<1x1x16xf32> to vector<28x28x16xf32>
    %42 = arith.mulf %37, %41 : vector<28x28x16xf32>
    %43 = arith.addf %35, %42 : vector<28x28x16xf32>
    %c0_21 = arith.constant 0 : index
    %c1_22 = arith.constant 1 : index
    %c2_23 = arith.constant 2 : index
    %c0_24 = arith.constant 0 : index
    %44 = vector.load %arg1[%c0_21, %c1_22, %c2_23, %c0_24] : memref<1x30x30x16xf32, #tpu.memory_space<vmem>>, vector<1x28x28x16xf32>
    %45 = vector.shape_cast %44 : vector<1x28x28x16xf32> to vector<28x28x16xf32>
    %46 = vector.extract_strided_slice %0 {offsets = [5, 0], sizes = [1, 16], strides = [1, 1]} : vector<9x16xf32> to vector<1x16xf32>
    %47 = vector.shape_cast %46 : vector<1x16xf32> to vector<16xf32>
    %48 = vector.shape_cast %47 : vector<16xf32> to vector<1x1x16xf32>
    %49 = vector.broadcast %48 : vector<1x1x16xf32> to vector<28x28x16xf32>
    %50 = arith.mulf %45, %49 : vector<28x28x16xf32>
    %51 = arith.addf %43, %50 : vector<28x28x16xf32>
    %c0_25 = arith.constant 0 : index
    %c2_26 = arith.constant 2 : index
    %c0_27 = arith.constant 0 : index
    %c0_28 = arith.constant 0 : index
    %52 = vector.load %arg1[%c0_25, %c2_26, %c0_27, %c0_28] : memref<1x30x30x16xf32, #tpu.memory_space<vmem>>, vector<1x28x28x16xf32>
    %53 = vector.shape_cast %52 : vector<1x28x28x16xf32> to vector<28x28x16xf32>
    %54 = vector.extract_strided_slice %0 {offsets = [6, 0], sizes = [1, 16], strides = [1, 1]} : vector<9x16xf32> to vector<1x16xf32>
    %55 = vector.shape_cast %54 : vector<1x16xf32> to vector<16xf32>
    %56 = vector.shape_cast %55 : vector<16xf32> to vector<1x1x16xf32>
    %57 = vector.broadcast %56 : vector<1x1x16xf32> to vector<28x28x16xf32>
    %58 = arith.mulf %53, %57 : vector<28x28x16xf32>
    %59 = arith.addf %51, %58 : vector<28x28x16xf32>
    %c0_29 = arith.constant 0 : index
    %c2_30 = arith.constant 2 : index
    %c1_31 = arith.constant 1 : index
    %c0_32 = arith.constant 0 : index
    %60 = vector.load %arg1[%c0_29, %c2_30, %c1_31, %c0_32] : memref<1x30x30x16xf32, #tpu.memory_space<vmem>>, vector<1x28x28x16xf32>
    %61 = vector.shape_cast %60 : vector<1x28x28x16xf32> to vector<28x28x16xf32>
    %62 = vector.extract_strided_slice %0 {offsets = [7, 0], sizes = [1, 16], strides = [1, 1]} : vector<9x16xf32> to vector<1x16xf32>
    %63 = vector.shape_cast %62 : vector<1x16xf32> to vector<16xf32>
    %64 = vector.shape_cast %63 : vector<16xf32> to vector<1x1x16xf32>
    %65 = vector.broadcast %64 : vector<1x1x16xf32> to vector<28x28x16xf32>
    %66 = arith.mulf %61, %65 : vector<28x28x16xf32>
    %67 = arith.addf %59, %66 : vector<28x28x16xf32>
    %c0_33 = arith.constant 0 : index
    %c2_34 = arith.constant 2 : index
    %c2_35 = arith.constant 2 : index
    %c0_36 = arith.constant 0 : index
    %68 = vector.load %arg1[%c0_33, %c2_34, %c2_35, %c0_36] : memref<1x30x30x16xf32, #tpu.memory_space<vmem>>, vector<1x28x28x16xf32>
    %69 = vector.shape_cast %68 : vector<1x28x28x16xf32> to vector<28x28x16xf32>
    %70 = vector.extract_strided_slice %0 {offsets = [8, 0], sizes = [1, 16], strides = [1, 1]} : vector<9x16xf32> to vector<1x16xf32>
    %71 = vector.shape_cast %70 : vector<1x16xf32> to vector<16xf32>
    %72 = vector.shape_cast %71 : vector<16xf32> to vector<1x1x16xf32>
    %73 = vector.broadcast %72 : vector<1x1x16xf32> to vector<28x28x16xf32>
    %74 = arith.mulf %69, %73 : vector<28x28x16xf32>
    %75 = arith.addf %67, %74 : vector<28x28x16xf32>
    %76 = vector.extract_strided_slice %75 {offsets = [0, 0, 0], sizes = [1, 28, 16], strides = [1, 1, 1]} : vector<28x28x16xf32> to vector<1x28x16xf32>
    %77 = vector.shape_cast %76 : vector<1x28x16xf32> to vector<28x16xf32>
    %78 = vector.extract_strided_slice %75 {offsets = [1, 0, 0], sizes = [1, 28, 16], strides = [1, 1, 1]} : vector<28x28x16xf32> to vector<1x28x16xf32>
    %79 = vector.shape_cast %78 : vector<1x28x16xf32> to vector<28x16xf32>
    %80 = arith.maximumf %77, %79 : vector<28x16xf32>
    %c0_37 = arith.constant 0 : index
    %c0_38 = arith.constant 0 : index
    %c0_39 = arith.constant 0 : index
    %81 = vector.load %arg11[%c0_37, %c0_38, %c0_39] : memref<14x28x16xf32, #tpu.memory_space<vmem>>, vector<1x28x16xf32>
    %82 = vector.shape_cast %81 : vector<1x28x16xf32> to vector<28x16xf32>
    %83 = vector.shape_cast %80 : vector<28x16xf32> to vector<1x28x16xf32>
    tpu.vector_store %arg11[%c0_37, %c0_38, %c0_39], %83 {strides = array<i32>} : memref<14x28x16xf32, #tpu.memory_space<vmem>>, vector<1x28x16xf32>,
    %84 = vector.extract_strided_slice %75 {offsets = [2, 0, 0], sizes = [1, 28, 16], strides = [1, 1, 1]} : vector<28x28x16xf32> to vector<1x28x16xf32>
    %85 = vector.shape_cast %84 : vector<1x28x16xf32> to vector<28x16xf32>
    %86 = vector.extract_strided_slice %75 {offsets = [3, 0, 0], sizes = [1, 28, 16], strides = [1, 1, 1]} : vector<28x28x16xf32> to vector<1x28x16xf32>
    %87 = vector.shape_cast %86 : vector<1x28x16xf32> to vector<28x16xf32>
    %88 = arith.maximumf %85, %87 : vector<28x16xf32>
    %c1_40 = arith.constant 1 : index
    %c0_41 = arith.constant 0 : index
    %c0_42 = arith.constant 0 : index
    %89 = vector.load %arg11[%c1_40, %c0_41, %c0_42] : memref<14x28x16xf32, #tpu.memory_space<vmem>>, vector<1x28x16xf32>
    %90 = vector.shape_cast %89 : vector<1x28x16xf32> to vector<28x16xf32>
    %91 = vector.shape_cast %88 : vector<28x16xf32> to vector<1x28x16xf32>
    tpu.vector_store %arg11[%c1_40, %c0_41, %c0_42], %91 {strides = array<i32>} : memref<14x28x16xf32, #tpu.memory_space<vmem>>, vector<1x28x16xf32>,
    %92 = vector.extract_strided_slice %75 {offsets = [4, 0, 0], sizes = [1, 28, 16], strides = [1, 1, 1]} : vector<28x28x16xf32> to vector<1x28x16xf32>
    %93 = vector.shape_cast %92 : vector<1x28x16xf32> to vector<28x16xf32>
    %94 = vector.extract_strided_slice %75 {offsets = [5, 0, 0], sizes = [1, 28, 16], strides = [1, 1, 1]} : vector<28x28x16xf32> to vector<1x28x16xf32>
    %95 = vector.shape_cast %94 : vector<1x28x16xf32> to vector<28x16xf32>
    %96 = arith.maximumf %93, %95 : vector<28x16xf32>
    %c2_43 = arith.constant 2 : index
    %c0_44 = arith.constant 0 : index
    %c0_45 = arith.constant 0 : index
    %97 = vector.load %arg11[%c2_43, %c0_44, %c0_45] : memref<14x28x16xf32, #tpu.memory_space<vmem>>, vector<1x28x16xf32>
    %98 = vector.shape_cast %97 : vector<1x28x16xf32> to vector<28x16xf32>
    %99 = vector.shape_cast %96 : vector<28x16xf32> to vector<1x28x16xf32>
    tpu.vector_store %arg11[%c2_43, %c0_44, %c0_45], %99 {strides = array<i32>} : memref<14x28x16xf32, #tpu.memory_space<vmem>>, vector<1x28x16xf32>,
    %100 = vector.extract_strided_slice %75 {offsets = [6, 0, 0], sizes = [1, 28, 16], strides = [1, 1, 1]} : vector<28x28x16xf32> to vector<1x28x16xf32>
    %101 = vector.shape_cast %100 : vector<1x28x16xf32> to vector<28x16xf32>
    %102 = vector.extract_strided_slice %75 {offsets = [7, 0, 0], sizes = [1, 28, 16], strides = [1, 1, 1]} : vector<28x28x16xf32> to vector<1x28x16xf32>
    %103 = vector.shape_cast %102 : vector<1x28x16xf32> to vector<28x16xf32>
    %104 = arith.maximumf %101, %103 : vector<28x16xf32>
    %c3 = arith.constant 3 : index
    %c0_46 = arith.constant 0 : index
    %c0_47 = arith.constant 0 : index
    %105 = vector.load %arg11[%c3, %c0_46, %c0_47] : memref<14x28x16xf32, #tpu.memory_space<vmem>>, vector<1x28x16xf32>
    %106 = vector.shape_cast %105 : vector<1x28x16xf32> to vector<28x16xf32>
    %107 = vector.shape_cast %104 : vector<28x16xf32> to vector<1x28x16xf32>
    tpu.vector_store %arg11[%c3, %c0_46, %c0_47], %107 {strides = array<i32>} : memref<14x28x16xf32, #tpu.memory_space<vmem>>, vector<1x28x16xf32>,
    %108 = vector.extract_strided_slice %75 {offsets = [8, 0, 0], sizes = [1, 28, 16], strides = [1, 1, 1]} : vector<28x28x16xf32> to vector<1x28x16xf32>
    %109 = vector.shape_cast %108 : vector<1x28x16xf32> to vector<28x16xf32>
    %110 = vector.extract_strided_slice %75 {offsets = [9, 0, 0], sizes = [1, 28, 16], strides = [1, 1, 1]} : vector<28x28x16xf32> to vector<1x28x16xf32>
    %111 = vector.shape_cast %110 : vector<1x28x16xf32> to vector<28x16xf32>
    %112 = arith.maximumf %109, %111 : vector<28x16xf32>
    %c4 = arith.constant 4 : index
    %c0_48 = arith.constant 0 : index
    %c0_49 = arith.constant 0 : index
    %113 = vector.load %arg11[%c4, %c0_48, %c0_49] : memref<14x28x16xf32, #tpu.memory_space<vmem>>, vector<1x28x16xf32>
    %114 = vector.shape_cast %113 : vector<1x28x16xf32> to vector<28x16xf32>
    %115 = vector.shape_cast %112 : vector<28x16xf32> to vector<1x28x16xf32>
    tpu.vector_store %arg11[%c4, %c0_48, %c0_49], %115 {strides = array<i32>} : memref<14x28x16xf32, #tpu.memory_space<vmem>>, vector<1x28x16xf32>,
    %116 = vector.extract_strided_slice %75 {offsets = [10, 0, 0], sizes = [1, 28, 16], strides = [1, 1, 1]} : vector<28x28x16xf32> to vector<1x28x16xf32>
    %117 = vector.shape_cast %116 : vector<1x28x16xf32> to vector<28x16xf32>
    %118 = vector.extract_strided_slice %75 {offsets = [11, 0, 0], sizes = [1, 28, 16], strides = [1, 1, 1]} : vector<28x28x16xf32> to vector<1x28x16xf32>
    %119 = vector.shape_cast %118 : vector<1x28x16xf32> to vector<28x16xf32>
    %120 = arith.maximumf %117, %119 : vector<28x16xf32>
    %c5 = arith.constant 5 : index
    %c0_50 = arith.constant 0 : index
    %c0_51 = arith.constant 0 : index
    %121 = vector.load %arg11[%c5, %c0_50, %c0_51] : memref<14x28x16xf32, #tpu.memory_space<vmem>>, vector<1x28x16xf32>
    %122 = vector.shape_cast %121 : vector<1x28x16xf32> to vector<28x16xf32>
    %123 = vector.shape_cast %120 : vector<28x16xf32> to vector<1x28x16xf32>
    tpu.vector_store %arg11[%c5, %c0_50, %c0_51], %123 {strides = array<i32>} : memref<14x28x16xf32, #tpu.memory_space<vmem>>, vector<1x28x16xf32>,
    %124 = vector.extract_strided_slice %75 {offsets = [12, 0, 0], sizes = [1, 28, 16], strides = [1, 1, 1]} : vector<28x28x16xf32> to vector<1x28x16xf32>
    %125 = vector.shape_cast %124 : vector<1x28x16xf32> to vector<28x16xf32>
    %126 = vector.extract_strided_slice %75 {offsets = [13, 0, 0], sizes = [1, 28, 16], strides = [1, 1, 1]} : vector<28x28x16xf32> to vector<1x28x16xf32>
    %127 = vector.shape_cast %126 : vector<1x28x16xf32> to vector<28x16xf32>
    %128 = arith.maximumf %125, %127 : vector<28x16xf32>
    %c6 = arith.constant 6 : index
    %c0_52 = arith.constant 0 : index
    %c0_53 = arith.constant 0 : index
    %129 = vector.load %arg11[%c6, %c0_52, %c0_53] : memref<14x28x16xf32, #tpu.memory_space<vmem>>, vector<1x28x16xf32>
    %130 = vector.shape_cast %129 : vector<1x28x16xf32> to vector<28x16xf32>
    %131 = vector.shape_cast %128 : vector<28x16xf32> to vector<1x28x16xf32>
    tpu.vector_store %arg11[%c6, %c0_52, %c0_53], %131 {strides = array<i32>} : memref<14x28x16xf32, #tpu.memory_space<vmem>>, vector<1x28x16xf32>,
    %132 = vector.extract_strided_slice %75 {offsets = [14, 0, 0], sizes = [1, 28, 16], strides = [1, 1, 1]} : vector<28x28x16xf32> to vector<1x28x16xf32>
    %133 = vector.shape_cast %132 : vector<1x28x16xf32> to vector<28x16xf32>
    %134 = vector.extract_strided_slice %75 {offsets = [15, 0, 0], sizes = [1, 28, 16], strides = [1, 1, 1]} : vector<28x28x16xf32> to vector<1x28x16xf32>
    %135 = vector.shape_cast %134 : vector<1x28x16xf32> to vector<28x16xf32>
    %136 = arith.maximumf %133, %135 : vector<28x16xf32>
    %c7 = arith.constant 7 : index
    %c0_54 = arith.constant 0 : index
    %c0_55 = arith.constant 0 : index
    %137 = vector.load %arg11[%c7, %c0_54, %c0_55] : memref<14x28x16xf32, #tpu.memory_space<vmem>>, vector<1x28x16xf32>
    %138 = vector.shape_cast %137 : vector<1x28x16xf32> to vector<28x16xf32>
    %139 = vector.shape_cast %136 : vector<28x16xf32> to vector<1x28x16xf32>
    tpu.vector_store %arg11[%c7, %c0_54, %c0_55], %139 {strides = array<i32>} : memref<14x28x16xf32, #tpu.memory_space<vmem>>, vector<1x28x16xf32>,
    %140 = vector.extract_strided_slice %75 {offsets = [16, 0, 0], sizes = [1, 28, 16], strides = [1, 1, 1]} : vector<28x28x16xf32> to vector<1x28x16xf32>
    %141 = vector.shape_cast %140 : vector<1x28x16xf32> to vector<28x16xf32>
    %142 = vector.extract_strided_slice %75 {offsets = [17, 0, 0], sizes = [1, 28, 16], strides = [1, 1, 1]} : vector<28x28x16xf32> to vector<1x28x16xf32>
    %143 = vector.shape_cast %142 : vector<1x28x16xf32> to vector<28x16xf32>
    %144 = arith.maximumf %141, %143 : vector<28x16xf32>
    %c8 = arith.constant 8 : index
    %c0_56 = arith.constant 0 : index
    %c0_57 = arith.constant 0 : index
    %145 = vector.load %arg11[%c8, %c0_56, %c0_57] : memref<14x28x16xf32, #tpu.memory_space<vmem>>, vector<1x28x16xf32>
    %146 = vector.shape_cast %145 : vector<1x28x16xf32> to vector<28x16xf32>
    %147 = vector.shape_cast %144 : vector<28x16xf32> to vector<1x28x16xf32>
    tpu.vector_store %arg11[%c8, %c0_56, %c0_57], %147 {strides = array<i32>} : memref<14x28x16xf32, #tpu.memory_space<vmem>>, vector<1x28x16xf32>,
    %148 = vector.extract_strided_slice %75 {offsets = [18, 0, 0], sizes = [1, 28, 16], strides = [1, 1, 1]} : vector<28x28x16xf32> to vector<1x28x16xf32>
    %149 = vector.shape_cast %148 : vector<1x28x16xf32> to vector<28x16xf32>
    %150 = vector.extract_strided_slice %75 {offsets = [19, 0, 0], sizes = [1, 28, 16], strides = [1, 1, 1]} : vector<28x28x16xf32> to vector<1x28x16xf32>
    %151 = vector.shape_cast %150 : vector<1x28x16xf32> to vector<28x16xf32>
    %152 = arith.maximumf %149, %151 : vector<28x16xf32>
    %c9 = arith.constant 9 : index
    %c0_58 = arith.constant 0 : index
    %c0_59 = arith.constant 0 : index
    %153 = vector.load %arg11[%c9, %c0_58, %c0_59] : memref<14x28x16xf32, #tpu.memory_space<vmem>>, vector<1x28x16xf32>
    %154 = vector.shape_cast %153 : vector<1x28x16xf32> to vector<28x16xf32>
    %155 = vector.shape_cast %152 : vector<28x16xf32> to vector<1x28x16xf32>
    tpu.vector_store %arg11[%c9, %c0_58, %c0_59], %155 {strides = array<i32>} : memref<14x28x16xf32, #tpu.memory_space<vmem>>, vector<1x28x16xf32>,
    %156 = vector.extract_strided_slice %75 {offsets = [20, 0, 0], sizes = [1, 28, 16], strides = [1, 1, 1]} : vector<28x28x16xf32> to vector<1x28x16xf32>
    %157 = vector.shape_cast %156 : vector<1x28x16xf32> to vector<28x16xf32>
    %158 = vector.extract_strided_slice %75 {offsets = [21, 0, 0], sizes = [1, 28, 16], strides = [1, 1, 1]} : vector<28x28x16xf32> to vector<1x28x16xf32>
    %159 = vector.shape_cast %158 : vector<1x28x16xf32> to vector<28x16xf32>
    %160 = arith.maximumf %157, %159 : vector<28x16xf32>
    %c10 = arith.constant 10 : index
    %c0_60 = arith.constant 0 : index
    %c0_61 = arith.constant 0 : index
    %161 = vector.load %arg11[%c10, %c0_60, %c0_61] : memref<14x28x16xf32, #tpu.memory_space<vmem>>, vector<1x28x16xf32>
    %162 = vector.shape_cast %161 : vector<1x28x16xf32> to vector<28x16xf32>
    %163 = vector.shape_cast %160 : vector<28x16xf32> to vector<1x28x16xf32>
    tpu.vector_store %arg11[%c10, %c0_60, %c0_61], %163 {strides = array<i32>} : memref<14x28x16xf32, #tpu.memory_space<vmem>>, vector<1x28x16xf32>,
    %164 = vector.extract_strided_slice %75 {offsets = [22, 0, 0], sizes = [1, 28, 16], strides = [1, 1, 1]} : vector<28x28x16xf32> to vector<1x28x16xf32>
    %165 = vector.shape_cast %164 : vector<1x28x16xf32> to vector<28x16xf32>
    %166 = vector.extract_strided_slice %75 {offsets = [23, 0, 0], sizes = [1, 28, 16], strides = [1, 1, 1]} : vector<28x28x16xf32> to vector<1x28x16xf32>
    %167 = vector.shape_cast %166 : vector<1x28x16xf32> to vector<28x16xf32>
    %168 = arith.maximumf %165, %167 : vector<28x16xf32>
    %c11 = arith.constant 11 : index
    %c0_62 = arith.constant 0 : index
    %c0_63 = arith.constant 0 : index
    %169 = vector.load %arg11[%c11, %c0_62, %c0_63] : memref<14x28x16xf32, #tpu.memory_space<vmem>>, vector<1x28x16xf32>
    %170 = vector.shape_cast %169 : vector<1x28x16xf32> to vector<28x16xf32>
    %171 = vector.shape_cast %168 : vector<28x16xf32> to vector<1x28x16xf32>
    tpu.vector_store %arg11[%c11, %c0_62, %c0_63], %171 {strides = array<i32>} : memref<14x28x16xf32, #tpu.memory_space<vmem>>, vector<1x28x16xf32>,
    %172 = vector.extract_strided_slice %75 {offsets = [24, 0, 0], sizes = [1, 28, 16], strides = [1, 1, 1]} : vector<28x28x16xf32> to vector<1x28x16xf32>
    %173 = vector.shape_cast %172 : vector<1x28x16xf32> to vector<28x16xf32>
    %174 = vector.extract_strided_slice %75 {offsets = [25, 0, 0], sizes = [1, 28, 16], strides = [1, 1, 1]} : vector<28x28x16xf32> to vector<1x28x16xf32>
    %175 = vector.shape_cast %174 : vector<1x28x16xf32> to vector<28x16xf32>
    %176 = arith.maximumf %173, %175 : vector<28x16xf32>
    %c12 = arith.constant 12 : index
    %c0_64 = arith.constant 0 : index
    %c0_65 = arith.constant 0 : index
    %177 = vector.load %arg11[%c12, %c0_64, %c0_65] : memref<14x28x16xf32, #tpu.memory_space<vmem>>, vector<1x28x16xf32>
    %178 = vector.shape_cast %177 : vector<1x28x16xf32> to vector<28x16xf32>
    %179 = vector.shape_cast %176 : vector<28x16xf32> to vector<1x28x16xf32>
    tpu.vector_store %arg11[%c12, %c0_64, %c0_65], %179 {strides = array<i32>} : memref<14x28x16xf32, #tpu.memory_space<vmem>>, vector<1x28x16xf32>,
    %180 = vector.extract_strided_slice %75 {offsets = [26, 0, 0], sizes = [1, 28, 16], strides = [1, 1, 1]} : vector<28x28x16xf32> to vector<1x28x16xf32>
    %181 = vector.shape_cast %180 : vector<1x28x16xf32> to vector<28x16xf32>
    %182 = vector.extract_strided_slice %75 {offsets = [27, 0, 0], sizes = [1, 28, 16], strides = [1, 1, 1]} : vector<28x28x16xf32> to vector<1x28x16xf32>
    %183 = vector.shape_cast %182 : vector<1x28x16xf32> to vector<28x16xf32>
    %184 = arith.maximumf %181, %183 : vector<28x16xf32>
    %c13 = arith.constant 13 : index
    %c0_66 = arith.constant 0 : index
    %c0_67 = arith.constant 0 : index
    %185 = vector.load %arg11[%c13, %c0_66, %c0_67] : memref<14x28x16xf32, #tpu.memory_space<vmem>>, vector<1x28x16xf32>
    %186 = vector.shape_cast %185 : vector<1x28x16xf32> to vector<28x16xf32>
    %187 = vector.shape_cast %184 : vector<28x16xf32> to vector<1x28x16xf32>
    tpu.vector_store %arg11[%c13, %c0_66, %c0_67], %187 {strides = array<i32>} : memref<14x28x16xf32, #tpu.memory_space<vmem>>, vector<1x28x16xf32>,
    %cst = arith.constant 0.000000e+00 : f32
    %188 = vector.broadcast %cst : f32 to vector<16x16x16xf32>
    %c0_68 = arith.constant 0 : index
    %c0_69 = arith.constant 0 : index
    %c0_70 = arith.constant 0 : index
    %189 = vector.load %arg12[%c0_68, %c0_69, %c0_70] : memref<16x16x16xf32, #tpu.memory_space<vmem>>, vector<16x16x16xf32>
    tpu.vector_store %arg12[%c0_68, %c0_69, %c0_70], %188 {strides = array<i32>} : memref<16x16x16xf32, #tpu.memory_space<vmem>>, vector<16x16x16xf32>,
    %c0_71 = arith.constant 0 : index
    %c0_72 = arith.constant 0 : index
    %c0_73 = arith.constant 0 : index
    %190 = vector.load %arg11[%c0_71, %c0_72, %c0_73] : memref<14x28x16xf32, #tpu.memory_space<vmem>>, vector<14x1x16xf32>
    %191 = vector.shape_cast %190 : vector<14x1x16xf32> to vector<14x16xf32>
    %c0_74 = arith.constant 0 : index
    %c1_75 = arith.constant 1 : index
    %c0_76 = arith.constant 0 : index
    %192 = vector.load %arg11[%c0_74, %c1_75, %c0_76] : memref<14x28x16xf32, #tpu.memory_space<vmem>>, vector<14x1x16xf32>
    %193 = vector.shape_cast %192 : vector<14x1x16xf32> to vector<14x16xf32>
    %194 = arith.maximumf %191, %193 : vector<14x16xf32>
    %c1_77 = arith.constant 1 : index
    %c1_78 = arith.constant 1 : index
    %c0_79 = arith.constant 0 : index
    %195 = vector.load %arg12[%c1_77, %c1_78, %c0_79] : memref<16x16x16xf32, #tpu.memory_space<vmem>>, vector<14x1x16xf32>
    %196 = vector.shape_cast %195 : vector<14x1x16xf32> to vector<14x16xf32>
    %197 = vector.shape_cast %194 : vector<14x16xf32> to vector<14x1x16xf32>
    tpu.vector_store %arg12[%c1_77, %c1_78, %c0_79], %197 {strides = array<i32>} : memref<16x16x16xf32, #tpu.memory_space<vmem>>, vector<14x1x16xf32>,
    %c0_80 = arith.constant 0 : index
    %c2_81 = arith.constant 2 : index
    %c0_82 = arith.constant 0 : index
    %198 = vector.load %arg11[%c0_80, %c2_81, %c0_82] : memref<14x28x16xf32, #tpu.memory_space<vmem>>, vector<14x1x16xf32>
    %199 = vector.shape_cast %198 : vector<14x1x16xf32> to vector<14x16xf32>
    %c0_83 = arith.constant 0 : index
    %c3_84 = arith.constant 3 : index
    %c0_85 = arith.constant 0 : index
    %200 = vector.load %arg11[%c0_83, %c3_84, %c0_85] : memref<14x28x16xf32, #tpu.memory_space<vmem>>, vector<14x1x16xf32>
    %201 = vector.shape_cast %200 : vector<14x1x16xf32> to vector<14x16xf32>
    %202 = arith.maximumf %199, %201 : vector<14x16xf32>
    %c1_86 = arith.constant 1 : index
    %c2_87 = arith.constant 2 : index
    %c0_88 = arith.constant 0 : index
    %203 = vector.load %arg12[%c1_86, %c2_87, %c0_88] : memref<16x16x16xf32, #tpu.memory_space<vmem>>, vector<14x1x16xf32>
    %204 = vector.shape_cast %203 : vector<14x1x16xf32> to vector<14x16xf32>
    %205 = vector.shape_cast %202 : vector<14x16xf32> to vector<14x1x16xf32>
    tpu.vector_store %arg12[%c1_86, %c2_87, %c0_88], %205 {strides = array<i32>} : memref<16x16x16xf32, #tpu.memory_space<vmem>>, vector<14x1x16xf32>,
    %c0_89 = arith.constant 0 : index
    %c4_90 = arith.constant 4 : index
    %c0_91 = arith.constant 0 : index
    %206 = vector.load %arg11[%c0_89, %c4_90, %c0_91] : memref<14x28x16xf32, #tpu.memory_space<vmem>>, vector<14x1x16xf32>
    %207 = vector.shape_cast %206 : vector<14x1x16xf32> to vector<14x16xf32>
    %c0_92 = arith.constant 0 : index
    %c5_93 = arith.constant 5 : index
    %c0_94 = arith.constant 0 : index
    %208 = vector.load %arg11[%c0_92, %c5_93, %c0_94] : memref<14x28x16xf32, #tpu.memory_space<vmem>>, vector<14x1x16xf32>
    %209 = vector.shape_cast %208 : vector<14x1x16xf32> to vector<14x16xf32>
    %210 = arith.maximumf %207, %209 : vector<14x16xf32>
    %c1_95 = arith.constant 1 : index
    %c3_96 = arith.constant 3 : index
    %c0_97 = arith.constant 0 : index
    %211 = vector.load %arg12[%c1_95, %c3_96, %c0_97] : memref<16x16x16xf32, #tpu.memory_space<vmem>>, vector<14x1x16xf32>
    %212 = vector.shape_cast %211 : vector<14x1x16xf32> to vector<14x16xf32>
    %213 = vector.shape_cast %210 : vector<14x16xf32> to vector<14x1x16xf32>
    tpu.vector_store %arg12[%c1_95, %c3_96, %c0_97], %213 {strides = array<i32>} : memref<16x16x16xf32, #tpu.memory_space<vmem>>, vector<14x1x16xf32>,
    %c0_98 = arith.constant 0 : index
    %c6_99 = arith.constant 6 : index
    %c0_100 = arith.constant 0 : index
    %214 = vector.load %arg11[%c0_98, %c6_99, %c0_100] : memref<14x28x16xf32, #tpu.memory_space<vmem>>, vector<14x1x16xf32>
    %215 = vector.shape_cast %214 : vector<14x1x16xf32> to vector<14x16xf32>
    %c0_101 = arith.constant 0 : index
    %c7_102 = arith.constant 7 : index
    %c0_103 = arith.constant 0 : index
    %216 = vector.load %arg11[%c0_101, %c7_102, %c0_103] : memref<14x28x16xf32, #tpu.memory_space<vmem>>, vector<14x1x16xf32>
    %217 = vector.shape_cast %216 : vector<14x1x16xf32> to vector<14x16xf32>
    %218 = arith.maximumf %215, %217 : vector<14x16xf32>
    %c1_104 = arith.constant 1 : index
    %c4_105 = arith.constant 4 : index
    %c0_106 = arith.constant 0 : index
    %219 = vector.load %arg12[%c1_104, %c4_105, %c0_106] : memref<16x16x16xf32, #tpu.memory_space<vmem>>, vector<14x1x16xf32>
    %220 = vector.shape_cast %219 : vector<14x1x16xf32> to vector<14x16xf32>
    %221 = vector.shape_cast %218 : vector<14x16xf32> to vector<14x1x16xf32>
    tpu.vector_store %arg12[%c1_104, %c4_105, %c0_106], %221 {strides = array<i32>} : memref<16x16x16xf32, #tpu.memory_space<vmem>>, vector<14x1x16xf32>,
    %c0_107 = arith.constant 0 : index
    %c8_108 = arith.constant 8 : index
    %c0_109 = arith.constant 0 : index
    %222 = vector.load %arg11[%c0_107, %c8_108, %c0_109] : memref<14x28x16xf32, #tpu.memory_space<vmem>>, vector<14x1x16xf32>
    %223 = vector.shape_cast %222 : vector<14x1x16xf32> to vector<14x16xf32>
    %c0_110 = arith.constant 0 : index
    %c9_111 = arith.constant 9 : index
    %c0_112 = arith.constant 0 : index
    %224 = vector.load %arg11[%c0_110, %c9_111, %c0_112] : memref<14x28x16xf32, #tpu.memory_space<vmem>>, vector<14x1x16xf32>
    %225 = vector.shape_cast %224 : vector<14x1x16xf32> to vector<14x16xf32>
    %226 = arith.maximumf %223, %225 : vector<14x16xf32>
    %c1_113 = arith.constant 1 : index
    %c5_114 = arith.constant 5 : index
    %c0_115 = arith.constant 0 : index
    %227 = vector.load %arg12[%c1_113, %c5_114, %c0_115] : memref<16x16x16xf32, #tpu.memory_space<vmem>>, vector<14x1x16xf32>
    %228 = vector.shape_cast %227 : vector<14x1x16xf32> to vector<14x16xf32>
    %229 = vector.shape_cast %226 : vector<14x16xf32> to vector<14x1x16xf32>
    tpu.vector_store %arg12[%c1_113, %c5_114, %c0_115], %229 {strides = array<i32>} : memref<16x16x16xf32, #tpu.memory_space<vmem>>, vector<14x1x16xf32>,
    %c0_116 = arith.constant 0 : index
    %c10_117 = arith.constant 10 : index
    %c0_118 = arith.constant 0 : index
    %230 = vector.load %arg11[%c0_116, %c10_117, %c0_118] : memref<14x28x16xf32, #tpu.memory_space<vmem>>, vector<14x1x16xf32>
    %231 = vector.shape_cast %230 : vector<14x1x16xf32> to vector<14x16xf32>
    %c0_119 = arith.constant 0 : index
    %c11_120 = arith.constant 11 : index
    %c0_121 = arith.constant 0 : index
    %232 = vector.load %arg11[%c0_119, %c11_120, %c0_121] : memref<14x28x16xf32, #tpu.memory_space<vmem>>, vector<14x1x16xf32>
    %233 = vector.shape_cast %232 : vector<14x1x16xf32> to vector<14x16xf32>
    %234 = arith.maximumf %231, %233 : vector<14x16xf32>
    %c1_122 = arith.constant 1 : index
    %c6_123 = arith.constant 6 : index
    %c0_124 = arith.constant 0 : index
    %235 = vector.load %arg12[%c1_122, %c6_123, %c0_124] : memref<16x16x16xf32, #tpu.memory_space<vmem>>, vector<14x1x16xf32>
    %236 = vector.shape_cast %235 : vector<14x1x16xf32> to vector<14x16xf32>
    %237 = vector.shape_cast %234 : vector<14x16xf32> to vector<14x1x16xf32>
    tpu.vector_store %arg12[%c1_122, %c6_123, %c0_124], %237 {strides = array<i32>} : memref<16x16x16xf32, #tpu.memory_space<vmem>>, vector<14x1x16xf32>,
    %c0_125 = arith.constant 0 : index
    %c12_126 = arith.constant 12 : index
    %c0_127 = arith.constant 0 : index
    %238 = vector.load %arg11[%c0_125, %c12_126, %c0_127] : memref<14x28x16xf32, #tpu.memory_space<vmem>>, vector<14x1x16xf32>
    %239 = vector.shape_cast %238 : vector<14x1x16xf32> to vector<14x16xf32>
    %c0_128 = arith.constant 0 : index
    %c13_129 = arith.constant 13 : index
    %c0_130 = arith.constant 0 : index
    %240 = vector.load %arg11[%c0_128, %c13_129, %c0_130] : memref<14x28x16xf32, #tpu.memory_space<vmem>>, vector<14x1x16xf32>
    %241 = vector.shape_cast %240 : vector<14x1x16xf32> to vector<14x16xf32>
    %242 = arith.maximumf %239, %241 : vector<14x16xf32>
    %c1_131 = arith.constant 1 : index
    %c7_132 = arith.constant 7 : index
    %c0_133 = arith.constant 0 : index
    %243 = vector.load %arg12[%c1_131, %c7_132, %c0_133] : memref<16x16x16xf32, #tpu.memory_space<vmem>>, vector<14x1x16xf32>
    %244 = vector.shape_cast %243 : vector<14x1x16xf32> to vector<14x16xf32>
    %245 = vector.shape_cast %242 : vector<14x16xf32> to vector<14x1x16xf32>
    tpu.vector_store %arg12[%c1_131, %c7_132, %c0_133], %245 {strides = array<i32>} : memref<16x16x16xf32, #tpu.memory_space<vmem>>, vector<14x1x16xf32>,
    %c0_134 = arith.constant 0 : index
    %c14 = arith.constant 14 : index
    %c0_135 = arith.constant 0 : index
    %246 = vector.load %arg11[%c0_134, %c14, %c0_135] : memref<14x28x16xf32, #tpu.memory_space<vmem>>, vector<14x1x16xf32>
    %247 = vector.shape_cast %246 : vector<14x1x16xf32> to vector<14x16xf32>
    %c0_136 = arith.constant 0 : index
    %c15 = arith.constant 15 : index
    %c0_137 = arith.constant 0 : index
    %248 = vector.load %arg11[%c0_136, %c15, %c0_137] : memref<14x28x16xf32, #tpu.memory_space<vmem>>, vector<14x1x16xf32>
    %249 = vector.shape_cast %248 : vector<14x1x16xf32> to vector<14x16xf32>
    %250 = arith.maximumf %247, %249 : vector<14x16xf32>
    %c1_138 = arith.constant 1 : index
    %c8_139 = arith.constant 8 : index
    %c0_140 = arith.constant 0 : index
    %251 = vector.load %arg12[%c1_138, %c8_139, %c0_140] : memref<16x16x16xf32, #tpu.memory_space<vmem>>, vector<14x1x16xf32>
    %252 = vector.shape_cast %251 : vector<14x1x16xf32> to vector<14x16xf32>
    %253 = vector.shape_cast %250 : vector<14x16xf32> to vector<14x1x16xf32>
    tpu.vector_store %arg12[%c1_138, %c8_139, %c0_140], %253 {strides = array<i32>} : memref<16x16x16xf32, #tpu.memory_space<vmem>>, vector<14x1x16xf32>,
    %c0_141 = arith.constant 0 : index
    %c16 = arith.constant 16 : index
    %c0_142 = arith.constant 0 : index
    %254 = vector.load %arg11[%c0_141, %c16, %c0_142] : memref<14x28x16xf32, #tpu.memory_space<vmem>>, vector<14x1x16xf32>
    %255 = vector.shape_cast %254 : vector<14x1x16xf32> to vector<14x16xf32>
    %c0_143 = arith.constant 0 : index
    %c17 = arith.constant 17 : index
    %c0_144 = arith.constant 0 : index
    %256 = vector.load %arg11[%c0_143, %c17, %c0_144] : memref<14x28x16xf32, #tpu.memory_space<vmem>>, vector<14x1x16xf32>
    %257 = vector.shape_cast %256 : vector<14x1x16xf32> to vector<14x16xf32>
    %258 = arith.maximumf %255, %257 : vector<14x16xf32>
    %c1_145 = arith.constant 1 : index
    %c9_146 = arith.constant 9 : index
    %c0_147 = arith.constant 0 : index
    %259 = vector.load %arg12[%c1_145, %c9_146, %c0_147] : memref<16x16x16xf32, #tpu.memory_space<vmem>>, vector<14x1x16xf32>
    %260 = vector.shape_cast %259 : vector<14x1x16xf32> to vector<14x16xf32>
    %261 = vector.shape_cast %258 : vector<14x16xf32> to vector<14x1x16xf32>
    tpu.vector_store %arg12[%c1_145, %c9_146, %c0_147], %261 {strides = array<i32>} : memref<16x16x16xf32, #tpu.memory_space<vmem>>, vector<14x1x16xf32>,
    %c0_148 = arith.constant 0 : index
    %c18 = arith.constant 18 : index
    %c0_149 = arith.constant 0 : index
    %262 = vector.load %arg11[%c0_148, %c18, %c0_149] : memref<14x28x16xf32, #tpu.memory_space<vmem>>, vector<14x1x16xf32>
    %263 = vector.shape_cast %262 : vector<14x1x16xf32> to vector<14x16xf32>
    %c0_150 = arith.constant 0 : index
    %c19 = arith.constant 19 : index
    %c0_151 = arith.constant 0 : index
    %264 = vector.load %arg11[%c0_150, %c19, %c0_151] : memref<14x28x16xf32, #tpu.memory_space<vmem>>, vector<14x1x16xf32>
    %265 = vector.shape_cast %264 : vector<14x1x16xf32> to vector<14x16xf32>
    %266 = arith.maximumf %263, %265 : vector<14x16xf32>
    %c1_152 = arith.constant 1 : index
    %c10_153 = arith.constant 10 : index
    %c0_154 = arith.constant 0 : index
    %267 = vector.load %arg12[%c1_152, %c10_153, %c0_154] : memref<16x16x16xf32, #tpu.memory_space<vmem>>, vector<14x1x16xf32>
    %268 = vector.shape_cast %267 : vector<14x1x16xf32> to vector<14x16xf32>
    %269 = vector.shape_cast %266 : vector<14x16xf32> to vector<14x1x16xf32>
    tpu.vector_store %arg12[%c1_152, %c10_153, %c0_154], %269 {strides = array<i32>} : memref<16x16x16xf32, #tpu.memory_space<vmem>>, vector<14x1x16xf32>,
    %c0_155 = arith.constant 0 : index
    %c20 = arith.constant 20 : index
    %c0_156 = arith.constant 0 : index
    %270 = vector.load %arg11[%c0_155, %c20, %c0_156] : memref<14x28x16xf32, #tpu.memory_space<vmem>>, vector<14x1x16xf32>
    %271 = vector.shape_cast %270 : vector<14x1x16xf32> to vector<14x16xf32>
    %c0_157 = arith.constant 0 : index
    %c21 = arith.constant 21 : index
    %c0_158 = arith.constant 0 : index
    %272 = vector.load %arg11[%c0_157, %c21, %c0_158] : memref<14x28x16xf32, #tpu.memory_space<vmem>>, vector<14x1x16xf32>
    %273 = vector.shape_cast %272 : vector<14x1x16xf32> to vector<14x16xf32>
    %274 = arith.maximumf %271, %273 : vector<14x16xf32>
    %c1_159 = arith.constant 1 : index
    %c11_160 = arith.constant 11 : index
    %c0_161 = arith.constant 0 : index
    %275 = vector.load %arg12[%c1_159, %c11_160, %c0_161] : memref<16x16x16xf32, #tpu.memory_space<vmem>>, vector<14x1x16xf32>
    %276 = vector.shape_cast %275 : vector<14x1x16xf32> to vector<14x16xf32>
    %277 = vector.shape_cast %274 : vector<14x16xf32> to vector<14x1x16xf32>
    tpu.vector_store %arg12[%c1_159, %c11_160, %c0_161], %277 {strides = array<i32>} : memref<16x16x16xf32, #tpu.memory_space<vmem>>, vector<14x1x16xf32>,
    %c0_162 = arith.constant 0 : index
    %c22 = arith.constant 22 : index
    %c0_163 = arith.constant 0 : index
    %278 = vector.load %arg11[%c0_162, %c22, %c0_163] : memref<14x28x16xf32, #tpu.memory_space<vmem>>, vector<14x1x16xf32>
    %279 = vector.shape_cast %278 : vector<14x1x16xf32> to vector<14x16xf32>
    %c0_164 = arith.constant 0 : index
    %c23 = arith.constant 23 : index
    %c0_165 = arith.constant 0 : index
    %280 = vector.load %arg11[%c0_164, %c23, %c0_165] : memref<14x28x16xf32, #tpu.memory_space<vmem>>, vector<14x1x16xf32>
    %281 = vector.shape_cast %280 : vector<14x1x16xf32> to vector<14x16xf32>
    %282 = arith.maximumf %279, %281 : vector<14x16xf32>
    %c1_166 = arith.constant 1 : index
    %c12_167 = arith.constant 12 : index
    %c0_168 = arith.constant 0 : index
    %283 = vector.load %arg12[%c1_166, %c12_167, %c0_168] : memref<16x16x16xf32, #tpu.memory_space<vmem>>, vector<14x1x16xf32>
    %284 = vector.shape_cast %283 : vector<14x1x16xf32> to vector<14x16xf32>
    %285 = vector.shape_cast %282 : vector<14x16xf32> to vector<14x1x16xf32>
    tpu.vector_store %arg12[%c1_166, %c12_167, %c0_168], %285 {strides = array<i32>} : memref<16x16x16xf32, #tpu.memory_space<vmem>>, vector<14x1x16xf32>,
    %c0_169 = arith.constant 0 : index
    %c24 = arith.constant 24 : index
    %c0_170 = arith.constant 0 : index
    %286 = vector.load %arg11[%c0_169, %c24, %c0_170] : memref<14x28x16xf32, #tpu.memory_space<vmem>>, vector<14x1x16xf32>
    %287 = vector.shape_cast %286 : vector<14x1x16xf32> to vector<14x16xf32>
    %c0_171 = arith.constant 0 : index
    %c25 = arith.constant 25 : index
    %c0_172 = arith.constant 0 : index
    %288 = vector.load %arg11[%c0_171, %c25, %c0_172] : memref<14x28x16xf32, #tpu.memory_space<vmem>>, vector<14x1x16xf32>
    %289 = vector.shape_cast %288 : vector<14x1x16xf32> to vector<14x16xf32>
    %290 = arith.maximumf %287, %289 : vector<14x16xf32>
    %c1_173 = arith.constant 1 : index
    %c13_174 = arith.constant 13 : index
    %c0_175 = arith.constant 0 : index
    %291 = vector.load %arg12[%c1_173, %c13_174, %c0_175] : memref<16x16x16xf32, #tpu.memory_space<vmem>>, vector<14x1x16xf32>
    %292 = vector.shape_cast %291 : vector<14x1x16xf32> to vector<14x16xf32>
    %293 = vector.shape_cast %290 : vector<14x16xf32> to vector<14x1x16xf32>
    tpu.vector_store %arg12[%c1_173, %c13_174, %c0_175], %293 {strides = array<i32>} : memref<16x16x16xf32, #tpu.memory_space<vmem>>, vector<14x1x16xf32>,
    %c0_176 = arith.constant 0 : index
    %c26 = arith.constant 26 : index
    %c0_177 = arith.constant 0 : index
    %294 = vector.load %arg11[%c0_176, %c26, %c0_177] : memref<14x28x16xf32, #tpu.memory_space<vmem>>, vector<14x1x16xf32>
    %295 = vector.shape_cast %294 : vector<14x1x16xf32> to vector<14x16xf32>
    %c0_178 = arith.constant 0 : index
    %c27 = arith.constant 27 : index
    %c0_179 = arith.constant 0 : index
    %296 = vector.load %arg11[%c0_178, %c27, %c0_179] : memref<14x28x16xf32, #tpu.memory_space<vmem>>, vector<14x1x16xf32>
    %297 = vector.shape_cast %296 : vector<14x1x16xf32> to vector<14x16xf32>
    %298 = arith.maximumf %295, %297 : vector<14x16xf32>
    %c1_180 = arith.constant 1 : index
    %c14_181 = arith.constant 14 : index
    %c0_182 = arith.constant 0 : index
    %299 = vector.load %arg12[%c1_180, %c14_181, %c0_182] : memref<16x16x16xf32, #tpu.memory_space<vmem>>, vector<14x1x16xf32>
    %300 = vector.shape_cast %299 : vector<14x1x16xf32> to vector<14x16xf32>
    %301 = vector.shape_cast %298 : vector<14x16xf32> to vector<14x1x16xf32>
    tpu.vector_store %arg12[%c1_180, %c14_181, %c0_182], %301 {strides = array<i32>} : memref<16x16x16xf32, #tpu.memory_space<vmem>>, vector<14x1x16xf32>,
    %c0_183 = arith.constant 0 : index
    %c0_184 = arith.constant 0 : index
    %302 = vector.load %arg4[%c0_183, %c0_184] : memref<144x32xf32, #tpu.memory_space<vmem>>, vector<144x32xf32>
    %c0_185 = arith.constant 0 : index
    %c0_186 = arith.constant 0 : index
    %c0_187 = arith.constant 0 : index
    %303 = vector.load %arg12[%c0_185, %c0_186, %c0_187] : memref<16x16x16xf32, #tpu.memory_space<vmem>>, vector<1x14x16xf32>
    %304 = vector.shape_cast %303 : vector<1x14x16xf32> to vector<14x16xf32>
    %c0_188 = arith.constant 0 : index
    %c1_189 = arith.constant 1 : index
    %c0_190 = arith.constant 0 : index
    %305 = vector.load %arg12[%c0_188, %c1_189, %c0_190] : memref<16x16x16xf32, #tpu.memory_space<vmem>>, vector<1x14x16xf32>
    %306 = vector.shape_cast %305 : vector<1x14x16xf32> to vector<14x16xf32>
    %c0_191 = arith.constant 0 : index
    %c2_192 = arith.constant 2 : index
    %c0_193 = arith.constant 0 : index
    %307 = vector.load %arg12[%c0_191, %c2_192, %c0_193] : memref<16x16x16xf32, #tpu.memory_space<vmem>>, vector<1x14x16xf32>
    %308 = vector.shape_cast %307 : vector<1x14x16xf32> to vector<14x16xf32>
    %c1_194 = arith.constant 1 : index
    %c0_195 = arith.constant 0 : index
    %c0_196 = arith.constant 0 : index
    %309 = vector.load %arg12[%c1_194, %c0_195, %c0_196] : memref<16x16x16xf32, #tpu.memory_space<vmem>>, vector<1x14x16xf32>
    %310 = vector.shape_cast %309 : vector<1x14x16xf32> to vector<14x16xf32>
    %c1_197 = arith.constant 1 : index
    %c1_198 = arith.constant 1 : index
    %c0_199 = arith.constant 0 : index
    %311 = vector.load %arg12[%c1_197, %c1_198, %c0_199] : memref<16x16x16xf32, #tpu.memory_space<vmem>>, vector<1x14x16xf32>
    %312 = vector.shape_cast %311 : vector<1x14x16xf32> to vector<14x16xf32>
    %c1_200 = arith.constant 1 : index
    %c2_201 = arith.constant 2 : index
    %c0_202 = arith.constant 0 : index
    %313 = vector.load %arg12[%c1_200, %c2_201, %c0_202] : memref<16x16x16xf32, #tpu.memory_space<vmem>>, vector<1x14x16xf32>
    %314 = vector.shape_cast %313 : vector<1x14x16xf32> to vector<14x16xf32>
    %c2_203 = arith.constant 2 : index
    %c0_204 = arith.constant 0 : index
    %c0_205 = arith.constant 0 : index
    %315 = vector.load %arg12[%c2_203, %c0_204, %c0_205] : memref<16x16x16xf32, #tpu.memory_space<vmem>>, vector<1x14x16xf32>
    %316 = vector.shape_cast %315 : vector<1x14x16xf32> to vector<14x16xf32>
    %c2_206 = arith.constant 2 : index
    %c1_207 = arith.constant 1 : index
    %c0_208 = arith.constant 0 : index
    %317 = vector.load %arg12[%c2_206, %c1_207, %c0_208] : memref<16x16x16xf32, #tpu.memory_space<vmem>>, vector<1x14x16xf32>
    %318 = vector.shape_cast %317 : vector<1x14x16xf32> to vector<14x16xf32>
    %c2_209 = arith.constant 2 : index
    %c2_210 = arith.constant 2 : index
    %c0_211 = arith.constant 0 : index
    %319 = vector.load %arg12[%c2_209, %c2_210, %c0_211] : memref<16x16x16xf32, #tpu.memory_space<vmem>>, vector<1x14x16xf32>
    %320 = vector.shape_cast %319 : vector<1x14x16xf32> to vector<14x16xf32>
    %321 = tpu.concatenate %304, %306, %308, %310, %312, %314, %316, %318, %320 in 1 : vector<14x16xf32>, vector<14x16xf32>, vector<14x16xf32>, vector<14x16xf32>, vector<14x16xf32>, vector<14x16xf32>, vector<14x16xf32>, vector<14x16xf32>, vector<14x16xf32> -> vector<14x144xf32>
    %cst_212 = arith.constant dense<0.000000e+00> : vector<14x32xf32>
    %322 = tpu.matmul %321, %302, %cst_212 {dimension_numbers = #tpu.dot_dimension_numbers<[1], [0], [0], [1], [0, 0, 1, 1], [], []>} : vector<14x144xf32>, vector<144x32xf32>, vector<14x32xf32> -> vector<14x32xf32>
    %c1_213 = arith.constant 1 : index
    %c0_214 = arith.constant 0 : index
    %c0_215 = arith.constant 0 : index
    %323 = vector.load %arg12[%c1_213, %c0_214, %c0_215] : memref<16x16x16xf32, #tpu.memory_space<vmem>>, vector<1x14x16xf32>
    %324 = vector.shape_cast %323 : vector<1x14x16xf32> to vector<14x16xf32>
    %c1_216 = arith.constant 1 : index
    %c1_217 = arith.constant 1 : index
    %c0_218 = arith.constant 0 : index
    %325 = vector.load %arg12[%c1_216, %c1_217, %c0_218] : memref<16x16x16xf32, #tpu.memory_space<vmem>>, vector<1x14x16xf32>
    %326 = vector.shape_cast %325 : vector<1x14x16xf32> to vector<14x16xf32>
    %c1_219 = arith.constant 1 : index
    %c2_220 = arith.constant 2 : index
    %c0_221 = arith.constant 0 : index
    %327 = vector.load %arg12[%c1_219, %c2_220, %c0_221] : memref<16x16x16xf32, #tpu.memory_space<vmem>>, vector<1x14x16xf32>
    %328 = vector.shape_cast %327 : vector<1x14x16xf32> to vector<14x16xf32>
    %c2_222 = arith.constant 2 : index
    %c0_223 = arith.constant 0 : index
    %c0_224 = arith.constant 0 : index
    %329 = vector.load %arg12[%c2_222, %c0_223, %c0_224] : memref<16x16x16xf32, #tpu.memory_space<vmem>>, vector<1x14x16xf32>
    %330 = vector.shape_cast %329 : vector<1x14x16xf32> to vector<14x16xf32>
    %c2_225 = arith.constant 2 : index
    %c1_226 = arith.constant 1 : index
    %c0_227 = arith.constant 0 : index
    %331 = vector.load %arg12[%c2_225, %c1_226, %c0_227] : memref<16x16x16xf32, #tpu.memory_space<vmem>>, vector<1x14x16xf32>
    %332 = vector.shape_cast %331 : vector<1x14x16xf32> to vector<14x16xf32>
    %c2_228 = arith.constant 2 : index
    %c2_229 = arith.constant 2 : index
    %c0_230 = arith.constant 0 : index
    %333 = vector.load %arg12[%c2_228, %c2_229, %c0_230] : memref<16x16x16xf32, #tpu.memory_space<vmem>>, vector<1x14x16xf32>
    %334 = vector.shape_cast %333 : vector<1x14x16xf32> to vector<14x16xf32>
    %c3_231 = arith.constant 3 : index
    %c0_232 = arith.constant 0 : index
    %c0_233 = arith.constant 0 : index
    %335 = vector.load %arg12[%c3_231, %c0_232, %c0_233] : memref<16x16x16xf32, #tpu.memory_space<vmem>>, vector<1x14x16xf32>
    %336 = vector.shape_cast %335 : vector<1x14x16xf32> to vector<14x16xf32>
    %c3_234 = arith.constant 3 : index
    %c1_235 = arith.constant 1 : index
    %c0_236 = arith.constant 0 : index
    %337 = vector.load %arg12[%c3_234, %c1_235, %c0_236] : memref<16x16x16xf32, #tpu.memory_space<vmem>>, vector<1x14x16xf32>
    %338 = vector.shape_cast %337 : vector<1x14x16xf32> to vector<14x16xf32>
    %c3_237 = arith.constant 3 : index
    %c2_238 = arith.constant 2 : index
    %c0_239 = arith.constant 0 : index
    %339 = vector.load %arg12[%c3_237, %c2_238, %c0_239] : memref<16x16x16xf32, #tpu.memory_space<vmem>>, vector<1x14x16xf32>
    %340 = vector.shape_cast %339 : vector<1x14x16xf32> to vector<14x16xf32>
    %341 = tpu.concatenate %324, %326, %328, %330, %332, %334, %336, %338, %340 in 1 : vector<14x16xf32>, vector<14x16xf32>, vector<14x16xf32>, vector<14x16xf32>, vector<14x16xf32>, vector<14x16xf32>, vector<14x16xf32>, vector<14x16xf32>, vector<14x16xf32> -> vector<14x144xf32>
    %cst_240 = arith.constant dense<0.000000e+00> : vector<14x32xf32>
    %342 = tpu.matmul %341, %302, %cst_240 {dimension_numbers = #tpu.dot_dimension_numbers<[1], [0], [0], [1], [0, 0, 1, 1], [], []>} : vector<14x144xf32>, vector<144x32xf32>, vector<14x32xf32> -> vector<14x32xf32>
    %343 = arith.maximumf %322, %342 : vector<14x32xf32>
    %c0_241 = arith.constant 0 : index
    %c0_242 = arith.constant 0 : index
    %344 = vector.load %arg5[%c0_241, %c0_242] : memref<1x32xf32, #tpu.memory_space<vmem>>, vector<1x32xf32>
    %345 = vector.broadcast %344 : vector<1x32xf32> to vector<14x32xf32>
    %346 = arith.addf %343, %345 : vector<14x32xf32>
    %c0_243 = arith.constant 0 : index
    %c0_244 = arith.constant 0 : index
    %c0_245 = arith.constant 0 : index
    %347 = vector.load %arg13[%c0_243, %c0_244, %c0_245] : memref<7x14x32xf32, #tpu.memory_space<vmem>>, vector<1x14x32xf32>
    %348 = vector.shape_cast %347 : vector<1x14x32xf32> to vector<14x32xf32>
    %349 = vector.shape_cast %346 : vector<14x32xf32> to vector<1x14x32xf32>
    tpu.vector_store %arg13[%c0_243, %c0_244, %c0_245], %349 {strides = array<i32>} : memref<7x14x32xf32, #tpu.memory_space<vmem>>, vector<1x14x32xf32>,
    %c2_246 = arith.constant 2 : index
    %c0_247 = arith.constant 0 : index
    %c0_248 = arith.constant 0 : index
    %350 = vector.load %arg12[%c2_246, %c0_247, %c0_248] : memref<16x16x16xf32, #tpu.memory_space<vmem>>, vector<1x14x16xf32>
    %351 = vector.shape_cast %350 : vector<1x14x16xf32> to vector<14x16xf32>
    %c2_249 = arith.constant 2 : index
    %c1_250 = arith.constant 1 : index
    %c0_251 = arith.constant 0 : index
    %352 = vector.load %arg12[%c2_249, %c1_250, %c0_251] : memref<16x16x16xf32, #tpu.memory_space<vmem>>, vector<1x14x16xf32>
    %353 = vector.shape_cast %352 : vector<1x14x16xf32> to vector<14x16xf32>
    %c2_252 = arith.constant 2 : index
    %c2_253 = arith.constant 2 : index
    %c0_254 = arith.constant 0 : index
    %354 = vector.load %arg12[%c2_252, %c2_253, %c0_254] : memref<16x16x16xf32, #tpu.memory_space<vmem>>, vector<1x14x16xf32>
    %355 = vector.shape_cast %354 : vector<1x14x16xf32> to vector<14x16xf32>
    %c3_255 = arith.constant 3 : index
    %c0_256 = arith.constant 0 : index
    %c0_257 = arith.constant 0 : index
    %356 = vector.load %arg12[%c3_255, %c0_256, %c0_257] : memref<16x16x16xf32, #tpu.memory_space<vmem>>, vector<1x14x16xf32>
    %357 = vector.shape_cast %356 : vector<1x14x16xf32> to vector<14x16xf32>
    %c3_258 = arith.constant 3 : index
    %c1_259 = arith.constant 1 : index
    %c0_260 = arith.constant 0 : index
    %358 = vector.load %arg12[%c3_258, %c1_259, %c0_260] : memref<16x16x16xf32, #tpu.memory_space<vmem>>, vector<1x14x16xf32>
    %359 = vector.shape_cast %358 : vector<1x14x16xf32> to vector<14x16xf32>
    %c3_261 = arith.constant 3 : index
    %c2_262 = arith.constant 2 : index
    %c0_263 = arith.constant 0 : index
    %360 = vector.load %arg12[%c3_261, %c2_262, %c0_263] : memref<16x16x16xf32, #tpu.memory_space<vmem>>, vector<1x14x16xf32>
    %361 = vector.shape_cast %360 : vector<1x14x16xf32> to vector<14x16xf32>
    %c4_264 = arith.constant 4 : index
    %c0_265 = arith.constant 0 : index
    %c0_266 = arith.constant 0 : index
    %362 = vector.load %arg12[%c4_264, %c0_265, %c0_266] : memref<16x16x16xf32, #tpu.memory_space<vmem>>, vector<1x14x16xf32>
    %363 = vector.shape_cast %362 : vector<1x14x16xf32> to vector<14x16xf32>
    %c4_267 = arith.constant 4 : index
    %c1_268 = arith.constant 1 : index
    %c0_269 = arith.constant 0 : index
    %364 = vector.load %arg12[%c4_267, %c1_268, %c0_269] : memref<16x16x16xf32, #tpu.memory_space<vmem>>, vector<1x14x16xf32>
    %365 = vector.shape_cast %364 : vector<1x14x16xf32> to vector<14x16xf32>
    %c4_270 = arith.constant 4 : index
    %c2_271 = arith.constant 2 : index
    %c0_272 = arith.constant 0 : index
    %366 = vector.load %arg12[%c4_270, %c2_271, %c0_272] : memref<16x16x16xf32, #tpu.memory_space<vmem>>, vector<1x14x16xf32>
    %367 = vector.shape_cast %366 : vector<1x14x16xf32> to vector<14x16xf32>
    %368 = tpu.concatenate %351, %353, %355, %357, %359, %361, %363, %365, %367 in 1 : vector<14x16xf32>, vector<14x16xf32>, vector<14x16xf32>, vector<14x16xf32>, vector<14x16xf32>, vector<14x16xf32>, vector<14x16xf32>, vector<14x16xf32>, vector<14x16xf32> -> vector<14x144xf32>
    %cst_273 = arith.constant dense<0.000000e+00> : vector<14x32xf32>
    %369 = tpu.matmul %368, %302, %cst_273 {dimension_numbers = #tpu.dot_dimension_numbers<[1], [0], [0], [1], [0, 0, 1, 1], [], []>} : vector<14x144xf32>, vector<144x32xf32>, vector<14x32xf32> -> vector<14x32xf32>
    %c3_274 = arith.constant 3 : index
    %c0_275 = arith.constant 0 : index
    %c0_276 = arith.constant 0 : index
    %370 = vector.load %arg12[%c3_274, %c0_275, %c0_276] : memref<16x16x16xf32, #tpu.memory_space<vmem>>, vector<1x14x16xf32>
    %371 = vector.shape_cast %370 : vector<1x14x16xf32> to vector<14x16xf32>
    %c3_277 = arith.constant 3 : index
    %c1_278 = arith.constant 1 : index
    %c0_279 = arith.constant 0 : index
    %372 = vector.load %arg12[%c3_277, %c1_278, %c0_279] : memref<16x16x16xf32, #tpu.memory_space<vmem>>, vector<1x14x16xf32>
    %373 = vector.shape_cast %372 : vector<1x14x16xf32> to vector<14x16xf32>
    %c3_280 = arith.constant 3 : index
    %c2_281 = arith.constant 2 : index
    %c0_282 = arith.constant 0 : index
    %374 = vector.load %arg12[%c3_280, %c2_281, %c0_282] : memref<16x16x16xf32, #tpu.memory_space<vmem>>, vector<1x14x16xf32>
    %375 = vector.shape_cast %374 : vector<1x14x16xf32> to vector<14x16xf32>
    %c4_283 = arith.constant 4 : index
    %c0_284 = arith.constant 0 : index
    %c0_285 = arith.constant 0 : index
    %376 = vector.load %arg12[%c4_283, %c0_284, %c0_285] : memref<16x16x16xf32, #tpu.memory_space<vmem>>, vector<1x14x16xf32>
    %377 = vector.shape_cast %376 : vector<1x14x16xf32> to vector<14x16xf32>
    %c4_286 = arith.constant 4 : index
    %c1_287 = arith.constant 1 : index
    %c0_288 = arith.constant 0 : index
    %378 = vector.load %arg12[%c4_286, %c1_287, %c0_288] : memref<16x16x16xf32, #tpu.memory_space<vmem>>, vector<1x14x16xf32>
    %379 = vector.shape_cast %378 : vector<1x14x16xf32> to vector<14x16xf32>
    %c4_289 = arith.constant 4 : index
    %c2_290 = arith.constant 2 : index
    %c0_291 = arith.constant 0 : index
    %380 = vector.load %arg12[%c4_289, %c2_290, %c0_291] : memref<16x16x16xf32, #tpu.memory_space<vmem>>, vector<1x14x16xf32>
    %381 = vector.shape_cast %380 : vector<1x14x16xf32> to vector<14x16xf32>
    %c5_292 = arith.constant 5 : index
    %c0_293 = arith.constant 0 : index
    %c0_294 = arith.constant 0 : index
    %382 = vector.load %arg12[%c5_292, %c0_293, %c0_294] : memref<16x16x16xf32, #tpu.memory_space<vmem>>, vector<1x14x16xf32>
    %383 = vector.shape_cast %382 : vector<1x14x16xf32> to vector<14x16xf32>
    %c5_295 = arith.constant 5 : index
    %c1_296 = arith.constant 1 : index
    %c0_297 = arith.constant 0 : index
    %384 = vector.load %arg12[%c5_295, %c1_296, %c0_297] : memref<16x16x16xf32, #tpu.memory_space<vmem>>, vector<1x14x16xf32>
    %385 = vector.shape_cast %384 : vector<1x14x16xf32> to vector<14x16xf32>
    %c5_298 = arith.constant 5 : index
    %c2_299 = arith.constant 2 : index
    %c0_300 = arith.constant 0 : index
    %386 = vector.load %arg12[%c5_298, %c2_299, %c0_300] : memref<16x16x16xf32, #tpu.memory_space<vmem>>, vector<1x14x16xf32>
    %387 = vector.shape_cast %386 : vector<1x14x16xf32> to vector<14x16xf32>
    %388 = tpu.concatenate %371, %373, %375, %377, %379, %381, %383, %385, %387 in 1 : vector<14x16xf32>, vector<14x16xf32>, vector<14x16xf32>, vector<14x16xf32>, vector<14x16xf32>, vector<14x16xf32>, vector<14x16xf32>, vector<14x16xf32>, vector<14x16xf32> -> vector<14x144xf32>
    %cst_301 = arith.constant dense<0.000000e+00> : vector<14x32xf32>
    %389 = tpu.matmul %388, %302, %cst_301 {dimension_numbers = #tpu.dot_dimension_numbers<[1], [0], [0], [1], [0, 0, 1, 1], [], []>} : vector<14x144xf32>, vector<144x32xf32>, vector<14x32xf32> -> vector<14x32xf32>
    %390 = arith.maximumf %369, %389 : vector<14x32xf32>
    %c0_302 = arith.constant 0 : index
    %c0_303 = arith.constant 0 : index
    %391 = vector.load %arg5[%c0_302, %c0_303] : memref<1x32xf32, #tpu.memory_space<vmem>>, vector<1x32xf32>
    %392 = vector.broadcast %391 : vector<1x32xf32> to vector<14x32xf32>
    %393 = arith.addf %390, %392 : vector<14x32xf32>
    %c1_304 = arith.constant 1 : index
    %c0_305 = arith.constant 0 : index
    %c0_306 = arith.constant 0 : index
    %394 = vector.load %arg13[%c1_304, %c0_305, %c0_306] : memref<7x14x32xf32, #tpu.memory_space<vmem>>, vector<1x14x32xf32>
    %395 = vector.shape_cast %394 : vector<1x14x32xf32> to vector<14x32xf32>
    %396 = vector.shape_cast %393 : vector<14x32xf32> to vector<1x14x32xf32>
    tpu.vector_store %arg13[%c1_304, %c0_305, %c0_306], %396 {strides = array<i32>} : memref<7x14x32xf32, #tpu.memory_space<vmem>>, vector<1x14x32xf32>,
    %c4_307 = arith.constant 4 : index
    %c0_308 = arith.constant 0 : index
    %c0_309 = arith.constant 0 : index
    %397 = vector.load %arg12[%c4_307, %c0_308, %c0_309] : memref<16x16x16xf32, #tpu.memory_space<vmem>>, vector<1x14x16xf32>
    %398 = vector.shape_cast %397 : vector<1x14x16xf32> to vector<14x16xf32>
    %c4_310 = arith.constant 4 : index
    %c1_311 = arith.constant 1 : index
    %c0_312 = arith.constant 0 : index
    %399 = vector.load %arg12[%c4_310, %c1_311, %c0_312] : memref<16x16x16xf32, #tpu.memory_space<vmem>>, vector<1x14x16xf32>
    %400 = vector.shape_cast %399 : vector<1x14x16xf32> to vector<14x16xf32>
    %c4_313 = arith.constant 4 : index
    %c2_314 = arith.constant 2 : index
    %c0_315 = arith.constant 0 : index
    %401 = vector.load %arg12[%c4_313, %c2_314, %c0_315] : memref<16x16x16xf32, #tpu.memory_space<vmem>>, vector<1x14x16xf32>
    %402 = vector.shape_cast %401 : vector<1x14x16xf32> to vector<14x16xf32>
    %c5_316 = arith.constant 5 : index
    %c0_317 = arith.constant 0 : index
    %c0_318 = arith.constant 0 : index
    %403 = vector.load %arg12[%c5_316, %c0_317, %c0_318] : memref<16x16x16xf32, #tpu.memory_space<vmem>>, vector<1x14x16xf32>
    %404 = vector.shape_cast %403 : vector<1x14x16xf32> to vector<14x16xf32>
    %c5_319 = arith.constant 5 : index
    %c1_320 = arith.constant 1 : index
    %c0_321 = arith.constant 0 : index
    %405 = vector.load %arg12[%c5_319, %c1_320, %c0_321] : memref<16x16x16xf32, #tpu.memory_space<vmem>>, vector<1x14x16xf32>
    %406 = vector.shape_cast %405 : vector<1x14x16xf32> to vector<14x16xf32>
    %c5_322 = arith.constant 5 : index
    %c2_323 = arith.constant 2 : index
    %c0_324 = arith.constant 0 : index
    %407 = vector.load %arg12[%c5_322, %c2_323, %c0_324] : memref<16x16x16xf32, #tpu.memory_space<vmem>>, vector<1x14x16xf32>
    %408 = vector.shape_cast %407 : vector<1x14x16xf32> to vector<14x16xf32>
    %c6_325 = arith.constant 6 : index
    %c0_326 = arith.constant 0 : index
    %c0_327 = arith.constant 0 : index
    %409 = vector.load %arg12[%c6_325, %c0_326, %c0_327] : memref<16x16x16xf32, #tpu.memory_space<vmem>>, vector<1x14x16xf32>
    %410 = vector.shape_cast %409 : vector<1x14x16xf32> to vector<14x16xf32>
    %c6_328 = arith.constant 6 : index
    %c1_329 = arith.constant 1 : index
    %c0_330 = arith.constant 0 : index
    %411 = vector.load %arg12[%c6_328, %c1_329, %c0_330] : memref<16x16x16xf32, #tpu.memory_space<vmem>>, vector<1x14x16xf32>
    %412 = vector.shape_cast %411 : vector<1x14x16xf32> to vector<14x16xf32>
    %c6_331 = arith.constant 6 : index
    %c2_332 = arith.constant 2 : index
    %c0_333 = arith.constant 0 : index
    %413 = vector.load %arg12[%c6_331, %c2_332, %c0_333] : memref<16x16x16xf32, #tpu.memory_space<vmem>>, vector<1x14x16xf32>
    %414 = vector.shape_cast %413 : vector<1x14x16xf32> to vector<14x16xf32>
    %415 = tpu.concatenate %398, %400, %402, %404, %406, %408, %410, %412, %414 in 1 : vector<14x16xf32>, vector<14x16xf32>, vector<14x16xf32>, vector<14x16xf32>, vector<14x16xf32>, vector<14x16xf32>, vector<14x16xf32>, vector<14x16xf32>, vector<14x16xf32> -> vector<14x144xf32>
    %cst_334 = arith.constant dense<0.000000e+00> : vector<14x32xf32>
    %416 = tpu.matmul %415, %302, %cst_334 {dimension_numbers = #tpu.dot_dimension_numbers<[1], [0], [0], [1], [0, 0, 1, 1], [], []>} : vector<14x144xf32>, vector<144x32xf32>, vector<14x32xf32> -> vector<14x32xf32>
    %c5_335 = arith.constant 5 : index
    %c0_336 = arith.constant 0 : index
    %c0_337 = arith.constant 0 : index
    %417 = vector.load %arg12[%c5_335, %c0_336, %c0_337] : memref<16x16x16xf32, #tpu.memory_space<vmem>>, vector<1x14x16xf32>
    %418 = vector.shape_cast %417 : vector<1x14x16xf32> to vector<14x16xf32>
    %c5_338 = arith.constant 5 : index
    %c1_339 = arith.constant 1 : index
    %c0_340 = arith.constant 0 : index
    %419 = vector.load %arg12[%c5_338, %c1_339, %c0_340] : memref<16x16x16xf32, #tpu.memory_space<vmem>>, vector<1x14x16xf32>
    %420 = vector.shape_cast %419 : vector<1x14x16xf32> to vector<14x16xf32>
    %c5_341 = arith.constant 5 : index
    %c2_342 = arith.constant 2 : index
    %c0_343 = arith.constant 0 : index
    %421 = vector.load %arg12[%c5_341, %c2_342, %c0_343] : memref<16x16x16xf32, #tpu.memory_space<vmem>>, vector<1x14x16xf32>
    %422 = vector.shape_cast %421 : vector<1x14x16xf32> to vector<14x16xf32>
    %c6_344 = arith.constant 6 : index
    %c0_345 = arith.constant 0 : index
    %c0_346 = arith.constant 0 : index
    %423 = vector.load %arg12[%c6_344, %c0_345, %c0_346] : memref<16x16x16xf32, #tpu.memory_space<vmem>>, vector<1x14x16xf32>
    %424 = vector.shape_cast %423 : vector<1x14x16xf32> to vector<14x16xf32>
    %c6_347 = arith.constant 6 : index
    %c1_348 = arith.constant 1 : index
    %c0_349 = arith.constant 0 : index
    %425 = vector.load %arg12[%c6_347, %c1_348, %c0_349] : memref<16x16x16xf32, #tpu.memory_space<vmem>>, vector<1x14x16xf32>
    %426 = vector.shape_cast %425 : vector<1x14x16xf32> to vector<14x16xf32>
    %c6_350 = arith.constant 6 : index
    %c2_351 = arith.constant 2 : index
    %c0_352 = arith.constant 0 : index
    %427 = vector.load %arg12[%c6_350, %c2_351, %c0_352] : memref<16x16x16xf32, #tpu.memory_space<vmem>>, vector<1x14x16xf32>
    %428 = vector.shape_cast %427 : vector<1x14x16xf32> to vector<14x16xf32>
    %c7_353 = arith.constant 7 : index
    %c0_354 = arith.constant 0 : index
    %c0_355 = arith.constant 0 : index
    %429 = vector.load %arg12[%c7_353, %c0_354, %c0_355] : memref<16x16x16xf32, #tpu.memory_space<vmem>>, vector<1x14x16xf32>
    %430 = vector.shape_cast %429 : vector<1x14x16xf32> to vector<14x16xf32>
    %c7_356 = arith.constant 7 : index
    %c1_357 = arith.constant 1 : index
    %c0_358 = arith.constant 0 : index
    %431 = vector.load %arg12[%c7_356, %c1_357, %c0_358] : memref<16x16x16xf32, #tpu.memory_space<vmem>>, vector<1x14x16xf32>
    %432 = vector.shape_cast %431 : vector<1x14x16xf32> to vector<14x16xf32>
    %c7_359 = arith.constant 7 : index
    %c2_360 = arith.constant 2 : index
    %c0_361 = arith.constant 0 : index
    %433 = vector.load %arg12[%c7_359, %c2_360, %c0_361] : memref<16x16x16xf32, #tpu.memory_space<vmem>>, vector<1x14x16xf32>
    %434 = vector.shape_cast %433 : vector<1x14x16xf32> to vector<14x16xf32>
    %435 = tpu.concatenate %418, %420, %422, %424, %426, %428, %430, %432, %434 in 1 : vector<14x16xf32>, vector<14x16xf32>, vector<14x16xf32>, vector<14x16xf32>, vector<14x16xf32>, vector<14x16xf32>, vector<14x16xf32>, vector<14x16xf32>, vector<14x16xf32> -> vector<14x144xf32>
    %cst_362 = arith.constant dense<0.000000e+00> : vector<14x32xf32>
    %436 = tpu.matmul %435, %302, %cst_362 {dimension_numbers = #tpu.dot_dimension_numbers<[1], [0], [0], [1], [0, 0, 1, 1], [], []>} : vector<14x144xf32>, vector<144x32xf32>, vector<14x32xf32> -> vector<14x32xf32>
    %437 = arith.maximumf %416, %436 : vector<14x32xf32>
    %c0_363 = arith.constant 0 : index
    %c0_364 = arith.constant 0 : index
    %438 = vector.load %arg5[%c0_363, %c0_364] : memref<1x32xf32, #tpu.memory_space<vmem>>, vector<1x32xf32>
    %439 = vector.broadcast %438 : vector<1x32xf32> to vector<14x32xf32>
    %440 = arith.addf %437, %439 : vector<14x32xf32>
    %c2_365 = arith.constant 2 : index
    %c0_366 = arith.constant 0 : index
    %c0_367 = arith.constant 0 : index
    %441 = vector.load %arg13[%c2_365, %c0_366, %c0_367] : memref<7x14x32xf32, #tpu.memory_space<vmem>>, vector<1x14x32xf32>
    %442 = vector.shape_cast %441 : vector<1x14x32xf32> to vector<14x32xf32>
    %443 = vector.shape_cast %440 : vector<14x32xf32> to vector<1x14x32xf32>
    tpu.vector_store %arg13[%c2_365, %c0_366, %c0_367], %443 {strides = array<i32>} : memref<7x14x32xf32, #tpu.memory_space<vmem>>, vector<1x14x32xf32>,
    %c6_368 = arith.constant 6 : index
    %c0_369 = arith.constant 0 : index
    %c0_370 = arith.constant 0 : index
    %444 = vector.load %arg12[%c6_368, %c0_369, %c0_370] : memref<16x16x16xf32, #tpu.memory_space<vmem>>, vector<1x14x16xf32>
    %445 = vector.shape_cast %444 : vector<1x14x16xf32> to vector<14x16xf32>
    %c6_371 = arith.constant 6 : index
    %c1_372 = arith.constant 1 : index
    %c0_373 = arith.constant 0 : index
    %446 = vector.load %arg12[%c6_371, %c1_372, %c0_373] : memref<16x16x16xf32, #tpu.memory_space<vmem>>, vector<1x14x16xf32>
    %447 = vector.shape_cast %446 : vector<1x14x16xf32> to vector<14x16xf32>
    %c6_374 = arith.constant 6 : index
    %c2_375 = arith.constant 2 : index
    %c0_376 = arith.constant 0 : index
    %448 = vector.load %arg12[%c6_374, %c2_375, %c0_376] : memref<16x16x16xf32, #tpu.memory_space<vmem>>, vector<1x14x16xf32>
    %449 = vector.shape_cast %448 : vector<1x14x16xf32> to vector<14x16xf32>
    %c7_377 = arith.constant 7 : index
    %c0_378 = arith.constant 0 : index
    %c0_379 = arith.constant 0 : index
    %450 = vector.load %arg12[%c7_377, %c0_378, %c0_379] : memref<16x16x16xf32, #tpu.memory_space<vmem>>, vector<1x14x16xf32>
    %451 = vector.shape_cast %450 : vector<1x14x16xf32> to vector<14x16xf32>
    %c7_380 = arith.constant 7 : index
    %c1_381 = arith.constant 1 : index
    %c0_382 = arith.constant 0 : index
    %452 = vector.load %arg12[%c7_380, %c1_381, %c0_382] : memref<16x16x16xf32, #tpu.memory_space<vmem>>, vector<1x14x16xf32>
    %453 = vector.shape_cast %452 : vector<1x14x16xf32> to vector<14x16xf32>
    %c7_383 = arith.constant 7 : index
    %c2_384 = arith.constant 2 : index
    %c0_385 = arith.constant 0 : index
    %454 = vector.load %arg12[%c7_383, %c2_384, %c0_385] : memref<16x16x16xf32, #tpu.memory_space<vmem>>, vector<1x14x16xf32>
    %455 = vector.shape_cast %454 : vector<1x14x16xf32> to vector<14x16xf32>
    %c8_386 = arith.constant 8 : index
    %c0_387 = arith.constant 0 : index
    %c0_388 = arith.constant 0 : index
    %456 = vector.load %arg12[%c8_386, %c0_387, %c0_388] : memref<16x16x16xf32, #tpu.memory_space<vmem>>, vector<1x14x16xf32>
    %457 = vector.shape_cast %456 : vector<1x14x16xf32> to vector<14x16xf32>
    %c8_389 = arith.constant 8 : index
    %c1_390 = arith.constant 1 : index
    %c0_391 = arith.constant 0 : index
    %458 = vector.load %arg12[%c8_389, %c1_390, %c0_391] : memref<16x16x16xf32, #tpu.memory_space<vmem>>, vector<1x14x16xf32>
    %459 = vector.shape_cast %458 : vector<1x14x16xf32> to vector<14x16xf32>
    %c8_392 = arith.constant 8 : index
    %c2_393 = arith.constant 2 : index
    %c0_394 = arith.constant 0 : index
    %460 = vector.load %arg12[%c8_392, %c2_393, %c0_394] : memref<16x16x16xf32, #tpu.memory_space<vmem>>, vector<1x14x16xf32>
    %461 = vector.shape_cast %460 : vector<1x14x16xf32> to vector<14x16xf32>
    %462 = tpu.concatenate %445, %447, %449, %451, %453, %455, %457, %459, %461 in 1 : vector<14x16xf32>, vector<14x16xf32>, vector<14x16xf32>, vector<14x16xf32>, vector<14x16xf32>, vector<14x16xf32>, vector<14x16xf32>, vector<14x16xf32>, vector<14x16xf32> -> vector<14x144xf32>
    %cst_395 = arith.constant dense<0.000000e+00> : vector<14x32xf32>
    %463 = tpu.matmul %462, %302, %cst_395 {dimension_numbers = #tpu.dot_dimension_numbers<[1], [0], [0], [1], [0, 0, 1, 1], [], []>} : vector<14x144xf32>, vector<144x32xf32>, vector<14x32xf32> -> vector<14x32xf32>
    %c7_396 = arith.constant 7 : index
    %c0_397 = arith.constant 0 : index
    %c0_398 = arith.constant 0 : index
    %464 = vector.load %arg12[%c7_396, %c0_397, %c0_398] : memref<16x16x16xf32, #tpu.memory_space<vmem>>, vector<1x14x16xf32>
    %465 = vector.shape_cast %464 : vector<1x14x16xf32> to vector<14x16xf32>
    %c7_399 = arith.constant 7 : index
    %c1_400 = arith.constant 1 : index
    %c0_401 = arith.constant 0 : index
    %466 = vector.load %arg12[%c7_399, %c1_400, %c0_401] : memref<16x16x16xf32, #tpu.memory_space<vmem>>, vector<1x14x16xf32>
    %467 = vector.shape_cast %466 : vector<1x14x16xf32> to vector<14x16xf32>
    %c7_402 = arith.constant 7 : index
    %c2_403 = arith.constant 2 : index
    %c0_404 = arith.constant 0 : index
    %468 = vector.load %arg12[%c7_402, %c2_403, %c0_404] : memref<16x16x16xf32, #tpu.memory_space<vmem>>, vector<1x14x16xf32>
    %469 = vector.shape_cast %468 : vector<1x14x16xf32> to vector<14x16xf32>
    %c8_405 = arith.constant 8 : index
    %c0_406 = arith.constant 0 : index
    %c0_407 = arith.constant 0 : index
    %470 = vector.load %arg12[%c8_405, %c0_406, %c0_407] : memref<16x16x16xf32, #tpu.memory_space<vmem>>, vector<1x14x16xf32>
    %471 = vector.shape_cast %470 : vector<1x14x16xf32> to vector<14x16xf32>
    %c8_408 = arith.constant 8 : index
    %c1_409 = arith.constant 1 : index
    %c0_410 = arith.constant 0 : index
    %472 = vector.load %arg12[%c8_408, %c1_409, %c0_410] : memref<16x16x16xf32, #tpu.memory_space<vmem>>, vector<1x14x16xf32>
    %473 = vector.shape_cast %472 : vector<1x14x16xf32> to vector<14x16xf32>
    %c8_411 = arith.constant 8 : index
    %c2_412 = arith.constant 2 : index
    %c0_413 = arith.constant 0 : index
    %474 = vector.load %arg12[%c8_411, %c2_412, %c0_413] : memref<16x16x16xf32, #tpu.memory_space<vmem>>, vector<1x14x16xf32>
    %475 = vector.shape_cast %474 : vector<1x14x16xf32> to vector<14x16xf32>
    %c9_414 = arith.constant 9 : index
    %c0_415 = arith.constant 0 : index
    %c0_416 = arith.constant 0 : index
    %476 = vector.load %arg12[%c9_414, %c0_415, %c0_416] : memref<16x16x16xf32, #tpu.memory_space<vmem>>, vector<1x14x16xf32>
    %477 = vector.shape_cast %476 : vector<1x14x16xf32> to vector<14x16xf32>
    %c9_417 = arith.constant 9 : index
    %c1_418 = arith.constant 1 : index
    %c0_419 = arith.constant 0 : index
    %478 = vector.load %arg12[%c9_417, %c1_418, %c0_419] : memref<16x16x16xf32, #tpu.memory_space<vmem>>, vector<1x14x16xf32>
    %479 = vector.shape_cast %478 : vector<1x14x16xf32> to vector<14x16xf32>
    %c9_420 = arith.constant 9 : index
    %c2_421 = arith.constant 2 : index
    %c0_422 = arith.constant 0 : index
    %480 = vector.load %arg12[%c9_420, %c2_421, %c0_422] : memref<16x16x16xf32, #tpu.memory_space<vmem>>, vector<1x14x16xf32>
    %481 = vector.shape_cast %480 : vector<1x14x16xf32> to vector<14x16xf32>
    %482 = tpu.concatenate %465, %467, %469, %471, %473, %475, %477, %479, %481 in 1 : vector<14x16xf32>, vector<14x16xf32>, vector<14x16xf32>, vector<14x16xf32>, vector<14x16xf32>, vector<14x16xf32>, vector<14x16xf32>, vector<14x16xf32>, vector<14x16xf32> -> vector<14x144xf32>
    %cst_423 = arith.constant dense<0.000000e+00> : vector<14x32xf32>
    %483 = tpu.matmul %482, %302, %cst_423 {dimension_numbers = #tpu.dot_dimension_numbers<[1], [0], [0], [1], [0, 0, 1, 1], [], []>} : vector<14x144xf32>, vector<144x32xf32>, vector<14x32xf32> -> vector<14x32xf32>
    %484 = arith.maximumf %463, %483 : vector<14x32xf32>
    %c0_424 = arith.constant 0 : index
    %c0_425 = arith.constant 0 : index
    %485 = vector.load %arg5[%c0_424, %c0_425] : memref<1x32xf32, #tpu.memory_space<vmem>>, vector<1x32xf32>
    %486 = vector.broadcast %485 : vector<1x32xf32> to vector<14x32xf32>
    %487 = arith.addf %484, %486 : vector<14x32xf32>
    %c3_426 = arith.constant 3 : index
    %c0_427 = arith.constant 0 : index
    %c0_428 = arith.constant 0 : index
    %488 = vector.load %arg13[%c3_426, %c0_427, %c0_428] : memref<7x14x32xf32, #tpu.memory_space<vmem>>, vector<1x14x32xf32>
    %489 = vector.shape_cast %488 : vector<1x14x32xf32> to vector<14x32xf32>
    %490 = vector.shape_cast %487 : vector<14x32xf32> to vector<1x14x32xf32>
    tpu.vector_store %arg13[%c3_426, %c0_427, %c0_428], %490 {strides = array<i32>} : memref<7x14x32xf32, #tpu.memory_space<vmem>>, vector<1x14x32xf32>,
    %c8_429 = arith.constant 8 : index
    %c0_430 = arith.constant 0 : index
    %c0_431 = arith.constant 0 : index
    %491 = vector.load %arg12[%c8_429, %c0_430, %c0_431] : memref<16x16x16xf32, #tpu.memory_space<vmem>>, vector<1x14x16xf32>
    %492 = vector.shape_cast %491 : vector<1x14x16xf32> to vector<14x16xf32>
    %c8_432 = arith.constant 8 : index
    %c1_433 = arith.constant 1 : index
    %c0_434 = arith.constant 0 : index
    %493 = vector.load %arg12[%c8_432, %c1_433, %c0_434] : memref<16x16x16xf32, #tpu.memory_space<vmem>>, vector<1x14x16xf32>
    %494 = vector.shape_cast %493 : vector<1x14x16xf32> to vector<14x16xf32>
    %c8_435 = arith.constant 8 : index
    %c2_436 = arith.constant 2 : index
    %c0_437 = arith.constant 0 : index
    %495 = vector.load %arg12[%c8_435, %c2_436, %c0_437] : memref<16x16x16xf32, #tpu.memory_space<vmem>>, vector<1x14x16xf32>
    %496 = vector.shape_cast %495 : vector<1x14x16xf32> to vector<14x16xf32>
    %c9_438 = arith.constant 9 : index
    %c0_439 = arith.constant 0 : index
    %c0_440 = arith.constant 0 : index
    %497 = vector.load %arg12[%c9_438, %c0_439, %c0_440] : memref<16x16x16xf32, #tpu.memory_space<vmem>>, vector<1x14x16xf32>
    %498 = vector.shape_cast %497 : vector<1x14x16xf32> to vector<14x16xf32>
    %c9_441 = arith.constant 9 : index
    %c1_442 = arith.constant 1 : index
    %c0_443 = arith.constant 0 : index
    %499 = vector.load %arg12[%c9_441, %c1_442, %c0_443] : memref<16x16x16xf32, #tpu.memory_space<vmem>>, vector<1x14x16xf32>
    %500 = vector.shape_cast %499 : vector<1x14x16xf32> to vector<14x16xf32>
    %c9_444 = arith.constant 9 : index
    %c2_445 = arith.constant 2 : index
    %c0_446 = arith.constant 0 : index
    %501 = vector.load %arg12[%c9_444, %c2_445, %c0_446] : memref<16x16x16xf32, #tpu.memory_space<vmem>>, vector<1x14x16xf32>
    %502 = vector.shape_cast %501 : vector<1x14x16xf32> to vector<14x16xf32>
    %c10_447 = arith.constant 10 : index
    %c0_448 = arith.constant 0 : index
    %c0_449 = arith.constant 0 : index
    %503 = vector.load %arg12[%c10_447, %c0_448, %c0_449] : memref<16x16x16xf32, #tpu.memory_space<vmem>>, vector<1x14x16xf32>
    %504 = vector.shape_cast %503 : vector<1x14x16xf32> to vector<14x16xf32>
    %c10_450 = arith.constant 10 : index
    %c1_451 = arith.constant 1 : index
    %c0_452 = arith.constant 0 : index
    %505 = vector.load %arg12[%c10_450, %c1_451, %c0_452] : memref<16x16x16xf32, #tpu.memory_space<vmem>>, vector<1x14x16xf32>
    %506 = vector.shape_cast %505 : vector<1x14x16xf32> to vector<14x16xf32>
    %c10_453 = arith.constant 10 : index
    %c2_454 = arith.constant 2 : index
    %c0_455 = arith.constant 0 : index
    %507 = vector.load %arg12[%c10_453, %c2_454, %c0_455] : memref<16x16x16xf32, #tpu.memory_space<vmem>>, vector<1x14x16xf32>
    %508 = vector.shape_cast %507 : vector<1x14x16xf32> to vector<14x16xf32>
    %509 = tpu.concatenate %492, %494, %496, %498, %500, %502, %504, %506, %508 in 1 : vector<14x16xf32>, vector<14x16xf32>, vector<14x16xf32>, vector<14x16xf32>, vector<14x16xf32>, vector<14x16xf32>, vector<14x16xf32>, vector<14x16xf32>, vector<14x16xf32> -> vector<14x144xf32>
    %cst_456 = arith.constant dense<0.000000e+00> : vector<14x32xf32>
    %510 = tpu.matmul %509, %302, %cst_456 {dimension_numbers = #tpu.dot_dimension_numbers<[1], [0], [0], [1], [0, 0, 1, 1], [], []>} : vector<14x144xf32>, vector<144x32xf32>, vector<14x32xf32> -> vector<14x32xf32>
    %c9_457 = arith.constant 9 : index
    %c0_458 = arith.constant 0 : index
    %c0_459 = arith.constant 0 : index
    %511 = vector.load %arg12[%c9_457, %c0_458, %c0_459] : memref<16x16x16xf32, #tpu.memory_space<vmem>>, vector<1x14x16xf32>
    %512 = vector.shape_cast %511 : vector<1x14x16xf32> to vector<14x16xf32>
    %c9_460 = arith.constant 9 : index
    %c1_461 = arith.constant 1 : index
    %c0_462 = arith.constant 0 : index
    %513 = vector.load %arg12[%c9_460, %c1_461, %c0_462] : memref<16x16x16xf32, #tpu.memory_space<vmem>>, vector<1x14x16xf32>
    %514 = vector.shape_cast %513 : vector<1x14x16xf32> to vector<14x16xf32>
    %c9_463 = arith.constant 9 : index
    %c2_464 = arith.constant 2 : index
    %c0_465 = arith.constant 0 : index
    %515 = vector.load %arg12[%c9_463, %c2_464, %c0_465] : memref<16x16x16xf32, #tpu.memory_space<vmem>>, vector<1x14x16xf32>
    %516 = vector.shape_cast %515 : vector<1x14x16xf32> to vector<14x16xf32>
    %c10_466 = arith.constant 10 : index
    %c0_467 = arith.constant 0 : index
    %c0_468 = arith.constant 0 : index
    %517 = vector.load %arg12[%c10_466, %c0_467, %c0_468] : memref<16x16x16xf32, #tpu.memory_space<vmem>>, vector<1x14x16xf32>
    %518 = vector.shape_cast %517 : vector<1x14x16xf32> to vector<14x16xf32>
    %c10_469 = arith.constant 10 : index
    %c1_470 = arith.constant 1 : index
    %c0_471 = arith.constant 0 : index
    %519 = vector.load %arg12[%c10_469, %c1_470, %c0_471] : memref<16x16x16xf32, #tpu.memory_space<vmem>>, vector<1x14x16xf32>
    %520 = vector.shape_cast %519 : vector<1x14x16xf32> to vector<14x16xf32>
    %c10_472 = arith.constant 10 : index
    %c2_473 = arith.constant 2 : index
    %c0_474 = arith.constant 0 : index
    %521 = vector.load %arg12[%c10_472, %c2_473, %c0_474] : memref<16x16x16xf32, #tpu.memory_space<vmem>>, vector<1x14x16xf32>
    %522 = vector.shape_cast %521 : vector<1x14x16xf32> to vector<14x16xf32>
    %c11_475 = arith.constant 11 : index
    %c0_476 = arith.constant 0 : index
    %c0_477 = arith.constant 0 : index
    %523 = vector.load %arg12[%c11_475, %c0_476, %c0_477] : memref<16x16x16xf32, #tpu.memory_space<vmem>>, vector<1x14x16xf32>
    %524 = vector.shape_cast %523 : vector<1x14x16xf32> to vector<14x16xf32>
    %c11_478 = arith.constant 11 : index
    %c1_479 = arith.constant 1 : index
    %c0_480 = arith.constant 0 : index
    %525 = vector.load %arg12[%c11_478, %c1_479, %c0_480] : memref<16x16x16xf32, #tpu.memory_space<vmem>>, vector<1x14x16xf32>
    %526 = vector.shape_cast %525 : vector<1x14x16xf32> to vector<14x16xf32>
    %c11_481 = arith.constant 11 : index
    %c2_482 = arith.constant 2 : index
    %c0_483 = arith.constant 0 : index
    %527 = vector.load %arg12[%c11_481, %c2_482, %c0_483] : memref<16x16x16xf32, #tpu.memory_space<vmem>>, vector<1x14x16xf32>
    %528 = vector.shape_cast %527 : vector<1x14x16xf32> to vector<14x16xf32>
    %529 = tpu.concatenate %512, %514, %516, %518, %520, %522, %524, %526, %528 in 1 : vector<14x16xf32>, vector<14x16xf32>, vector<14x16xf32>, vector<14x16xf32>, vector<14x16xf32>, vector<14x16xf32>, vector<14x16xf32>, vector<14x16xf32>, vector<14x16xf32> -> vector<14x144xf32>
    %cst_484 = arith.constant dense<0.000000e+00> : vector<14x32xf32>
    %530 = tpu.matmul %529, %302, %cst_484 {dimension_numbers = #tpu.dot_dimension_numbers<[1], [0], [0], [1], [0, 0, 1, 1], [], []>} : vector<14x144xf32>, vector<144x32xf32>, vector<14x32xf32> -> vector<14x32xf32>
    %531 = arith.maximumf %510, %530 : vector<14x32xf32>
    %c0_485 = arith.constant 0 : index
    %c0_486 = arith.constant 0 : index
    %532 = vector.load %arg5[%c0_485, %c0_486] : memref<1x32xf32, #tpu.memory_space<vmem>>, vector<1x32xf32>
    %533 = vector.broadcast %532 : vector<1x32xf32> to vector<14x32xf32>
    %534 = arith.addf %531, %533 : vector<14x32xf32>
    %c4_487 = arith.constant 4 : index
    %c0_488 = arith.constant 0 : index
    %c0_489 = arith.constant 0 : index
    %535 = vector.load %arg13[%c4_487, %c0_488, %c0_489] : memref<7x14x32xf32, #tpu.memory_space<vmem>>, vector<1x14x32xf32>
    %536 = vector.shape_cast %535 : vector<1x14x32xf32> to vector<14x32xf32>
    %537 = vector.shape_cast %534 : vector<14x32xf32> to vector<1x14x32xf32>
    tpu.vector_store %arg13[%c4_487, %c0_488, %c0_489], %537 {strides = array<i32>} : memref<7x14x32xf32, #tpu.memory_space<vmem>>, vector<1x14x32xf32>,
    %c10_490 = arith.constant 10 : index
    %c0_491 = arith.constant 0 : index
    %c0_492 = arith.constant 0 : index
    %538 = vector.load %arg12[%c10_490, %c0_491, %c0_492] : memref<16x16x16xf32, #tpu.memory_space<vmem>>, vector<1x14x16xf32>
    %539 = vector.shape_cast %538 : vector<1x14x16xf32> to vector<14x16xf32>
    %c10_493 = arith.constant 10 : index
    %c1_494 = arith.constant 1 : index
    %c0_495 = arith.constant 0 : index
    %540 = vector.load %arg12[%c10_493, %c1_494, %c0_495] : memref<16x16x16xf32, #tpu.memory_space<vmem>>, vector<1x14x16xf32>
    %541 = vector.shape_cast %540 : vector<1x14x16xf32> to vector<14x16xf32>
    %c10_496 = arith.constant 10 : index
    %c2_497 = arith.constant 2 : index
    %c0_498 = arith.constant 0 : index
    %542 = vector.load %arg12[%c10_496, %c2_497, %c0_498] : memref<16x16x16xf32, #tpu.memory_space<vmem>>, vector<1x14x16xf32>
    %543 = vector.shape_cast %542 : vector<1x14x16xf32> to vector<14x16xf32>
    %c11_499 = arith.constant 11 : index
    %c0_500 = arith.constant 0 : index
    %c0_501 = arith.constant 0 : index
    %544 = vector.load %arg12[%c11_499, %c0_500, %c0_501] : memref<16x16x16xf32, #tpu.memory_space<vmem>>, vector<1x14x16xf32>
    %545 = vector.shape_cast %544 : vector<1x14x16xf32> to vector<14x16xf32>
    %c11_502 = arith.constant 11 : index
    %c1_503 = arith.constant 1 : index
    %c0_504 = arith.constant 0 : index
    %546 = vector.load %arg12[%c11_502, %c1_503, %c0_504] : memref<16x16x16xf32, #tpu.memory_space<vmem>>, vector<1x14x16xf32>
    %547 = vector.shape_cast %546 : vector<1x14x16xf32> to vector<14x16xf32>
    %c11_505 = arith.constant 11 : index
    %c2_506 = arith.constant 2 : index
    %c0_507 = arith.constant 0 : index
    %548 = vector.load %arg12[%c11_505, %c2_506, %c0_507] : memref<16x16x16xf32, #tpu.memory_space<vmem>>, vector<1x14x16xf32>
    %549 = vector.shape_cast %548 : vector<1x14x16xf32> to vector<14x16xf32>
    %c12_508 = arith.constant 12 : index
    %c0_509 = arith.constant 0 : index
    %c0_510 = arith.constant 0 : index
    %550 = vector.load %arg12[%c12_508, %c0_509, %c0_510] : memref<16x16x16xf32, #tpu.memory_space<vmem>>, vector<1x14x16xf32>
    %551 = vector.shape_cast %550 : vector<1x14x16xf32> to vector<14x16xf32>
    %c12_511 = arith.constant 12 : index
    %c1_512 = arith.constant 1 : index
    %c0_513 = arith.constant 0 : index
    %552 = vector.load %arg12[%c12_511, %c1_512, %c0_513] : memref<16x16x16xf32, #tpu.memory_space<vmem>>, vector<1x14x16xf32>
    %553 = vector.shape_cast %552 : vector<1x14x16xf32> to vector<14x16xf32>
    %c12_514 = arith.constant 12 : index
    %c2_515 = arith.constant 2 : index
    %c0_516 = arith.constant 0 : index
    %554 = vector.load %arg12[%c12_514, %c2_515, %c0_516] : memref<16x16x16xf32, #tpu.memory_space<vmem>>, vector<1x14x16xf32>
    %555 = vector.shape_cast %554 : vector<1x14x16xf32> to vector<14x16xf32>
    %556 = tpu.concatenate %539, %541, %543, %545, %547, %549, %551, %553, %555 in 1 : vector<14x16xf32>, vector<14x16xf32>, vector<14x16xf32>, vector<14x16xf32>, vector<14x16xf32>, vector<14x16xf32>, vector<14x16xf32>, vector<14x16xf32>, vector<14x16xf32> -> vector<14x144xf32>
    %cst_517 = arith.constant dense<0.000000e+00> : vector<14x32xf32>
    %557 = tpu.matmul %556, %302, %cst_517 {dimension_numbers = #tpu.dot_dimension_numbers<[1], [0], [0], [1], [0, 0, 1, 1], [], []>} : vector<14x144xf32>, vector<144x32xf32>, vector<14x32xf32> -> vector<14x32xf32>
    %c11_518 = arith.constant 11 : index
    %c0_519 = arith.constant 0 : index
    %c0_520 = arith.constant 0 : index
    %558 = vector.load %arg12[%c11_518, %c0_519, %c0_520] : memref<16x16x16xf32, #tpu.memory_space<vmem>>, vector<1x14x16xf32>
    %559 = vector.shape_cast %558 : vector<1x14x16xf32> to vector<14x16xf32>
    %c11_521 = arith.constant 11 : index
    %c1_522 = arith.constant 1 : index
    %c0_523 = arith.constant 0 : index
    %560 = vector.load %arg12[%c11_521, %c1_522, %c0_523] : memref<16x16x16xf32, #tpu.memory_space<vmem>>, vector<1x14x16xf32>
    %561 = vector.shape_cast %560 : vector<1x14x16xf32> to vector<14x16xf32>
    %c11_524 = arith.constant 11 : index
    %c2_525 = arith.constant 2 : index
    %c0_526 = arith.constant 0 : index
    %562 = vector.load %arg12[%c11_524, %c2_525, %c0_526] : memref<16x16x16xf32, #tpu.memory_space<vmem>>, vector<1x14x16xf32>
    %563 = vector.shape_cast %562 : vector<1x14x16xf32> to vector<14x16xf32>
    %c12_527 = arith.constant 12 : index
    %c0_528 = arith.constant 0 : index
    %c0_529 = arith.constant 0 : index
    %564 = vector.load %arg12[%c12_527, %c0_528, %c0_529] : memref<16x16x16xf32, #tpu.memory_space<vmem>>, vector<1x14x16xf32>
    %565 = vector.shape_cast %564 : vector<1x14x16xf32> to vector<14x16xf32>
    %c12_530 = arith.constant 12 : index
    %c1_531 = arith.constant 1 : index
    %c0_532 = arith.constant 0 : index
    %566 = vector.load %arg12[%c12_530, %c1_531, %c0_532] : memref<16x16x16xf32, #tpu.memory_space<vmem>>, vector<1x14x16xf32>
    %567 = vector.shape_cast %566 : vector<1x14x16xf32> to vector<14x16xf32>
    %c12_533 = arith.constant 12 : index
    %c2_534 = arith.constant 2 : index
    %c0_535 = arith.constant 0 : index
    %568 = vector.load %arg12[%c12_533, %c2_534, %c0_535] : memref<16x16x16xf32, #tpu.memory_space<vmem>>, vector<1x14x16xf32>
    %569 = vector.shape_cast %568 : vector<1x14x16xf32> to vector<14x16xf32>
    %c13_536 = arith.constant 13 : index
    %c0_537 = arith.constant 0 : index
    %c0_538 = arith.constant 0 : index
    %570 = vector.load %arg12[%c13_536, %c0_537, %c0_538] : memref<16x16x16xf32, #tpu.memory_space<vmem>>, vector<1x14x16xf32>
    %571 = vector.shape_cast %570 : vector<1x14x16xf32> to vector<14x16xf32>
    %c13_539 = arith.constant 13 : index
    %c1_540 = arith.constant 1 : index
    %c0_541 = arith.constant 0 : index
    %572 = vector.load %arg12[%c13_539, %c1_540, %c0_541] : memref<16x16x16xf32, #tpu.memory_space<vmem>>, vector<1x14x16xf32>
    %573 = vector.shape_cast %572 : vector<1x14x16xf32> to vector<14x16xf32>
    %c13_542 = arith.constant 13 : index
    %c2_543 = arith.constant 2 : index
    %c0_544 = arith.constant 0 : index
    %574 = vector.load %arg12[%c13_542, %c2_543, %c0_544] : memref<16x16x16xf32, #tpu.memory_space<vmem>>, vector<1x14x16xf32>
    %575 = vector.shape_cast %574 : vector<1x14x16xf32> to vector<14x16xf32>
    %576 = tpu.concatenate %559, %561, %563, %565, %567, %569, %571, %573, %575 in 1 : vector<14x16xf32>, vector<14x16xf32>, vector<14x16xf32>, vector<14x16xf32>, vector<14x16xf32>, vector<14x16xf32>, vector<14x16xf32>, vector<14x16xf32>, vector<14x16xf32> -> vector<14x144xf32>
    %cst_545 = arith.constant dense<0.000000e+00> : vector<14x32xf32>
    %577 = tpu.matmul %576, %302, %cst_545 {dimension_numbers = #tpu.dot_dimension_numbers<[1], [0], [0], [1], [0, 0, 1, 1], [], []>} : vector<14x144xf32>, vector<144x32xf32>, vector<14x32xf32> -> vector<14x32xf32>
    %578 = arith.maximumf %557, %577 : vector<14x32xf32>
    %c0_546 = arith.constant 0 : index
    %c0_547 = arith.constant 0 : index
    %579 = vector.load %arg5[%c0_546, %c0_547] : memref<1x32xf32, #tpu.memory_space<vmem>>, vector<1x32xf32>
    %580 = vector.broadcast %579 : vector<1x32xf32> to vector<14x32xf32>
    %581 = arith.addf %578, %580 : vector<14x32xf32>
    %c5_548 = arith.constant 5 : index
    %c0_549 = arith.constant 0 : index
    %c0_550 = arith.constant 0 : index
    %582 = vector.load %arg13[%c5_548, %c0_549, %c0_550] : memref<7x14x32xf32, #tpu.memory_space<vmem>>, vector<1x14x32xf32>
    %583 = vector.shape_cast %582 : vector<1x14x32xf32> to vector<14x32xf32>
    %584 = vector.shape_cast %581 : vector<14x32xf32> to vector<1x14x32xf32>
    tpu.vector_store %arg13[%c5_548, %c0_549, %c0_550], %584 {strides = array<i32>} : memref<7x14x32xf32, #tpu.memory_space<vmem>>, vector<1x14x32xf32>,
    %c12_551 = arith.constant 12 : index
    %c0_552 = arith.constant 0 : index
    %c0_553 = arith.constant 0 : index
    %585 = vector.load %arg12[%c12_551, %c0_552, %c0_553] : memref<16x16x16xf32, #tpu.memory_space<vmem>>, vector<1x14x16xf32>
    %586 = vector.shape_cast %585 : vector<1x14x16xf32> to vector<14x16xf32>
    %c12_554 = arith.constant 12 : index
    %c1_555 = arith.constant 1 : index
    %c0_556 = arith.constant 0 : index
    %587 = vector.load %arg12[%c12_554, %c1_555, %c0_556] : memref<16x16x16xf32, #tpu.memory_space<vmem>>, vector<1x14x16xf32>
    %588 = vector.shape_cast %587 : vector<1x14x16xf32> to vector<14x16xf32>
    %c12_557 = arith.constant 12 : index
    %c2_558 = arith.constant 2 : index
    %c0_559 = arith.constant 0 : index
    %589 = vector.load %arg12[%c12_557, %c2_558, %c0_559] : memref<16x16x16xf32, #tpu.memory_space<vmem>>, vector<1x14x16xf32>
    %590 = vector.shape_cast %589 : vector<1x14x16xf32> to vector<14x16xf32>
    %c13_560 = arith.constant 13 : index
    %c0_561 = arith.constant 0 : index
    %c0_562 = arith.constant 0 : index
    %591 = vector.load %arg12[%c13_560, %c0_561, %c0_562] : memref<16x16x16xf32, #tpu.memory_space<vmem>>, vector<1x14x16xf32>
    %592 = vector.shape_cast %591 : vector<1x14x16xf32> to vector<14x16xf32>
    %c13_563 = arith.constant 13 : index
    %c1_564 = arith.constant 1 : index
    %c0_565 = arith.constant 0 : index
    %593 = vector.load %arg12[%c13_563, %c1_564, %c0_565] : memref<16x16x16xf32, #tpu.memory_space<vmem>>, vector<1x14x16xf32>
    %594 = vector.shape_cast %593 : vector<1x14x16xf32> to vector<14x16xf32>
    %c13_566 = arith.constant 13 : index
    %c2_567 = arith.constant 2 : index
    %c0_568 = arith.constant 0 : index
    %595 = vector.load %arg12[%c13_566, %c2_567, %c0_568] : memref<16x16x16xf32, #tpu.memory_space<vmem>>, vector<1x14x16xf32>
    %596 = vector.shape_cast %595 : vector<1x14x16xf32> to vector<14x16xf32>
    %c14_569 = arith.constant 14 : index
    %c0_570 = arith.constant 0 : index
    %c0_571 = arith.constant 0 : index
    %597 = vector.load %arg12[%c14_569, %c0_570, %c0_571] : memref<16x16x16xf32, #tpu.memory_space<vmem>>, vector<1x14x16xf32>
    %598 = vector.shape_cast %597 : vector<1x14x16xf32> to vector<14x16xf32>
    %c14_572 = arith.constant 14 : index
    %c1_573 = arith.constant 1 : index
    %c0_574 = arith.constant 0 : index
    %599 = vector.load %arg12[%c14_572, %c1_573, %c0_574] : memref<16x16x16xf32, #tpu.memory_space<vmem>>, vector<1x14x16xf32>
    %600 = vector.shape_cast %599 : vector<1x14x16xf32> to vector<14x16xf32>
    %c14_575 = arith.constant 14 : index
    %c2_576 = arith.constant 2 : index
    %c0_577 = arith.constant 0 : index
    %601 = vector.load %arg12[%c14_575, %c2_576, %c0_577] : memref<16x16x16xf32, #tpu.memory_space<vmem>>, vector<1x14x16xf32>
    %602 = vector.shape_cast %601 : vector<1x14x16xf32> to vector<14x16xf32>
    %603 = tpu.concatenate %586, %588, %590, %592, %594, %596, %598, %600, %602 in 1 : vector<14x16xf32>, vector<14x16xf32>, vector<14x16xf32>, vector<14x16xf32>, vector<14x16xf32>, vector<14x16xf32>, vector<14x16xf32>, vector<14x16xf32>, vector<14x16xf32> -> vector<14x144xf32>
    %cst_578 = arith.constant dense<0.000000e+00> : vector<14x32xf32>
    %604 = tpu.matmul %603, %302, %cst_578 {dimension_numbers = #tpu.dot_dimension_numbers<[1], [0], [0], [1], [0, 0, 1, 1], [], []>} : vector<14x144xf32>, vector<144x32xf32>, vector<14x32xf32> -> vector<14x32xf32>
    %c13_579 = arith.constant 13 : index
    %c0_580 = arith.constant 0 : index
    %c0_581 = arith.constant 0 : index
    %605 = vector.load %arg12[%c13_579, %c0_580, %c0_581] : memref<16x16x16xf32, #tpu.memory_space<vmem>>, vector<1x14x16xf32>
    %606 = vector.shape_cast %605 : vector<1x14x16xf32> to vector<14x16xf32>
    %c13_582 = arith.constant 13 : index
    %c1_583 = arith.constant 1 : index
    %c0_584 = arith.constant 0 : index
    %607 = vector.load %arg12[%c13_582, %c1_583, %c0_584] : memref<16x16x16xf32, #tpu.memory_space<vmem>>, vector<1x14x16xf32>
    %608 = vector.shape_cast %607 : vector<1x14x16xf32> to vector<14x16xf32>
    %c13_585 = arith.constant 13 : index
    %c2_586 = arith.constant 2 : index
    %c0_587 = arith.constant 0 : index
    %609 = vector.load %arg12[%c13_585, %c2_586, %c0_587] : memref<16x16x16xf32, #tpu.memory_space<vmem>>, vector<1x14x16xf32>
    %610 = vector.shape_cast %609 : vector<1x14x16xf32> to vector<14x16xf32>
    %c14_588 = arith.constant 14 : index
    %c0_589 = arith.constant 0 : index
    %c0_590 = arith.constant 0 : index
    %611 = vector.load %arg12[%c14_588, %c0_589, %c0_590] : memref<16x16x16xf32, #tpu.memory_space<vmem>>, vector<1x14x16xf32>
    %612 = vector.shape_cast %611 : vector<1x14x16xf32> to vector<14x16xf32>
    %c14_591 = arith.constant 14 : index
    %c1_592 = arith.constant 1 : index
    %c0_593 = arith.constant 0 : index
    %613 = vector.load %arg12[%c14_591, %c1_592, %c0_593] : memref<16x16x16xf32, #tpu.memory_space<vmem>>, vector<1x14x16xf32>
    %614 = vector.shape_cast %613 : vector<1x14x16xf32> to vector<14x16xf32>
    %c14_594 = arith.constant 14 : index
    %c2_595 = arith.constant 2 : index
    %c0_596 = arith.constant 0 : index
    %615 = vector.load %arg12[%c14_594, %c2_595, %c0_596] : memref<16x16x16xf32, #tpu.memory_space<vmem>>, vector<1x14x16xf32>
    %616 = vector.shape_cast %615 : vector<1x14x16xf32> to vector<14x16xf32>
    %c15_597 = arith.constant 15 : index
    %c0_598 = arith.constant 0 : index
    %c0_599 = arith.constant 0 : index
    %617 = vector.load %arg12[%c15_597, %c0_598, %c0_599] : memref<16x16x16xf32, #tpu.memory_space<vmem>>, vector<1x14x16xf32>
    %618 = vector.shape_cast %617 : vector<1x14x16xf32> to vector<14x16xf32>
    %c15_600 = arith.constant 15 : index
    %c1_601 = arith.constant 1 : index
    %c0_602 = arith.constant 0 : index
    %619 = vector.load %arg12[%c15_600, %c1_601, %c0_602] : memref<16x16x16xf32, #tpu.memory_space<vmem>>, vector<1x14x16xf32>
    %620 = vector.shape_cast %619 : vector<1x14x16xf32> to vector<14x16xf32>
    %c15_603 = arith.constant 15 : index
    %c2_604 = arith.constant 2 : index
    %c0_605 = arith.constant 0 : index
    %621 = vector.load %arg12[%c15_603, %c2_604, %c0_605] : memref<16x16x16xf32, #tpu.memory_space<vmem>>, vector<1x14x16xf32>
    %622 = vector.shape_cast %621 : vector<1x14x16xf32> to vector<14x16xf32>
    %623 = tpu.concatenate %606, %608, %610, %612, %614, %616, %618, %620, %622 in 1 : vector<14x16xf32>, vector<14x16xf32>, vector<14x16xf32>, vector<14x16xf32>, vector<14x16xf32>, vector<14x16xf32>, vector<14x16xf32>, vector<14x16xf32>, vector<14x16xf32> -> vector<14x144xf32>
    %cst_606 = arith.constant dense<0.000000e+00> : vector<14x32xf32>
    %624 = tpu.matmul %623, %302, %cst_606 {dimension_numbers = #tpu.dot_dimension_numbers<[1], [0], [0], [1], [0, 0, 1, 1], [], []>} : vector<14x144xf32>, vector<144x32xf32>, vector<14x32xf32> -> vector<14x32xf32>
    %625 = arith.maximumf %604, %624 : vector<14x32xf32>
    %c0_607 = arith.constant 0 : index
    %c0_608 = arith.constant 0 : index
    %626 = vector.load %arg5[%c0_607, %c0_608] : memref<1x32xf32, #tpu.memory_space<vmem>>, vector<1x32xf32>
    %627 = vector.broadcast %626 : vector<1x32xf32> to vector<14x32xf32>
    %628 = arith.addf %625, %627 : vector<14x32xf32>
    %c6_609 = arith.constant 6 : index
    %c0_610 = arith.constant 0 : index
    %c0_611 = arith.constant 0 : index
    %629 = vector.load %arg13[%c6_609, %c0_610, %c0_611] : memref<7x14x32xf32, #tpu.memory_space<vmem>>, vector<1x14x32xf32>
    %630 = vector.shape_cast %629 : vector<1x14x32xf32> to vector<14x32xf32>
    %631 = vector.shape_cast %628 : vector<14x32xf32> to vector<1x14x32xf32>
    tpu.vector_store %arg13[%c6_609, %c0_610, %c0_611], %631 {strides = array<i32>} : memref<7x14x32xf32, #tpu.memory_space<vmem>>, vector<1x14x32xf32>,
    %c0_612 = arith.constant 0 : index
    %c0_613 = arith.constant 0 : index
    %c0_614 = arith.constant 0 : index
    %632 = vector.load %arg13[%c0_612, %c0_613, %c0_614] : memref<7x14x32xf32, #tpu.memory_space<vmem>>, vector<7x1x32xf32>
    %633 = vector.shape_cast %632 : vector<7x1x32xf32> to vector<7x32xf32>
    %c0_615 = arith.constant 0 : index
    %c1_616 = arith.constant 1 : index
    %c0_617 = arith.constant 0 : index
    %634 = vector.load %arg13[%c0_615, %c1_616, %c0_617] : memref<7x14x32xf32, #tpu.memory_space<vmem>>, vector<7x1x32xf32>
    %635 = vector.shape_cast %634 : vector<7x1x32xf32> to vector<7x32xf32>
    %636 = arith.maximumf %633, %635 : vector<7x32xf32>
    %c0_618 = arith.constant 0 : index
    %c0_619 = arith.constant 0 : index
    %637 = vector.load %arg14[%c0_618, %c0_619] : memref<7x224xf32, #tpu.memory_space<vmem>>, vector<7x32xf32>
    tpu.vector_store %arg14[%c0_618, %c0_619], %636 {strides = array<i32>} : memref<7x224xf32, #tpu.memory_space<vmem>>, vector<7x32xf32>,
    %c0_620 = arith.constant 0 : index
    %c2_621 = arith.constant 2 : index
    %c0_622 = arith.constant 0 : index
    %638 = vector.load %arg13[%c0_620, %c2_621, %c0_622] : memref<7x14x32xf32, #tpu.memory_space<vmem>>, vector<7x1x32xf32>
    %639 = vector.shape_cast %638 : vector<7x1x32xf32> to vector<7x32xf32>
    %c0_623 = arith.constant 0 : index
    %c3_624 = arith.constant 3 : index
    %c0_625 = arith.constant 0 : index
    %640 = vector.load %arg13[%c0_623, %c3_624, %c0_625] : memref<7x14x32xf32, #tpu.memory_space<vmem>>, vector<7x1x32xf32>
    %641 = vector.shape_cast %640 : vector<7x1x32xf32> to vector<7x32xf32>
    %642 = arith.maximumf %639, %641 : vector<7x32xf32>
    %c0_626 = arith.constant 0 : index
    %c32 = arith.constant 32 : index
    %643 = vector.load %arg14[%c0_626, %c32] : memref<7x224xf32, #tpu.memory_space<vmem>>, vector<7x32xf32>
    tpu.vector_store %arg14[%c0_626, %c32], %642 {strides = array<i32>} : memref<7x224xf32, #tpu.memory_space<vmem>>, vector<7x32xf32>,
    %c0_627 = arith.constant 0 : index
    %c4_628 = arith.constant 4 : index
    %c0_629 = arith.constant 0 : index
    %644 = vector.load %arg13[%c0_627, %c4_628, %c0_629] : memref<7x14x32xf32, #tpu.memory_space<vmem>>, vector<7x1x32xf32>
    %645 = vector.shape_cast %644 : vector<7x1x32xf32> to vector<7x32xf32>
    %c0_630 = arith.constant 0 : index
    %c5_631 = arith.constant 5 : index
    %c0_632 = arith.constant 0 : index
    %646 = vector.load %arg13[%c0_630, %c5_631, %c0_632] : memref<7x14x32xf32, #tpu.memory_space<vmem>>, vector<7x1x32xf32>
    %647 = vector.shape_cast %646 : vector<7x1x32xf32> to vector<7x32xf32>
    %648 = arith.maximumf %645, %647 : vector<7x32xf32>
    %c0_633 = arith.constant 0 : index
    %c64 = arith.constant 64 : index
    %649 = vector.load %arg14[%c0_633, %c64] : memref<7x224xf32, #tpu.memory_space<vmem>>, vector<7x32xf32>
    tpu.vector_store %arg14[%c0_633, %c64], %648 {strides = array<i32>} : memref<7x224xf32, #tpu.memory_space<vmem>>, vector<7x32xf32>,
    %c0_634 = arith.constant 0 : index
    %c6_635 = arith.constant 6 : index
    %c0_636 = arith.constant 0 : index
    %650 = vector.load %arg13[%c0_634, %c6_635, %c0_636] : memref<7x14x32xf32, #tpu.memory_space<vmem>>, vector<7x1x32xf32>
    %651 = vector.shape_cast %650 : vector<7x1x32xf32> to vector<7x32xf32>
    %c0_637 = arith.constant 0 : index
    %c7_638 = arith.constant 7 : index
    %c0_639 = arith.constant 0 : index
    %652 = vector.load %arg13[%c0_637, %c7_638, %c0_639] : memref<7x14x32xf32, #tpu.memory_space<vmem>>, vector<7x1x32xf32>
    %653 = vector.shape_cast %652 : vector<7x1x32xf32> to vector<7x32xf32>
    %654 = arith.maximumf %651, %653 : vector<7x32xf32>
    %c0_640 = arith.constant 0 : index
    %c96 = arith.constant 96 : index
    %655 = vector.load %arg14[%c0_640, %c96] : memref<7x224xf32, #tpu.memory_space<vmem>>, vector<7x32xf32>
    tpu.vector_store %arg14[%c0_640, %c96], %654 {strides = array<i32>} : memref<7x224xf32, #tpu.memory_space<vmem>>, vector<7x32xf32>,
    %c0_641 = arith.constant 0 : index
    %c8_642 = arith.constant 8 : index
    %c0_643 = arith.constant 0 : index
    %656 = vector.load %arg13[%c0_641, %c8_642, %c0_643] : memref<7x14x32xf32, #tpu.memory_space<vmem>>, vector<7x1x32xf32>
    %657 = vector.shape_cast %656 : vector<7x1x32xf32> to vector<7x32xf32>
    %c0_644 = arith.constant 0 : index
    %c9_645 = arith.constant 9 : index
    %c0_646 = arith.constant 0 : index
    %658 = vector.load %arg13[%c0_644, %c9_645, %c0_646] : memref<7x14x32xf32, #tpu.memory_space<vmem>>, vector<7x1x32xf32>
    %659 = vector.shape_cast %658 : vector<7x1x32xf32> to vector<7x32xf32>
    %660 = arith.maximumf %657, %659 : vector<7x32xf32>
    %c0_647 = arith.constant 0 : index
    %c128 = arith.constant 128 : index
    %661 = vector.load %arg14[%c0_647, %c128] : memref<7x224xf32, #tpu.memory_space<vmem>>, vector<7x32xf32>
    tpu.vector_store %arg14[%c0_647, %c128], %660 {strides = array<i32>} : memref<7x224xf32, #tpu.memory_space<vmem>>, vector<7x32xf32>,
    %c0_648 = arith.constant 0 : index
    %c10_649 = arith.constant 10 : index
    %c0_650 = arith.constant 0 : index
    %662 = vector.load %arg13[%c0_648, %c10_649, %c0_650] : memref<7x14x32xf32, #tpu.memory_space<vmem>>, vector<7x1x32xf32>
    %663 = vector.shape_cast %662 : vector<7x1x32xf32> to vector<7x32xf32>
    %c0_651 = arith.constant 0 : index
    %c11_652 = arith.constant 11 : index
    %c0_653 = arith.constant 0 : index
    %664 = vector.load %arg13[%c0_651, %c11_652, %c0_653] : memref<7x14x32xf32, #tpu.memory_space<vmem>>, vector<7x1x32xf32>
    %665 = vector.shape_cast %664 : vector<7x1x32xf32> to vector<7x32xf32>
    %666 = arith.maximumf %663, %665 : vector<7x32xf32>
    %c0_654 = arith.constant 0 : index
    %c160 = arith.constant 160 : index
    %667 = vector.load %arg14[%c0_654, %c160] : memref<7x224xf32, #tpu.memory_space<vmem>>, vector<7x32xf32>
    tpu.vector_store %arg14[%c0_654, %c160], %666 {strides = array<i32>} : memref<7x224xf32, #tpu.memory_space<vmem>>, vector<7x32xf32>,
    %c0_655 = arith.constant 0 : index
    %c12_656 = arith.constant 12 : index
    %c0_657 = arith.constant 0 : index
    %668 = vector.load %arg13[%c0_655, %c12_656, %c0_657] : memref<7x14x32xf32, #tpu.memory_space<vmem>>, vector<7x1x32xf32>
    %669 = vector.shape_cast %668 : vector<7x1x32xf32> to vector<7x32xf32>
    %c0_658 = arith.constant 0 : index
    %c13_659 = arith.constant 13 : index
    %c0_660 = arith.constant 0 : index
    %670 = vector.load %arg13[%c0_658, %c13_659, %c0_660] : memref<7x14x32xf32, #tpu.memory_space<vmem>>, vector<7x1x32xf32>
    %671 = vector.shape_cast %670 : vector<7x1x32xf32> to vector<7x32xf32>
    %672 = arith.maximumf %669, %671 : vector<7x32xf32>
    %c0_661 = arith.constant 0 : index
    %c192 = arith.constant 192 : index
    %673 = vector.load %arg14[%c0_661, %c192] : memref<7x224xf32, #tpu.memory_space<vmem>>, vector<7x32xf32>
    tpu.vector_store %arg14[%c0_661, %c192], %672 {strides = array<i32>} : memref<7x224xf32, #tpu.memory_space<vmem>>, vector<7x32xf32>,
    %c0_662 = arith.constant 0 : index
    %c0_663 = arith.constant 0 : index
    %674 = vector.load %arg7[%c0_662, %c0_663] : memref<1x16xf32, #tpu.memory_space<vmem>>, vector<1x16xf32>
    %c0_664 = arith.constant 0 : index
    %c0_665 = arith.constant 0 : index
    %675 = vector.load %arg14[%c0_664, %c0_665] : memref<7x224xf32, #tpu.memory_space<vmem>>, vector<1x224xf32>
    %c0_666 = arith.constant 0 : index
    %c0_667 = arith.constant 0 : index
    %c0_668 = arith.constant 0 : index
    %676 = vector.load %arg6[%c0_666, %c0_667, %c0_668] : memref<7x224x16xf32, #tpu.memory_space<vmem>>, vector<1x224x16xf32>
    %677 = vector.shape_cast %676 : vector<1x224x16xf32> to vector<224x16xf32>
    %cst_669 = arith.constant dense<0.000000e+00> : vector<1x16xf32>
    %678 = tpu.matmul %675, %677, %cst_669 {dimension_numbers = #tpu.dot_dimension_numbers<[1], [0], [0], [1], [0, 0, 1, 1], [], []>} : vector<1x224xf32>, vector<224x16xf32>, vector<1x16xf32> -> vector<1x16xf32>
    %679 = arith.addf %674, %678 : vector<1x16xf32>
    %c1_670 = arith.constant 1 : index
    %c0_671 = arith.constant 0 : index
    %680 = vector.load %arg14[%c1_670, %c0_671] : memref<7x224xf32, #tpu.memory_space<vmem>>, vector<1x224xf32>
    %c1_672 = arith.constant 1 : index
    %c0_673 = arith.constant 0 : index
    %c0_674 = arith.constant 0 : index
    %681 = vector.load %arg6[%c1_672, %c0_673, %c0_674] : memref<7x224x16xf32, #tpu.memory_space<vmem>>, vector<1x224x16xf32>
    %682 = vector.shape_cast %681 : vector<1x224x16xf32> to vector<224x16xf32>
    %cst_675 = arith.constant dense<0.000000e+00> : vector<1x16xf32>
    %683 = tpu.matmul %680, %682, %cst_675 {dimension_numbers = #tpu.dot_dimension_numbers<[1], [0], [0], [1], [0, 0, 1, 1], [], []>} : vector<1x224xf32>, vector<224x16xf32>, vector<1x16xf32> -> vector<1x16xf32>
    %684 = arith.addf %679, %683 : vector<1x16xf32>
    %c2_676 = arith.constant 2 : index
    %c0_677 = arith.constant 0 : index
    %685 = vector.load %arg14[%c2_676, %c0_677] : memref<7x224xf32, #tpu.memory_space<vmem>>, vector<1x224xf32>
    %c2_678 = arith.constant 2 : index
    %c0_679 = arith.constant 0 : index
    %c0_680 = arith.constant 0 : index
    %686 = vector.load %arg6[%c2_678, %c0_679, %c0_680] : memref<7x224x16xf32, #tpu.memory_space<vmem>>, vector<1x224x16xf32>
    %687 = vector.shape_cast %686 : vector<1x224x16xf32> to vector<224x16xf32>
    %cst_681 = arith.constant dense<0.000000e+00> : vector<1x16xf32>
    %688 = tpu.matmul %685, %687, %cst_681 {dimension_numbers = #tpu.dot_dimension_numbers<[1], [0], [0], [1], [0, 0, 1, 1], [], []>} : vector<1x224xf32>, vector<224x16xf32>, vector<1x16xf32> -> vector<1x16xf32>
    %689 = arith.addf %684, %688 : vector<1x16xf32>
    %c3_682 = arith.constant 3 : index
    %c0_683 = arith.constant 0 : index
    %690 = vector.load %arg14[%c3_682, %c0_683] : memref<7x224xf32, #tpu.memory_space<vmem>>, vector<1x224xf32>
    %c3_684 = arith.constant 3 : index
    %c0_685 = arith.constant 0 : index
    %c0_686 = arith.constant 0 : index
    %691 = vector.load %arg6[%c3_684, %c0_685, %c0_686] : memref<7x224x16xf32, #tpu.memory_space<vmem>>, vector<1x224x16xf32>
    %692 = vector.shape_cast %691 : vector<1x224x16xf32> to vector<224x16xf32>
    %cst_687 = arith.constant dense<0.000000e+00> : vector<1x16xf32>
    %693 = tpu.matmul %690, %692, %cst_687 {dimension_numbers = #tpu.dot_dimension_numbers<[1], [0], [0], [1], [0, 0, 1, 1], [], []>} : vector<1x224xf32>, vector<224x16xf32>, vector<1x16xf32> -> vector<1x16xf32>
    %694 = arith.addf %689, %693 : vector<1x16xf32>
    %c4_688 = arith.constant 4 : index
    %c0_689 = arith.constant 0 : index
    %695 = vector.load %arg14[%c4_688, %c0_689] : memref<7x224xf32, #tpu.memory_space<vmem>>, vector<1x224xf32>
    %c4_690 = arith.constant 4 : index
    %c0_691 = arith.constant 0 : index
    %c0_692 = arith.constant 0 : index
    %696 = vector.load %arg6[%c4_690, %c0_691, %c0_692] : memref<7x224x16xf32, #tpu.memory_space<vmem>>, vector<1x224x16xf32>
    %697 = vector.shape_cast %696 : vector<1x224x16xf32> to vector<224x16xf32>
    %cst_693 = arith.constant dense<0.000000e+00> : vector<1x16xf32>
    %698 = tpu.matmul %695, %697, %cst_693 {dimension_numbers = #tpu.dot_dimension_numbers<[1], [0], [0], [1], [0, 0, 1, 1], [], []>} : vector<1x224xf32>, vector<224x16xf32>, vector<1x16xf32> -> vector<1x16xf32>
    %699 = arith.addf %694, %698 : vector<1x16xf32>
    %c5_694 = arith.constant 5 : index
    %c0_695 = arith.constant 0 : index
    %700 = vector.load %arg14[%c5_694, %c0_695] : memref<7x224xf32, #tpu.memory_space<vmem>>, vector<1x224xf32>
    %c5_696 = arith.constant 5 : index
    %c0_697 = arith.constant 0 : index
    %c0_698 = arith.constant 0 : index
    %701 = vector.load %arg6[%c5_696, %c0_697, %c0_698] : memref<7x224x16xf32, #tpu.memory_space<vmem>>, vector<1x224x16xf32>
    %702 = vector.shape_cast %701 : vector<1x224x16xf32> to vector<224x16xf32>
    %cst_699 = arith.constant dense<0.000000e+00> : vector<1x16xf32>
    %703 = tpu.matmul %700, %702, %cst_699 {dimension_numbers = #tpu.dot_dimension_numbers<[1], [0], [0], [1], [0, 0, 1, 1], [], []>} : vector<1x224xf32>, vector<224x16xf32>, vector<1x16xf32> -> vector<1x16xf32>
    %704 = arith.addf %699, %703 : vector<1x16xf32>
    %c6_700 = arith.constant 6 : index
    %c0_701 = arith.constant 0 : index
    %705 = vector.load %arg14[%c6_700, %c0_701] : memref<7x224xf32, #tpu.memory_space<vmem>>, vector<1x224xf32>
    %c6_702 = arith.constant 6 : index
    %c0_703 = arith.constant 0 : index
    %c0_704 = arith.constant 0 : index
    %706 = vector.load %arg6[%c6_702, %c0_703, %c0_704] : memref<7x224x16xf32, #tpu.memory_space<vmem>>, vector<1x224x16xf32>
    %707 = vector.shape_cast %706 : vector<1x224x16xf32> to vector<224x16xf32>
    %cst_705 = arith.constant dense<0.000000e+00> : vector<1x16xf32>
    %708 = tpu.matmul %705, %707, %cst_705 {dimension_numbers = #tpu.dot_dimension_numbers<[1], [0], [0], [1], [0, 0, 1, 1], [], []>} : vector<1x224xf32>, vector<224x16xf32>, vector<1x16xf32> -> vector<1x16xf32>
    %709 = arith.addf %704, %708 : vector<1x16xf32>
    %cst_706 = arith.constant 0.000000e+00 : f32
    %710 = vector.broadcast %cst_706 : f32 to vector<1x16xf32>
    %711 = arith.maximumf %709, %710 : vector<1x16xf32>
    %c0_707 = arith.constant 0 : index
    %c0_708 = arith.constant 0 : index
    %712 = vector.load %arg8[%c0_707, %c0_708] : memref<16x10xf32, #tpu.memory_space<vmem>>, vector<16x10xf32>
    %cst_709 = arith.constant dense<0.000000e+00> : vector<1x10xf32>
    %713 = tpu.matmul %711, %712, %cst_709 {dimension_numbers = #tpu.dot_dimension_numbers<[1], [0], [0], [1], [0, 0, 1, 1], [], []>} : vector<1x16xf32>, vector<16x10xf32>, vector<1x10xf32> -> vector<1x10xf32>
    %c0_710 = arith.constant 0 : index
    %c0_711 = arith.constant 0 : index
    %714 = vector.load %arg9[%c0_710, %c0_711] : memref<1x10xf32, #tpu.memory_space<vmem>>, vector<1x10xf32>
    %715 = arith.addf %713, %714 : vector<1x10xf32>
    %c0_712 = arith.constant 0 : index
    %c0_713 = arith.constant 0 : index
    %c0_714 = arith.constant 0 : index
    %716 = vector.load %arg10[%c0_712, %c0_713, %c0_714] : memref<1x1x10xf32, #tpu.memory_space<vmem>>, vector<1x1x10xf32>
    %717 = vector.shape_cast %716 : vector<1x1x10xf32> to vector<1x10xf32>
    %718 = vector.shape_cast %715 : vector<1x10xf32> to vector<1x1x10xf32>
    tpu.vector_store %arg10[%c0_712, %c0_713, %c0_714], %718 {strides = array<i32>} : memref<1x1x10xf32, #tpu.memory_space<vmem>>, vector<1x1x10xf32>,
    return
  }
  func.func @transform_0(%arg0: i32) -> (i32, i32, i32, i32) {
    %c0_i32 = arith.constant 0 : i32
    %c0_i32_0 = arith.constant 0 : i32
    %c0_i32_1 = arith.constant 0 : i32
    %c0_i32_2 = arith.constant 0 : i32
    return %arg0, %c0_i32, %c0_i32_0, %c0_i32_1 : i32, i32, i32, i32
  }
  func.func @transform_1(%arg0: i32) -> (i32, i32) {
    %c0_i32 = arith.constant 0 : i32
    %c0_i32_0 = arith.constant 0 : i32
    %c0_i32_1 = arith.constant 0 : i32
    return %c0_i32, %c0_i32_0 : i32, i32
  }
  func.func @transform_2(%arg0: i32) -> (i32, i32) {
    %c0_i32 = arith.constant 0 : i32
    %c0_i32_0 = arith.constant 0 : i32
    %c0_i32_1 = arith.constant 0 : i32
    return %c0_i32, %c0_i32_0 : i32, i32
  }
  func.func @transform_3(%arg0: i32) -> (i32, i32) {
    %c0_i32 = arith.constant 0 : i32
    %c0_i32_0 = arith.constant 0 : i32
    %c0_i32_1 = arith.constant 0 : i32
    return %c0_i32, %c0_i32_0 : i32, i32
  }
  func.func @transform_4(%arg0: i32) -> (i32, i32) {
    %c0_i32 = arith.constant 0 : i32
    %c0_i32_0 = arith.constant 0 : i32
    %c0_i32_1 = arith.constant 0 : i32
    return %c0_i32, %c0_i32_0 : i32, i32
  }
  func.func @transform_5(%arg0: i32) -> (i32, i32, i32) {
    %c0_i32 = arith.constant 0 : i32
    %c0_i32_0 = arith.constant 0 : i32
    %c0_i32_1 = arith.constant 0 : i32
    %c0_i32_2 = arith.constant 0 : i32
    return %c0_i32, %c0_i32_0, %c0_i32_1 : i32, i32, i32
  }
  func.func @transform_6(%arg0: i32) -> (i32, i32) {
    %c0_i32 = arith.constant 0 : i32
    %c0_i32_0 = arith.constant 0 : i32
    %c0_i32_1 = arith.constant 0 : i32
    return %c0_i32, %c0_i32_0 : i32, i32
  }
  func.func @transform_7(%arg0: i32) -> (i32, i32) {
    %c0_i32 = arith.constant 0 : i32
    %c0_i32_0 = arith.constant 0 : i32
    %c0_i32_1 = arith.constant 0 : i32
    return %c0_i32, %c0_i32_0 : i32, i32
  }
  func.func @transform_8(%arg0: i32) -> (i32, i32) {
    %c0_i32 = arith.constant 0 : i32
    %c0_i32_0 = arith.constant 0 : i32
    %c0_i32_1 = arith.constant 0 : i32
    return %c0_i32, %c0_i32_0 : i32, i32
  }
  func.func @transform_9(%arg0: i32) -> (i32, i32, i32) {
    %c0_i32 = arith.constant 0 : i32
    %c0_i32_0 = arith.constant 0 : i32
    %c0_i32_1 = arith.constant 0 : i32
    return %arg0, %c0_i32, %c0_i32_0 : i32, i32, i32
  }
}

</mosaic_0001>

<llo_original>
// kernel: cnn_forward.1
$region0: #{cnn_forward.1}
  #allocation0 [shape = 'u32[]', space=smem, size = 0x4, offset = 0x4, fixed_abs, tag = 'smem constant byte address 0x4 - core index']
  #allocation1 [shape = 'u32[144,128]{1,0:T(1,128)}', space=vmem, size = 0x12000, scoped, tag = 'internal scratch']
  #allocation2 [shape = 'f32[14,28,16]{2,1,0:T(8,128)}', space=vmem, size = 0x38000, scoped, tag = 'scratch operand']
  #allocation3 [shape = 'f32[16,16,16]{2,1,0:T(8,128)}', space=vmem, size = 0x20000, scoped, tag = 'scratch operand']
  #allocation4 [shape = 'f32[7,14,32]{2,1,0:T(8,128)}', space=vmem, size = 0xe000, scoped, tag = 'scratch operand']
  #allocation5 [shape = 'f32[7,224]{1,0:T(8,128)}', space=vmem, size = 0x2000, scoped, tag = 'scratch operand']
  %s0 = inlined_call_operand.vmem [shape: f32[2,30,30,16], index: 0, kind: input, shape index: {}]
  %s1 = inlined_call_operand.vmem [shape: f32[9,16], index: 1, kind: input, shape index: {}]
  %s2 = inlined_call_operand.vmem [shape: f32[1,16], index: 2, kind: input, shape index: {}]
  %s3 = inlined_call_operand.vmem [shape: f32[144,32], index: 3, kind: input, shape index: {}]
  %s4 = inlined_call_operand.vmem [shape: f32[1,32], index: 4, kind: input, shape index: {}]
  %s5 = inlined_call_operand.vmem [shape: f32[7,224,16], index: 5, kind: input, shape index: {}]
  %s6 = inlined_call_operand.vmem [shape: f32[1,16], index: 6, kind: input, shape index: {}]
  %s7 = inlined_call_operand.vmem [shape: f32[16,10], index: 7, kind: input, shape index: {}]
  %s8 = inlined_call_operand.vmem [shape: f32[1,10], index: 8, kind: input, shape index: {}]
  %s9 = inlined_call_operand.hbm [shape: f32[2,1,10], index: 9, kind: output, shape index: {}]
  %s10 = sld [smem:[#allocation0]]
  $region69: #{cnn_forward.1} parent=0
    _
  %s12 = ssub.s32 1, %s10
  %s13 = scalar_select 0, %s12, %s10
  $region1: #{cnn_forward.1} parent=0
    #allocation6 [shape = 'u8[1024]{0}', space=vmem, size = 0x400, scoped, tag = 'output window, operand 0']
    #allocation7 [shape = 's32[2]{0}', space=sflag, size = 0x8, scoped, tag = 'scoped memory for cnn_forward.1']
    %14 = vsyncpa [#allocation7], 0
    %s15 = scalar_lea.sflag [#allocation7], 1
    %16 = vsyncpa %s15, 0
    loop: start=0, step=1, limit=4
    $region2: #{cnn_forward.1} parent=1 // loop_pre_header
      _
    $region3: #{cnn_forward.1} parent=1 // loop_header
      %s18 = sphi 0, %s22
      %p19 = scmp.ge.s32.totalorder %s18, 4
      %s28 = sphi 0, %s30
      %s31 = sphi 0, %s28
      %s32 = sphi 0, %s31
      %s48 = sphi 0, %s32
      %s52 = sphi 0, %s52
      %s54 = sphi 0, %s52
      %s55 = sphi 0, %s54
      %s69 = sphi 0, %s55
      %s73 = sphi 0, %s73
      %s75 = sphi 0, %s73
      %s76 = sphi 0, %s75
      %s90 = sphi 0, %s76
      %s94 = sphi 0, %s94
      %s96 = sphi 0, %s94
      %s97 = sphi 0, %s96
      %s111 = sphi 0, %s97
      %s115 = sphi 0, %s115
      %s117 = sphi 0, %s115
      %s118 = sphi 0, %s117
      %s132 = sphi 0, %s118
      %s136 = sphi 0, %s136
      %s138 = sphi 0, %s136
      %s139 = sphi 0, %s138
      %s153 = sphi 0, %s139
      %s157 = sphi 0, %s157
      %s159 = sphi 0, %s157
      %s160 = sphi 0, %s159
      %s174 = sphi 0, %s160
      %s178 = sphi 0, %s178
      %s180 = sphi 0, %s178
      %s181 = sphi 0, %s180
      %s195 = sphi 0, %s181
      %s199 = sphi 0, %s199
      %s201 = sphi 0, %s199
      %s202 = sphi 0, %s201
      %s216 = sphi 0, %s202
      %s222 = sphi 0, %s224
      %s225 = sphi 0, %s222
      %s226 = sphi 0, %s225
      %s242 = sphi 0, %s226
    $region4: #{cnn_forward.1} parent=1 // loop_header_branch
      %21 = sbr.rel (%p19) target = $region8
    $region5: #{cnn_forward.1} parent=1 // loop_body
      %s23 = ssub.s32 %s18, 1
      %s24 = ssub.s32 %s18, 2
      %s25 = sadd.s32 %s18, 1
      %s26 = ssub.s32 %s18, %s25
      %p27 = scmp.eq.s32.totalorder %s26, 0
      %s29 = sadd.s32 %s28, 1
      %s30 = scalar_select %p27, %s28, %s29
      %p33 = pneg %p27
      %p34 = scmp.eq.s32.totalorder %s18, 1
      %p35 = por %p33, %p34
      %p36 = scmp.ne.s32.totalorder %s28, %s31
      %p37 = scmp.eq.s32.totalorder %s18, 0
      %p38 = por %p36, %p37
      %p39 = scmp.ne.s32.totalorder %s28, %s31
      %p40 = scmp.eq.s32.totalorder %s23, 1
      %p41 = por %p39, %p40
      %p42 = scmp.ne.s32.totalorder %s31, %s32
      %p43 = scmp.eq.s32.totalorder %s23, 0
      %p44 = por %p42, %p43
      %p45 = scmp.ne.s32.totalorder %s31, %s32
      %p46 = scmp.eq.s32.totalorder %s24, 1
      %p47 = por %p45, %p46
      %p49 = scmp.ne.s32.totalorder %s32, %s48
      %p50 = scmp.eq.s32.totalorder %s24, 0
      %p51 = por %p49, %p50
      %s53 = sadd.s32 %s52, 1
      %p56 = scmp.eq.s32.totalorder %s18, 1
      %p57 = scmp.ne.s32.totalorder %s52, %s54
      %p58 = scmp.eq.s32.totalorder %s18, 0
      %p59 = por %p57, %p58
      %p60 = scmp.ne.s32.totalorder %s52, %s54
      %p61 = scmp.eq.s32.totalorder %s23, 1
      %p62 = por %p60, %p61
      %p63 = scmp.ne.s32.totalorder %s54, %s55
      %p64 = scmp.eq.s32.totalorder %s23, 0
      %p65 = por %p63, %p64
      %p66 = scmp.ne.s32.totalorder %s54, %s55
      %p67 = scmp.eq.s32.totalorder %s24, 1
      %p68 = por %p66, %p67
      %p70 = scmp.ne.s32.totalorder %s55, %s69
      %p71 = scmp.eq.s32.totalorder %s24, 0
      %p72 = por %p70, %p71
      %s74 = sadd.s32 %s73, 1
      %p77 = scmp.eq.s32.totalorder %s18, 1
      %p78 = scmp.ne.s32.totalorder %s73, %s75
      %p79 = scmp.eq.s32.totalorder %s18, 0
      %p80 = por %p78, %p79
      %p81 = scmp.ne.s32.totalorder %s73, %s75
      %p82 = scmp.eq.s32.totalorder %s23, 1
      %p83 = por %p81, %p82
      %p84 = scmp.ne.s32.totalorder %s75, %s76
      %p85 = scmp.eq.s32.totalorder %s23, 0
      %p86 = por %p84, %p85
      %p87 = scmp.ne.s32.totalorder %s75, %s76
      %p88 = scmp.eq.s32.totalorder %s24, 1
      %p89 = por %p87, %p88
      %p91 = scmp.ne.s32.totalorder %s76, %s90
      %p92 = scmp.eq.s32.totalorder %s24, 0
      %p93 = por %p91, %p92
      %s95 = sadd.s32 %s94, 1
      %p98 = scmp.eq.s32.totalorder %s18, 1
      %p99 = scmp.ne.s32.totalorder %s94, %s96
      %p100 = scmp.eq.s32.totalorder %s18, 0
      %p101 = por %p99, %p100
      %p102 = scmp.ne.s32.totalorder %s94, %s96
      %p103 = scmp.eq.s32.totalorder %s23, 1
      %p104 = por %p102, %p103
      %p105 = scmp.ne.s32.totalorder %s96, %s97
      %p106 = scmp.eq.s32.totalorder %s23, 0
      %p107 = por %p105, %p106
      %p108 = scmp.ne.s32.totalorder %s96, %s97
      %p109 = scmp.eq.s32.totalorder %s24, 1
      %p110 = por %p108, %p109
      %p112 = scmp.ne.s32.totalorder %s97, %s111
      %p113 = scmp.eq.s32.totalorder %s24, 0
      %p114 = por %p112, %p113
      %s116 = sadd.s32 %s115, 1
      %p119 = scmp.eq.s32.totalorder %s18, 1
      %p120 = scmp.ne.s32.totalorder %s115, %s117
      %p121 = scmp.eq.s32.totalorder %s18, 0
      %p122 = por %p120, %p121
      %p123 = scmp.ne.s32.totalorder %s115, %s117
      %p124 = scmp.eq.s32.totalorder %s23, 1
      %p125 = por %p123, %p124
      %p126 = scmp.ne.s32.totalorder %s117, %s118
      %p127 = scmp.eq.s32.totalorder %s23, 0
      %p128 = por %p126, %p127
      %p129 = scmp.ne.s32.totalorder %s117, %s118
      %p130 = scmp.eq.s32.totalorder %s24, 1
      %p131 = por %p129, %p130
      %p133 = scmp.ne.s32.totalorder %s118, %s132
      %p134 = scmp.eq.s32.totalorder %s24, 0
      %p135 = por %p133, %p134
      %s137 = sadd.s32 %s136, 1
      %p140 = scmp.eq.s32.totalorder %s18, 1
      %p141 = scmp.ne.s32.totalorder %s136, %s138
      %p142 = scmp.eq.s32.totalorder %s18, 0
      %p143 = por %p141, %p142
      %p144 = scmp.ne.s32.totalorder %s136, %s138
      %p145 = scmp.eq.s32.totalorder %s23, 1
      %p146 = por %p144, %p145
      %p147 = scmp.ne.s32.totalorder %s138, %s139
      %p148 = scmp.eq.s32.totalorder %s23, 0
      %p149 = por %p147, %p148
      %p150 = scmp.ne.s32.totalorder %s138, %s139
      %p151 = scmp.eq.s32.totalorder %s24, 1
      %p152 = por %p150, %p151
      %p154 = scmp.ne.s32.totalorder %s139, %s153
      %p155 = scmp.eq.s32.totalorder %s24, 0
      %p156 = por %p154, %p155
      %s158 = sadd.s32 %s157, 1
      %p161 = scmp.eq.s32.totalorder %s18, 1
      %p162 = scmp.ne.s32.totalorder %s157, %s159
      %p163 = scmp.eq.s32.totalorder %s18, 0
      %p164 = por %p162, %p163
      %p165 = scmp.ne.s32.totalorder %s157, %s159
      %p166 = scmp.eq.s32.totalorder %s23, 1
      %p167 = por %p165, %p166
      %p168 = scmp.ne.s32.totalorder %s159, %s160
      %p169 = scmp.eq.s32.totalorder %s23, 0
      %p170 = por %p168, %p169
      %p171 = scmp.ne.s32.totalorder %s159, %s160
      %p172 = scmp.eq.s32.totalorder %s24, 1
      %p173 = por %p171, %p172
      %p175 = scmp.ne.s32.totalorder %s160, %s174
      %p176 = scmp.eq.s32.totalorder %s24, 0
      %p177 = por %p175, %p176
      %s179 = sadd.s32 %s178, 1
      %p182 = scmp.eq.s32.totalorder %s18, 1
      %p183 = scmp.ne.s32.totalorder %s178, %s180
      %p184 = scmp.eq.s32.totalorder %s18, 0
      %p185 = por %p183, %p184
      %p186 = scmp.ne.s32.totalorder %s178, %s180
      %p187 = scmp.eq.s32.totalorder %s23, 1
      %p188 = por %p186, %p187
      %p189 = scmp.ne.s32.totalorder %s180, %s181
      %p190 = scmp.eq.s32.totalorder %s23, 0
      %p191 = por %p189, %p190
      %p192 = scmp.ne.s32.totalorder %s180, %s181
      %p193 = scmp.eq.s32.totalorder %s24, 1
      %p194 = por %p192, %p193
      %p196 = scmp.ne.s32.totalorder %s181, %s195
      %p197 = scmp.eq.s32.totalorder %s24, 0
      %p198 = por %p196, %p197
      %s200 = sadd.s32 %s199, 1
      %p203 = scmp.eq.s32.totalorder %s18, 1
      %p204 = scmp.ne.s32.totalorder %s199, %s201
      %p205 = scmp.eq.s32.totalorder %s18, 0
      %p206 = por %p204, %p205
      %p207 = scmp.ne.s32.totalorder %s199, %s201
      %p208 = scmp.eq.s32.totalorder %s23, 1
      %p209 = por %p207, %p208
      %p210 = scmp.ne.s32.totalorder %s201, %s202
      %p211 = scmp.eq.s32.totalorder %s23, 0
      %p212 = por %p210, %p211
      %p213 = scmp.ne.s32.totalorder %s201, %s202
      %p214 = scmp.eq.s32.totalorder %s24, 1
      %p215 = por %p213, %p214
      %p217 = scmp.ne.s32.totalorder %s202, %s216
      %p218 = scmp.eq.s32.totalorder %s24, 0
      %p219 = por %p217, %p218
      %s220 = ssub.s32 %s18, %s25
      %p221 = scmp.eq.s32.totalorder %s220, 0
      %s223 = sadd.s32 %s222, 1
      %s224 = scalar_select %p221, %s222, %s223
      %p227 = pneg %p221
      %p228 = scmp.eq.s32.totalorder %s18, 1
      %p229 = por %p227, %p228
      %p230 = scmp.ne.s32.totalorder %s222, %s225
      %p231 = scmp.eq.s32.totalorder %s18, 0
      %p232 = por %p230, %p231
      %p233 = scmp.ne.s32.totalorder %s222, %s225
      %p234 = scmp.eq.s32.totalorder %s23, 1
      %p235 = por %p233, %p234
      %p236 = scmp.ne.s32.totalorder %s225, %s226
      %p237 = scmp.eq.s32.totalorder %s23, 0
      %p238 = por %p236, %p237
      %p239 = scmp.ne.s32.totalorder %s225, %s226
      %p240 = scmp.eq.s32.totalorder %s24, 1
      %p241 = por %p239, %p240
      %p243 = scmp.ne.s32.totalorder %s226, %s242
      %p244 = scmp.eq.s32.totalorder %s24, 0
      %p245 = por %p243, %p244
      %p246 = scmp.le.s32.totalorder 1, %s18
      %p247 = scmp.lt.s32.totalorder %s18, 3
      %p248 = pnand %p246, %p247
      %p249 = pneg %p248
      // Predicated region
      $region9: #{cnn_forward.1} parent=5 // pred_check
        _
      $region10: #{cnn_forward.1} parent=5 // pred_check_branch
        %251 = sbr.rel (%p248) target = $region12
      $region11: #{cnn_forward.1} parent=5 // pred_region
        %s252 = ssub.s32 %s18, 1
        // Predicated region
        $region13: #{cnn_forward.1} parent=11 // pred_check
          %p253 = pneg %p65
        $region14: #{cnn_forward.1} parent=11 // pred_check_branch
          %255 = sbr.rel (%p253) target = $region16
        $region15: #{cnn_forward.1} parent=11 // pred_region
          _
        $region16: #{cnn_forward.1} parent=11 // pred_fallthru
          _
        // Predicated region
        $region17: #{cnn_forward.1} parent=11 // pred_check
          %p256 = pneg %p86
        $region18: #{cnn_forward.1} parent=11 // pred_check_branch
          %258 = sbr.rel (%p256) target = $region20
        $region19: #{cnn_forward.1} parent=11 // pred_region
          _
        $region20: #{cnn_forward.1} parent=11 // pred_fallthru
          _
        // Predicated region
        $region21: #{cnn_forward.1} parent=11 // pred_check
          %p259 = pneg %p107
        $region22: #{cnn_forward.1} parent=11 // pred_check_branch
          %261 = sbr.rel (%p259) target = $region24
        $region23: #{cnn_forward.1} parent=11 // pred_region
          _
        $region24: #{cnn_forward.1} parent=11 // pred_fallthru
          _
        // Predicated region
        $region25: #{cnn_forward.1} parent=11 // pred_check
          %p262 = pneg %p128
        $region26: #{cnn_forward.1} parent=11 // pred_check_branch
          %264 = sbr.rel (%p262) target = $region28
        $region27: #{cnn_forward.1} parent=11 // pred_region
          _
        $region28: #{cnn_forward.1} parent=11 // pred_fallthru
          _
        // Predicated region
        $region29: #{cnn_forward.1} parent=11 // pred_check
          %p265 = pneg %p149
        $region30: #{cnn_forward.1} parent=11 // pred_check_branch
          %267 = sbr.rel (%p265) target = $region32
        $region31: #{cnn_forward.1} parent=11 // pred_region
          _
        $region32: #{cnn_forward.1} parent=11 // pred_fallthru
          _
        // Predicated region
        $region33: #{cnn_forward.1} parent=11 // pred_check
          %p268 = pneg %p170
        $region34: #{cnn_forward.1} parent=11 // pred_check_branch
          %270 = sbr.rel (%p268) target = $region36
        $region35: #{cnn_forward.1} parent=11 // pred_region
          _
        $region36: #{cnn_forward.1} parent=11 // pred_fallthru
          _
        // Predicated region
        $region37: #{cnn_forward.1} parent=11 // pred_check
          %p271 = pneg %p191
        $region38: #{cnn_forward.1} parent=11 // pred_check_branch
          %273 = sbr.rel (%p271) target = $region40
        $region39: #{cnn_forward.1} parent=11 // pred_region
          _
        $region40: #{cnn_forward.1} parent=11 // pred_fallthru
          _
        // Predicated region
        $region41: #{cnn_forward.1} parent=11 // pred_check
          %p274 = pneg %p212
        $region42: #{cnn_forward.1} parent=11 // pred_check_branch
          %276 = sbr.rel (%p274) target = $region44
        $region43: #{cnn_forward.1} parent=11 // pred_region
          _
        $region44: #{cnn_forward.1} parent=11 // pred_fallthru
          _
      $region12: #{cnn_forward.1} parent=5 // pred_fallthru
        _
      %p277 = scmp.lt.s32.totalorder %s18, 2
      // Predicated region
      $region45: #{cnn_forward.1} parent=5 // pred_check
        %p278 = pneg %p277
      $region46: #{cnn_forward.1} parent=5 // pred_check_branch
        %280 = sbr.rel (%p278) target = $region48
      $region47: #{cnn_forward.1} parent=5 // pred_region
        // Predicated region
        $region49: #{cnn_forward.1} parent=47 // pred_check
          %p281 = pneg %p38
        $region50: #{cnn_forward.1} parent=47 // pred_check_branch
          %283 = sbr.rel (%p281) target = $region52
        $region51: #{cnn_forward.1} parent=47 // pred_region
          %p284 = scmp.lt.s32.totalorder %s18, 1
          %s285 = scalar_select %p284, %s18, 1
          %s286 = smul.addr %s285, 120
          %s287 = smul.addr %s286, 8
          %s288 = scalar_lea.vmem %s0, %s287
        $region52: #{cnn_forward.1} parent=47 // pred_fallthru
          _
      $region48: #{cnn_forward.1} parent=5 // pred_fallthru
        _
      %p289 = scmp.le.s32.totalorder 1, %s18
      %p290 = scmp.lt.s32.totalorder %s18, 3
      %p291 = pnand %p289, %p290
      %p292 = pneg %p291
      // Predicated region
      $region53: #{cnn_forward.1} parent=5 // pred_check
        _
      $region54: #{cnn_forward.1} parent=5 // pred_check_branch
        %294 = sbr.rel (%p291) target = $region56
      $region55: #{cnn_forward.1} parent=5 // pred_region
        %s295 = ssub.s32 %s18, 1
        %p296 = scmp.lt.s32.totalorder %s23, 1
        %s297 = scalar_select %p296, %s23, 1
        %s298 = smul.addr %s297, 120
        %s299 = smul.addr %s298, 8
        %s300 = scalar_lea.vmem %s0, %s299
        %p301 = pneg %p44
        %p302 = pneg %p41
        %p303 = pneg %p65
        %p304 = pneg %p62
        %p305 = pneg %p86
        %p306 = pneg %p83
        %p307 = pneg %p107
        %p308 = pneg %p104
        %p309 = pneg %p128
        %p310 = pneg %p125
        %p311 = pneg %p149
        %p312 = pneg %p146
        %p313 = pneg %p170
        %p314 = pneg %p167
        %p315 = pneg %p191
        %p316 = pneg %p188
        %p317 = pneg %p212
        %p318 = pneg %p209
        %p319 = pneg %p238
        %p320 = pneg %p235
        %s321 = sand.u32 %s225, 1
        %s322 = scalar_lea.sflag [#allocation7], %s321
        %s323 = sand.u32 %s225, 1
        %s324 = scalar_lea.vmem [#allocation6], %s323
        %p325 = scmp.lt.s32.totalorder %s23, 1
        %s326 = scalar_select %p325, %s23, 1
        %s327 = smul.addr %s326, 120
        %s328 = smul.addr %s327, 8
        %s329 = scalar_lea.vmem %s0, %s328
        %v330 = vld [vmem:[%s1] sm:$0xff]
        %v331 = vld [vmem:[%s1 + $0x8] sm:$0x1]
        %v332 = vld [vmem:[%s2] sm:$0x1]
        %v334 = vlaneseq
        %v335 = vshrl.u32 %v334, 7
        %v336 = vsub.s32 0, %v335
        %v337 = vrot.slane %v332, %v336
        %v339 = vld [vmem:[%s329] sm:$0xff]
        %v340 = vld [vmem:[%s329 + $0x8] sm:$0xff]
        %v341 = vld [vmem:[%s329 + $0x10] sm:$0xff]
        %v342 = vld [vmem:[%s329 + $0x18] sm:$0xf]
        %v343 = vld [vmem:[%s329 + $0x20] sm:$0xff]
        %v344 = vld [vmem:[%s329 + $0x28] sm:$0xff]
        %v345 = vld [vmem:[%s329 + $0x30] sm:$0xff]
        %v346 = vld [vmem:[%s329 + $0x38] sm:$0xf]
        %v347 = vld [vmem:[%s329 + $0x40] sm:$0xff]
        %v348 = vld [vmem:[%s329 + $0x48] sm:$0xff]
        %v349 = vld [vmem:[%s329 + $0x50] sm:$0xff]
        %v350 = vld [vmem:[%s329 + $0x58] sm:$0xf]
        %v351 = vld [vmem:[%s329 + $0x60] sm:$0xff]
        %v352 = vld [vmem:[%s329 + $0x68] sm:$0xff]
        %v353 = vld [vmem:[%s329 + $0x70] sm:$0xff]
        %v354 = vld [vmem:[%s329 + $0x78] sm:$0xf]
        %v355 = vld [vmem:[%s329 + $0x80] sm:$0xff]
        %v356 = vld [vmem:[%s329 + $0x88] sm:$0xff]
        %v357 = vld [vmem:[%s329 + $0x90] sm:$0xff]
        %v358 = vld [vmem:[%s329 + $0x98] sm:$0xf]
        %v359 = vld [vmem:[%s329 + $0xa0] sm:$0xff]
        %v360 = vld [vmem:[%s329 + $0xa8] sm:$0xff]
        %v361 = vld [vmem:[%s329 + $0xb0] sm:$0xff]
        %v362 = vld [vmem:[%s329 + $0xb8] sm:$0xf]
        %v363 = vld [vmem:[%s329 + $0xc0] sm:$0xff]
        %v364 = vld [vmem:[%s329 + $0xc8] sm:$0xff]
        %v365 = vld [vmem:[%s329 + $0xd0] sm:$0xff]
        %v366 = vld [vmem:[%s329 + $0xd8] sm:$0xf]
        %v367 = vld [vmem:[%s329 + $0xe0] sm:$0xff]
        %v368 = vld [vmem:[%s329 + $0xe8] sm:$0xff]
        %v369 = vld [vmem:[%s329 + $0xf0] sm:$0xff]
        %v370 = vld [vmem:[%s329 + $0xf8] sm:$0xf]
        %v371 = vld [vmem:[%s329 + $0x100] sm:$0xff]
        %v372 = vld [vmem:[%s329 + $0x108] sm:$0xff]
        %v373 = vld [vmem:[%s329 + $0x110] sm:$0xff]
        %v374 = vld [vmem:[%s329 + $0x118] sm:$0xf]
        %v375 = vld [vmem:[%s329 + $0x120] sm:$0xff]
        %v376 = vld [vmem:[%s329 + $0x128] sm:$0xff]
        %v377 = vld [vmem:[%s329 + $0x130] sm:$0xff]
        %v378 = vld [vmem:[%s329 + $0x138] sm:$0xf]
        %v379 = vld [vmem:[%s329 + $0x140] sm:$0xff]
        %v380 = vld [vmem:[%s329 + $0x148] sm:$0xff]
        %v381 = vld [vmem:[%s329 + $0x150] sm:$0xff]
        %v382 = vld [vmem:[%s329 + $0x158] sm:$0xf]
        %v383 = vld [vmem:[%s329 + $0x160] sm:$0xff]
        %v384 = vld [vmem:[%s329 + $0x168] sm:$0xff]
        %v385 = vld [vmem:[%s329 + $0x170] sm:$0xff]
        %v386 = vld [vmem:[%s329 + $0x178] sm:$0xf]
        %v387 = vld [vmem:[%s329 + $0x180] sm:$0xff]
        %v388 = vld [vmem:[%s329 + $0x188] sm:$0xff]
        %v389 = vld [vmem:[%s329 + $0x190] sm:$0xff]
        %v390 = vld [vmem:[%s329 + $0x198] sm:$0xf]
        %v391 = vld [vmem:[%s329 + $0x1a0] sm:$0xff]
        %v392 = vld [vmem:[%s329 + $0x1a8] sm:$0xff]
        %v393 = vld [vmem:[%s329 + $0x1b0] sm:$0xff]
        %v394 = vld [vmem:[%s329 + $0x1b8] sm:$0xf]
        %v395 = vld [vmem:[%s329 + $0x1c0] sm:$0xff]
        %v396 = vld [vmem:[%s329 + $0x1c8] sm:$0xff]
        %v397 = vld [vmem:[%s329 + $0x1d0] sm:$0xff]
        %v398 = vld [vmem:[%s329 + $0x1d8] sm:$0xf]
        %v399 = vld [vmem:[%s329 + $0x1e0] sm:$0xff]
        %v400 = vld [vmem:[%s329 + $0x1e8] sm:$0xff]
        %v401 = vld [vmem:[%s329 + $0x1f0] sm:$0xff]
        %v402 = vld [vmem:[%s329 + $0x1f8] sm:$0xf]
        %v403 = vld [vmem:[%s329 + $0x200] sm:$0xff]
        %v404 = vld [vmem:[%s329 + $0x208] sm:$0xff]
        %v405 = vld [vmem:[%s329 + $0x210] sm:$0xff]
        %v406 = vld [vmem:[%s329 + $0x218] sm:$0xf]
        %v407 = vld [vmem:[%s329 + $0x220] sm:$0xff]
        %v408 = vld [vmem:[%s329 + $0x228] sm:$0xff]
        %v409 = vld [vmem:[%s329 + $0x230] sm:$0xff]
        %v410 = vld [vmem:[%s329 + $0x238] sm:$0xf]
        %v411 = vld [vmem:[%s329 + $0x240] sm:$0xff]
        %v412 = vld [vmem:[%s329 + $0x248] sm:$0xff]
        %v413 = vld [vmem:[%s329 + $0x250] sm:$0xff]
        %v414 = vld [vmem:[%s329 + $0x258] sm:$0xf]
        %v415 = vld [vmem:[%s329 + $0x260] sm:$0xff]
        %v416 = vld [vmem:[%s329 + $0x268] sm:$0xff]
        %v417 = vld [vmem:[%s329 + $0x270] sm:$0xff]
        %v418 = vld [vmem:[%s329 + $0x278] sm:$0xf]
        %v419 = vld [vmem:[%s329 + $0x280] sm:$0xff]
        %v420 = vld [vmem:[%s329 + $0x288] sm:$0xff]
        %v421 = vld [vmem:[%s329 + $0x290] sm:$0xff]
        %v422 = vld [vmem:[%s329 + $0x298] sm:$0xf]
        %v423 = vld [vmem:[%s329 + $0x2a0] sm:$0xff]
        %v424 = vld [vmem:[%s329 + $0x2a8] sm:$0xff]
        %v425 = vld [vmem:[%s329 + $0x2b0] sm:$0xff]
        %v426 = vld [vmem:[%s329 + $0x2b8] sm:$0xf]
        %v427 = vld [vmem:[%s329 + $0x2c0] sm:$0xff]
        %v428 = vld [vmem:[%s329 + $0x2c8] sm:$0xff]
        %v429 = vld [vmem:[%s329 + $0x2d0] sm:$0xff]
        %v430 = vld [vmem:[%s329 + $0x2d8] sm:$0xf]
        %v431 = vld [vmem:[%s329 + $0x2e0] sm:$0xff]
        %v432 = vld [vmem:[%s329 + $0x2e8] sm:$0xff]
        %v433 = vld [vmem:[%s329 + $0x2f0] sm:$0xff]
        %v434 = vld [vmem:[%s329 + $0x2f8] sm:$0xf]
        %v435 = vld [vmem:[%s329 + $0x300] sm:$0xff]
        %v436 = vld [vmem:[%s329 + $0x308] sm:$0xff]
        %v437 = vld [vmem:[%s329 + $0x310] sm:$0xff]
        %v438 = vld [vmem:[%s329 + $0x318] sm:$0xf]
        %v439 = vld [vmem:[%s329 + $0x320] sm:$0xff]
        %v440 = vld [vmem:[%s329 + $0x328] sm:$0xff]
        %v441 = vld [vmem:[%s329 + $0x330] sm:$0xff]
        %v442 = vld [vmem:[%s329 + $0x338] sm:$0xf]
        %v443 = vld [vmem:[%s329 + $0x340] sm:$0xff]
        %v444 = vld [vmem:[%s329 + $0x348] sm:$0xff]
        %v445 = vld [vmem:[%s329 + $0x350] sm:$0xff]
        %v446 = vld [vmem:[%s329 + $0x358] sm:$0xf]
        %v447 = vld [vmem:[%s329 + $0x360] sm:$0xff]
        %v448 = vld [vmem:[%s329 + $0x368] sm:$0xff]
        %v449 = vld [vmem:[%s329 + $0x370] sm:$0xff]
        %v450 = vld [vmem:[%s329 + $0x378] sm:$0xf]
        %v451 = vlaneseq
        %v452 = vshrl.u32 %v451, 7
        %v453 = vsub.s32 0, %v452
        %v454 = vrot.slane %v330, %v453
        %v455 = vmul.f32 %v339, %v454
        %v456 = vmul.f32 %v340, %v454
        %v457 = vmul.f32 %v341, %v454
        %v458 = vmul.f32 %v342, %v454
        %v459 = vmul.f32 %v343, %v454
        %v460 = vmul.f32 %v344, %v454
        %v461 = vmul.f32 %v345, %v454
        %v462 = vmul.f32 %v346, %v454
        %v463 = vmul.f32 %v347, %v454
        %v464 = vmul.f32 %v348, %v454
        %v465 = vmul.f32 %v349, %v454
        %v466 = vmul.f32 %v350, %v454
        %v467 = vmul.f32 %v351, %v454
        %v468 = vmul.f32 %v352, %v454
        %v469 = vmul.f32 %v353, %v454
        %v470 = vmul.f32 %v354, %v454
        %v471 = vmul.f32 %v355, %v454
        %v472 = vmul.f32 %v356, %v454
        %v473 = vmul.f32 %v357, %v454
        %v474 = vmul.f32 %v358, %v454
        %v475 = vmul.f32 %v359, %v454
        %v476 = vmul.f32 %v360, %v454
        %v477 = vmul.f32 %v361, %v454
        %v478 = vmul.f32 %v362, %v454
        %v479 = vmul.f32 %v363, %v454
        %v480 = vmul.f32 %v364, %v454
        %v481 = vmul.f32 %v365, %v454
        %v482 = vmul.f32 %v366, %v454
        %v483 = vmul.f32 %v367, %v454
        %v484 = vmul.f32 %v368, %v454
        %v485 = vmul.f32 %v369, %v454
        %v486 = vmul.f32 %v370, %v454
        %v487 = vmul.f32 %v371, %v454
        %v488 = vmul.f32 %v372, %v454
        %v489 = vmul.f32 %v373, %v454
        %v490 = vmul.f32 %v374, %v454
        %v491 = vmul.f32 %v375, %v454
        %v492 = vmul.f32 %v376, %v454
        %v493 = vmul.f32 %v377, %v454
        %v494 = vmul.f32 %v378, %v454
        %v495 = vmul.f32 %v379, %v454
        %v496 = vmul.f32 %v380, %v454
        %v497 = vmul.f32 %v381, %v454
        %v498 = vmul.f32 %v382, %v454
        %v499 = vmul.f32 %v383, %v454
        %v500 = vmul.f32 %v384, %v454
        %v501 = vmul.f32 %v385, %v454
        %v502 = vmul.f32 %v386, %v454
        %v503 = vmul.f32 %v387, %v454
        %v504 = vmul.f32 %v388, %v454
        %v505 = vmul.f32 %v389, %v454
        %v506 = vmul.f32 %v390, %v454
        %v507 = vmul.f32 %v391, %v454
        %v508 = vmul.f32 %v392, %v454
        %v509 = vmul.f32 %v393, %v454
        %v510 = vmul.f32 %v394, %v454
        %v511 = vmul.f32 %v395, %v454
        %v512 = vmul.f32 %v396, %v454
        %v513 = vmul.f32 %v397, %v454
        %v514 = vmul.f32 %v398, %v454
        %v515 = vmul.f32 %v399, %v454
        %v516 = vmul.f32 %v400, %v454
        %v517 = vmul.f32 %v401, %v454
        %v518 = vmul.f32 %v402, %v454
        %v519 = vmul.f32 %v403, %v454
        %v520 = vmul.f32 %v404, %v454
        %v521 = vmul.f32 %v405, %v454
        %v522 = vmul.f32 %v406, %v454
        %v523 = vmul.f32 %v407, %v454
        %v524 = vmul.f32 %v408, %v454
        %v525 = vmul.f32 %v409, %v454
        %v526 = vmul.f32 %v410, %v454
        %v527 = vmul.f32 %v411, %v454
        %v528 = vmul.f32 %v412, %v454
        %v529 = vmul.f32 %v413, %v454
        %v530 = vmul.f32 %v414, %v454
        %v531 = vmul.f32 %v415, %v454
        %v532 = vmul.f32 %v416, %v454
        %v533 = vmul.f32 %v417, %v454
        %v534 = vmul.f32 %v418, %v454
        %v535 = vmul.f32 %v419, %v454
        %v536 = vmul.f32 %v420, %v454
        %v537 = vmul.f32 %v421, %v454
        %v538 = vmul.f32 %v422, %v454
        %v539 = vmul.f32 %v423, %v454
        %v540 = vmul.f32 %v424, %v454
        %v541 = vmul.f32 %v425, %v454
        %v542 = vmul.f32 %v426, %v454
        %v543 = vmul.f32 %v427, %v454
        %v544 = vmul.f32 %v428, %v454
        %v545 = vmul.f32 %v429, %v454
        %v546 = vmul.f32 %v430, %v454
        %v547 = vmul.f32 %v431, %v454
        %v548 = vmul.f32 %v432, %v454
        %v549 = vmul.f32 %v433, %v454
        %v550 = vmul.f32 %v434, %v454
        %v551 = vmul.f32 %v435, %v454
        %v552 = vmul.f32 %v436, %v454
        %v553 = vmul.f32 %v437, %v454
        %v554 = vmul.f32 %v438, %v454
        %v555 = vmul.f32 %v439, %v454
        %v556 = vmul.f32 %v440, %v454
        %v557 = vmul.f32 %v441, %v454
        %v558 = vmul.f32 %v442, %v454
        %v559 = vmul.f32 %v443, %v454
        %v560 = vmul.f32 %v444, %v454
        %v561 = vmul.f32 %v445, %v454
        %v562 = vmul.f32 %v446, %v454
        %v563 = vmul.f32 %v447, %v454
        %v564 = vmul.f32 %v448, %v454
        %v565 = vmul.f32 %v449, %v454
        %v566 = vmul.f32 %v450, %v454
        %v567 = vadd.f32 %v337, %v455
        %v568 = vadd.f32 %v337, %v456
        %v569 = vadd.f32 %v337, %v457
        %v570 = vadd.f32 %v337, %v458
        %v571 = vadd.f32 %v337, %v459
        %v572 = vadd.f32 %v337, %v460
        %v573 = vadd.f32 %v337, %v461
        %v574 = vadd.f32 %v337, %v462
        %v575 = vadd.f32 %v337, %v463
        %v576 = vadd.f32 %v337, %v464
        %v577 = vadd.f32 %v337, %v465
        %v578 = vadd.f32 %v337, %v466
        %v579 = vadd.f32 %v337, %v467
        %v580 = vadd.f32 %v337, %v468
        %v581 = vadd.f32 %v337, %v469
        %v582 = vadd.f32 %v337, %v470
        %v583 = vadd.f32 %v337, %v471
        %v584 = vadd.f32 %v337, %v472
        %v585 = vadd.f32 %v337, %v473
        %v586 = vadd.f32 %v337, %v474
        %v587 = vadd.f32 %v337, %v475
        %v588 = vadd.f32 %v337, %v476
        %v589 = vadd.f32 %v337, %v477
        %v590 = vadd.f32 %v337, %v478
        %v591 = vadd.f32 %v337, %v479
        %v592 = vadd.f32 %v337, %v480
        %v593 = vadd.f32 %v337, %v481
        %v594 = vadd.f32 %v337, %v482
        %v595 = vadd.f32 %v337, %v483
        %v596 = vadd.f32 %v337, %v484
        %v597 = vadd.f32 %v337, %v485
        %v598 = vadd.f32 %v337, %v486
        %v599 = vadd.f32 %v337, %v487
        %v600 = vadd.f32 %v337, %v488
        %v601 = vadd.f32 %v337, %v489
        %v602 = vadd.f32 %v337, %v490
        %v603 = vadd.f32 %v337, %v491
        %v604 = vadd.f32 %v337, %v492
        %v605 = vadd.f32 %v337, %v493
        %v606 = vadd.f32 %v337, %v494
        %v607 = vadd.f32 %v337, %v495
        %v608 = vadd.f32 %v337, %v496
        %v609 = vadd.f32 %v337, %v497
        %v610 = vadd.f32 %v337, %v498
        %v611 = vadd.f32 %v337, %v499
        %v612 = vadd.f32 %v337, %v500
        %v613 = vadd.f32 %v337, %v501
        %v614 = vadd.f32 %v337, %v502
        %v615 = vadd.f32 %v337, %v503
        %v616 = vadd.f32 %v337, %v504
        %v617 = vadd.f32 %v337, %v505
        %v618 = vadd.f32 %v337, %v506
        %v619 = vadd.f32 %v337, %v507
        %v620 = vadd.f32 %v337, %v508
        %v621 = vadd.f32 %v337, %v509
        %v622 = vadd.f32 %v337, %v510
        %v623 = vadd.f32 %v337, %v511
        %v624 = vadd.f32 %v337, %v512
        %v625 = vadd.f32 %v337, %v513
        %v626 = vadd.f32 %v337, %v514
        %v627 = vadd.f32 %v337, %v515
        %v628 = vadd.f32 %v337, %v516
        %v629 = vadd.f32 %v337, %v517
        %v630 = vadd.f32 %v337, %v518
        %v631 = vadd.f32 %v337, %v519
        %v632 = vadd.f32 %v337, %v520
        %v633 = vadd.f32 %v337, %v521
        %v634 = vadd.f32 %v337, %v522
        %v635 = vadd.f32 %v337, %v523
        %v636 = vadd.f32 %v337, %v524
        %v637 = vadd.f32 %v337, %v525
        %v638 = vadd.f32 %v337, %v526
        %v639 = vadd.f32 %v337, %v527
        %v640 = vadd.f32 %v337, %v528
        %v641 = vadd.f32 %v337, %v529
        %v642 = vadd.f32 %v337, %v530
        %v643 = vadd.f32 %v337, %v531
        %v644 = vadd.f32 %v337, %v532
        %v645 = vadd.f32 %v337, %v533
        %v646 = vadd.f32 %v337, %v534
        %v647 = vadd.f32 %v337, %v535
        %v648 = vadd.f32 %v337, %v536
        %v649 = vadd.f32 %v337, %v537
        %v650 = vadd.f32 %v337, %v538
        %v651 = vadd.f32 %v337, %v539
        %v652 = vadd.f32 %v337, %v540
        %v653 = vadd.f32 %v337, %v541
        %v654 = vadd.f32 %v337, %v542
        %v655 = vadd.f32 %v337, %v543
        %v656 = vadd.f32 %v337, %v544
        %v657 = vadd.f32 %v337, %v545
        %v658 = vadd.f32 %v337, %v546
        %v659 = vadd.f32 %v337, %v547
        %v660 = vadd.f32 %v337, %v548
        %v661 = vadd.f32 %v337, %v549
        %v662 = vadd.f32 %v337, %v550
        %v663 = vadd.f32 %v337, %v551
        %v664 = vadd.f32 %v337, %v552
        %v665 = vadd.f32 %v337, %v553
        %v666 = vadd.f32 %v337, %v554
        %v667 = vadd.f32 %v337, %v555
        %v668 = vadd.f32 %v337, %v556
        %v669 = vadd.f32 %v337, %v557
        %v670 = vadd.f32 %v337, %v558
        %v671 = vadd.f32 %v337, %v559
        %v672 = vadd.f32 %v337, %v560
        %v673 = vadd.f32 %v337, %v561
        %v674 = vadd.f32 %v337, %v562
        %v675 = vadd.f32 %v337, %v563
        %v676 = vadd.f32 %v337, %v564
        %v677 = vadd.f32 %v337, %v565
        %v678 = vadd.f32 %v337, %v566
        %v679 = vld [vmem:[%s329 + $0x1] sm:$0xff]
        %v680 = vld [vmem:[%s329 + $0x9] sm:$0xff]
        %v681 = vld [vmem:[%s329 + $0x11] sm:$0xff]
        %v682 = vld [vmem:[%s329 + $0x19] sm:$0xf]
        %v683 = vld [vmem:[%s329 + $0x21] sm:$0xff]
        %v684 = vld [vmem:[%s329 + $0x29] sm:$0xff]
        %v685 = vld [vmem:[%s329 + $0x31] sm:$0xff]
        %v686 = vld [vmem:[%s329 + $0x39] sm:$0xf]
        %v687 = vld [vmem:[%s329 + $0x41] sm:$0xff]
        %v688 = vld [vmem:[%s329 + $0x49] sm:$0xff]
        %v689 = vld [vmem:[%s329 + $0x51] sm:$0xff]
        %v690 = vld [vmem:[%s329 + $0x59] sm:$0xf]
        %v691 = vld [vmem:[%s329 + $0x61] sm:$0xff]
        %v692 = vld [vmem:[%s329 + $0x69] sm:$0xff]
        %v693 = vld [vmem:[%s329 + $0x71] sm:$0xff]
        %v694 = vld [vmem:[%s329 + $0x79] sm:$0xf]
        %v695 = vld [vmem:[%s329 + $0x81] sm:$0xff]
        %v696 = vld [vmem:[%s329 + $0x89] sm:$0xff]
        %v697 = vld [vmem:[%s329 + $0x91] sm:$0xff]
        %v698 = vld [vmem:[%s329 + $0x99] sm:$0xf]
        %v699 = vld [vmem:[%s329 + $0xa1] sm:$0xff]
        %v700 = vld [vmem:[%s329 + $0xa9] sm:$0xff]
        %v701 = vld [vmem:[%s329 + $0xb1] sm:$0xff]
        %v702 = vld [vmem:[%s329 + $0xb9] sm:$0xf]
        %v703 = vld [vmem:[%s329 + $0xc1] sm:$0xff]
        %v704 = vld [vmem:[%s329 + $0xc9] sm:$0xff]
        %v705 = vld [vmem:[%s329 + $0xd1] sm:$0xff]
        %v706 = vld [vmem:[%s329 + $0xd9] sm:$0xf]
        %v707 = vld [vmem:[%s329 + $0xe1] sm:$0xff]
        %v708 = vld [vmem:[%s329 + $0xe9] sm:$0xff]
        %v709 = vld [vmem:[%s329 + $0xf1] sm:$0xff]
        %v710 = vld [vmem:[%s329 + $0xf9] sm:$0xf]
        %v711 = vld [vmem:[%s329 + $0x101] sm:$0xff]
        %v712 = vld [vmem:[%s329 + $0x109] sm:$0xff]
        %v713 = vld [vmem:[%s329 + $0x111] sm:$0xff]
        %v714 = vld [vmem:[%s329 + $0x119] sm:$0xf]
        %v715 = vld [vmem:[%s329 + $0x121] sm:$0xff]
        %v716 = vld [vmem:[%s329 + $0x129] sm:$0xff]
        %v717 = vld [vmem:[%s329 + $0x131] sm:$0xff]
        %v718 = vld [vmem:[%s329 + $0x139] sm:$0xf]
        %v719 = vld [vmem:[%s329 + $0x141] sm:$0xff]
        %v720 = vld [vmem:[%s329 + $0x149] sm:$0xff]
        %v721 = vld [vmem:[%s329 + $0x151] sm:$0xff]
        %v722 = vld [vmem:[%s329 + $0x159] sm:$0xf]
        %v723 = vld [vmem:[%s329 + $0x161] sm:$0xff]
        %v724 = vld [vmem:[%s329 + $0x169] sm:$0xff]
        %v725 = vld [vmem:[%s329 + $0x171] sm:$0xff]
        %v726 = vld [vmem:[%s329 + $0x179] sm:$0xf]
        %v727 = vld [vmem:[%s329 + $0x181] sm:$0xff]
        %v728 = vld [vmem:[%s329 + $0x189] sm:$0xff]
        %v729 = vld [vmem:[%s329 + $0x191] sm:$0xff]
        %v730 = vld [vmem:[%s329 + $0x199] sm:$0xf]
        %v731 = vld [vmem:[%s329 + $0x1a1] sm:$0xff]
        %v732 = vld [vmem:[%s329 + $0x1a9] sm:$0xff]
        %v733 = vld [vmem:[%s329 + $0x1b1] sm:$0xff]
        %v734 = vld [vmem:[%s329 + $0x1b9] sm:$0xf]
        %v735 = vld [vmem:[%s329 + $0x1c1] sm:$0xff]
        %v736 = vld [vmem:[%s329 + $0x1c9] sm:$0xff]
        %v737 = vld [vmem:[%s329 + $0x1d1] sm:$0xff]
        %v738 = vld [vmem:[%s329 + $0x1d9] sm:$0xf]
        %v739 = vld [vmem:[%s329 + $0x1e1] sm:$0xff]
        %v740 = vld [vmem:[%s329 + $0x1e9] sm:$0xff]
        %v741 = vld [vmem:[%s329 + $0x1f1] sm:$0xff]
        %v742 = vld [vmem:[%s329 + $0x1f9] sm:$0xf]
        %v743 = vld [vmem:[%s329 + $0x201] sm:$0xff]
        %v744 = vld [vmem:[%s329 + $0x209] sm:$0xff]
        %v745 = vld [vmem:[%s329 + $0x211] sm:$0xff]
        %v746 = vld [vmem:[%s329 + $0x219] sm:$0xf]
        %v747 = vld [vmem:[%s329 + $0x221] sm:$0xff]
        %v748 = vld [vmem:[%s329 + $0x229] sm:$0xff]
        %v749 = vld [vmem:[%s329 + $0x231] sm:$0xff]
        %v750 = vld [vmem:[%s329 + $0x239] sm:$0xf]
        %v751 = vld [vmem:[%s329 + $0x241] sm:$0xff]
        %v752 = vld [vmem:[%s329 + $0x249] sm:$0xff]
        %v753 = vld [vmem:[%s329 + $0x251] sm:$0xff]
        %v754 = vld [vmem:[%s329 + $0x259] sm:$0xf]
        %v755 = vld [vmem:[%s329 + $0x261] sm:$0xff]
        %v756 = vld [vmem:[%s329 + $0x269] sm:$0xff]
        %v757 = vld [vmem:[%s329 + $0x271] sm:$0xff]
        %v758 = vld [vmem:[%s329 + $0x279] sm:$0xf]
        %v759 = vld [vmem:[%s329 + $0x281] sm:$0xff]
        %v760 = vld [vmem:[%s329 + $0x289] sm:$0xff]
        %v761 = vld [vmem:[%s329 + $0x291] sm:$0xff]
        %v762 = vld [vmem:[%s329 + $0x299] sm:$0xf]
        %v763 = vld [vmem:[%s329 + $0x2a1] sm:$0xff]
        %v764 = vld [vmem:[%s329 + $0x2a9] sm:$0xff]
        %v765 = vld [vmem:[%s329 + $0x2b1] sm:$0xff]
        %v766 = vld [vmem:[%s329 + $0x2b9] sm:$0xf]
        %v767 = vld [vmem:[%s329 + $0x2c1] sm:$0xff]
        %v768 = vld [vmem:[%s329 + $0x2c9] sm:$0xff]
        %v769 = vld [vmem:[%s329 + $0x2d1] sm:$0xff]
        %v770 = vld [vmem:[%s329 + $0x2d9] sm:$0xf]
        %v771 = vld [vmem:[%s329 + $0x2e1] sm:$0xff]
        %v772 = vld [vmem:[%s329 + $0x2e9] sm:$0xff]
        %v773 = vld [vmem:[%s329 + $0x2f1] sm:$0xff]
        %v774 = vld [vmem:[%s329 + $0x2f9] sm:$0xf]
        %v775 = vld [vmem:[%s329 + $0x301] sm:$0xff]
        %v776 = vld [vmem:[%s329 + $0x309] sm:$0xff]
        %v777 = vld [vmem:[%s329 + $0x311] sm:$0xff]
        %v778 = vld [vmem:[%s329 + $0x319] sm:$0xf]
        %v779 = vld [vmem:[%s329 + $0x321] sm:$0xff]
        %v780 = vld [vmem:[%s329 + $0x329] sm:$0xff]
        %v781 = vld [vmem:[%s329 + $0x331] sm:$0xff]
        %v782 = vld [vmem:[%s329 + $0x339] sm:$0xf]
        %v783 = vld [vmem:[%s329 + $0x341] sm:$0xff]
        %v784 = vld [vmem:[%s329 + $0x349] sm:$0xff]
        %v785 = vld [vmem:[%s329 + $0x351] sm:$0xff]
        %v786 = vld [vmem:[%s329 + $0x359] sm:$0xf]
        %v787 = vld [vmem:[%s329 + $0x361] sm:$0xff]
        %v788 = vld [vmem:[%s329 + $0x369] sm:$0xff]
        %v789 = vld [vmem:[%s329 + $0x371] sm:$0xff]
        %v790 = vld [vmem:[%s329 + $0x379] sm:$0xf]
        %v791 = vlaneseq
        %v792 = vshrl.u32 %v791, 7
        %v793 = vsub.s32 1, %v792
        %v794 = vrot.slane %v330, %v793
        %v795 = vmul.f32 %v679, %v794
        %v796 = vmul.f32 %v680, %v794
        %v797 = vmul.f32 %v681, %v794
        %v798 = vmul.f32 %v682, %v794
        %v799 = vmul.f32 %v683, %v794
        %v800 = vmul.f32 %v684, %v794
        %v801 = vmul.f32 %v685, %v794
        %v802 = vmul.f32 %v686, %v794
        %v803 = vmul.f32 %v687, %v794
        %v804 = vmul.f32 %v688, %v794
        %v805 = vmul.f32 %v689, %v794
        %v806 = vmul.f32 %v690, %v794
        %v807 = vmul.f32 %v691, %v794
        %v808 = vmul.f32 %v692, %v794
        %v809 = vmul.f32 %v693, %v794
        %v810 = vmul.f32 %v694, %v794
        %v811 = vmul.f32 %v695, %v794
        %v812 = vmul.f32 %v696, %v794
        %v813 = vmul.f32 %v697, %v794
        %v814 = vmul.f32 %v698, %v794
        %v815 = vmul.f32 %v699, %v794
        %v816 = vmul.f32 %v700, %v794
        %v817 = vmul.f32 %v701, %v794
        %v818 = vmul.f32 %v702, %v794
        %v819 = vmul.f32 %v703, %v794
        %v820 = vmul.f32 %v704, %v794
        %v821 = vmul.f32 %v705, %v794
        %v822 = vmul.f32 %v706, %v794
        %v823 = vmul.f32 %v707, %v794
        %v824 = vmul.f32 %v708, %v794
        %v825 = vmul.f32 %v709, %v794
        %v826 = vmul.f32 %v710, %v794
        %v827 = vmul.f32 %v711, %v794
        %v828 = vmul.f32 %v712, %v794
        %v829 = vmul.f32 %v713, %v794
        %v830 = vmul.f32 %v714, %v794
        %v831 = vmul.f32 %v715, %v794
        %v832 = vmul.f32 %v716, %v794
        %v833 = vmul.f32 %v717, %v794
        %v834 = vmul.f32 %v718, %v794
        %v835 = vmul.f32 %v719, %v794
        %v836 = vmul.f32 %v720, %v794
        %v837 = vmul.f32 %v721, %v794
        %v838 = vmul.f32 %v722, %v794
        %v839 = vmul.f32 %v723, %v794
        %v840 = vmul.f32 %v724, %v794
        %v841 = vmul.f32 %v725, %v794
        %v842 = vmul.f32 %v726, %v794
        %v843 = vmul.f32 %v727, %v794
        %v844 = vmul.f32 %v728, %v794
        %v845 = vmul.f32 %v729, %v794
        %v846 = vmul.f32 %v730, %v794
        %v847 = vmul.f32 %v731, %v794
        %v848 = vmul.f32 %v732, %v794
        %v849 = vmul.f32 %v733, %v794
        %v850 = vmul.f32 %v734, %v794
        %v851 = vmul.f32 %v735, %v794
        %v852 = vmul.f32 %v736, %v794
        %v853 = vmul.f32 %v737, %v794
        %v854 = vmul.f32 %v738, %v794
        %v855 = vmul.f32 %v739, %v794
        %v856 = vmul.f32 %v740, %v794
        %v857 = vmul.f32 %v741, %v794
        %v858 = vmul.f32 %v742, %v794
        %v859 = vmul.f32 %v743, %v794
        %v860 = vmul.f32 %v744, %v794
        %v861 = vmul.f32 %v745, %v794
        %v862 = vmul.f32 %v746, %v794
        %v863 = vmul.f32 %v747, %v794
        %v864 = vmul.f32 %v748, %v794
        %v865 = vmul.f32 %v749, %v794
        %v866 = vmul.f32 %v750, %v794
        %v867 = vmul.f32 %v751, %v794
        %v868 = vmul.f32 %v752, %v794
        %v869 = vmul.f32 %v753, %v794
        %v870 = vmul.f32 %v754, %v794
        %v871 = vmul.f32 %v755, %v794
        %v872 = vmul.f32 %v756, %v794
        %v873 = vmul.f32 %v757, %v794
        %v874 = vmul.f32 %v758, %v794
        %v875 = vmul.f32 %v759, %v794
        %v876 = vmul.f32 %v760, %v794
        %v877 = vmul.f32 %v761, %v794
        %v878 = vmul.f32 %v762, %v794
        %v879 = vmul.f32 %v763, %v794
        %v880 = vmul.f32 %v764, %v794
        %v881 = vmul.f32 %v765, %v794
        %v882 = vmul.f32 %v766, %v794
        %v883 = vmul.f32 %v767, %v794
        %v884 = vmul.f32 %v768, %v794
        %v885 = vmul.f32 %v769, %v794
        %v886 = vmul.f32 %v770, %v794
        %v887 = vmul.f32 %v771, %v794
        %v888 = vmul.f32 %v772, %v794
        %v889 = vmul.f32 %v773, %v794
        %v890 = vmul.f32 %v774, %v794
        %v891 = vmul.f32 %v775, %v794
        %v892 = vmul.f32 %v776, %v794
        %v893 = vmul.f32 %v777, %v794
        %v894 = vmul.f32 %v778, %v794
        %v895 = vmul.f32 %v779, %v794
        %v896 = vmul.f32 %v780, %v794
        %v897 = vmul.f32 %v781, %v794
        %v898 = vmul.f32 %v782, %v794
        %v899 = vmul.f32 %v783, %v794
        %v900 = vmul.f32 %v784, %v794
        %v901 = vmul.f32 %v785, %v794
        %v902 = vmul.f32 %v786, %v794
        %v903 = vmul.f32 %v787, %v794
        %v904 = vmul.f32 %v788, %v794
        %v905 = vmul.f32 %v789, %v794
        %v906 = vmul.f32 %v790, %v794
        %v907 = vadd.f32 %v567, %v795
        %v908 = vadd.f32 %v568, %v796
        %v909 = vadd.f32 %v569, %v797
        %v910 = vadd.f32 %v570, %v798
        %v911 = vadd.f32 %v571, %v799
        %v912 = vadd.f32 %v572, %v800
        %v913 = vadd.f32 %v573, %v801
        %v914 = vadd.f32 %v574, %v802
        %v915 = vadd.f32 %v575, %v803
        %v916 = vadd.f32 %v576, %v804
        %v917 = vadd.f32 %v577, %v805
        %v918 = vadd.f32 %v578, %v806
        %v919 = vadd.f32 %v579, %v807
        %v920 = vadd.f32 %v580, %v808
        %v921 = vadd.f32 %v581, %v809
        %v922 = vadd.f32 %v582, %v810
        %v923 = vadd.f32 %v583, %v811
        %v924 = vadd.f32 %v584, %v812
        %v925 = vadd.f32 %v585, %v813
        %v926 = vadd.f32 %v586, %v814
        %v927 = vadd.f32 %v587, %v815
        %v928 = vadd.f32 %v588, %v816
        %v929 = vadd.f32 %v589, %v817
        %v930 = vadd.f32 %v590, %v818
        %v931 = vadd.f32 %v591, %v819
        %v932 = vadd.f32 %v592, %v820
        %v933 = vadd.f32 %v593, %v821
        %v934 = vadd.f32 %v594, %v822
        %v935 = vadd.f32 %v595, %v823
        %v936 = vadd.f32 %v596, %v824
        %v937 = vadd.f32 %v597, %v825
        %v938 = vadd.f32 %v598, %v826
        %v939 = vadd.f32 %v599, %v827
        %v940 = vadd.f32 %v600, %v828
        %v941 = vadd.f32 %v601, %v829
        %v942 = vadd.f32 %v602, %v830
        %v943 = vadd.f32 %v603, %v831
        %v944 = vadd.f32 %v604, %v832
        %v945 = vadd.f32 %v605, %v833
        %v946 = vadd.f32 %v606, %v834
        %v947 = vadd.f32 %v607, %v835
        %v948 = vadd.f32 %v608, %v836
        %v949 = vadd.f32 %v609, %v837
        %v950 = vadd.f32 %v610, %v838
        %v951 = vadd.f32 %v611, %v839
        %v952 = vadd.f32 %v612, %v840
        %v953 = vadd.f32 %v613, %v841
        %v954 = vadd.f32 %v614, %v842
        %v955 = vadd.f32 %v615, %v843
        %v956 = vadd.f32 %v616, %v844
        %v957 = vadd.f32 %v617, %v845
        %v958 = vadd.f32 %v618, %v846
        %v959 = vadd.f32 %v619, %v847
        %v960 = vadd.f32 %v620, %v848
        %v961 = vadd.f32 %v621, %v849
        %v962 = vadd.f32 %v622, %v850
        %v963 = vadd.f32 %v623, %v851
        %v964 = vadd.f32 %v624, %v852
        %v965 = vadd.f32 %v625, %v853
        %v966 = vadd.f32 %v626, %v854
        %v967 = vadd.f32 %v627, %v855
        %v968 = vadd.f32 %v628, %v856
        %v969 = vadd.f32 %v629, %v857
        %v970 = vadd.f32 %v630, %v858
        %v971 = vadd.f32 %v631, %v859
        %v972 = vadd.f32 %v632, %v860
        %v973 = vadd.f32 %v633, %v861
        %v974 = vadd.f32 %v634, %v862
        %v975 = vadd.f32 %v635, %v863
        %v976 = vadd.f32 %v636, %v864
        %v977 = vadd.f32 %v637, %v865
        %v978 = vadd.f32 %v638, %v866
        %v979 = vadd.f32 %v639, %v867
        %v980 = vadd.f32 %v640, %v868
        %v981 = vadd.f32 %v641, %v869
        %v982 = vadd.f32 %v642, %v870
        %v983 = vadd.f32 %v643, %v871
        %v984 = vadd.f32 %v644, %v872
        %v985 = vadd.f32 %v645, %v873
        %v986 = vadd.f32 %v646, %v874
        %v987 = vadd.f32 %v647, %v875
        %v988 = vadd.f32 %v648, %v876
        %v989 = vadd.f32 %v649, %v877
        %v990 = vadd.f32 %v650, %v878
        %v991 = vadd.f32 %v651, %v879
        %v992 = vadd.f32 %v652, %v880
        %v993 = vadd.f32 %v653, %v881
        %v994 = vadd.f32 %v654, %v882
        %v995 = vadd.f32 %v655, %v883
        %v996 = vadd.f32 %v656, %v884
        %v997 = vadd.f32 %v657, %v885
        %v998 = vadd.f32 %v658, %v886
        %v999 = vadd.f32 %v659, %v887
        %v1000 = vadd.f32 %v660, %v888
        %v1001 = vadd.f32 %v661, %v889
        %v1002 = vadd.f32 %v662, %v890
        %v1003 = vadd.f32 %v663, %v891
        %v1004 = vadd.f32 %v664, %v892
        %v1005 = vadd.f32 %v665, %v893
        %v1006 = vadd.f32 %v666, %v894
        %v1007 = vadd.f32 %v667, %v895
        %v1008 = vadd.f32 %v668, %v896
        %v1009 = vadd.f32 %v669, %v897
        %v1010 = vadd.f32 %v670, %v898
        %v1011 = vadd.f32 %v671, %v899
        %v1012 = vadd.f32 %v672, %v900
        %v1013 = vadd.f32 %v673, %v901
        %v1014 = vadd.f32 %v674, %v902
        %v1015 = vadd.f32 %v675, %v903
        %v1016 = vadd.f32 %v676, %v904
        %v1017 = vadd.f32 %v677, %v905
        %v1018 = vadd.f32 %v678, %v906
        %v1019 = vld [vmem:[%s329 + $0x2] sm:$0xff]
        %v1020 = vld [vmem:[%s329 + $0xa] sm:$0xff]
        %v1021 = vld [vmem:[%s329 + $0x12] sm:$0xff]
        %v1022 = vld [vmem:[%s329 + $0x1a] sm:$0xf]
        %v1023 = vld [vmem:[%s329 + $0x22] sm:$0xff]
        %v1024 = vld [vmem:[%s329 + $0x2a] sm:$0xff]
        %v1025 = vld [vmem:[%s329 + $0x32] sm:$0xff]
        %v1026 = vld [vmem:[%s329 + $0x3a] sm:$0xf]
        %v1027 = vld [vmem:[%s329 + $0x42] sm:$0xff]
        %v1028 = vld [vmem:[%s329 + $0x4a] sm:$0xff]
        %v1029 = vld [vmem:[%s329 + $0x52] sm:$0xff]
        %v1030 = vld [vmem:[%s329 + $0x5a] sm:$0xf]
        %v1031 = vld [vmem:[%s329 + $0x62] sm:$0xff]
        %v1032 = vld [vmem:[%s329 + $0x6a] sm:$0xff]
        %v1033 = vld [vmem:[%s329 + $0x72] sm:$0xff]
        %v1034 = vld [vmem:[%s329 + $0x7a] sm:$0xf]
        %v1035 = vld [vmem:[%s329 + $0x82] sm:$0xff]
        %v1036 = vld [vmem:[%s329 + $0x8a] sm:$0xff]
        %v1037 = vld [vmem:[%s329 + $0x92] sm:$0xff]
        %v1038 = vld [vmem:[%s329 + $0x9a] sm:$0xf]
        %v1039 = vld [vmem:[%s329 + $0xa2] sm:$0xff]
        %v1040 = vld [vmem:[%s329 + $0xaa] sm:$0xff]
        %v1041 = vld [vmem:[%s329 + $0xb2] sm:$0xff]
        %v1042 = vld [vmem:[%s329 + $0xba] sm:$0xf]
        %v1043 = vld [vmem:[%s329 + $0xc2] sm:$0xff]
        %v1044 = vld [vmem:[%s329 + $0xca] sm:$0xff]
        %v1045 = vld [vmem:[%s329 + $0xd2] sm:$0xff]
        %v1046 = vld [vmem:[%s329 + $0xda] sm:$0xf]
        %v1047 = vld [vmem:[%s329 + $0xe2] sm:$0xff]
        %v1048 = vld [vmem:[%s329 + $0xea] sm:$0xff]
        %v1049 = vld [vmem:[%s329 + $0xf2] sm:$0xff]
        %v1050 = vld [vmem:[%s329 + $0xfa] sm:$0xf]
        %v1051 = vld [vmem:[%s329 + $0x102] sm:$0xff]
        %v1052 = vld [vmem:[%s329 + $0x10a] sm:$0xff]
        %v1053 = vld [vmem:[%s329 + $0x112] sm:$0xff]
        %v1054 = vld [vmem:[%s329 + $0x11a] sm:$0xf]
        %v1055 = vld [vmem:[%s329 + $0x122] sm:$0xff]
        %v1056 = vld [vmem:[%s329 + $0x12a] sm:$0xff]
        %v1057 = vld [vmem:[%s329 + $0x132] sm:$0xff]
        %v1058 = vld [vmem:[%s329 + $0x13a] sm:$0xf]
        %v1059 = vld [vmem:[%s329 + $0x142] sm:$0xff]
        %v1060 = vld [vmem:[%s329 + $0x14a] sm:$0xff]
        %v1061 = vld [vmem:[%s329 + $0x152] sm:$0xff]
        %v1062 = vld [vmem:[%s329 + $0x15a] sm:$0xf]
        %v1063 = vld [vmem:[%s329 + $0x162] sm:$0xff]
        %v1064 = vld [vmem:[%s329 + $0x16a] sm:$0xff]
        %v1065 = vld [vmem:[%s329 + $0x172] sm:$0xff]
        %v1066 = vld [vmem:[%s329 + $0x17a] sm:$0xf]
        %v1067 = vld [vmem:[%s329 + $0x182] sm:$0xff]
        %v1068 = vld [vmem:[%s329 + $0x18a] sm:$0xff]
        %v1069 = vld [vmem:[%s329 + $0x192] sm:$0xff]
        %v1070 = vld [vmem:[%s329 + $0x19a] sm:$0xf]
        %v1071 = vld [vmem:[%s329 + $0x1a2] sm:$0xff]
        %v1072 = vld [vmem:[%s329 + $0x1aa] sm:$0xff]
        %v1073 = vld [vmem:[%s329 + $0x1b2] sm:$0xff]
        %v1074 = vld [vmem:[%s329 + $0x1ba] sm:$0xf]
        %v1075 = vld [vmem:[%s329 + $0x1c2] sm:$0xff]
        %v1076 = vld [vmem:[%s329 + $0x1ca] sm:$0xff]
        %v1077 = vld [vmem:[%s329 + $0x1d2] sm:$0xff]
        %v1078 = vld [vmem:[%s329 + $0x1da] sm:$0xf]
        %v1079 = vld [vmem:[%s329 + $0x1e2] sm:$0xff]
        %v1080 = vld [vmem:[%s329 + $0x1ea] sm:$0xff]
        %v1081 = vld [vmem:[%s329 + $0x1f2] sm:$0xff]
        %v1082 = vld [vmem:[%s329 + $0x1fa] sm:$0xf]
        %v1083 = vld [vmem:[%s329 + $0x202] sm:$0xff]
        %v1084 = vld [vmem:[%s329 + $0x20a] sm:$0xff]
        %v1085 = vld [vmem:[%s329 + $0x212] sm:$0xff]
        %v1086 = vld [vmem:[%s329 + $0x21a] sm:$0xf]
        %v1087 = vld [vmem:[%s329 + $0x222] sm:$0xff]
        %v1088 = vld [vmem:[%s329 + $0x22a] sm:$0xff]
        %v1089 = vld [vmem:[%s329 + $0x232] sm:$0xff]
        %v1090 = vld [vmem:[%s329 + $0x23a] sm:$0xf]
        %v1091 = vld [vmem:[%s329 + $0x242] sm:$0xff]
        %v1092 = vld [vmem:[%s329 + $0x24a] sm:$0xff]
        %v1093 = vld [vmem:[%s329 + $0x252] sm:$0xff]
        %v1094 = vld [vmem:[%s329 + $0x25a] sm:$0xf]
        %v1095 = vld [vmem:[%s329 + $0x262] sm:$0xff]
        %v1096 = vld [vmem:[%s329 + $0x26a] sm:$0xff]
        %v1097 = vld [vmem:[%s329 + $0x272] sm:$0xff]
        %v1098 = vld [vmem:[%s329 + $0x27a] sm:$0xf]
        %v1099 = vld [vmem:[%s329 + $0x282] sm:$0xff]
        %v1100 = vld [vmem:[%s329 + $0x28a] sm:$0xff]
        %v1101 = vld [vmem:[%s329 + $0x292] sm:$0xff]
        %v1102 = vld [vmem:[%s329 + $0x29a] sm:$0xf]
        %v1103 = vld [vmem:[%s329 + $0x2a2] sm:$0xff]
        %v1104 = vld [vmem:[%s329 + $0x2aa] sm:$0xff]
        %v1105 = vld [vmem:[%s329 + $0x2b2] sm:$0xff]
        %v1106 = vld [vmem:[%s329 + $0x2ba] sm:$0xf]
        %v1107 = vld [vmem:[%s329 + $0x2c2] sm:$0xff]
        %v1108 = vld [vmem:[%s329 + $0x2ca] sm:$0xff]
        %v1109 = vld [vmem:[%s329 + $0x2d2] sm:$0xff]
        %v1110 = vld [vmem:[%s329 + $0x2da] sm:$0xf]
        %v1111 = vld [vmem:[%s329 + $0x2e2] sm:$0xff]
        %v1112 = vld [vmem:[%s329 + $0x2ea] sm:$0xff]
        %v1113 = vld [vmem:[%s329 + $0x2f2] sm:$0xff]
        %v1114 = vld [vmem:[%s329 + $0x2fa] sm:$0xf]
        %v1115 = vld [vmem:[%s329 + $0x302] sm:$0xff]
        %v1116 = vld [vmem:[%s329 + $0x30a] sm:$0xff]
        %v1117 = vld [vmem:[%s329 + $0x312] sm:$0xff]
        %v1118 = vld [vmem:[%s329 + $0x31a] sm:$0xf]
        %v1119 = vld [vmem:[%s329 + $0x322] sm:$0xff]
        %v1120 = vld [vmem:[%s329 + $0x32a] sm:$0xff]
        %v1121 = vld [vmem:[%s329 + $0x332] sm:$0xff]
        %v1122 = vld [vmem:[%s329 + $0x33a] sm:$0xf]
        %v1123 = vld [vmem:[%s329 + $0x342] sm:$0xff]
        %v1124 = vld [vmem:[%s329 + $0x34a] sm:$0xff]
        %v1125 = vld [vmem:[%s329 + $0x352] sm:$0xff]
        %v1126 = vld [vmem:[%s329 + $0x35a] sm:$0xf]
        %v1127 = vld [vmem:[%s329 + $0x362] sm:$0xff]
        %v1128 = vld [vmem:[%s329 + $0x36a] sm:$0xff]
        %v1129 = vld [vmem:[%s329 + $0x372] sm:$0xff]
        %v1130 = vld [vmem:[%s329 + $0x37a] sm:$0xf]
        %v1131 = vlaneseq
        %v1132 = vshrl.u32 %v1131, 7
        %v1133 = vsub.s32 2, %v1132
        %v1134 = vrot.slane %v330, %v1133
        %v1135 = vmul.f32 %v1019, %v1134
        %v1136 = vmul.f32 %v1020, %v1134
        %v1137 = vmul.f32 %v1021, %v1134
        %v1138 = vmul.f32 %v1022, %v1134
        %v1139 = vmul.f32 %v1023, %v1134
        %v1140 = vmul.f32 %v1024, %v1134
        %v1141 = vmul.f32 %v1025, %v1134
        %v1142 = vmul.f32 %v1026, %v1134
        %v1143 = vmul.f32 %v1027, %v1134
        %v1144 = vmul.f32 %v1028, %v1134
        %v1145 = vmul.f32 %v1029, %v1134
        %v1146 = vmul.f32 %v1030, %v1134
        %v1147 = vmul.f32 %v1031, %v1134
        %v1148 = vmul.f32 %v1032, %v1134
        %v1149 = vmul.f32 %v1033, %v1134
        %v1150 = vmul.f32 %v1034, %v1134
        %v1151 = vmul.f32 %v1035, %v1134
        %v1152 = vmul.f32 %v1036, %v1134
        %v1153 = vmul.f32 %v1037, %v1134
        %v1154 = vmul.f32 %v1038, %v1134
        %v1155 = vmul.f32 %v1039, %v1134
        %v1156 = vmul.f32 %v1040, %v1134
        %v1157 = vmul.f32 %v1041, %v1134
        %v1158 = vmul.f32 %v1042, %v1134
        %v1159 = vmul.f32 %v1043, %v1134
        %v1160 = vmul.f32 %v1044, %v1134
        %v1161 = vmul.f32 %v1045, %v1134
        %v1162 = vmul.f32 %v1046, %v1134
        %v1163 = vmul.f32 %v1047, %v1134
        %v1164 = vmul.f32 %v1048, %v1134
        %v1165 = vmul.f32 %v1049, %v1134
        %v1166 = vmul.f32 %v1050, %v1134
        %v1167 = vmul.f32 %v1051, %v1134
        %v1168 = vmul.f32 %v1052, %v1134
        %v1169 = vmul.f32 %v1053, %v1134
        %v1170 = vmul.f32 %v1054, %v1134
        %v1171 = vmul.f32 %v1055, %v1134
        %v1172 = vmul.f32 %v1056, %v1134
        %v1173 = vmul.f32 %v1057, %v1134
        %v1174 = vmul.f32 %v1058, %v1134
        %v1175 = vmul.f32 %v1059, %v1134
        %v1176 = vmul.f32 %v1060, %v1134
        %v1177 = vmul.f32 %v1061, %v1134
        %v1178 = vmul.f32 %v1062, %v1134
        %v1179 = vmul.f32 %v1063, %v1134
        %v1180 = vmul.f32 %v1064, %v1134
        %v1181 = vmul.f32 %v1065, %v1134
        %v1182 = vmul.f32 %v1066, %v1134
        %v1183 = vmul.f32 %v1067, %v1134
        %v1184 = vmul.f32 %v1068, %v1134
        %v1185 = vmul.f32 %v1069, %v1134
        %v1186 = vmul.f32 %v1070, %v1134
        %v1187 = vmul.f32 %v1071, %v1134
        %v1188 = vmul.f32 %v1072, %v1134
        %v1189 = vmul.f32 %v1073, %v1134
        %v1190 = vmul.f32 %v1074, %v1134
        %v1191 = vmul.f32 %v1075, %v1134
        %v1192 = vmul.f32 %v1076, %v1134
        %v1193 = vmul.f32 %v1077, %v1134
        %v1194 = vmul.f32 %v1078, %v1134
        %v1195 = vmul.f32 %v1079, %v1134
        %v1196 = vmul.f32 %v1080, %v1134
        %v1197 = vmul.f32 %v1081, %v1134
        %v1198 = vmul.f32 %v1082, %v1134
        %v1199 = vmul.f32 %v1083, %v1134
        %v1200 = vmul.f32 %v1084, %v1134
        %v1201 = vmul.f32 %v1085, %v1134
        %v1202 = vmul.f32 %v1086, %v1134
        %v1203 = vmul.f32 %v1087, %v1134
        %v1204 = vmul.f32 %v1088, %v1134
        %v1205 = vmul.f32 %v1089, %v1134
        %v1206 = vmul.f32 %v1090, %v1134
        %v1207 = vmul.f32 %v1091, %v1134
        %v1208 = vmul.f32 %v1092, %v1134
        %v1209 = vmul.f32 %v1093, %v1134
        %v1210 = vmul.f32 %v1094, %v1134
        %v1211 = vmul.f32 %v1095, %v1134
        %v1212 = vmul.f32 %v1096, %v1134
        %v1213 = vmul.f32 %v1097, %v1134
        %v1214 = vmul.f32 %v1098, %v1134
        %v1215 = vmul.f32 %v1099, %v1134
        %v1216 = vmul.f32 %v1100, %v1134
        %v1217 = vmul.f32 %v1101, %v1134
        %v1218 = vmul.f32 %v1102, %v1134
        %v1219 = vmul.f32 %v1103, %v1134
        %v1220 = vmul.f32 %v1104, %v1134
        %v1221 = vmul.f32 %v1105, %v1134
        %v1222 = vmul.f32 %v1106, %v1134
        %v1223 = vmul.f32 %v1107, %v1134
        %v1224 = vmul.f32 %v1108, %v1134
        %v1225 = vmul.f32 %v1109, %v1134
        %v1226 = vmul.f32 %v1110, %v1134
        %v1227 = vmul.f32 %v1111, %v1134
        %v1228 = vmul.f32 %v1112, %v1134
        %v1229 = vmul.f32 %v1113, %v1134
        %v1230 = vmul.f32 %v1114, %v1134
        %v1231 = vmul.f32 %v1115, %v1134
        %v1232 = vmul.f32 %v1116, %v1134
        %v1233 = vmul.f32 %v1117, %v1134
        %v1234 = vmul.f32 %v1118, %v1134
        %v1235 = vmul.f32 %v1119, %v1134
        %v1236 = vmul.f32 %v1120, %v1134
        %v1237 = vmul.f32 %v1121, %v1134
        %v1238 = vmul.f32 %v1122, %v1134
        %v1239 = vmul.f32 %v1123, %v1134
        %v1240 = vmul.f32 %v1124, %v1134
        %v1241 = vmul.f32 %v1125, %v1134
        %v1242 = vmul.f32 %v1126, %v1134
        %v1243 = vmul.f32 %v1127, %v1134
        %v1244 = vmul.f32 %v1128, %v1134
        %v1245 = vmul.f32 %v1129, %v1134
        %v1246 = vmul.f32 %v1130, %v1134
        %v1247 = vadd.f32 %v907, %v1135
        %v1248 = vadd.f32 %v908, %v1136
        %v1249 = vadd.f32 %v909, %v1137
        %v1250 = vadd.f32 %v910, %v1138
        %v1251 = vadd.f32 %v911, %v1139
        %v1252 = vadd.f32 %v912, %v1140
        %v1253 = vadd.f32 %v913, %v1141
        %v1254 = vadd.f32 %v914, %v1142
        %v1255 = vadd.f32 %v915, %v1143
        %v1256 = vadd.f32 %v916, %v1144
        %v1257 = vadd.f32 %v917, %v1145
        %v1258 = vadd.f32 %v918, %v1146
        %v1259 = vadd.f32 %v919, %v1147
        %v1260 = vadd.f32 %v920, %v1148
        %v1261 = vadd.f32 %v921, %v1149
        %v1262 = vadd.f32 %v922, %v1150
        %v1263 = vadd.f32 %v923, %v1151
        %v1264 = vadd.f32 %v924, %v1152
        %v1265 = vadd.f32 %v925, %v1153
        %v1266 = vadd.f32 %v926, %v1154
        %v1267 = vadd.f32 %v927, %v1155
        %v1268 = vadd.f32 %v928, %v1156
        %v1269 = vadd.f32 %v929, %v1157
        %v1270 = vadd.f32 %v930, %v1158
        %v1271 = vadd.f32 %v931, %v1159
        %v1272 = vadd.f32 %v932, %v1160
        %v1273 = vadd.f32 %v933, %v1161
        %v1274 = vadd.f32 %v934, %v1162
        %v1275 = vadd.f32 %v935, %v1163
        %v1276 = vadd.f32 %v936, %v1164
        %v1277 = vadd.f32 %v937, %v1165
        %v1278 = vadd.f32 %v938, %v1166
        %v1279 = vadd.f32 %v939, %v1167
        %v1280 = vadd.f32 %v940, %v1168
        %v1281 = vadd.f32 %v941, %v1169
        %v1282 = vadd.f32 %v942, %v1170
        %v1283 = vadd.f32 %v943, %v1171
        %v1284 = vadd.f32 %v944, %v1172
        %v1285 = vadd.f32 %v945, %v1173
        %v1286 = vadd.f32 %v946, %v1174
        %v1287 = vadd.f32 %v947, %v1175
        %v1288 = vadd.f32 %v948, %v1176
        %v1289 = vadd.f32 %v949, %v1177
        %v1290 = vadd.f32 %v950, %v1178
        %v1291 = vadd.f32 %v951, %v1179
        %v1292 = vadd.f32 %v952, %v1180
        %v1293 = vadd.f32 %v953, %v1181
        %v1294 = vadd.f32 %v954, %v1182
        %v1295 = vadd.f32 %v955, %v1183
        %v1296 = vadd.f32 %v956, %v1184
        %v1297 = vadd.f32 %v957, %v1185
        %v1298 = vadd.f32 %v958, %v1186
        %v1299 = vadd.f32 %v959, %v1187
        %v1300 = vadd.f32 %v960, %v1188
        %v1301 = vadd.f32 %v961, %v1189
        %v1302 = vadd.f32 %v962, %v1190
        %v1303 = vadd.f32 %v963, %v1191
        %v1304 = vadd.f32 %v964, %v1192
        %v1305 = vadd.f32 %v965, %v1193
        %v1306 = vadd.f32 %v966, %v1194
        %v1307 = vadd.f32 %v967, %v1195
        %v1308 = vadd.f32 %v968, %v1196
        %v1309 = vadd.f32 %v969, %v1197
        %v1310 = vadd.f32 %v970, %v1198
        %v1311 = vadd.f32 %v971, %v1199
        %v1312 = vadd.f32 %v972, %v1200
        %v1313 = vadd.f32 %v973, %v1201
        %v1314 = vadd.f32 %v974, %v1202
        %v1315 = vadd.f32 %v975, %v1203
        %v1316 = vadd.f32 %v976, %v1204
        %v1317 = vadd.f32 %v977, %v1205
        %v1318 = vadd.f32 %v978, %v1206
        %v1319 = vadd.f32 %v979, %v1207
        %v1320 = vadd.f32 %v980, %v1208
        %v1321 = vadd.f32 %v981, %v1209
        %v1322 = vadd.f32 %v982, %v1210
        %v1323 = vadd.f32 %v983, %v1211
        %v1324 = vadd.f32 %v984, %v1212
        %v1325 = vadd.f32 %v985, %v1213
        %v1326 = vadd.f32 %v986, %v1214
        %v1327 = vadd.f32 %v987, %v1215
        %v1328 = vadd.f32 %v988, %v1216
        %v1329 = vadd.f32 %v989, %v1217
        %v1330 = vadd.f32 %v990, %v1218
        %v1331 = vadd.f32 %v991, %v1219
        %v1332 = vadd.f32 %v992, %v1220
        %v1333 = vadd.f32 %v993, %v1221
        %v1334 = vadd.f32 %v994, %v1222
        %v1335 = vadd.f32 %v995, %v1223
        %v1336 = vadd.f32 %v996, %v1224
        %v1337 = vadd.f32 %v997, %v1225
        %v1338 = vadd.f32 %v998, %v1226
        %v1339 = vadd.f32 %v999, %v1227
        %v1340 = vadd.f32 %v1000, %v1228
        %v1341 = vadd.f32 %v1001, %v1229
        %v1342 = vadd.f32 %v1002, %v1230
        %v1343 = vadd.f32 %v1003, %v1231
        %v1344 = vadd.f32 %v1004, %v1232
        %v1345 = vadd.f32 %v1005, %v1233
        %v1346 = vadd.f32 %v1006, %v1234
        %v1347 = vadd.f32 %v1007, %v1235
        %v1348 = vadd.f32 %v1008, %v1236
        %v1349 = vadd.f32 %v1009, %v1237
        %v1350 = vadd.f32 %v1010, %v1238
        %v1351 = vadd.f32 %v1011, %v1239
        %v1352 = vadd.f32 %v1012, %v1240
        %v1353 = vadd.f32 %v1013, %v1241
        %v1354 = vadd.f32 %v1014, %v1242
        %v1355 = vadd.f32 %v1015, %v1243
        %v1356 = vadd.f32 %v1016, %v1244
        %v1357 = vadd.f32 %v1017, %v1245
        %v1358 = vadd.f32 %v1018, %v1246
        %s1359 = scalar_lea.vmem %s329, 32
        %v1360 = vld [vmem:[%s1359] sm:$0xff]
        %v1361 = vld [vmem:[%s1359 + $0x8] sm:$0xff]
        %v1362 = vld [vmem:[%s1359 + $0x10] sm:$0xff]
        %v1363 = vld [vmem:[%s1359 + $0x18] sm:$0xf]
        %v1364 = vld [vmem:[%s1359 + $0x20] sm:$0xff]
        %v1365 = vld [vmem:[%s1359 + $0x28] sm:$0xff]
        %v1366 = vld [vmem:[%s1359 + $0x30] sm:$0xff]
        %v1367 = vld [vmem:[%s1359 + $0x38] sm:$0xf]
        %v1368 = vld [vmem:[%s1359 + $0x40] sm:$0xff]
        %v1369 = vld [vmem:[%s1359 + $0x48] sm:$0xff]
        %v1370 = vld [vmem:[%s1359 + $0x50] sm:$0xff]
        %v1371 = vld [vmem:[%s1359 + $0x58] sm:$0xf]
        %v1372 = vld [vmem:[%s1359 + $0x60] sm:$0xff]
        %v1373 = vld [vmem:[%s1359 + $0x68] sm:$0xff]
        %v1374 = vld [vmem:[%s1359 + $0x70] sm:$0xff]
        %v1375 = vld [vmem:[%s1359 + $0x78] sm:$0xf]
        %v1376 = vld [vmem:[%s1359 + $0x80] sm:$0xff]
        %v1377 = vld [vmem:[%s1359 + $0x88] sm:$0xff]
        %v1378 = vld [vmem:[%s1359 + $0x90] sm:$0xff]
        %v1379 = vld [vmem:[%s1359 + $0x98] sm:$0xf]
        %v1380 = vld [vmem:[%s1359 + $0xa0] sm:$0xff]
        %v1381 = vld [vmem:[%s1359 + $0xa8] sm:$0xff]
        %v1382 = vld [vmem:[%s1359 + $0xb0] sm:$0xff]
        %v1383 = vld [vmem:[%s1359 + $0xb8] sm:$0xf]
        %v1384 = vld [vmem:[%s1359 + $0xc0] sm:$0xff]
        %v1385 = vld [vmem:[%s1359 + $0xc8] sm:$0xff]
        %v1386 = vld [vmem:[%s1359 + $0xd0] sm:$0xff]
        %v1387 = vld [vmem:[%s1359 + $0xd8] sm:$0xf]
        %v1388 = vld [vmem:[%s1359 + $0xe0] sm:$0xff]
        %v1389 = vld [vmem:[%s1359 + $0xe8] sm:$0xff]
        %v1390 = vld [vmem:[%s1359 + $0xf0] sm:$0xff]
        %v1391 = vld [vmem:[%s1359 + $0xf8] sm:$0xf]
        %v1392 = vld [vmem:[%s1359 + $0x100] sm:$0xff]
        %v1393 = vld [vmem:[%s1359 + $0x108] sm:$0xff]
        %v1394 = vld [vmem:[%s1359 + $0x110] sm:$0xff]
        %v1395 = vld [vmem:[%s1359 + $0x118] sm:$0xf]
        %v1396 = vld [vmem:[%s1359 + $0x120] sm:$0xff]
        %v1397 = vld [vmem:[%s1359 + $0x128] sm:$0xff]
        %v1398 = vld [vmem:[%s1359 + $0x130] sm:$0xff]
        %v1399 = vld [vmem:[%s1359 + $0x138] sm:$0xf]
        %v1400 = vld [vmem:[%s1359 + $0x140] sm:$0xff]
        %v1401 = vld [vmem:[%s1359 + $0x148] sm:$0xff]
        %v1402 = vld [vmem:[%s1359 + $0x150] sm:$0xff]
        %v1403 = vld [vmem:[%s1359 + $0x158] sm:$0xf]
        %v1404 = vld [vmem:[%s1359 + $0x160] sm:$0xff]
        %v1405 = vld [vmem:[%s1359 + $0x168] sm:$0xff]
        %v1406 = vld [vmem:[%s1359 + $0x170] sm:$0xff]
        %v1407 = vld [vmem:[%s1359 + $0x178] sm:$0xf]
        %v1408 = vld [vmem:[%s1359 + $0x180] sm:$0xff]
        %v1409 = vld [vmem:[%s1359 + $0x188] sm:$0xff]
        %v1410 = vld [vmem:[%s1359 + $0x190] sm:$0xff]
        %v1411 = vld [vmem:[%s1359 + $0x198] sm:$0xf]
        %v1412 = vld [vmem:[%s1359 + $0x1a0] sm:$0xff]
        %v1413 = vld [vmem:[%s1359 + $0x1a8] sm:$0xff]
        %v1414 = vld [vmem:[%s1359 + $0x1b0] sm:$0xff]
        %v1415 = vld [vmem:[%s1359 + $0x1b8] sm:$0xf]
        %v1416 = vld [vmem:[%s1359 + $0x1c0] sm:$0xff]
        %v1417 = vld [vmem:[%s1359 + $0x1c8] sm:$0xff]
        %v1418 = vld [vmem:[%s1359 + $0x1d0] sm:$0xff]
        %v1419 = vld [vmem:[%s1359 + $0x1d8] sm:$0xf]
        %v1420 = vld [vmem:[%s1359 + $0x1e0] sm:$0xff]
        %v1421 = vld [vmem:[%s1359 + $0x1e8] sm:$0xff]
        %v1422 = vld [vmem:[%s1359 + $0x1f0] sm:$0xff]
        %v1423 = vld [vmem:[%s1359 + $0x1f8] sm:$0xf]
        %v1424 = vld [vmem:[%s1359 + $0x200] sm:$0xff]
        %v1425 = vld [vmem:[%s1359 + $0x208] sm:$0xff]
        %v1426 = vld [vmem:[%s1359 + $0x210] sm:$0xff]
        %v1427 = vld [vmem:[%s1359 + $0x218] sm:$0xf]
        %v1428 = vld [vmem:[%s1359 + $0x220] sm:$0xff]
        %v1429 = vld [vmem:[%s1359 + $0x228] sm:$0xff]
        %v1430 = vld [vmem:[%s1359 + $0x230] sm:$0xff]
        %v1431 = vld [vmem:[%s1359 + $0x238] sm:$0xf]
        %v1432 = vld [vmem:[%s1359 + $0x240] sm:$0xff]
        %v1433 = vld [vmem:[%s1359 + $0x248] sm:$0xff]
        %v1434 = vld [vmem:[%s1359 + $0x250] sm:$0xff]
        %v1435 = vld [vmem:[%s1359 + $0x258] sm:$0xf]
        %v1436 = vld [vmem:[%s1359 + $0x260] sm:$0xff]
        %v1437 = vld [vmem:[%s1359 + $0x268] sm:$0xff]
        %v1438 = vld [vmem:[%s1359 + $0x270] sm:$0xff]
        %v1439 = vld [vmem:[%s1359 + $0x278] sm:$0xf]
        %v1440 = vld [vmem:[%s1359 + $0x280] sm:$0xff]
        %v1441 = vld [vmem:[%s1359 + $0x288] sm:$0xff]
        %v1442 = vld [vmem:[%s1359 + $0x290] sm:$0xff]
        %v1443 = vld [vmem:[%s1359 + $0x298] sm:$0xf]
        %v1444 = vld [vmem:[%s1359 + $0x2a0] sm:$0xff]
        %v1445 = vld [vmem:[%s1359 + $0x2a8] sm:$0xff]
        %v1446 = vld [vmem:[%s1359 + $0x2b0] sm:$0xff]
        %v1447 = vld [vmem:[%s1359 + $0x2b8] sm:$0xf]
        %v1448 = vld [vmem:[%s1359 + $0x2c0] sm:$0xff]
        %v1449 = vld [vmem:[%s1359 + $0x2c8] sm:$0xff]
        %v1450 = vld [vmem:[%s1359 + $0x2d0] sm:$0xff]
        %v1451 = vld [vmem:[%s1359 + $0x2d8] sm:$0xf]
        %v1452 = vld [vmem:[%s1359 + $0x2e0] sm:$0xff]
        %v1453 = vld [vmem:[%s1359 + $0x2e8] sm:$0xff]
        %v1454 = vld [vmem:[%s1359 + $0x2f0] sm:$0xff]
        %v1455 = vld [vmem:[%s1359 + $0x2f8] sm:$0xf]
        %v1456 = vld [vmem:[%s1359 + $0x300] sm:$0xff]
        %v1457 = vld [vmem:[%s1359 + $0x308] sm:$0xff]
        %v1458 = vld [vmem:[%s1359 + $0x310] sm:$0xff]
        %v1459 = vld [vmem:[%s1359 + $0x318] sm:$0xf]
        %v1460 = vld [vmem:[%s1359 + $0x320] sm:$0xff]
        %v1461 = vld [vmem:[%s1359 + $0x328] sm:$0xff]
        %v1462 = vld [vmem:[%s1359 + $0x330] sm:$0xff]
        %v1463 = vld [vmem:[%s1359 + $0x338] sm:$0xf]
        %v1464 = vld [vmem:[%s1359 + $0x340] sm:$0xff]
        %v1465 = vld [vmem:[%s1359 + $0x348] sm:$0xff]
        %v1466 = vld [vmem:[%s1359 + $0x350] sm:$0xff]
        %v1467 = vld [vmem:[%s1359 + $0x358] sm:$0xf]
        %v1468 = vld [vmem:[%s1359 + $0x360] sm:$0xff]
        %v1469 = vld [vmem:[%s1359 + $0x368] sm:$0xff]
        %v1470 = vld [vmem:[%s1359 + $0x370] sm:$0xff]
        %v1471 = vld [vmem:[%s1359 + $0x378] sm:$0xf]
        %v1472 = vlaneseq
        %v1473 = vshrl.u32 %v1472, 7
        %v1474 = vsub.s32 3, %v1473
        %v1475 = vrot.slane %v330, %v1474
        %v1476 = vmul.f32 %v1360, %v1475
        %v1477 = vmul.f32 %v1361, %v1475
        %v1478 = vmul.f32 %v1362, %v1475
        %v1479 = vmul.f32 %v1363, %v1475
        %v1480 = vmul.f32 %v1364, %v1475
        %v1481 = vmul.f32 %v1365, %v1475
        %v1482 = vmul.f32 %v1366, %v1475
        %v1483 = vmul.f32 %v1367, %v1475
        %v1484 = vmul.f32 %v1368, %v1475
        %v1485 = vmul.f32 %v1369, %v1475
        %v1486 = vmul.f32 %v1370, %v1475
        %v1487 = vmul.f32 %v1371, %v1475
        %v1488 = vmul.f32 %v1372, %v1475
        %v1489 = vmul.f32 %v1373, %v1475
        %v1490 = vmul.f32 %v1374, %v1475
        %v1491 = vmul.f32 %v1375, %v1475
        %v1492 = vmul.f32 %v1376, %v1475
        %v1493 = vmul.f32 %v1377, %v1475
        %v1494 = vmul.f32 %v1378, %v1475
        %v1495 = vmul.f32 %v1379, %v1475
        %v1496 = vmul.f32 %v1380, %v1475
        %v1497 = vmul.f32 %v1381, %v1475
        %v1498 = vmul.f32 %v1382, %v1475
        %v1499 = vmul.f32 %v1383, %v1475
        %v1500 = vmul.f32 %v1384, %v1475
        %v1501 = vmul.f32 %v1385, %v1475
        %v1502 = vmul.f32 %v1386, %v1475
        %v1503 = vmul.f32 %v1387, %v1475
        %v1504 = vmul.f32 %v1388, %v1475
        %v1505 = vmul.f32 %v1389, %v1475
        %v1506 = vmul.f32 %v1390, %v1475
        %v1507 = vmul.f32 %v1391, %v1475
        %v1508 = vmul.f32 %v1392, %v1475
        %v1509 = vmul.f32 %v1393, %v1475
        %v1510 = vmul.f32 %v1394, %v1475
        %v1511 = vmul.f32 %v1395, %v1475
        %v1512 = vmul.f32 %v1396, %v1475
        %v1513 = vmul.f32 %v1397, %v1475
        %v1514 = vmul.f32 %v1398, %v1475
        %v1515 = vmul.f32 %v1399, %v1475
        %v1516 = vmul.f32 %v1400, %v1475
        %v1517 = vmul.f32 %v1401, %v1475
        %v1518 = vmul.f32 %v1402, %v1475
        %v1519 = vmul.f32 %v1403, %v1475
        %v1520 = vmul.f32 %v1404, %v1475
        %v1521 = vmul.f32 %v1405, %v1475
        %v1522 = vmul.f32 %v1406, %v1475
        %v1523 = vmul.f32 %v1407, %v1475
        %v1524 = vmul.f32 %v1408, %v1475
        %v1525 = vmul.f32 %v1409, %v1475
        %v1526 = vmul.f32 %v1410, %v1475
        %v1527 = vmul.f32 %v1411, %v1475
        %v1528 = vmul.f32 %v1412, %v1475
        %v1529 = vmul.f32 %v1413, %v1475
        %v1530 = vmul.f32 %v1414, %v1475
        %v1531 = vmul.f32 %v1415, %v1475
        %v1532 = vmul.f32 %v1416, %v1475
        %v1533 = vmul.f32 %v1417, %v1475
        %v1534 = vmul.f32 %v1418, %v1475
        %v1535 = vmul.f32 %v1419, %v1475
        %v1536 = vmul.f32 %v1420, %v1475
        %v1537 = vmul.f32 %v1421, %v1475
        %v1538 = vmul.f32 %v1422, %v1475
        %v1539 = vmul.f32 %v1423, %v1475
        %v1540 = vmul.f32 %v1424, %v1475
        %v1541 = vmul.f32 %v1425, %v1475
        %v1542 = vmul.f32 %v1426, %v1475
        %v1543 = vmul.f32 %v1427, %v1475
        %v1544 = vmul.f32 %v1428, %v1475
        %v1545 = vmul.f32 %v1429, %v1475
        %v1546 = vmul.f32 %v1430, %v1475
        %v1547 = vmul.f32 %v1431, %v1475
        %v1548 = vmul.f32 %v1432, %v1475
        %v1549 = vmul.f32 %v1433, %v1475
        %v1550 = vmul.f32 %v1434, %v1475
        %v1551 = vmul.f32 %v1435, %v1475
        %v1552 = vmul.f32 %v1436, %v1475
        %v1553 = vmul.f32 %v1437, %v1475
        %v1554 = vmul.f32 %v1438, %v1475
        %v1555 = vmul.f32 %v1439, %v1475
        %v1556 = vmul.f32 %v1440, %v1475
        %v1557 = vmul.f32 %v1441, %v1475
        %v1558 = vmul.f32 %v1442, %v1475
        %v1559 = vmul.f32 %v1443, %v1475
        %v1560 = vmul.f32 %v1444, %v1475
        %v1561 = vmul.f32 %v1445, %v1475
        %v1562 = vmul.f32 %v1446, %v1475
        %v1563 = vmul.f32 %v1447, %v1475
        %v1564 = vmul.f32 %v1448, %v1475
        %v1565 = vmul.f32 %v1449, %v1475
        %v1566 = vmul.f32 %v1450, %v1475
        %v1567 = vmul.f32 %v1451, %v1475
        %v1568 = vmul.f32 %v1452, %v1475
        %v1569 = vmul.f32 %v1453, %v1475
        %v1570 = vmul.f32 %v1454, %v1475
        %v1571 = vmul.f32 %v1455, %v1475
        %v1572 = vmul.f32 %v1456, %v1475
        %v1573 = vmul.f32 %v1457, %v1475
        %v1574 = vmul.f32 %v1458, %v1475
        %v1575 = vmul.f32 %v1459, %v1475
        %v1576 = vmul.f32 %v1460, %v1475
        %v1577 = vmul.f32 %v1461, %v1475
        %v1578 = vmul.f32 %v1462, %v1475
        %v1579 = vmul.f32 %v1463, %v1475
        %v1580 = vmul.f32 %v1464, %v1475
        %v1581 = vmul.f32 %v1465, %v1475
        %v1582 = vmul.f32 %v1466, %v1475
        %v1583 = vmul.f32 %v1467, %v1475
        %v1584 = vmul.f32 %v1468, %v1475
        %v1585 = vmul.f32 %v1469, %v1475
        %v1586 = vmul.f32 %v1470, %v1475
        %v1587 = vmul.f32 %v1471, %v1475
        %v1588 = vadd.f32 %v1247, %v1476
        %v1589 = vadd.f32 %v1248, %v1477
        %v1590 = vadd.f32 %v1249, %v1478
        %v1591 = vadd.f32 %v1250, %v1479
        %v1592 = vadd.f32 %v1251, %v1480
        %v1593 = vadd.f32 %v1252, %v1481
        %v1594 = vadd.f32 %v1253, %v1482
        %v1595 = vadd.f32 %v1254, %v1483
        %v1596 = vadd.f32 %v1255, %v1484
        %v1597 = vadd.f32 %v1256, %v1485
        %v1598 = vadd.f32 %v1257, %v1486
        %v1599 = vadd.f32 %v1258, %v1487
        %v1600 = vadd.f32 %v1259, %v1488
        %v1601 = vadd.f32 %v1260, %v1489
        %v1602 = vadd.f32 %v1261, %v1490
        %v1603 = vadd.f32 %v1262, %v1491
        %v1604 = vadd.f32 %v1263, %v1492
        %v1605 = vadd.f32 %v1264, %v1493
        %v1606 = vadd.f32 %v1265, %v1494
        %v1607 = vadd.f32 %v1266, %v1495
        %v1608 = vadd.f32 %v1267, %v1496
        %v1609 = vadd.f32 %v1268, %v1497
        %v1610 = vadd.f32 %v1269, %v1498
        %v1611 = vadd.f32 %v1270, %v1499
        %v1612 = vadd.f32 %v1271, %v1500
        %v1613 = vadd.f32 %v1272, %v1501
        %v1614 = vadd.f32 %v1273, %v1502
        %v1615 = vadd.f32 %v1274, %v1503
        %v1616 = vadd.f32 %v1275, %v1504
        %v1617 = vadd.f32 %v1276, %v1505
        %v1618 = vadd.f32 %v1277, %v1506
        %v1619 = vadd.f32 %v1278, %v1507
        %v1620 = vadd.f32 %v1279, %v1508
        %v1621 = vadd.f32 %v1280, %v1509
        %v1622 = vadd.f32 %v1281, %v1510
        %v1623 = vadd.f32 %v1282, %v1511
        %v1624 = vadd.f32 %v1283, %v1512
        %v1625 = vadd.f32 %v1284, %v1513
        %v1626 = vadd.f32 %v1285, %v1514
        %v1627 = vadd.f32 %v1286, %v1515
        %v1628 = vadd.f32 %v1287, %v1516
        %v1629 = vadd.f32 %v1288, %v1517
        %v1630 = vadd.f32 %v1289, %v1518
        %v1631 = vadd.f32 %v1290, %v1519
        %v1632 = vadd.f32 %v1291, %v1520
        %v1633 = vadd.f32 %v1292, %v1521
        %v1634 = vadd.f32 %v1293, %v1522
        %v1635 = vadd.f32 %v1294, %v1523
        %v1636 = vadd.f32 %v1295, %v1524
        %v1637 = vadd.f32 %v1296, %v1525
        %v1638 = vadd.f32 %v1297, %v1526
        %v1639 = vadd.f32 %v1298, %v1527
        %v1640 = vadd.f32 %v1299, %v1528
        %v1641 = vadd.f32 %v1300, %v1529
        %v1642 = vadd.f32 %v1301, %v1530
        %v1643 = vadd.f32 %v1302, %v1531
        %v1644 = vadd.f32 %v1303, %v1532
        %v1645 = vadd.f32 %v1304, %v1533
        %v1646 = vadd.f32 %v1305, %v1534
        %v1647 = vadd.f32 %v1306, %v1535
        %v1648 = vadd.f32 %v1307, %v1536
        %v1649 = vadd.f32 %v1308, %v1537
        %v1650 = vadd.f32 %v1309, %v1538
        %v1651 = vadd.f32 %v1310, %v1539
        %v1652 = vadd.f32 %v1311, %v1540
        %v1653 = vadd.f32 %v1312, %v1541
        %v1654 = vadd.f32 %v1313, %v1542
        %v1655 = vadd.f32 %v1314, %v1543
        %v1656 = vadd.f32 %v1315, %v1544
        %v1657 = vadd.f32 %v1316, %v1545
        %v1658 = vadd.f32 %v1317, %v1546
        %v1659 = vadd.f32 %v1318, %v1547
        %v1660 = vadd.f32 %v1319, %v1548
        %v1661 = vadd.f32 %v1320, %v1549
        %v1662 = vadd.f32 %v1321, %v1550
        %v1663 = vadd.f32 %v1322, %v1551
        %v1664 = vadd.f32 %v1323, %v1552
        %v1665 = vadd.f32 %v1324, %v1553
        %v1666 = vadd.f32 %v1325, %v1554
        %v1667 = vadd.f32 %v1326, %v1555
        %v1668 = vadd.f32 %v1327, %v1556
        %v1669 = vadd.f32 %v1328, %v1557
        %v1670 = vadd.f32 %v1329, %v1558
        %v1671 = vadd.f32 %v1330, %v1559
        %v1672 = vadd.f32 %v1331, %v1560
        %v1673 = vadd.f32 %v1332, %v1561
        %v1674 = vadd.f32 %v1333, %v1562
        %v1675 = vadd.f32 %v1334, %v1563
        %v1676 = vadd.f32 %v1335, %v1564
        %v1677 = vadd.f32 %v1336, %v1565
        %v1678 = vadd.f32 %v1337, %v1566
        %v1679 = vadd.f32 %v1338, %v1567
        %v1680 = vadd.f32 %v1339, %v1568
        %v1681 = vadd.f32 %v1340, %v1569
        %v1682 = vadd.f32 %v1341, %v1570
        %v1683 = vadd.f32 %v1342, %v1571
        %v1684 = vadd.f32 %v1343, %v1572
        %v1685 = vadd.f32 %v1344, %v1573
        %v1686 = vadd.f32 %v1345, %v1574
        %v1687 = vadd.f32 %v1346, %v1575
        %v1688 = vadd.f32 %v1347, %v1576
        %v1689 = vadd.f32 %v1348, %v1577
        %v1690 = vadd.f32 %v1349, %v1578
        %v1691 = vadd.f32 %v1350, %v1579
        %v1692 = vadd.f32 %v1351, %v1580
        %v1693 = vadd.f32 %v1352, %v1581
        %v1694 = vadd.f32 %v1353, %v1582
        %v1695 = vadd.f32 %v1354, %v1583
        %v1696 = vadd.f32 %v1355, %v1584
        %v1697 = vadd.f32 %v1356, %v1585
        %v1698 = vadd.f32 %v1357, %v1586
        %v1699 = vadd.f32 %v1358, %v1587
        %v1700 = vld [vmem:[%s1359 + $0x1] sm:$0xff]
        %v1701 = vld [vmem:[%s1359 + $0x9] sm:$0xff]
        %v1702 = vld [vmem:[%s1359 + $0x11] sm:$0xff]
        %v1703 = vld [vmem:[%s1359 + $0x19] sm:$0xf]
        %v1704 = vld [vmem:[%s1359 + $0x21] sm:$0xff]
        %v1705 = vld [vmem:[%s1359 + $0x29] sm:$0xff]
        %v1706 = vld [vmem:[%s1359 + $0x31] sm:$0xff]
        %v1707 = vld [vmem:[%s1359 + $0x39] sm:$0xf]
        %v1708 = vld [vmem:[%s1359 + $0x41] sm:$0xff]
        %v1709 = vld [vmem:[%s1359 + $0x49] sm:$0xff]
        %v1710 = vld [vmem:[%s1359 + $0x51] sm:$0xff]
        %v1711 = vld [vmem:[%s1359 + $0x59] sm:$0xf]
        %v1712 = vld [vmem:[%s1359 + $0x61] sm:$0xff]
        %v1713 = vld [vmem:[%s1359 + $0x69] sm:$0xff]
        %v1714 = vld [vmem:[%s1359 + $0x71] sm:$0xff]
        %v1715 = vld [vmem:[%s1359 + $0x79] sm:$0xf]
        %v1716 = vld [vmem:[%s1359 + $0x81] sm:$0xff]
        %v1717 = vld [vmem:[%s1359 + $0x89] sm:$0xff]
        %v1718 = vld [vmem:[%s1359 + $0x91] sm:$0xff]
        %v1719 = vld [vmem:[%s1359 + $0x99] sm:$0xf]
        %v1720 = vld [vmem:[%s1359 + $0xa1] sm:$0xff]
        %v1721 = vld [vmem:[%s1359 + $0xa9] sm:$0xff]
        %v1722 = vld [vmem:[%s1359 + $0xb1] sm:$0xff]
        %v1723 = vld [vmem:[%s1359 + $0xb9] sm:$0xf]
        %v1724 = vld [vmem:[%s1359 + $0xc1] sm:$0xff]
        %v1725 = vld [vmem:[%s1359 + $0xc9] sm:$0xff]
        %v1726 = vld [vmem:[%s1359 + $0xd1] sm:$0xff]
        %v1727 = vld [vmem:[%s1359 + $0xd9] sm:$0xf]
        %v1728 = vld [vmem:[%s1359 + $0xe1] sm:$0xff]
        %v1729 = vld [vmem:[%s1359 + $0xe9] sm:$0xff]
        %v1730 = vld [vmem:[%s1359 + $0xf1] sm:$0xff]
        %v1731 = vld [vmem:[%s1359 + $0xf9] sm:$0xf]
        %v1732 = vld [vmem:[%s1359 + $0x101] sm:$0xff]
        %v1733 = vld [vmem:[%s1359 + $0x109] sm:$0xff]
        %v1734 = vld [vmem:[%s1359 + $0x111] sm:$0xff]
        %v1735 = vld [vmem:[%s1359 + $0x119] sm:$0xf]
        %v1736 = vld [vmem:[%s1359 + $0x121] sm:$0xff]
        %v1737 = vld [vmem:[%s1359 + $0x129] sm:$0xff]
        %v1738 = vld [vmem:[%s1359 + $0x131] sm:$0xff]
        %v1739 = vld [vmem:[%s1359 + $0x139] sm:$0xf]
        %v1740 = vld [vmem:[%s1359 + $0x141] sm:$0xff]
        %v1741 = vld [vmem:[%s1359 + $0x149] sm:$0xff]
        %v1742 = vld [vmem:[%s1359 + $0x151] sm:$0xff]
        %v1743 = vld [vmem:[%s1359 + $0x159] sm:$0xf]
        %v1744 = vld [vmem:[%s1359 + $0x161] sm:$0xff]
        %v1745 = vld [vmem:[%s1359 + $0x169] sm:$0xff]
        %v1746 = vld [vmem:[%s1359 + $0x171] sm:$0xff]
        %v1747 = vld [vmem:[%s1359 + $0x179] sm:$0xf]
        %v1748 = vld [vmem:[%s1359 + $0x181] sm:$0xff]
        %v1749 = vld [vmem:[%s1359 + $0x189] sm:$0xff]
        %v1750 = vld [vmem:[%s1359 + $0x191] sm:$0xff]
        %v1751 = vld [vmem:[%s1359 + $0x199] sm:$0xf]
        %v1752 = vld [vmem:[%s1359 + $0x1a1] sm:$0xff]
        %v1753 = vld [vmem:[%s1359 + $0x1a9] sm:$0xff]
        %v1754 = vld [vmem:[%s1359 + $0x1b1] sm:$0xff]
        %v1755 = vld [vmem:[%s1359 + $0x1b9] sm:$0xf]
        %v1756 = vld [vmem:[%s1359 + $0x1c1] sm:$0xff]
        %v1757 = vld [vmem:[%s1359 + $0x1c9] sm:$0xff]
        %v1758 = vld [vmem:[%s1359 + $0x1d1] sm:$0xff]
        %v1759 = vld [vmem:[%s1359 + $0x1d9] sm:$0xf]
        %v1760 = vld [vmem:[%s1359 + $0x1e1] sm:$0xff]
        %v1761 = vld [vmem:[%s1359 + $0x1e9] sm:$0xff]
        %v1762 = vld [vmem:[%s1359 + $0x1f1] sm:$0xff]
        %v1763 = vld [vmem:[%s1359 + $0x1f9] sm:$0xf]
        %v1764 = vld [vmem:[%s1359 + $0x201] sm:$0xff]
        %v1765 = vld [vmem:[%s1359 + $0x209] sm:$0xff]
        %v1766 = vld [vmem:[%s1359 + $0x211] sm:$0xff]
        %v1767 = vld [vmem:[%s1359 + $0x219] sm:$0xf]
        %v1768 = vld [vmem:[%s1359 + $0x221] sm:$0xff]
        %v1769 = vld [vmem:[%s1359 + $0x229] sm:$0xff]
        %v1770 = vld [vmem:[%s1359 + $0x231] sm:$0xff]
        %v1771 = vld [vmem:[%s1359 + $0x239] sm:$0xf]
        %v1772 = vld [vmem:[%s1359 + $0x241] sm:$0xff]
        %v1773 = vld [vmem:[%s1359 + $0x249] sm:$0xff]
        %v1774 = vld [vmem:[%s1359 + $0x251] sm:$0xff]
        %v1775 = vld [vmem:[%s1359 + $0x259] sm:$0xf]
        %v1776 = vld [vmem:[%s1359 + $0x261] sm:$0xff]
        %v1777 = vld [vmem:[%s1359 + $0x269] sm:$0xff]
        %v1778 = vld [vmem:[%s1359 + $0x271] sm:$0xff]
        %v1779 = vld [vmem:[%s1359 + $0x279] sm:$0xf]
        %v1780 = vld [vmem:[%s1359 + $0x281] sm:$0xff]
        %v1781 = vld [vmem:[%s1359 + $0x289] sm:$0xff]
        %v1782 = vld [vmem:[%s1359 + $0x291] sm:$0xff]
        %v1783 = vld [vmem:[%s1359 + $0x299] sm:$0xf]
        %v1784 = vld [vmem:[%s1359 + $0x2a1] sm:$0xff]
        %v1785 = vld [vmem:[%s1359 + $0x2a9] sm:$0xff]
        %v1786 = vld [vmem:[%s1359 + $0x2b1] sm:$0xff]
        %v1787 = vld [vmem:[%s1359 + $0x2b9] sm:$0xf]
        %v1788 = vld [vmem:[%s1359 + $0x2c1] sm:$0xff]
        %v1789 = vld [vmem:[%s1359 + $0x2c9] sm:$0xff]
        %v1790 = vld [vmem:[%s1359 + $0x2d1] sm:$0xff]
        %v1791 = vld [vmem:[%s1359 + $0x2d9] sm:$0xf]
        %v1792 = vld [vmem:[%s1359 + $0x2e1] sm:$0xff]
        %v1793 = vld [vmem:[%s1359 + $0x2e9] sm:$0xff]
        %v1794 = vld [vmem:[%s1359 + $0x2f1] sm:$0xff]
        %v1795 = vld [vmem:[%s1359 + $0x2f9] sm:$0xf]
        %v1796 = vld [vmem:[%s1359 + $0x301] sm:$0xff]
        %v1797 = vld [vmem:[%s1359 + $0x309] sm:$0xff]
        %v1798 = vld [vmem:[%s1359 + $0x311] sm:$0xff]
        %v1799 = vld [vmem:[%s1359 + $0x319] sm:$0xf]
        %v1800 = vld [vmem:[%s1359 + $0x321] sm:$0xff]
        %v1801 = vld [vmem:[%s1359 + $0x329] sm:$0xff]
        %v1802 = vld [vmem:[%s1359 + $0x331] sm:$0xff]
        %v1803 = vld [vmem:[%s1359 + $0x339] sm:$0xf]
        %v1804 = vld [vmem:[%s1359 + $0x341] sm:$0xff]
        %v1805 = vld [vmem:[%s1359 + $0x349] sm:$0xff]
        %v1806 = vld [vmem:[%s1359 + $0x351] sm:$0xff]
        %v1807 = vld [vmem:[%s1359 + $0x359] sm:$0xf]
        %v1808 = vld [vmem:[%s1359 + $0x361] sm:$0xff]
        %v1809 = vld [vmem:[%s1359 + $0x369] sm:$0xff]
        %v1810 = vld [vmem:[%s1359 + $0x371] sm:$0xff]
        %v1811 = vld [vmem:[%s1359 + $0x379] sm:$0xf]
        %v1812 = vlaneseq
        %v1813 = vshrl.u32 %v1812, 7
        %v1814 = vsub.s32 4, %v1813
        %v1815 = vrot.slane %v330, %v1814
        %v1816 = vmul.f32 %v1700, %v1815
        %v1817 = vmul.f32 %v1701, %v1815
        %v1818 = vmul.f32 %v1702, %v1815
        %v1819 = vmul.f32 %v1703, %v1815
        %v1820 = vmul.f32 %v1704, %v1815
        %v1821 = vmul.f32 %v1705, %v1815
        %v1822 = vmul.f32 %v1706, %v1815
        %v1823 = vmul.f32 %v1707, %v1815
        %v1824 = vmul.f32 %v1708, %v1815
        %v1825 = vmul.f32 %v1709, %v1815
        %v1826 = vmul.f32 %v1710, %v1815
        %v1827 = vmul.f32 %v1711, %v1815
        %v1828 = vmul.f32 %v1712, %v1815
        %v1829 = vmul.f32 %v1713, %v1815
        %v1830 = vmul.f32 %v1714, %v1815
        %v1831 = vmul.f32 %v1715, %v1815
        %v1832 = vmul.f32 %v1716, %v1815
        %v1833 = vmul.f32 %v1717, %v1815
        %v1834 = vmul.f32 %v1718, %v1815
        %v1835 = vmul.f32 %v1719, %v1815
        %v1836 = vmul.f32 %v1720, %v1815
        %v1837 = vmul.f32 %v1721, %v1815
        %v1838 = vmul.f32 %v1722, %v1815
        %v1839 = vmul.f32 %v1723, %v1815
        %v1840 = vmul.f32 %v1724, %v1815
        %v1841 = vmul.f32 %v1725, %v1815
        %v1842 = vmul.f32 %v1726, %v1815
        %v1843 = vmul.f32 %v1727, %v1815
        %v1844 = vmul.f32 %v1728, %v1815
        %v1845 = vmul.f32 %v1729, %v1815
        %v1846 = vmul.f32 %v1730, %v1815
        %v1847 = vmul.f32 %v1731, %v1815
        %v1848 = vmul.f32 %v1732, %v1815
        %v1849 = vmul.f32 %v1733, %v1815
        %v1850 = vmul.f32 %v1734, %v1815
        %v1851 = vmul.f32 %v1735, %v1815
        %v1852 = vmul.f32 %v1736, %v1815
        %v1853 = vmul.f32 %v1737, %v1815
        %v1854 = vmul.f32 %v1738, %v1815
        %v1855 = vmul.f32 %v1739, %v1815
        %v1856 = vmul.f32 %v1740, %v1815
        %v1857 = vmul.f32 %v1741, %v1815
        %v1858 = vmul.f32 %v1742, %v1815
        %v1859 = vmul.f32 %v1743, %v1815
        %v1860 = vmul.f32 %v1744, %v1815
        %v1861 = vmul.f32 %v1745, %v1815
        %v1862 = vmul.f32 %v1746, %v1815
        %v1863 = vmul.f32 %v1747, %v1815
        %v1864 = vmul.f32 %v1748, %v1815
        %v1865 = vmul.f32 %v1749, %v1815
        %v1866 = vmul.f32 %v1750, %v1815
        %v1867 = vmul.f32 %v1751, %v1815
        %v1868 = vmul.f32 %v1752, %v1815
        %v1869 = vmul.f32 %v1753, %v1815
        %v1870 = vmul.f32 %v1754, %v1815
        %v1871 = vmul.f32 %v1755, %v1815
        %v1872 = vmul.f32 %v1756, %v1815
        %v1873 = vmul.f32 %v1757, %v1815
        %v1874 = vmul.f32 %v1758, %v1815
        %v1875 = vmul.f32 %v1759, %v1815
        %v1876 = vmul.f32 %v1760, %v1815
        %v1877 = vmul.f32 %v1761, %v1815
        %v1878 = vmul.f32 %v1762, %v1815
        %v1879 = vmul.f32 %v1763, %v1815
        %v1880 = vmul.f32 %v1764, %v1815
        %v1881 = vmul.f32 %v1765, %v1815
        %v1882 = vmul.f32 %v1766, %v1815
        %v1883 = vmul.f32 %v1767, %v1815
        %v1884 = vmul.f32 %v1768, %v1815
        %v1885 = vmul.f32 %v1769, %v1815
        %v1886 = vmul.f32 %v1770, %v1815
        %v1887 = vmul.f32 %v1771, %v1815
        %v1888 = vmul.f32 %v1772, %v1815
        %v1889 = vmul.f32 %v1773, %v1815
        %v1890 = vmul.f32 %v1774, %v1815
        %v1891 = vmul.f32 %v1775, %v1815
        %v1892 = vmul.f32 %v1776, %v1815
        %v1893 = vmul.f32 %v1777, %v1815
        %v1894 = vmul.f32 %v1778, %v1815
        %v1895 = vmul.f32 %v1779, %v1815
        %v1896 = vmul.f32 %v1780, %v1815
        %v1897 = vmul.f32 %v1781, %v1815
        %v1898 = vmul.f32 %v1782, %v1815
        %v1899 = vmul.f32 %v1783, %v1815
        %v1900 = vmul.f32 %v1784, %v1815
        %v1901 = vmul.f32 %v1785, %v1815
        %v1902 = vmul.f32 %v1786, %v1815
        %v1903 = vmul.f32 %v1787, %v1815
        %v1904 = vmul.f32 %v1788, %v1815
        %v1905 = vmul.f32 %v1789, %v1815
        %v1906 = vmul.f32 %v1790, %v1815
        %v1907 = vmul.f32 %v1791, %v1815
        %v1908 = vmul.f32 %v1792, %v1815
        %v1909 = vmul.f32 %v1793, %v1815
        %v1910 = vmul.f32 %v1794, %v1815
        %v1911 = vmul.f32 %v1795, %v1815
        %v1912 = vmul.f32 %v1796, %v1815
        %v1913 = vmul.f32 %v1797, %v1815
        %v1914 = vmul.f32 %v1798, %v1815
        %v1915 = vmul.f32 %v1799, %v1815
        %v1916 = vmul.f32 %v1800, %v1815
        %v1917 = vmul.f32 %v1801, %v1815
        %v1918 = vmul.f32 %v1802, %v1815
        %v1919 = vmul.f32 %v1803, %v1815
        %v1920 = vmul.f32 %v1804, %v1815
        %v1921 = vmul.f32 %v1805, %v1815
        %v1922 = vmul.f32 %v1806, %v1815
        %v1923 = vmul.f32 %v1807, %v1815
        %v1924 = vmul.f32 %v1808, %v1815
        %v1925 = vmul.f32 %v1809, %v1815
        %v1926 = vmul.f32 %v1810, %v1815
        %v1927 = vmul.f32 %v1811, %v1815
        %v1928 = vadd.f32 %v1588, %v1816
        %v1929 = vadd.f32 %v1589, %v1817
        %v1930 = vadd.f32 %v1590, %v1818
        %v1931 = vadd.f32 %v1591, %v1819
        %v1932 = vadd.f32 %v1592, %v1820
        %v1933 = vadd.f32 %v1593, %v1821
        %v1934 = vadd.f32 %v1594, %v1822
        %v1935 = vadd.f32 %v1595, %v1823
        %v1936 = vadd.f32 %v1596, %v1824
        %v1937 = vadd.f32 %v1597, %v1825
        %v1938 = vadd.f32 %v1598, %v1826
        %v1939 = vadd.f32 %v1599, %v1827
        %v1940 = vadd.f32 %v1600, %v1828
        %v1941 = vadd.f32 %v1601, %v1829
        %v1942 = vadd.f32 %v1602, %v1830
        %v1943 = vadd.f32 %v1603, %v1831
        %v1944 = vadd.f32 %v1604, %v1832
        %v1945 = vadd.f32 %v1605, %v1833
        %v1946 = vadd.f32 %v1606, %v1834
        %v1947 = vadd.f32 %v1607, %v1835
        %v1948 = vadd.f32 %v1608, %v1836
        %v1949 = vadd.f32 %v1609, %v1837
        %v1950 = vadd.f32 %v1610, %v1838
        %v1951 = vadd.f32 %v1611, %v1839
        %v1952 = vadd.f32 %v1612, %v1840
        %v1953 = vadd.f32 %v1613, %v1841
        %v1954 = vadd.f32 %v1614, %v1842
        %v1955 = vadd.f32 %v1615, %v1843
        %v1956 = vadd.f32 %v1616, %v1844
        %v1957 = vadd.f32 %v1617, %v1845
        %v1958 = vadd.f32 %v1618, %v1846
        %v1959 = vadd.f32 %v1619, %v1847
        %v1960 = vadd.f32 %v1620, %v1848
        %v1961 = vadd.f32 %v1621, %v1849
        %v1962 = vadd.f32 %v1622, %v1850
        %v1963 = vadd.f32 %v1623, %v1851
        %v1964 = vadd.f32 %v1624, %v1852
        %v1965 = vadd.f32 %v1625, %v1853
        %v1966 = vadd.f32 %v1626, %v1854
        %v1967 = vadd.f32 %v1627, %v1855
        %v1968 = vadd.f32 %v1628, %v1856
        %v1969 = vadd.f32 %v1629, %v1857
        %v1970 = vadd.f32 %v1630, %v1858
        %v1971 = vadd.f32 %v1631, %v1859
        %v1972 = vadd.f32 %v1632, %v1860
        %v1973 = vadd.f32 %v1633, %v1861
        %v1974 = vadd.f32 %v1634, %v1862
        %v1975 = vadd.f32 %v1635, %v1863
        %v1976 = vadd.f32 %v1636, %v1864
        %v1977 = vadd.f32 %v1637, %v1865
        %v1978 = vadd.f32 %v1638, %v1866
        %v1979 = vadd.f32 %v1639, %v1867
        %v1980 = vadd.f32 %v1640, %v1868
        %v1981 = vadd.f32 %v1641, %v1869
        %v1982 = vadd.f32 %v1642, %v1870
        %v1983 = vadd.f32 %v1643, %v1871
        %v1984 = vadd.f32 %v1644, %v1872
        %v1985 = vadd.f32 %v1645, %v1873
        %v1986 = vadd.f32 %v1646, %v1874
        %v1987 = vadd.f32 %v1647, %v1875
        %v1988 = vadd.f32 %v1648, %v1876
        %v1989 = vadd.f32 %v1649, %v1877
        %v1990 = vadd.f32 %v1650, %v1878
        %v1991 = vadd.f32 %v1651, %v1879
        %v1992 = vadd.f32 %v1652, %v1880
        %v1993 = vadd.f32 %v1653, %v1881
        %v1994 = vadd.f32 %v1654, %v1882
        %v1995 = vadd.f32 %v1655, %v1883
        %v1996 = vadd.f32 %v1656, %v1884
        %v1997 = vadd.f32 %v1657, %v1885
        %v1998 = vadd.f32 %v1658, %v1886
        %v1999 = vadd.f32 %v1659, %v1887
        %v2000 = vadd.f32 %v1660, %v1888
        %v2001 = vadd.f32 %v1661, %v1889
        %v2002 = vadd.f32 %v1662, %v1890
        %v2003 = vadd.f32 %v1663, %v1891
        %v2004 = vadd.f32 %v1664, %v1892
        %v2005 = vadd.f32 %v1665, %v1893
        %v2006 = vadd.f32 %v1666, %v1894
        %v2007 = vadd.f32 %v1667, %v1895
        %v2008 = vadd.f32 %v1668, %v1896
        %v2009 = vadd.f32 %v1669, %v1897
        %v2010 = vadd.f32 %v1670, %v1898
        %v2011 = vadd.f32 %v1671, %v1899
        %v2012 = vadd.f32 %v1672, %v1900
        %v2013 = vadd.f32 %v1673, %v1901
        %v2014 = vadd.f32 %v1674, %v1902
        %v2015 = vadd.f32 %v1675, %v1903
        %v2016 = vadd.f32 %v1676, %v1904
        %v2017 = vadd.f32 %v1677, %v1905
        %v2018 = vadd.f32 %v1678, %v1906
        %v2019 = vadd.f32 %v1679, %v1907
        %v2020 = vadd.f32 %v1680, %v1908
        %v2021 = vadd.f32 %v1681, %v1909
        %v2022 = vadd.f32 %v1682, %v1910
        %v2023 = vadd.f32 %v1683, %v1911
        %v2024 = vadd.f32 %v1684, %v1912
        %v2025 = vadd.f32 %v1685, %v1913
        %v2026 = vadd.f32 %v1686, %v1914
        %v2027 = vadd.f32 %v1687, %v1915
        %v2028 = vadd.f32 %v1688, %v1916
        %v2029 = vadd.f32 %v1689, %v1917
        %v2030 = vadd.f32 %v1690, %v1918
        %v2031 = vadd.f32 %v1691, %v1919
        %v2032 = vadd.f32 %v1692, %v1920
        %v2033 = vadd.f32 %v1693, %v1921
        %v2034 = vadd.f32 %v1694, %v1922
        %v2035 = vadd.f32 %v1695, %v1923
        %v2036 = vadd.f32 %v1696, %v1924
        %v2037 = vadd.f32 %v1697, %v1925
        %v2038 = vadd.f32 %v1698, %v1926
        %v2039 = vadd.f32 %v1699, %v1927
        %v2040 = vld [vmem:[%s1359 + $0x2] sm:$0xff]
        %v2041 = vld [vmem:[%s1359 + $0xa] sm:$0xff]
        %v2042 = vld [vmem:[%s1359 + $0x12] sm:$0xff]
        %v2043 = vld [vmem:[%s1359 + $0x1a] sm:$0xf]
        %v2044 = vld [vmem:[%s1359 + $0x22] sm:$0xff]
        %v2045 = vld [vmem:[%s1359 + $0x2a] sm:$0xff]
        %v2046 = vld [vmem:[%s1359 + $0x32] sm:$0xff]
        %v2047 = vld [vmem:[%s1359 + $0x3a] sm:$0xf]
        %v2048 = vld [vmem:[%s1359 + $0x42] sm:$0xff]
        %v2049 = vld [vmem:[%s1359 + $0x4a] sm:$0xff]
        %v2050 = vld [vmem:[%s1359 + $0x52] sm:$0xff]
        %v2051 = vld [vmem:[%s1359 + $0x5a] sm:$0xf]
        %v2052 = vld [vmem:[%s1359 + $0x62] sm:$0xff]
        %v2053 = vld [vmem:[%s1359 + $0x6a] sm:$0xff]
        %v2054 = vld [vmem:[%s1359 + $0x72] sm:$0xff]
        %v2055 = vld [vmem:[%s1359 + $0x7a] sm:$0xf]
        %v2056 = vld [vmem:[%s1359 + $0x82] sm:$0xff]
        %v2057 = vld [vmem:[%s1359 + $0x8a] sm:$0xff]
        %v2058 = vld [vmem:[%s1359 + $0x92] sm:$0xff]
        %v2059 = vld [vmem:[%s1359 + $0x9a] sm:$0xf]
        %v2060 = vld [vmem:[%s1359 + $0xa2] sm:$0xff]
        %v2061 = vld [vmem:[%s1359 + $0xaa] sm:$0xff]
        %v2062 = vld [vmem:[%s1359 + $0xb2] sm:$0xff]
        %v2063 = vld [vmem:[%s1359 + $0xba] sm:$0xf]
        %v2064 = vld [vmem:[%s1359 + $0xc2] sm:$0xff]
        %v2065 = vld [vmem:[%s1359 + $0xca] sm:$0xff]
        %v2066 = vld [vmem:[%s1359 + $0xd2] sm:$0xff]
        %v2067 = vld [vmem:[%s1359 + $0xda] sm:$0xf]
        %v2068 = vld [vmem:[%s1359 + $0xe2] sm:$0xff]
        %v2069 = vld [vmem:[%s1359 + $0xea] sm:$0xff]
        %v2070 = vld [vmem:[%s1359 + $0xf2] sm:$0xff]
        %v2071 = vld [vmem:[%s1359 + $0xfa] sm:$0xf]
        %v2072 = vld [vmem:[%s1359 + $0x102] sm:$0xff]
        %v2073 = vld [vmem:[%s1359 + $0x10a] sm:$0xff]
        %v2074 = vld [vmem:[%s1359 + $0x112] sm:$0xff]
        %v2075 = vld [vmem:[%s1359 + $0x11a] sm:$0xf]
        %v2076 = vld [vmem:[%s1359 + $0x122] sm:$0xff]
        %v2077 = vld [vmem:[%s1359 + $0x12a] sm:$0xff]
        %v2078 = vld [vmem:[%s1359 + $0x132] sm:$0xff]
        %v2079 = vld [vmem:[%s1359 + $0x13a] sm:$0xf]
        %v2080 = vld [vmem:[%s1359 + $0x142] sm:$0xff]
        %v2081 = vld [vmem:[%s1359 + $0x14a] sm:$0xff]
        %v2082 = vld [vmem:[%s1359 + $0x152] sm:$0xff]
        %v2083 = vld [vmem:[%s1359 + $0x15a] sm:$0xf]
        %v2084 = vld [vmem:[%s1359 + $0x162] sm:$0xff]
        %v2085 = vld [vmem:[%s1359 + $0x16a] sm:$0xff]
        %v2086 = vld [vmem:[%s1359 + $0x172] sm:$0xff]
        %v2087 = vld [vmem:[%s1359 + $0x17a] sm:$0xf]
        %v2088 = vld [vmem:[%s1359 + $0x182] sm:$0xff]
        %v2089 = vld [vmem:[%s1359 + $0x18a] sm:$0xff]
        %v2090 = vld [vmem:[%s1359 + $0x192] sm:$0xff]
        %v2091 = vld [vmem:[%s1359 + $0x19a] sm:$0xf]
        %v2092 = vld [vmem:[%s1359 + $0x1a2] sm:$0xff]
        %v2093 = vld [vmem:[%s1359 + $0x1aa] sm:$0xff]
        %v2094 = vld [vmem:[%s1359 + $0x1b2] sm:$0xff]
        %v2095 = vld [vmem:[%s1359 + $0x1ba] sm:$0xf]
        %v2096 = vld [vmem:[%s1359 + $0x1c2] sm:$0xff]
        %v2097 = vld [vmem:[%s1359 + $0x1ca] sm:$0xff]
        %v2098 = vld [vmem:[%s1359 + $0x1d2] sm:$0xff]
        %v2099 = vld [vmem:[%s1359 + $0x1da] sm:$0xf]
        %v2100 = vld [vmem:[%s1359 + $0x1e2] sm:$0xff]
        %v2101 = vld [vmem:[%s1359 + $0x1ea] sm:$0xff]
        %v2102 = vld [vmem:[%s1359 + $0x1f2] sm:$0xff]
        %v2103 = vld [vmem:[%s1359 + $0x1fa] sm:$0xf]
        %v2104 = vld [vmem:[%s1359 + $0x202] sm:$0xff]
        %v2105 = vld [vmem:[%s1359 + $0x20a] sm:$0xff]
        %v2106 = vld [vmem:[%s1359 + $0x212] sm:$0xff]
        %v2107 = vld [vmem:[%s1359 + $0x21a] sm:$0xf]
        %v2108 = vld [vmem:[%s1359 + $0x222] sm:$0xff]
        %v2109 = vld [vmem:[%s1359 + $0x22a] sm:$0xff]
        %v2110 = vld [vmem:[%s1359 + $0x232] sm:$0xff]
        %v2111 = vld [vmem:[%s1359 + $0x23a] sm:$0xf]
        %v2112 = vld [vmem:[%s1359 + $0x242] sm:$0xff]
        %v2113 = vld [vmem:[%s1359 + $0x24a] sm:$0xff]
        %v2114 = vld [vmem:[%s1359 + $0x252] sm:$0xff]
        %v2115 = vld [vmem:[%s1359 + $0x25a] sm:$0xf]
        %v2116 = vld [vmem:[%s1359 + $0x262] sm:$0xff]
        %v2117 = vld [vmem:[%s1359 + $0x26a] sm:$0xff]
        %v2118 = vld [vmem:[%s1359 + $0x272] sm:$0xff]
        %v2119 = vld [vmem:[%s1359 + $0x27a] sm:$0xf]
        %v2120 = vld [vmem:[%s1359 + $0x282] sm:$0xff]
        %v2121 = vld [vmem:[%s1359 + $0x28a] sm:$0xff]
        %v2122 = vld [vmem:[%s1359 + $0x292] sm:$0xff]
        %v2123 = vld [vmem:[%s1359 + $0x29a] sm:$0xf]
        %v2124 = vld [vmem:[%s1359 + $0x2a2] sm:$0xff]
        %v2125 = vld [vmem:[%s1359 + $0x2aa] sm:$0xff]
        %v2126 = vld [vmem:[%s1359 + $0x2b2] sm:$0xff]
        %v2127 = vld [vmem:[%s1359 + $0x2ba] sm:$0xf]
        %v2128 = vld [vmem:[%s1359 + $0x2c2] sm:$0xff]
        %v2129 = vld [vmem:[%s1359 + $0x2ca] sm:$0xff]
        %v2130 = vld [vmem:[%s1359 + $0x2d2] sm:$0xff]
        %v2131 = vld [vmem:[%s1359 + $0x2da] sm:$0xf]
        %v2132 = vld [vmem:[%s1359 + $0x2e2] sm:$0xff]
        %v2133 = vld [vmem:[%s1359 + $0x2ea] sm:$0xff]
        %v2134 = vld [vmem:[%s1359 + $0x2f2] sm:$0xff]
        %v2135 = vld [vmem:[%s1359 + $0x2fa] sm:$0xf]
        %v2136 = vld [vmem:[%s1359 + $0x302] sm:$0xff]
        %v2137 = vld [vmem:[%s1359 + $0x30a] sm:$0xff]
        %v2138 = vld [vmem:[%s1359 + $0x312] sm:$0xff]
        %v2139 = vld [vmem:[%s1359 + $0x31a] sm:$0xf]
        %v2140 = vld [vmem:[%s1359 + $0x322] sm:$0xff]
        %v2141 = vld [vmem:[%s1359 + $0x32a] sm:$0xff]
        %v2142 = vld [vmem:[%s1359 + $0x332] sm:$0xff]
        %v2143 = vld [vmem:[%s1359 + $0x33a] sm:$0xf]
        %v2144 = vld [vmem:[%s1359 + $0x342] sm:$0xff]
        %v2145 = vld [vmem:[%s1359 + $0x34a] sm:$0xff]
        %v2146 = vld [vmem:[%s1359 + $0x352] sm:$0xff]
        %v2147 = vld [vmem:[%s1359 + $0x35a] sm:$0xf]
        %v2148 = vld [vmem:[%s1359 + $0x362] sm:$0xff]
        %v2149 = vld [vmem:[%s1359 + $0x36a] sm:$0xff]
        %v2150 = vld [vmem:[%s1359 + $0x372] sm:$0xff]
        %v2151 = vld [vmem:[%s1359 + $0x37a] sm:$0xf]
        %v2152 = vlaneseq
        %v2153 = vshrl.u32 %v2152, 7
        %v2154 = vsub.s32 5, %v2153
        %v2155 = vrot.slane %v330, %v2154
        %v2156 = vmul.f32 %v2040, %v2155
        %v2157 = vmul.f32 %v2041, %v2155
        %v2158 = vmul.f32 %v2042, %v2155
        %v2159 = vmul.f32 %v2043, %v2155
        %v2160 = vmul.f32 %v2044, %v2155
        %v2161 = vmul.f32 %v2045, %v2155
        %v2162 = vmul.f32 %v2046, %v2155
        %v2163 = vmul.f32 %v2047, %v2155
        %v2164 = vmul.f32 %v2048, %v2155
        %v2165 = vmul.f32 %v2049, %v2155
        %v2166 = vmul.f32 %v2050, %v2155
        %v2167 = vmul.f32 %v2051, %v2155
        %v2168 = vmul.f32 %v2052, %v2155
        %v2169 = vmul.f32 %v2053, %v2155
        %v2170 = vmul.f32 %v2054, %v2155
        %v2171 = vmul.f32 %v2055, %v2155
        %v2172 = vmul.f32 %v2056, %v2155
        %v2173 = vmul.f32 %v2057, %v2155
        %v2174 = vmul.f32 %v2058, %v2155
        %v2175 = vmul.f32 %v2059, %v2155
        %v2176 = vmul.f32 %v2060, %v2155
        %v2177 = vmul.f32 %v2061, %v2155
        %v2178 = vmul.f32 %v2062, %v2155
        %v2179 = vmul.f32 %v2063, %v2155
        %v2180 = vmul.f32 %v2064, %v2155
        %v2181 = vmul.f32 %v2065, %v2155
        %v2182 = vmul.f32 %v2066, %v2155
        %v2183 = vmul.f32 %v2067, %v2155
        %v2184 = vmul.f32 %v2068, %v2155
        %v2185 = vmul.f32 %v2069, %v2155
        %v2186 = vmul.f32 %v2070, %v2155
        %v2187 = vmul.f32 %v2071, %v2155
        %v2188 = vmul.f32 %v2072, %v2155
        %v2189 = vmul.f32 %v2073, %v2155
        %v2190 = vmul.f32 %v2074, %v2155
        %v2191 = vmul.f32 %v2075, %v2155
        %v2192 = vmul.f32 %v2076, %v2155
        %v2193 = vmul.f32 %v2077, %v2155
        %v2194 = vmul.f32 %v2078, %v2155
        %v2195 = vmul.f32 %v2079, %v2155
        %v2196 = vmul.f32 %v2080, %v2155
        %v2197 = vmul.f32 %v2081, %v2155
        %v2198 = vmul.f32 %v2082, %v2155
        %v2199 = vmul.f32 %v2083, %v2155
        %v2200 = vmul.f32 %v2084, %v2155
        %v2201 = vmul.f32 %v2085, %v2155
        %v2202 = vmul.f32 %v2086, %v2155
        %v2203 = vmul.f32 %v2087, %v2155
        %v2204 = vmul.f32 %v2088, %v2155
        %v2205 = vmul.f32 %v2089, %v2155
        %v2206 = vmul.f32 %v2090, %v2155
        %v2207 = vmul.f32 %v2091, %v2155
        %v2208 = vmul.f32 %v2092, %v2155
        %v2209 = vmul.f32 %v2093, %v2155
        %v2210 = vmul.f32 %v2094, %v2155
        %v2211 = vmul.f32 %v2095, %v2155
        %v2212 = vmul.f32 %v2096, %v2155
        %v2213 = vmul.f32 %v2097, %v2155
        %v2214 = vmul.f32 %v2098, %v2155
        %v2215 = vmul.f32 %v2099, %v2155
        %v2216 = vmul.f32 %v2100, %v2155
        %v2217 = vmul.f32 %v2101, %v2155
        %v2218 = vmul.f32 %v2102, %v2155
        %v2219 = vmul.f32 %v2103, %v2155
        %v2220 = vmul.f32 %v2104, %v2155
        %v2221 = vmul.f32 %v2105, %v2155
        %v2222 = vmul.f32 %v2106, %v2155
        %v2223 = vmul.f32 %v2107, %v2155
        %v2224 = vmul.f32 %v2108, %v2155
        %v2225 = vmul.f32 %v2109, %v2155
        %v2226 = vmul.f32 %v2110, %v2155
        %v2227 = vmul.f32 %v2111, %v2155
        %v2228 = vmul.f32 %v2112, %v2155
        %v2229 = vmul.f32 %v2113, %v2155
        %v2230 = vmul.f32 %v2114, %v2155
        %v2231 = vmul.f32 %v2115, %v2155
        %v2232 = vmul.f32 %v2116, %v2155
        %v2233 = vmul.f32 %v2117, %v2155
        %v2234 = vmul.f32 %v2118, %v2155
        %v2235 = vmul.f32 %v2119, %v2155
        %v2236 = vmul.f32 %v2120, %v2155
        %v2237 = vmul.f32 %v2121, %v2155
        %v2238 = vmul.f32 %v2122, %v2155
        %v2239 = vmul.f32 %v2123, %v2155
        %v2240 = vmul.f32 %v2124, %v2155
        %v2241 = vmul.f32 %v2125, %v2155
        %v2242 = vmul.f32 %v2126, %v2155
        %v2243 = vmul.f32 %v2127, %v2155
        %v2244 = vmul.f32 %v2128, %v2155
        %v2245 = vmul.f32 %v2129, %v2155
        %v2246 = vmul.f32 %v2130, %v2155
        %v2247 = vmul.f32 %v2131, %v2155
        %v2248 = vmul.f32 %v2132, %v2155
        %v2249 = vmul.f32 %v2133, %v2155
        %v2250 = vmul.f32 %v2134, %v2155
        %v2251 = vmul.f32 %v2135, %v2155
        %v2252 = vmul.f32 %v2136, %v2155
        %v2253 = vmul.f32 %v2137, %v2155
        %v2254 = vmul.f32 %v2138, %v2155
        %v2255 = vmul.f32 %v2139, %v2155
        %v2256 = vmul.f32 %v2140, %v2155
        %v2257 = vmul.f32 %v2141, %v2155
        %v2258 = vmul.f32 %v2142, %v2155
        %v2259 = vmul.f32 %v2143, %v2155
        %v2260 = vmul.f32 %v2144, %v2155
        %v2261 = vmul.f32 %v2145, %v2155
        %v2262 = vmul.f32 %v2146, %v2155
        %v2263 = vmul.f32 %v2147, %v2155
        %v2264 = vmul.f32 %v2148, %v2155
        %v2265 = vmul.f32 %v2149, %v2155
        %v2266 = vmul.f32 %v2150, %v2155
        %v2267 = vmul.f32 %v2151, %v2155
        %v2268 = vadd.f32 %v1928, %v2156
        %v2269 = vadd.f32 %v1929, %v2157
        %v2270 = vadd.f32 %v1930, %v2158
        %v2271 = vadd.f32 %v1931, %v2159
        %v2272 = vadd.f32 %v1932, %v2160
        %v2273 = vadd.f32 %v1933, %v2161
        %v2274 = vadd.f32 %v1934, %v2162
        %v2275 = vadd.f32 %v1935, %v2163
        %v2276 = vadd.f32 %v1936, %v2164
        %v2277 = vadd.f32 %v1937, %v2165
        %v2278 = vadd.f32 %v1938, %v2166
        %v2279 = vadd.f32 %v1939, %v2167
        %v2280 = vadd.f32 %v1940, %v2168
        %v2281 = vadd.f32 %v1941, %v2169
        %v2282 = vadd.f32 %v1942, %v2170
        %v2283 = vadd.f32 %v1943, %v2171
        %v2284 = vadd.f32 %v1944, %v2172
        %v2285 = vadd.f32 %v1945, %v2173
        %v2286 = vadd.f32 %v1946, %v2174
        %v2287 = vadd.f32 %v1947, %v2175
        %v2288 = vadd.f32 %v1948, %v2176
        %v2289 = vadd.f32 %v1949, %v2177
        %v2290 = vadd.f32 %v1950, %v2178
        %v2291 = vadd.f32 %v1951, %v2179
        %v2292 = vadd.f32 %v1952, %v2180
        %v2293 = vadd.f32 %v1953, %v2181
        %v2294 = vadd.f32 %v1954, %v2182
        %v2295 = vadd.f32 %v1955, %v2183
        %v2296 = vadd.f32 %v1956, %v2184
        %v2297 = vadd.f32 %v1957, %v2185
        %v2298 = vadd.f32 %v1958, %v2186
        %v2299 = vadd.f32 %v1959, %v2187
        %v2300 = vadd.f32 %v1960, %v2188
        %v2301 = vadd.f32 %v1961, %v2189
        %v2302 = vadd.f32 %v1962, %v2190
        %v2303 = vadd.f32 %v1963, %v2191
        %v2304 = vadd.f32 %v1964, %v2192
        %v2305 = vadd.f32 %v1965, %v2193
        %v2306 = vadd.f32 %v1966, %v2194
        %v2307 = vadd.f32 %v1967, %v2195
        %v2308 = vadd.f32 %v1968, %v2196
        %v2309 = vadd.f32 %v1969, %v2197
        %v2310 = vadd.f32 %v1970, %v2198
        %v2311 = vadd.f32 %v1971, %v2199
        %v2312 = vadd.f32 %v1972, %v2200
        %v2313 = vadd.f32 %v1973, %v2201
        %v2314 = vadd.f32 %v1974, %v2202
        %v2315 = vadd.f32 %v1975, %v2203
        %v2316 = vadd.f32 %v1976, %v2204
        %v2317 = vadd.f32 %v1977, %v2205
        %v2318 = vadd.f32 %v1978, %v2206
        %v2319 = vadd.f32 %v1979, %v2207
        %v2320 = vadd.f32 %v1980, %v2208
        %v2321 = vadd.f32 %v1981, %v2209
        %v2322 = vadd.f32 %v1982, %v2210
        %v2323 = vadd.f32 %v1983, %v2211
        %v2324 = vadd.f32 %v1984, %v2212
        %v2325 = vadd.f32 %v1985, %v2213
        %v2326 = vadd.f32 %v1986, %v2214
        %v2327 = vadd.f32 %v1987, %v2215
        %v2328 = vadd.f32 %v1988, %v2216
        %v2329 = vadd.f32 %v1989, %v2217
        %v2330 = vadd.f32 %v1990, %v2218
        %v2331 = vadd.f32 %v1991, %v2219
        %v2332 = vadd.f32 %v1992, %v2220
        %v2333 = vadd.f32 %v1993, %v2221
        %v2334 = vadd.f32 %v1994, %v2222
        %v2335 = vadd.f32 %v1995, %v2223
        %v2336 = vadd.f32 %v1996, %v2224
        %v2337 = vadd.f32 %v1997, %v2225
        %v2338 = vadd.f32 %v1998, %v2226
        %v2339 = vadd.f32 %v1999, %v2227
        %v2340 = vadd.f32 %v2000, %v2228
        %v2341 = vadd.f32 %v2001, %v2229
        %v2342 = vadd.f32 %v2002, %v2230
        %v2343 = vadd.f32 %v2003, %v2231
        %v2344 = vadd.f32 %v2004, %v2232
        %v2345 = vadd.f32 %v2005, %v2233
        %v2346 = vadd.f32 %v2006, %v2234
        %v2347 = vadd.f32 %v2007, %v2235
        %v2348 = vadd.f32 %v2008, %v2236
        %v2349 = vadd.f32 %v2009, %v2237
        %v2350 = vadd.f32 %v2010, %v2238
        %v2351 = vadd.f32 %v2011, %v2239
        %v2352 = vadd.f32 %v2012, %v2240
        %v2353 = vadd.f32 %v2013, %v2241
        %v2354 = vadd.f32 %v2014, %v2242
        %v2355 = vadd.f32 %v2015, %v2243
        %v2356 = vadd.f32 %v2016, %v2244
        %v2357 = vadd.f32 %v2017, %v2245
        %v2358 = vadd.f32 %v2018, %v2246
        %v2359 = vadd.f32 %v2019, %v2247
        %v2360 = vadd.f32 %v2020, %v2248
        %v2361 = vadd.f32 %v2021, %v2249
        %v2362 = vadd.f32 %v2022, %v2250
        %v2363 = vadd.f32 %v2023, %v2251
        %v2364 = vadd.f32 %v2024, %v2252
        %v2365 = vadd.f32 %v2025, %v2253
        %v2366 = vadd.f32 %v2026, %v2254
        %v2367 = vadd.f32 %v2027, %v2255
        %v2368 = vadd.f32 %v2028, %v2256
        %v2369 = vadd.f32 %v2029, %v2257
        %v2370 = vadd.f32 %v2030, %v2258
        %v2371 = vadd.f32 %v2031, %v2259
        %v2372 = vadd.f32 %v2032, %v2260
        %v2373 = vadd.f32 %v2033, %v2261
        %v2374 = vadd.f32 %v2034, %v2262
        %v2375 = vadd.f32 %v2035, %v2263
        %v2376 = vadd.f32 %v2036, %v2264
        %v2377 = vadd.f32 %v2037, %v2265
        %v2378 = vadd.f32 %v2038, %v2266
        %v2379 = vadd.f32 %v2039, %v2267
        %s2380 = scalar_lea.vmem %s329, 64
        %v2381 = vld [vmem:[%s2380] sm:$0xff]
        %v2382 = vld [vmem:[%s2380 + $0x8] sm:$0xff]
        %v2383 = vld [vmem:[%s2380 + $0x10] sm:$0xff]
        %v2384 = vld [vmem:[%s2380 + $0x18] sm:$0xf]
        %v2385 = vld [vmem:[%s2380 + $0x20] sm:$0xff]
        %v2386 = vld [vmem:[%s2380 + $0x28] sm:$0xff]
        %v2387 = vld [vmem:[%s2380 + $0x30] sm:$0xff]
        %v2388 = vld [vmem:[%s2380 + $0x38] sm:$0xf]
        %v2389 = vld [vmem:[%s2380 + $0x40] sm:$0xff]
        %v2390 = vld [vmem:[%s2380 + $0x48] sm:$0xff]
        %v2391 = vld [vmem:[%s2380 + $0x50] sm:$0xff]
        %v2392 = vld [vmem:[%s2380 + $0x58] sm:$0xf]
        %v2393 = vld [vmem:[%s2380 + $0x60] sm:$0xff]
        %v2394 = vld [vmem:[%s2380 + $0x68] sm:$0xff]
        %v2395 = vld [vmem:[%s2380 + $0x70] sm:$0xff]
        %v2396 = vld [vmem:[%s2380 + $0x78] sm:$0xf]
        %v2397 = vld [vmem:[%s2380 + $0x80] sm:$0xff]
        %v2398 = vld [vmem:[%s2380 + $0x88] sm:$0xff]
        %v2399 = vld [vmem:[%s2380 + $0x90] sm:$0xff]
        %v2400 = vld [vmem:[%s2380 + $0x98] sm:$0xf]
        %v2401 = vld [vmem:[%s2380 + $0xa0] sm:$0xff]
        %v2402 = vld [vmem:[%s2380 + $0xa8] sm:$0xff]
        %v2403 = vld [vmem:[%s2380 + $0xb0] sm:$0xff]
        %v2404 = vld [vmem:[%s2380 + $0xb8] sm:$0xf]
        %v2405 = vld [vmem:[%s2380 + $0xc0] sm:$0xff]
        %v2406 = vld [vmem:[%s2380 + $0xc8] sm:$0xff]
        %v2407 = vld [vmem:[%s2380 + $0xd0] sm:$0xff]
        %v2408 = vld [vmem:[%s2380 + $0xd8] sm:$0xf]
        %v2409 = vld [vmem:[%s2380 + $0xe0] sm:$0xff]
        %v2410 = vld [vmem:[%s2380 + $0xe8] sm:$0xff]
        %v2411 = vld [vmem:[%s2380 + $0xf0] sm:$0xff]
        %v2412 = vld [vmem:[%s2380 + $0xf8] sm:$0xf]
        %v2413 = vld [vmem:[%s2380 + $0x100] sm:$0xff]
        %v2414 = vld [vmem:[%s2380 + $0x108] sm:$0xff]
        %v2415 = vld [vmem:[%s2380 + $0x110] sm:$0xff]
        %v2416 = vld [vmem:[%s2380 + $0x118] sm:$0xf]
        %v2417 = vld [vmem:[%s2380 + $0x120] sm:$0xff]
        %v2418 = vld [vmem:[%s2380 + $0x128] sm:$0xff]
        %v2419 = vld [vmem:[%s2380 + $0x130] sm:$0xff]
        %v2420 = vld [vmem:[%s2380 + $0x138] sm:$0xf]
        %v2421 = vld [vmem:[%s2380 + $0x140] sm:$0xff]
        %v2422 = vld [vmem:[%s2380 + $0x148] sm:$0xff]
        %v2423 = vld [vmem:[%s2380 + $0x150] sm:$0xff]
        %v2424 = vld [vmem:[%s2380 + $0x158] sm:$0xf]
        %v2425 = vld [vmem:[%s2380 + $0x160] sm:$0xff]
        %v2426 = vld [vmem:[%s2380 + $0x168] sm:$0xff]
        %v2427 = vld [vmem:[%s2380 + $0x170] sm:$0xff]
        %v2428 = vld [vmem:[%s2380 + $0x178] sm:$0xf]
        %v2429 = vld [vmem:[%s2380 + $0x180] sm:$0xff]
        %v2430 = vld [vmem:[%s2380 + $0x188] sm:$0xff]
        %v2431 = vld [vmem:[%s2380 + $0x190] sm:$0xff]
        %v2432 = vld [vmem:[%s2380 + $0x198] sm:$0xf]
        %v2433 = vld [vmem:[%s2380 + $0x1a0] sm:$0xff]
        %v2434 = vld [vmem:[%s2380 + $0x1a8] sm:$0xff]
        %v2435 = vld [vmem:[%s2380 + $0x1b0] sm:$0xff]
        %v2436 = vld [vmem:[%s2380 + $0x1b8] sm:$0xf]
        %v2437 = vld [vmem:[%s2380 + $0x1c0] sm:$0xff]
        %v2438 = vld [vmem:[%s2380 + $0x1c8] sm:$0xff]
        %v2439 = vld [vmem:[%s2380 + $0x1d0] sm:$0xff]
        %v2440 = vld [vmem:[%s2380 + $0x1d8] sm:$0xf]
        %v2441 = vld [vmem:[%s2380 + $0x1e0] sm:$0xff]
        %v2442 = vld [vmem:[%s2380 + $0x1e8] sm:$0xff]
        %v2443 = vld [vmem:[%s2380 + $0x1f0] sm:$0xff]
        %v2444 = vld [vmem:[%s2380 + $0x1f8] sm:$0xf]
        %v2445 = vld [vmem:[%s2380 + $0x200] sm:$0xff]
        %v2446 = vld [vmem:[%s2380 + $0x208] sm:$0xff]
        %v2447 = vld [vmem:[%s2380 + $0x210] sm:$0xff]
        %v2448 = vld [vmem:[%s2380 + $0x218] sm:$0xf]
        %v2449 = vld [vmem:[%s2380 + $0x220] sm:$0xff]
        %v2450 = vld [vmem:[%s2380 + $0x228] sm:$0xff]
        %v2451 = vld [vmem:[%s2380 + $0x230] sm:$0xff]
        %v2452 = vld [vmem:[%s2380 + $0x238] sm:$0xf]
        %v2453 = vld [vmem:[%s2380 + $0x240] sm:$0xff]
        %v2454 = vld [vmem:[%s2380 + $0x248] sm:$0xff]
        %v2455 = vld [vmem:[%s2380 + $0x250] sm:$0xff]
        %v2456 = vld [vmem:[%s2380 + $0x258] sm:$0xf]
        %v2457 = vld [vmem:[%s2380 + $0x260] sm:$0xff]
        %v2458 = vld [vmem:[%s2380 + $0x268] sm:$0xff]
        %v2459 = vld [vmem:[%s2380 + $0x270] sm:$0xff]
        %v2460 = vld [vmem:[%s2380 + $0x278] sm:$0xf]
        %v2461 = vld [vmem:[%s2380 + $0x280] sm:$0xff]
        %v2462 = vld [vmem:[%s2380 + $0x288] sm:$0xff]
        %v2463 = vld [vmem:[%s2380 + $0x290] sm:$0xff]
        %v2464 = vld [vmem:[%s2380 + $0x298] sm:$0xf]
        %v2465 = vld [vmem:[%s2380 + $0x2a0] sm:$0xff]
        %v2466 = vld [vmem:[%s2380 + $0x2a8] sm:$0xff]
        %v2467 = vld [vmem:[%s2380 + $0x2b0] sm:$0xff]
        %v2468 = vld [vmem:[%s2380 + $0x2b8] sm:$0xf]
        %v2469 = vld [vmem:[%s2380 + $0x2c0] sm:$0xff]
        %v2470 = vld [vmem:[%s2380 + $0x2c8] sm:$0xff]
        %v2471 = vld [vmem:[%s2380 + $0x2d0] sm:$0xff]
        %v2472 = vld [vmem:[%s2380 + $0x2d8] sm:$0xf]
        %v2473 = vld [vmem:[%s2380 + $0x2e0] sm:$0xff]
        %v2474 = vld [vmem:[%s2380 + $0x2e8] sm:$0xff]
        %v2475 = vld [vmem:[%s2380 + $0x2f0] sm:$0xff]
        %v2476 = vld [vmem:[%s2380 + $0x2f8] sm:$0xf]
        %v2477 = vld [vmem:[%s2380 + $0x300] sm:$0xff]
        %v2478 = vld [vmem:[%s2380 + $0x308] sm:$0xff]
        %v2479 = vld [vmem:[%s2380 + $0x310] sm:$0xff]
        %v2480 = vld [vmem:[%s2380 + $0x318] sm:$0xf]
        %v2481 = vld [vmem:[%s2380 + $0x320] sm:$0xff]
        %v2482 = vld [vmem:[%s2380 + $0x328] sm:$0xff]
        %v2483 = vld [vmem:[%s2380 + $0x330] sm:$0xff]
        %v2484 = vld [vmem:[%s2380 + $0x338] sm:$0xf]
        %v2485 = vld [vmem:[%s2380 + $0x340] sm:$0xff]
        %v2486 = vld [vmem:[%s2380 + $0x348] sm:$0xff]
        %v2487 = vld [vmem:[%s2380 + $0x350] sm:$0xff]
        %v2488 = vld [vmem:[%s2380 + $0x358] sm:$0xf]
        %v2489 = vld [vmem:[%s2380 + $0x360] sm:$0xff]
        %v2490 = vld [vmem:[%s2380 + $0x368] sm:$0xff]
        %v2491 = vld [vmem:[%s2380 + $0x370] sm:$0xff]
        %v2492 = vld [vmem:[%s2380 + $0x378] sm:$0xf]
        %v2493 = vlaneseq
        %v2494 = vshrl.u32 %v2493, 7
        %v2495 = vsub.s32 6, %v2494
        %v2496 = vrot.slane %v330, %v2495
        %v2497 = vmul.f32 %v2381, %v2496
        %v2498 = vmul.f32 %v2382, %v2496
        %v2499 = vmul.f32 %v2383, %v2496
        %v2500 = vmul.f32 %v2384, %v2496
        %v2501 = vmul.f32 %v2385, %v2496
        %v2502 = vmul.f32 %v2386, %v2496
        %v2503 = vmul.f32 %v2387, %v2496
        %v2504 = vmul.f32 %v2388, %v2496
        %v2505 = vmul.f32 %v2389, %v2496
        %v2506 = vmul.f32 %v2390, %v2496
        %v2507 = vmul.f32 %v2391, %v2496
        %v2508 = vmul.f32 %v2392, %v2496
        %v2509 = vmul.f32 %v2393, %v2496
        %v2510 = vmul.f32 %v2394, %v2496
        %v2511 = vmul.f32 %v2395, %v2496
        %v2512 = vmul.f32 %v2396, %v2496
        %v2513 = vmul.f32 %v2397, %v2496
        %v2514 = vmul.f32 %v2398, %v2496
        %v2515 = vmul.f32 %v2399, %v2496
        %v2516 = vmul.f32 %v2400, %v2496
        %v2517 = vmul.f32 %v2401, %v2496
        %v2518 = vmul.f32 %v2402, %v2496
        %v2519 = vmul.f32 %v2403, %v2496
        %v2520 = vmul.f32 %v2404, %v2496
        %v2521 = vmul.f32 %v2405, %v2496
        %v2522 = vmul.f32 %v2406, %v2496
        %v2523 = vmul.f32 %v2407, %v2496
        %v2524 = vmul.f32 %v2408, %v2496
        %v2525 = vmul.f32 %v2409, %v2496
        %v2526 = vmul.f32 %v2410, %v2496
        %v2527 = vmul.f32 %v2411, %v2496
        %v2528 = vmul.f32 %v2412, %v2496
        %v2529 = vmul.f32 %v2413, %v2496
        %v2530 = vmul.f32 %v2414, %v2496
        %v2531 = vmul.f32 %v2415, %v2496
        %v2532 = vmul.f32 %v2416, %v2496
        %v2533 = vmul.f32 %v2417, %v2496
        %v2534 = vmul.f32 %v2418, %v2496
        %v2535 = vmul.f32 %v2419, %v2496
        %v2536 = vmul.f32 %v2420, %v2496
        %v2537 = vmul.f32 %v2421, %v2496
        %v2538 = vmul.f32 %v2422, %v2496
        %v2539 = vmul.f32 %v2423, %v2496
        %v2540 = vmul.f32 %v2424, %v2496
        %v2541 = vmul.f32 %v2425, %v2496
        %v2542 = vmul.f32 %v2426, %v2496
        %v2543 = vmul.f32 %v2427, %v2496
        %v2544 = vmul.f32 %v2428, %v2496
        %v2545 = vmul.f32 %v2429, %v2496
        %v2546 = vmul.f32 %v2430, %v2496
        %v2547 = vmul.f32 %v2431, %v2496
        %v2548 = vmul.f32 %v2432, %v2496
        %v2549 = vmul.f32 %v2433, %v2496
        %v2550 = vmul.f32 %v2434, %v2496
        %v2551 = vmul.f32 %v2435, %v2496
        %v2552 = vmul.f32 %v2436, %v2496
        %v2553 = vmul.f32 %v2437, %v2496
        %v2554 = vmul.f32 %v2438, %v2496
        %v2555 = vmul.f32 %v2439, %v2496
        %v2556 = vmul.f32 %v2440, %v2496
        %v2557 = vmul.f32 %v2441, %v2496
        %v2558 = vmul.f32 %v2442, %v2496
        %v2559 = vmul.f32 %v2443, %v2496
        %v2560 = vmul.f32 %v2444, %v2496
        %v2561 = vmul.f32 %v2445, %v2496
        %v2562 = vmul.f32 %v2446, %v2496
        %v2563 = vmul.f32 %v2447, %v2496
        %v2564 = vmul.f32 %v2448, %v2496
        %v2565 = vmul.f32 %v2449, %v2496
        %v2566 = vmul.f32 %v2450, %v2496
        %v2567 = vmul.f32 %v2451, %v2496
        %v2568 = vmul.f32 %v2452, %v2496
        %v2569 = vmul.f32 %v2453, %v2496
        %v2570 = vmul.f32 %v2454, %v2496
        %v2571 = vmul.f32 %v2455, %v2496
        %v2572 = vmul.f32 %v2456, %v2496
        %v2573 = vmul.f32 %v2457, %v2496
        %v2574 = vmul.f32 %v2458, %v2496
        %v2575 = vmul.f32 %v2459, %v2496
        %v2576 = vmul.f32 %v2460, %v2496
        %v2577 = vmul.f32 %v2461, %v2496
        %v2578 = vmul.f32 %v2462, %v2496
        %v2579 = vmul.f32 %v2463, %v2496
        %v2580 = vmul.f32 %v2464, %v2496
        %v2581 = vmul.f32 %v2465, %v2496
        %v2582 = vmul.f32 %v2466, %v2496
        %v2583 = vmul.f32 %v2467, %v2496
        %v2584 = vmul.f32 %v2468, %v2496
        %v2585 = vmul.f32 %v2469, %v2496
        %v2586 = vmul.f32 %v2470, %v2496
        %v2587 = vmul.f32 %v2471, %v2496
        %v2588 = vmul.f32 %v2472, %v2496
        %v2589 = vmul.f32 %v2473, %v2496
        %v2590 = vmul.f32 %v2474, %v2496
        %v2591 = vmul.f32 %v2475, %v2496
        %v2592 = vmul.f32 %v2476, %v2496
        %v2593 = vmul.f32 %v2477, %v2496
        %v2594 = vmul.f32 %v2478, %v2496
        %v2595 = vmul.f32 %v2479, %v2496
        %v2596 = vmul.f32 %v2480, %v2496
        %v2597 = vmul.f32 %v2481, %v2496
        %v2598 = vmul.f32 %v2482, %v2496
        %v2599 = vmul.f32 %v2483, %v2496
        %v2600 = vmul.f32 %v2484, %v2496
        %v2601 = vmul.f32 %v2485, %v2496
        %v2602 = vmul.f32 %v2486, %v2496
        %v2603 = vmul.f32 %v2487, %v2496
        %v2604 = vmul.f32 %v2488, %v2496
        %v2605 = vmul.f32 %v2489, %v2496
        %v2606 = vmul.f32 %v2490, %v2496
        %v2607 = vmul.f32 %v2491, %v2496
        %v2608 = vmul.f32 %v2492, %v2496
        %v2609 = vadd.f32 %v2268, %v2497
        %v2610 = vadd.f32 %v2269, %v2498
        %v2611 = vadd.f32 %v2270, %v2499
        %v2612 = vadd.f32 %v2271, %v2500
        %v2613 = vadd.f32 %v2272, %v2501
        %v2614 = vadd.f32 %v2273, %v2502
        %v2615 = vadd.f32 %v2274, %v2503
        %v2616 = vadd.f32 %v2275, %v2504
        %v2617 = vadd.f32 %v2276, %v2505
        %v2618 = vadd.f32 %v2277, %v2506
        %v2619 = vadd.f32 %v2278, %v2507
        %v2620 = vadd.f32 %v2279, %v2508
        %v2621 = vadd.f32 %v2280, %v2509
        %v2622 = vadd.f32 %v2281, %v2510
        %v2623 = vadd.f32 %v2282, %v2511
        %v2624 = vadd.f32 %v2283, %v2512
        %v2625 = vadd.f32 %v2284, %v2513
        %v2626 = vadd.f32 %v2285, %v2514
        %v2627 = vadd.f32 %v2286, %v2515
        %v2628 = vadd.f32 %v2287, %v2516
        %v2629 = vadd.f32 %v2288, %v2517
        %v2630 = vadd.f32 %v2289, %v2518
        %v2631 = vadd.f32 %v2290, %v2519
        %v2632 = vadd.f32 %v2291, %v2520
        %v2633 = vadd.f32 %v2292, %v2521
        %v2634 = vadd.f32 %v2293, %v2522
        %v2635 = vadd.f32 %v2294, %v2523
        %v2636 = vadd.f32 %v2295, %v2524
        %v2637 = vadd.f32 %v2296, %v2525
        %v2638 = vadd.f32 %v2297, %v2526
        %v2639 = vadd.f32 %v2298, %v2527
        %v2640 = vadd.f32 %v2299, %v2528
        %v2641 = vadd.f32 %v2300, %v2529
        %v2642 = vadd.f32 %v2301, %v2530
        %v2643 = vadd.f32 %v2302, %v2531
        %v2644 = vadd.f32 %v2303, %v2532
        %v2645 = vadd.f32 %v2304, %v2533
        %v2646 = vadd.f32 %v2305, %v2534
        %v2647 = vadd.f32 %v2306, %v2535
        %v2648 = vadd.f32 %v2307, %v2536
        %v2649 = vadd.f32 %v2308, %v2537
        %v2650 = vadd.f32 %v2309, %v2538
        %v2651 = vadd.f32 %v2310, %v2539
        %v2652 = vadd.f32 %v2311, %v2540
        %v2653 = vadd.f32 %v2312, %v2541
        %v2654 = vadd.f32 %v2313, %v2542
        %v2655 = vadd.f32 %v2314, %v2543
        %v2656 = vadd.f32 %v2315, %v2544
        %v2657 = vadd.f32 %v2316, %v2545
        %v2658 = vadd.f32 %v2317, %v2546
        %v2659 = vadd.f32 %v2318, %v2547
        %v2660 = vadd.f32 %v2319, %v2548
        %v2661 = vadd.f32 %v2320, %v2549
        %v2662 = vadd.f32 %v2321, %v2550
        %v2663 = vadd.f32 %v2322, %v2551
        %v2664 = vadd.f32 %v2323, %v2552
        %v2665 = vadd.f32 %v2324, %v2553
        %v2666 = vadd.f32 %v2325, %v2554
        %v2667 = vadd.f32 %v2326, %v2555
        %v2668 = vadd.f32 %v2327, %v2556
        %v2669 = vadd.f32 %v2328, %v2557
        %v2670 = vadd.f32 %v2329, %v2558
        %v2671 = vadd.f32 %v2330, %v2559
        %v2672 = vadd.f32 %v2331, %v2560
        %v2673 = vadd.f32 %v2332, %v2561
        %v2674 = vadd.f32 %v2333, %v2562
        %v2675 = vadd.f32 %v2334, %v2563
        %v2676 = vadd.f32 %v2335, %v2564
        %v2677 = vadd.f32 %v2336, %v2565
        %v2678 = vadd.f32 %v2337, %v2566
        %v2679 = vadd.f32 %v2338, %v2567
        %v2680 = vadd.f32 %v2339, %v2568
        %v2681 = vadd.f32 %v2340, %v2569
        %v2682 = vadd.f32 %v2341, %v2570
        %v2683 = vadd.f32 %v2342, %v2571
        %v2684 = vadd.f32 %v2343, %v2572
        %v2685 = vadd.f32 %v2344, %v2573
        %v2686 = vadd.f32 %v2345, %v2574
        %v2687 = vadd.f32 %v2346, %v2575
        %v2688 = vadd.f32 %v2347, %v2576
        %v2689 = vadd.f32 %v2348, %v2577
        %v2690 = vadd.f32 %v2349, %v2578
        %v2691 = vadd.f32 %v2350, %v2579
        %v2692 = vadd.f32 %v2351, %v2580
        %v2693 = vadd.f32 %v2352, %v2581
        %v2694 = vadd.f32 %v2353, %v2582
        %v2695 = vadd.f32 %v2354, %v2583
        %v2696 = vadd.f32 %v2355, %v2584
        %v2697 = vadd.f32 %v2356, %v2585
        %v2698 = vadd.f32 %v2357, %v2586
        %v2699 = vadd.f32 %v2358, %v2587
        %v2700 = vadd.f32 %v2359, %v2588
        %v2701 = vadd.f32 %v2360, %v2589
        %v2702 = vadd.f32 %v2361, %v2590
        %v2703 = vadd.f32 %v2362, %v2591
        %v2704 = vadd.f32 %v2363, %v2592
        %v2705 = vadd.f32 %v2364, %v2593
        %v2706 = vadd.f32 %v2365, %v2594
        %v2707 = vadd.f32 %v2366, %v2595
        %v2708 = vadd.f32 %v2367, %v2596
        %v2709 = vadd.f32 %v2368, %v2597
        %v2710 = vadd.f32 %v2369, %v2598
        %v2711 = vadd.f32 %v2370, %v2599
        %v2712 = vadd.f32 %v2371, %v2600
        %v2713 = vadd.f32 %v2372, %v2601
        %v2714 = vadd.f32 %v2373, %v2602
        %v2715 = vadd.f32 %v2374, %v2603
        %v2716 = vadd.f32 %v2375, %v2604
        %v2717 = vadd.f32 %v2376, %v2605
        %v2718 = vadd.f32 %v2377, %v2606
        %v2719 = vadd.f32 %v2378, %v2607
        %v2720 = vadd.f32 %v2379, %v2608
        %v2721 = vld [vmem:[%s2380 + $0x1] sm:$0xff]
        %v2722 = vld [vmem:[%s2380 + $0x9] sm:$0xff]
        %v2723 = vld [vmem:[%s2380 + $0x11] sm:$0xff]
        %v2724 = vld [vmem:[%s2380 + $0x19] sm:$0xf]
        %v2725 = vld [vmem:[%s2380 + $0x21] sm:$0xff]
        %v2726 = vld [vmem:[%s2380 + $0x29] sm:$0xff]
        %v2727 = vld [vmem:[%s2380 + $0x31] sm:$0xff]
        %v2728 = vld [vmem:[%s2380 + $0x39] sm:$0xf]
        %v2729 = vld [vmem:[%s2380 + $0x41] sm:$0xff]
        %v2730 = vld [vmem:[%s2380 + $0x49] sm:$0xff]
        %v2731 = vld [vmem:[%s2380 + $0x51] sm:$0xff]
        %v2732 = vld [vmem:[%s2380 + $0x59] sm:$0xf]
        %v2733 = vld [vmem:[%s2380 + $0x61] sm:$0xff]
        %v2734 = vld [vmem:[%s2380 + $0x69] sm:$0xff]
        %v2735 = vld [vmem:[%s2380 + $0x71] sm:$0xff]
        %v2736 = vld [vmem:[%s2380 + $0x79] sm:$0xf]
        %v2737 = vld [vmem:[%s2380 + $0x81] sm:$0xff]
        %v2738 = vld [vmem:[%s2380 + $0x89] sm:$0xff]
        %v2739 = vld [vmem:[%s2380 + $0x91] sm:$0xff]
        %v2740 = vld [vmem:[%s2380 + $0x99] sm:$0xf]
        %v2741 = vld [vmem:[%s2380 + $0xa1] sm:$0xff]
        %v2742 = vld [vmem:[%s2380 + $0xa9] sm:$0xff]
        %v2743 = vld [vmem:[%s2380 + $0xb1] sm:$0xff]
        %v2744 = vld [vmem:[%s2380 + $0xb9] sm:$0xf]
        %v2745 = vld [vmem:[%s2380 + $0xc1] sm:$0xff]
        %v2746 = vld [vmem:[%s2380 + $0xc9] sm:$0xff]
        %v2747 = vld [vmem:[%s2380 + $0xd1] sm:$0xff]
        %v2748 = vld [vmem:[%s2380 + $0xd9] sm:$0xf]
        %v2749 = vld [vmem:[%s2380 + $0xe1] sm:$0xff]
        %v2750 = vld [vmem:[%s2380 + $0xe9] sm:$0xff]
        %v2751 = vld [vmem:[%s2380 + $0xf1] sm:$0xff]
        %v2752 = vld [vmem:[%s2380 + $0xf9] sm:$0xf]
        %v2753 = vld [vmem:[%s2380 + $0x101] sm:$0xff]
        %v2754 = vld [vmem:[%s2380 + $0x109] sm:$0xff]
        %v2755 = vld [vmem:[%s2380 + $0x111] sm:$0xff]
        %v2756 = vld [vmem:[%s2380 + $0x119] sm:$0xf]
        %v2757 = vld [vmem:[%s2380 + $0x121] sm:$0xff]
        %v2758 = vld [vmem:[%s2380 + $0x129] sm:$0xff]
        %v2759 = vld [vmem:[%s2380 + $0x131] sm:$0xff]
        %v2760 = vld [vmem:[%s2380 + $0x139] sm:$0xf]
        %v2761 = vld [vmem:[%s2380 + $0x141] sm:$0xff]
        %v2762 = vld [vmem:[%s2380 + $0x149] sm:$0xff]
        %v2763 = vld [vmem:[%s2380 + $0x151] sm:$0xff]
        %v2764 = vld [vmem:[%s2380 + $0x159] sm:$0xf]
        %v2765 = vld [vmem:[%s2380 + $0x161] sm:$0xff]
        %v2766 = vld [vmem:[%s2380 + $0x169] sm:$0xff]
        %v2767 = vld [vmem:[%s2380 + $0x171] sm:$0xff]
        %v2768 = vld [vmem:[%s2380 + $0x179] sm:$0xf]
        %v2769 = vld [vmem:[%s2380 + $0x181] sm:$0xff]
        %v2770 = vld [vmem:[%s2380 + $0x189] sm:$0xff]
        %v2771 = vld [vmem:[%s2380 + $0x191] sm:$0xff]
        %v2772 = vld [vmem:[%s2380 + $0x199] sm:$0xf]
        %v2773 = vld [vmem:[%s2380 + $0x1a1] sm:$0xff]
        %v2774 = vld [vmem:[%s2380 + $0x1a9] sm:$0xff]
        %v2775 = vld [vmem:[%s2380 + $0x1b1] sm:$0xff]
        %v2776 = vld [vmem:[%s2380 + $0x1b9] sm:$0xf]
        %v2777 = vld [vmem:[%s2380 + $0x1c1] sm:$0xff]
        %v2778 = vld [vmem:[%s2380 + $0x1c9] sm:$0xff]
        %v2779 = vld [vmem:[%s2380 + $0x1d1] sm:$0xff]
        %v2780 = vld [vmem:[%s2380 + $0x1d9] sm:$0xf]
        %v2781 = vld [vmem:[%s2380 + $0x1e1] sm:$0xff]
        %v2782 = vld [vmem:[%s2380 + $0x1e9] sm:$0xff]
        %v2783 = vld [vmem:[%s2380 + $0x1f1] sm:$0xff]
        %v2784 = vld [vmem:[%s2380 + $0x1f9] sm:$0xf]
        %v2785 = vld [vmem:[%s2380 + $0x201] sm:$0xff]
        %v2786 = vld [vmem:[%s2380 + $0x209] sm:$0xff]
        %v2787 = vld [vmem:[%s2380 + $0x211] sm:$0xff]
        %v2788 = vld [vmem:[%s2380 + $0x219] sm:$0xf]
        %v2789 = vld [vmem:[%s2380 + $0x221] sm:$0xff]
        %v2790 = vld [vmem:[%s2380 + $0x229] sm:$0xff]
        %v2791 = vld [vmem:[%s2380 + $0x231] sm:$0xff]
        %v2792 = vld [vmem:[%s2380 + $0x239] sm:$0xf]
        %v2793 = vld [vmem:[%s2380 + $0x241] sm:$0xff]
        %v2794 = vld [vmem:[%s2380 + $0x249] sm:$0xff]
        %v2795 = vld [vmem:[%s2380 + $0x251] sm:$0xff]
        %v2796 = vld [vmem:[%s2380 + $0x259] sm:$0xf]
        %v2797 = vld [vmem:[%s2380 + $0x261] sm:$0xff]
        %v2798 = vld [vmem:[%s2380 + $0x269] sm:$0xff]
        %v2799 = vld [vmem:[%s2380 + $0x271] sm:$0xff]
        %v2800 = vld [vmem:[%s2380 + $0x279] sm:$0xf]
        %v2801 = vld [vmem:[%s2380 + $0x281] sm:$0xff]
        %v2802 = vld [vmem:[%s2380 + $0x289] sm:$0xff]
        %v2803 = vld [vmem:[%s2380 + $0x291] sm:$0xff]
        %v2804 = vld [vmem:[%s2380 + $0x299] sm:$0xf]
        %v2805 = vld [vmem:[%s2380 + $0x2a1] sm:$0xff]
        %v2806 = vld [vmem:[%s2380 + $0x2a9] sm:$0xff]
        %v2807 = vld [vmem:[%s2380 + $0x2b1] sm:$0xff]
        %v2808 = vld [vmem:[%s2380 + $0x2b9] sm:$0xf]
        %v2809 = vld [vmem:[%s2380 + $0x2c1] sm:$0xff]
        %v2810 = vld [vmem:[%s2380 + $0x2c9] sm:$0xff]
        %v2811 = vld [vmem:[%s2380 + $0x2d1] sm:$0xff]
        %v2812 = vld [vmem:[%s2380 + $0x2d9] sm:$0xf]
        %v2813 = vld [vmem:[%s2380 + $0x2e1] sm:$0xff]
        %v2814 = vld [vmem:[%s2380 + $0x2e9] sm:$0xff]
        %v2815 = vld [vmem:[%s2380 + $0x2f1] sm:$0xff]
        %v2816 = vld [vmem:[%s2380 + $0x2f9] sm:$0xf]
        %v2817 = vld [vmem:[%s2380 + $0x301] sm:$0xff]
        %v2818 = vld [vmem:[%s2380 + $0x309] sm:$0xff]
        %v2819 = vld [vmem:[%s2380 + $0x311] sm:$0xff]
        %v2820 = vld [vmem:[%s2380 + $0x319] sm:$0xf]
        %v2821 = vld [vmem:[%s2380 + $0x321] sm:$0xff]
        %v2822 = vld [vmem:[%s2380 + $0x329] sm:$0xff]
        %v2823 = vld [vmem:[%s2380 + $0x331] sm:$0xff]
        %v2824 = vld [vmem:[%s2380 + $0x339] sm:$0xf]
        %v2825 = vld [vmem:[%s2380 + $0x341] sm:$0xff]
        %v2826 = vld [vmem:[%s2380 + $0x349] sm:$0xff]
        %v2827 = vld [vmem:[%s2380 + $0x351] sm:$0xff]
        %v2828 = vld [vmem:[%s2380 + $0x359] sm:$0xf]
        %v2829 = vld [vmem:[%s2380 + $0x361] sm:$0xff]
        %v2830 = vld [vmem:[%s2380 + $0x369] sm:$0xff]
        %v2831 = vld [vmem:[%s2380 + $0x371] sm:$0xff]
        %v2832 = vld [vmem:[%s2380 + $0x379] sm:$0xf]
        %v2833 = vlaneseq
        %v2834 = vshrl.u32 %v2833, 7
        %v2835 = vsub.s32 7, %v2834
        %v2836 = vrot.slane %v330, %v2835
        %v2837 = vmul.f32 %v2721, %v2836
        %v2838 = vmul.f32 %v2722, %v2836
        %v2839 = vmul.f32 %v2723, %v2836
        %v2840 = vmul.f32 %v2724, %v2836
        %v2841 = vmul.f32 %v2725, %v2836
        %v2842 = vmul.f32 %v2726, %v2836
        %v2843 = vmul.f32 %v2727, %v2836
        %v2844 = vmul.f32 %v2728, %v2836
        %v2845 = vmul.f32 %v2729, %v2836
        %v2846 = vmul.f32 %v2730, %v2836
        %v2847 = vmul.f32 %v2731, %v2836
        %v2848 = vmul.f32 %v2732, %v2836
        %v2849 = vmul.f32 %v2733, %v2836
        %v2850 = vmul.f32 %v2734, %v2836
        %v2851 = vmul.f32 %v2735, %v2836
        %v2852 = vmul.f32 %v2736, %v2836
        %v2853 = vmul.f32 %v2737, %v2836
        %v2854 = vmul.f32 %v2738, %v2836
        %v2855 = vmul.f32 %v2739, %v2836
        %v2856 = vmul.f32 %v2740, %v2836
        %v2857 = vmul.f32 %v2741, %v2836
        %v2858 = vmul.f32 %v2742, %v2836
        %v2859 = vmul.f32 %v2743, %v2836
        %v2860 = vmul.f32 %v2744, %v2836
        %v2861 = vmul.f32 %v2745, %v2836
        %v2862 = vmul.f32 %v2746, %v2836
        %v2863 = vmul.f32 %v2747, %v2836
        %v2864 = vmul.f32 %v2748, %v2836
        %v2865 = vmul.f32 %v2749, %v2836
        %v2866 = vmul.f32 %v2750, %v2836
        %v2867 = vmul.f32 %v2751, %v2836
        %v2868 = vmul.f32 %v2752, %v2836
        %v2869 = vmul.f32 %v2753, %v2836
        %v2870 = vmul.f32 %v2754, %v2836
        %v2871 = vmul.f32 %v2755, %v2836
        %v2872 = vmul.f32 %v2756, %v2836
        %v2873 = vmul.f32 %v2757, %v2836
        %v2874 = vmul.f32 %v2758, %v2836
        %v2875 = vmul.f32 %v2759, %v2836
        %v2876 = vmul.f32 %v2760, %v2836
        %v2877 = vmul.f32 %v2761, %v2836
        %v2878 = vmul.f32 %v2762, %v2836
        %v2879 = vmul.f32 %v2763, %v2836
        %v2880 = vmul.f32 %v2764, %v2836
        %v2881 = vmul.f32 %v2765, %v2836
        %v2882 = vmul.f32 %v2766, %v2836
        %v2883 = vmul.f32 %v2767, %v2836
        %v2884 = vmul.f32 %v2768, %v2836
        %v2885 = vmul.f32 %v2769, %v2836
        %v2886 = vmul.f32 %v2770, %v2836
        %v2887 = vmul.f32 %v2771, %v2836
        %v2888 = vmul.f32 %v2772, %v2836
        %v2889 = vmul.f32 %v2773, %v2836
        %v2890 = vmul.f32 %v2774, %v2836
        %v2891 = vmul.f32 %v2775, %v2836
        %v2892 = vmul.f32 %v2776, %v2836
        %v2893 = vmul.f32 %v2777, %v2836
        %v2894 = vmul.f32 %v2778, %v2836
        %v2895 = vmul.f32 %v2779, %v2836
        %v2896 = vmul.f32 %v2780, %v2836
        %v2897 = vmul.f32 %v2781, %v2836
        %v2898 = vmul.f32 %v2782, %v2836
        %v2899 = vmul.f32 %v2783, %v2836
        %v2900 = vmul.f32 %v2784, %v2836
        %v2901 = vmul.f32 %v2785, %v2836
        %v2902 = vmul.f32 %v2786, %v2836
        %v2903 = vmul.f32 %v2787, %v2836
        %v2904 = vmul.f32 %v2788, %v2836
        %v2905 = vmul.f32 %v2789, %v2836
        %v2906 = vmul.f32 %v2790, %v2836
        %v2907 = vmul.f32 %v2791, %v2836
        %v2908 = vmul.f32 %v2792, %v2836
        %v2909 = vmul.f32 %v2793, %v2836
        %v2910 = vmul.f32 %v2794, %v2836
        %v2911 = vmul.f32 %v2795, %v2836
        %v2912 = vmul.f32 %v2796, %v2836
        %v2913 = vmul.f32 %v2797, %v2836
        %v2914 = vmul.f32 %v2798, %v2836
        %v2915 = vmul.f32 %v2799, %v2836
        %v2916 = vmul.f32 %v2800, %v2836
        %v2917 = vmul.f32 %v2801, %v2836
        %v2918 = vmul.f32 %v2802, %v2836
        %v2919 = vmul.f32 %v2803, %v2836
        %v2920 = vmul.f32 %v2804, %v2836
        %v2921 = vmul.f32 %v2805, %v2836
        %v2922 = vmul.f32 %v2806, %v2836
        %v2923 = vmul.f32 %v2807, %v2836
        %v2924 = vmul.f32 %v2808, %v2836
        %v2925 = vmul.f32 %v2809, %v2836
        %v2926 = vmul.f32 %v2810, %v2836
        %v2927 = vmul.f32 %v2811, %v2836
        %v2928 = vmul.f32 %v2812, %v2836
        %v2929 = vmul.f32 %v2813, %v2836
        %v2930 = vmul.f32 %v2814, %v2836
        %v2931 = vmul.f32 %v2815, %v2836
        %v2932 = vmul.f32 %v2816, %v2836
        %v2933 = vmul.f32 %v2817, %v2836
        %v2934 = vmul.f32 %v2818, %v2836
        %v2935 = vmul.f32 %v2819, %v2836
        %v2936 = vmul.f32 %v2820, %v2836
        %v2937 = vmul.f32 %v2821, %v2836
        %v2938 = vmul.f32 %v2822, %v2836
        %v2939 = vmul.f32 %v2823, %v2836
        %v2940 = vmul.f32 %v2824, %v2836
        %v2941 = vmul.f32 %v2825, %v2836
        %v2942 = vmul.f32 %v2826, %v2836
        %v2943 = vmul.f32 %v2827, %v2836
        %v2944 = vmul.f32 %v2828, %v2836
        %v2945 = vmul.f32 %v2829, %v2836
        %v2946 = vmul.f32 %v2830, %v2836
        %v2947 = vmul.f32 %v2831, %v2836
        %v2948 = vmul.f32 %v2832, %v2836
        %v2949 = vadd.f32 %v2609, %v2837
        %v2950 = vadd.f32 %v2610, %v2838
        %v2951 = vadd.f32 %v2611, %v2839
        %v2952 = vadd.f32 %v2612, %v2840
        %v2953 = vadd.f32 %v2613, %v2841
        %v2954 = vadd.f32 %v2614, %v2842
        %v2955 = vadd.f32 %v2615, %v2843
        %v2956 = vadd.f32 %v2616, %v2844
        %v2957 = vadd.f32 %v2617, %v2845
        %v2958 = vadd.f32 %v2618, %v2846
        %v2959 = vadd.f32 %v2619, %v2847
        %v2960 = vadd.f32 %v2620, %v2848
        %v2961 = vadd.f32 %v2621, %v2849
        %v2962 = vadd.f32 %v2622, %v2850
        %v2963 = vadd.f32 %v2623, %v2851
        %v2964 = vadd.f32 %v2624, %v2852
        %v2965 = vadd.f32 %v2625, %v2853
        %v2966 = vadd.f32 %v2626, %v2854
        %v2967 = vadd.f32 %v2627, %v2855
        %v2968 = vadd.f32 %v2628, %v2856
        %v2969 = vadd.f32 %v2629, %v2857
        %v2970 = vadd.f32 %v2630, %v2858
        %v2971 = vadd.f32 %v2631, %v2859
        %v2972 = vadd.f32 %v2632, %v2860
        %v2973 = vadd.f32 %v2633, %v2861
        %v2974 = vadd.f32 %v2634, %v2862
        %v2975 = vadd.f32 %v2635, %v2863
        %v2976 = vadd.f32 %v2636, %v2864
        %v2977 = vadd.f32 %v2637, %v2865
        %v2978 = vadd.f32 %v2638, %v2866
        %v2979 = vadd.f32 %v2639, %v2867
        %v2980 = vadd.f32 %v2640, %v2868
        %v2981 = vadd.f32 %v2641, %v2869
        %v2982 = vadd.f32 %v2642, %v2870
        %v2983 = vadd.f32 %v2643, %v2871
        %v2984 = vadd.f32 %v2644, %v2872
        %v2985 = vadd.f32 %v2645, %v2873
        %v2986 = vadd.f32 %v2646, %v2874
        %v2987 = vadd.f32 %v2647, %v2875
        %v2988 = vadd.f32 %v2648, %v2876
        %v2989 = vadd.f32 %v2649, %v2877
        %v2990 = vadd.f32 %v2650, %v2878
        %v2991 = vadd.f32 %v2651, %v2879
        %v2992 = vadd.f32 %v2652, %v2880
        %v2993 = vadd.f32 %v2653, %v2881
        %v2994 = vadd.f32 %v2654, %v2882
        %v2995 = vadd.f32 %v2655, %v2883
        %v2996 = vadd.f32 %v2656, %v2884
        %v2997 = vadd.f32 %v2657, %v2885
        %v2998 = vadd.f32 %v2658, %v2886
        %v2999 = vadd.f32 %v2659, %v2887
        %v3000 = vadd.f32 %v2660, %v2888
        %v3001 = vadd.f32 %v2661, %v2889
        %v3002 = vadd.f32 %v2662, %v2890
        %v3003 = vadd.f32 %v2663, %v2891
        %v3004 = vadd.f32 %v2664, %v2892
        %v3005 = vadd.f32 %v2665, %v2893
        %v3006 = vadd.f32 %v2666, %v2894
        %v3007 = vadd.f32 %v2667, %v2895
        %v3008 = vadd.f32 %v2668, %v2896
        %v3009 = vadd.f32 %v2669, %v2897
        %v3010 = vadd.f32 %v2670, %v2898
        %v3011 = vadd.f32 %v2671, %v2899
        %v3012 = vadd.f32 %v2672, %v2900
        %v3013 = vadd.f32 %v2673, %v2901
        %v3014 = vadd.f32 %v2674, %v2902
        %v3015 = vadd.f32 %v2675, %v2903
        %v3016 = vadd.f32 %v2676, %v2904
        %v3017 = vadd.f32 %v2677, %v2905
        %v3018 = vadd.f32 %v2678, %v2906
        %v3019 = vadd.f32 %v2679, %v2907
        %v3020 = vadd.f32 %v2680, %v2908
        %v3021 = vadd.f32 %v2681, %v2909
        %v3022 = vadd.f32 %v2682, %v2910
        %v3023 = vadd.f32 %v2683, %v2911
        %v3024 = vadd.f32 %v2684, %v2912
        %v3025 = vadd.f32 %v2685, %v2913
        %v3026 = vadd.f32 %v2686, %v2914
        %v3027 = vadd.f32 %v2687, %v2915
        %v3028 = vadd.f32 %v2688, %v2916
        %v3029 = vadd.f32 %v2689, %v2917
        %v3030 = vadd.f32 %v2690, %v2918
        %v3031 = vadd.f32 %v2691, %v2919
        %v3032 = vadd.f32 %v2692, %v2920
        %v3033 = vadd.f32 %v2693, %v2921
        %v3034 = vadd.f32 %v2694, %v2922
        %v3035 = vadd.f32 %v2695, %v2923
        %v3036 = vadd.f32 %v2696, %v2924
        %v3037 = vadd.f32 %v2697, %v2925
        %v3038 = vadd.f32 %v2698, %v2926
        %v3039 = vadd.f32 %v2699, %v2927
        %v3040 = vadd.f32 %v2700, %v2928
        %v3041 = vadd.f32 %v2701, %v2929
        %v3042 = vadd.f32 %v2702, %v2930
        %v3043 = vadd.f32 %v2703, %v2931
        %v3044 = vadd.f32 %v2704, %v2932
        %v3045 = vadd.f32 %v2705, %v2933
        %v3046 = vadd.f32 %v2706, %v2934
        %v3047 = vadd.f32 %v2707, %v2935
        %v3048 = vadd.f32 %v2708, %v2936
        %v3049 = vadd.f32 %v2709, %v2937
        %v3050 = vadd.f32 %v2710, %v2938
        %v3051 = vadd.f32 %v2711, %v2939
        %v3052 = vadd.f32 %v2712, %v2940
        %v3053 = vadd.f32 %v2713, %v2941
        %v3054 = vadd.f32 %v2714, %v2942
        %v3055 = vadd.f32 %v2715, %v2943
        %v3056 = vadd.f32 %v2716, %v2944
        %v3057 = vadd.f32 %v2717, %v2945
        %v3058 = vadd.f32 %v2718, %v2946
        %v3059 = vadd.f32 %v2719, %v2947
        %v3060 = vadd.f32 %v2720, %v2948
        %v3061 = vld [vmem:[%s2380 + $0x2] sm:$0xff]
        %v3062 = vld [vmem:[%s2380 + $0xa] sm:$0xff]
        %v3063 = vld [vmem:[%s2380 + $0x12] sm:$0xff]
        %v3064 = vld [vmem:[%s2380 + $0x1a] sm:$0xf]
        %v3065 = vld [vmem:[%s2380 + $0x22] sm:$0xff]
        %v3066 = vld [vmem:[%s2380 + $0x2a] sm:$0xff]
        %v3067 = vld [vmem:[%s2380 + $0x32] sm:$0xff]
        %v3068 = vld [vmem:[%s2380 + $0x3a] sm:$0xf]
        %v3069 = vld [vmem:[%s2380 + $0x42] sm:$0xff]
        %v3070 = vld [vmem:[%s2380 + $0x4a] sm:$0xff]
        %v3071 = vld [vmem:[%s2380 + $0x52] sm:$0xff]
        %v3072 = vld [vmem:[%s2380 + $0x5a] sm:$0xf]
        %v3073 = vld [vmem:[%s2380 + $0x62] sm:$0xff]
        %v3074 = vld [vmem:[%s2380 + $0x6a] sm:$0xff]
        %v3075 = vld [vmem:[%s2380 + $0x72] sm:$0xff]
        %v3076 = vld [vmem:[%s2380 + $0x7a] sm:$0xf]
        %v3077 = vld [vmem:[%s2380 + $0x82] sm:$0xff]
        %v3078 = vld [vmem:[%s2380 + $0x8a] sm:$0xff]
        %v3079 = vld [vmem:[%s2380 + $0x92] sm:$0xff]
        %v3080 = vld [vmem:[%s2380 + $0x9a] sm:$0xf]
        %v3081 = vld [vmem:[%s2380 + $0xa2] sm:$0xff]
        %v3082 = vld [vmem:[%s2380 + $0xaa] sm:$0xff]
        %v3083 = vld [vmem:[%s2380 + $0xb2] sm:$0xff]
        %v3084 = vld [vmem:[%s2380 + $0xba] sm:$0xf]
        %v3085 = vld [vmem:[%s2380 + $0xc2] sm:$0xff]
        %v3086 = vld [vmem:[%s2380 + $0xca] sm:$0xff]
        %v3087 = vld [vmem:[%s2380 + $0xd2] sm:$0xff]
        %v3088 = vld [vmem:[%s2380 + $0xda] sm:$0xf]
        %v3089 = vld [vmem:[%s2380 + $0xe2] sm:$0xff]
        %v3090 = vld [vmem:[%s2380 + $0xea] sm:$0xff]
        %v3091 = vld [vmem:[%s2380 + $0xf2] sm:$0xff]
        %v3092 = vld [vmem:[%s2380 + $0xfa] sm:$0xf]
        %v3093 = vld [vmem:[%s2380 + $0x102] sm:$0xff]
        %v3094 = vld [vmem:[%s2380 + $0x10a] sm:$0xff]
        %v3095 = vld [vmem:[%s2380 + $0x112] sm:$0xff]
        %v3096 = vld [vmem:[%s2380 + $0x11a] sm:$0xf]
        %v3097 = vld [vmem:[%s2380 + $0x122] sm:$0xff]
        %v3098 = vld [vmem:[%s2380 + $0x12a] sm:$0xff]
        %v3099 = vld [vmem:[%s2380 + $0x132] sm:$0xff]
        %v3100 = vld [vmem:[%s2380 + $0x13a] sm:$0xf]
        %v3101 = vld [vmem:[%s2380 + $0x142] sm:$0xff]
        %v3102 = vld [vmem:[%s2380 + $0x14a] sm:$0xff]
        %v3103 = vld [vmem:[%s2380 + $0x152] sm:$0xff]
        %v3104 = vld [vmem:[%s2380 + $0x15a] sm:$0xf]
        %v3105 = vld [vmem:[%s2380 + $0x162] sm:$0xff]
        %v3106 = vld [vmem:[%s2380 + $0x16a] sm:$0xff]
        %v3107 = vld [vmem:[%s2380 + $0x172] sm:$0xff]
        %v3108 = vld [vmem:[%s2380 + $0x17a] sm:$0xf]
        %v3109 = vld [vmem:[%s2380 + $0x182] sm:$0xff]
        %v3110 = vld [vmem:[%s2380 + $0x18a] sm:$0xff]
        %v3111 = vld [vmem:[%s2380 + $0x192] sm:$0xff]
        %v3112 = vld [vmem:[%s2380 + $0x19a] sm:$0xf]
        %v3113 = vld [vmem:[%s2380 + $0x1a2] sm:$0xff]
        %v3114 = vld [vmem:[%s2380 + $0x1aa] sm:$0xff]
        %v3115 = vld [vmem:[%s2380 + $0x1b2] sm:$0xff]
        %v3116 = vld [vmem:[%s2380 + $0x1ba] sm:$0xf]
        %v3117 = vld [vmem:[%s2380 + $0x1c2] sm:$0xff]
        %v3118 = vld [vmem:[%s2380 + $0x1ca] sm:$0xff]
        %v3119 = vld [vmem:[%s2380 + $0x1d2] sm:$0xff]
        %v3120 = vld [vmem:[%s2380 + $0x1da] sm:$0xf]
        %v3121 = vld [vmem:[%s2380 + $0x1e2] sm:$0xff]
        %v3122 = vld [vmem:[%s2380 + $0x1ea] sm:$0xff]
        %v3123 = vld [vmem:[%s2380 + $0x1f2] sm:$0xff]
        %v3124 = vld [vmem:[%s2380 + $0x1fa] sm:$0xf]
        %v3125 = vld [vmem:[%s2380 + $0x202] sm:$0xff]
        %v3126 = vld [vmem:[%s2380 + $0x20a] sm:$0xff]
        %v3127 = vld [vmem:[%s2380 + $0x212] sm:$0xff]
        %v3128 = vld [vmem:[%s2380 + $0x21a] sm:$0xf]
        %v3129 = vld [vmem:[%s2380 + $0x222] sm:$0xff]
        %v3130 = vld [vmem:[%s2380 + $0x22a] sm:$0xff]
        %v3131 = vld [vmem:[%s2380 + $0x232] sm:$0xff]
        %v3132 = vld [vmem:[%s2380 + $0x23a] sm:$0xf]
        %v3133 = vld [vmem:[%s2380 + $0x242] sm:$0xff]
        %v3134 = vld [vmem:[%s2380 + $0x24a] sm:$0xff]
        %v3135 = vld [vmem:[%s2380 + $0x252] sm:$0xff]
        %v3136 = vld [vmem:[%s2380 + $0x25a] sm:$0xf]
        %v3137 = vld [vmem:[%s2380 + $0x262] sm:$0xff]
        %v3138 = vld [vmem:[%s2380 + $0x26a] sm:$0xff]
        %v3139 = vld [vmem:[%s2380 + $0x272] sm:$0xff]
        %v3140 = vld [vmem:[%s2380 + $0x27a] sm:$0xf]
        %v3141 = vld [vmem:[%s2380 + $0x282] sm:$0xff]
        %v3142 = vld [vmem:[%s2380 + $0x28a] sm:$0xff]
        %v3143 = vld [vmem:[%s2380 + $0x292] sm:$0xff]
        %v3144 = vld [vmem:[%s2380 + $0x29a] sm:$0xf]
        %v3145 = vld [vmem:[%s2380 + $0x2a2] sm:$0xff]
        %v3146 = vld [vmem:[%s2380 + $0x2aa] sm:$0xff]
        %v3147 = vld [vmem:[%s2380 + $0x2b2] sm:$0xff]
        %v3148 = vld [vmem:[%s2380 + $0x2ba] sm:$0xf]
        %v3149 = vld [vmem:[%s2380 + $0x2c2] sm:$0xff]
        %v3150 = vld [vmem:[%s2380 + $0x2ca] sm:$0xff]
        %v3151 = vld [vmem:[%s2380 + $0x2d2] sm:$0xff]
        %v3152 = vld [vmem:[%s2380 + $0x2da] sm:$0xf]
        %v3153 = vld [vmem:[%s2380 + $0x2e2] sm:$0xff]
        %v3154 = vld [vmem:[%s2380 + $0x2ea] sm:$0xff]
        %v3155 = vld [vmem:[%s2380 + $0x2f2] sm:$0xff]
        %v3156 = vld [vmem:[%s2380 + $0x2fa] sm:$0xf]
        %v3157 = vld [vmem:[%s2380 + $0x302] sm:$0xff]
        %v3158 = vld [vmem:[%s2380 + $0x30a] sm:$0xff]
        %v3159 = vld [vmem:[%s2380 + $0x312] sm:$0xff]
        %v3160 = vld [vmem:[%s2380 + $0x31a] sm:$0xf]
        %v3161 = vld [vmem:[%s2380 + $0x322] sm:$0xff]
        %v3162 = vld [vmem:[%s2380 + $0x32a] sm:$0xff]
        %v3163 = vld [vmem:[%s2380 + $0x332] sm:$0xff]
        %v3164 = vld [vmem:[%s2380 + $0x33a] sm:$0xf]
        %v3165 = vld [vmem:[%s2380 + $0x342] sm:$0xff]
        %v3166 = vld [vmem:[%s2380 + $0x34a] sm:$0xff]
        %v3167 = vld [vmem:[%s2380 + $0x352] sm:$0xff]
        %v3168 = vld [vmem:[%s2380 + $0x35a] sm:$0xf]
        %v3169 = vld [vmem:[%s2380 + $0x362] sm:$0xff]
        %v3170 = vld [vmem:[%s2380 + $0x36a] sm:$0xff]
        %v3171 = vld [vmem:[%s2380 + $0x372] sm:$0xff]
        %v3172 = vld [vmem:[%s2380 + $0x37a] sm:$0xf]
        %v3173 = vlaneseq
        %v3174 = vshrl.u32 %v3173, 7
        %v3175 = vsub.s32 0, %v3174
        %v3176 = vrot.slane %v331, %v3175
        %v3177 = vmul.f32 %v3061, %v3176
        %v3178 = vmul.f32 %v3062, %v3176
        %v3179 = vmul.f32 %v3063, %v3176
        %v3180 = vmul.f32 %v3064, %v3176
        %v3181 = vmul.f32 %v3065, %v3176
        %v3182 = vmul.f32 %v3066, %v3176
        %v3183 = vmul.f32 %v3067, %v3176
        %v3184 = vmul.f32 %v3068, %v3176
        %v3185 = vmul.f32 %v3069, %v3176
        %v3186 = vmul.f32 %v3070, %v3176
        %v3187 = vmul.f32 %v3071, %v3176
        %v3188 = vmul.f32 %v3072, %v3176
        %v3189 = vmul.f32 %v3073, %v3176
        %v3190 = vmul.f32 %v3074, %v3176
        %v3191 = vmul.f32 %v3075, %v3176
        %v3192 = vmul.f32 %v3076, %v3176
        %v3193 = vmul.f32 %v3077, %v3176
        %v3194 = vmul.f32 %v3078, %v3176
        %v3195 = vmul.f32 %v3079, %v3176
        %v3196 = vmul.f32 %v3080, %v3176
        %v3197 = vmul.f32 %v3081, %v3176
        %v3198 = vmul.f32 %v3082, %v3176
        %v3199 = vmul.f32 %v3083, %v3176
        %v3200 = vmul.f32 %v3084, %v3176
        %v3201 = vmul.f32 %v3085, %v3176
        %v3202 = vmul.f32 %v3086, %v3176
        %v3203 = vmul.f32 %v3087, %v3176
        %v3204 = vmul.f32 %v3088, %v3176
        %v3205 = vmul.f32 %v3089, %v3176
        %v3206 = vmul.f32 %v3090, %v3176
        %v3207 = vmul.f32 %v3091, %v3176
        %v3208 = vmul.f32 %v3092, %v3176
        %v3209 = vmul.f32 %v3093, %v3176
        %v3210 = vmul.f32 %v3094, %v3176
        %v3211 = vmul.f32 %v3095, %v3176
        %v3212 = vmul.f32 %v3096, %v3176
        %v3213 = vmul.f32 %v3097, %v3176
        %v3214 = vmul.f32 %v3098, %v3176
        %v3215 = vmul.f32 %v3099, %v3176
        %v3216 = vmul.f32 %v3100, %v3176
        %v3217 = vmul.f32 %v3101, %v3176
        %v3218 = vmul.f32 %v3102, %v3176
        %v3219 = vmul.f32 %v3103, %v3176
        %v3220 = vmul.f32 %v3104, %v3176
        %v3221 = vmul.f32 %v3105, %v3176
        %v3222 = vmul.f32 %v3106, %v3176
        %v3223 = vmul.f32 %v3107, %v3176
        %v3224 = vmul.f32 %v3108, %v3176
        %v3225 = vmul.f32 %v3109, %v3176
        %v3226 = vmul.f32 %v3110, %v3176
        %v3227 = vmul.f32 %v3111, %v3176
        %v3228 = vmul.f32 %v3112, %v3176
        %v3229 = vmul.f32 %v3113, %v3176
        %v3230 = vmul.f32 %v3114, %v3176
        %v3231 = vmul.f32 %v3115, %v3176
        %v3232 = vmul.f32 %v3116, %v3176
        %v3233 = vmul.f32 %v3117, %v3176
        %v3234 = vmul.f32 %v3118, %v3176
        %v3235 = vmul.f32 %v3119, %v3176
        %v3236 = vmul.f32 %v3120, %v3176
        %v3237 = vmul.f32 %v3121, %v3176
        %v3238 = vmul.f32 %v3122, %v3176
        %v3239 = vmul.f32 %v3123, %v3176
        %v3240 = vmul.f32 %v3124, %v3176
        %v3241 = vmul.f32 %v3125, %v3176
        %v3242 = vmul.f32 %v3126, %v3176
        %v3243 = vmul.f32 %v3127, %v3176
        %v3244 = vmul.f32 %v3128, %v3176
        %v3245 = vmul.f32 %v3129, %v3176
        %v3246 = vmul.f32 %v3130, %v3176
        %v3247 = vmul.f32 %v3131, %v3176
        %v3248 = vmul.f32 %v3132, %v3176
        %v3249 = vmul.f32 %v3133, %v3176
        %v3250 = vmul.f32 %v3134, %v3176
        %v3251 = vmul.f32 %v3135, %v3176
        %v3252 = vmul.f32 %v3136, %v3176
        %v3253 = vmul.f32 %v3137, %v3176
        %v3254 = vmul.f32 %v3138, %v3176
        %v3255 = vmul.f32 %v3139, %v3176
        %v3256 = vmul.f32 %v3140, %v3176
        %v3257 = vmul.f32 %v3141, %v3176
        %v3258 = vmul.f32 %v3142, %v3176
        %v3259 = vmul.f32 %v3143, %v3176
        %v3260 = vmul.f32 %v3144, %v3176
        %v3261 = vmul.f32 %v3145, %v3176
        %v3262 = vmul.f32 %v3146, %v3176
        %v3263 = vmul.f32 %v3147, %v3176
        %v3264 = vmul.f32 %v3148, %v3176
        %v3265 = vmul.f32 %v3149, %v3176
        %v3266 = vmul.f32 %v3150, %v3176
        %v3267 = vmul.f32 %v3151, %v3176
        %v3268 = vmul.f32 %v3152, %v3176
        %v3269 = vmul.f32 %v3153, %v3176
        %v3270 = vmul.f32 %v3154, %v3176
        %v3271 = vmul.f32 %v3155, %v3176
        %v3272 = vmul.f32 %v3156, %v3176
        %v3273 = vmul.f32 %v3157, %v3176
        %v3274 = vmul.f32 %v3158, %v3176
        %v3275 = vmul.f32 %v3159, %v3176
        %v3276 = vmul.f32 %v3160, %v3176
        %v3277 = vmul.f32 %v3161, %v3176
        %v3278 = vmul.f32 %v3162, %v3176
        %v3279 = vmul.f32 %v3163, %v3176
        %v3280 = vmul.f32 %v3164, %v3176
        %v3281 = vmul.f32 %v3165, %v3176
        %v3282 = vmul.f32 %v3166, %v3176
        %v3283 = vmul.f32 %v3167, %v3176
        %v3284 = vmul.f32 %v3168, %v3176
        %v3285 = vmul.f32 %v3169, %v3176
        %v3286 = vmul.f32 %v3170, %v3176
        %v3287 = vmul.f32 %v3171, %v3176
        %v3288 = vmul.f32 %v3172, %v3176
        %v3289 = vadd.f32 %v2949, %v3177
        %v3290 = vadd.f32 %v2950, %v3178
        %v3291 = vadd.f32 %v2951, %v3179
        %v3292 = vadd.f32 %v2952, %v3180
        %v3293 = vadd.f32 %v2953, %v3181
        %v3294 = vadd.f32 %v2954, %v3182
        %v3295 = vadd.f32 %v2955, %v3183
        %v3296 = vadd.f32 %v2956, %v3184
        %v3297 = vadd.f32 %v2957, %v3185
        %v3298 = vadd.f32 %v2958, %v3186
        %v3299 = vadd.f32 %v2959, %v3187
        %v3300 = vadd.f32 %v2960, %v3188
        %v3301 = vadd.f32 %v2961, %v3189
        %v3302 = vadd.f32 %v2962, %v3190
        %v3303 = vadd.f32 %v2963, %v3191
        %v3304 = vadd.f32 %v2964, %v3192
        %v3305 = vadd.f32 %v2965, %v3193
        %v3306 = vadd.f32 %v2966, %v3194
        %v3307 = vadd.f32 %v2967, %v3195
        %v3308 = vadd.f32 %v2968, %v3196
        %v3309 = vadd.f32 %v2969, %v3197
        %v3310 = vadd.f32 %v2970, %v3198
        %v3311 = vadd.f32 %v2971, %v3199
        %v3312 = vadd.f32 %v2972, %v3200
        %v3313 = vadd.f32 %v2973, %v3201
        %v3314 = vadd.f32 %v2974, %v3202
        %v3315 = vadd.f32 %v2975, %v3203
        %v3316 = vadd.f32 %v2976, %v3204
        %v3317 = vadd.f32 %v2977, %v3205
        %v3318 = vadd.f32 %v2978, %v3206
        %v3319 = vadd.f32 %v2979, %v3207
        %v3320 = vadd.f32 %v2980, %v3208
        %v3321 = vadd.f32 %v2981, %v3209
        %v3322 = vadd.f32 %v2982, %v3210
        %v3323 = vadd.f32 %v2983, %v3211
        %v3324 = vadd.f32 %v2984, %v3212
        %v3325 = vadd.f32 %v2985, %v3213
        %v3326 = vadd.f32 %v2986, %v3214
        %v3327 = vadd.f32 %v2987, %v3215
        %v3328 = vadd.f32 %v2988, %v3216
        %v3329 = vadd.f32 %v2989, %v3217
        %v3330 = vadd.f32 %v2990, %v3218
        %v3331 = vadd.f32 %v2991, %v3219
        %v3332 = vadd.f32 %v2992, %v3220
        %v3333 = vadd.f32 %v2993, %v3221
        %v3334 = vadd.f32 %v2994, %v3222
        %v3335 = vadd.f32 %v2995, %v3223
        %v3336 = vadd.f32 %v2996, %v3224
        %v3337 = vadd.f32 %v2997, %v3225
        %v3338 = vadd.f32 %v2998, %v3226
        %v3339 = vadd.f32 %v2999, %v3227
        %v3340 = vadd.f32 %v3000, %v3228
        %v3341 = vadd.f32 %v3001, %v3229
        %v3342 = vadd.f32 %v3002, %v3230
        %v3343 = vadd.f32 %v3003, %v3231
        %v3344 = vadd.f32 %v3004, %v3232
        %v3345 = vadd.f32 %v3005, %v3233
        %v3346 = vadd.f32 %v3006, %v3234
        %v3347 = vadd.f32 %v3007, %v3235
        %v3348 = vadd.f32 %v3008, %v3236
        %v3349 = vadd.f32 %v3009, %v3237
        %v3350 = vadd.f32 %v3010, %v3238
        %v3351 = vadd.f32 %v3011, %v3239
        %v3352 = vadd.f32 %v3012, %v3240
        %v3353 = vadd.f32 %v3013, %v3241
        %v3354 = vadd.f32 %v3014, %v3242
        %v3355 = vadd.f32 %v3015, %v3243
        %v3356 = vadd.f32 %v3016, %v3244
        %v3357 = vadd.f32 %v3017, %v3245
        %v3358 = vadd.f32 %v3018, %v3246
        %v3359 = vadd.f32 %v3019, %v3247
        %v3360 = vadd.f32 %v3020, %v3248
        %v3361 = vadd.f32 %v3021, %v3249
        %v3362 = vadd.f32 %v3022, %v3250
        %v3363 = vadd.f32 %v3023, %v3251
        %v3364 = vadd.f32 %v3024, %v3252
        %v3365 = vadd.f32 %v3025, %v3253
        %v3366 = vadd.f32 %v3026, %v3254
        %v3367 = vadd.f32 %v3027, %v3255
        %v3368 = vadd.f32 %v3028, %v3256
        %v3369 = vadd.f32 %v3029, %v3257
        %v3370 = vadd.f32 %v3030, %v3258
        %v3371 = vadd.f32 %v3031, %v3259
        %v3372 = vadd.f32 %v3032, %v3260
        %v3373 = vadd.f32 %v3033, %v3261
        %v3374 = vadd.f32 %v3034, %v3262
        %v3375 = vadd.f32 %v3035, %v3263
        %v3376 = vadd.f32 %v3036, %v3264
        %v3377 = vadd.f32 %v3037, %v3265
        %v3378 = vadd.f32 %v3038, %v3266
        %v3379 = vadd.f32 %v3039, %v3267
        %v3380 = vadd.f32 %v3040, %v3268
        %v3381 = vadd.f32 %v3041, %v3269
        %v3382 = vadd.f32 %v3042, %v3270
        %v3383 = vadd.f32 %v3043, %v3271
        %v3384 = vadd.f32 %v3044, %v3272
        %v3385 = vadd.f32 %v3045, %v3273
        %v3386 = vadd.f32 %v3046, %v3274
        %v3387 = vadd.f32 %v3047, %v3275
        %v3388 = vadd.f32 %v3048, %v3276
        %v3389 = vadd.f32 %v3049, %v3277
        %v3390 = vadd.f32 %v3050, %v3278
        %v3391 = vadd.f32 %v3051, %v3279
        %v3392 = vadd.f32 %v3052, %v3280
        %v3393 = vadd.f32 %v3053, %v3281
        %v3394 = vadd.f32 %v3054, %v3282
        %v3395 = vadd.f32 %v3055, %v3283
        %v3396 = vadd.f32 %v3056, %v3284
        %v3397 = vadd.f32 %v3057, %v3285
        %v3398 = vadd.f32 %v3058, %v3286
        %v3399 = vadd.f32 %v3059, %v3287
        %v3400 = vadd.f32 %v3060, %v3288
        %v3401 = vmax.f32 %v3289, %v3293
        %v3402 = vmax.f32 %v3290, %v3294
        %v3403 = vmax.f32 %v3291, %v3295
        %v3404 = vmax.f32 %v3292, %v3296
        %vm3405 = vcmask 130048
        %3406 = vst.msk [vmem:[#allocation2] sm:$0xff] %vm3405, %v3401
        %3407 = vst.msk [vmem:[#allocation2 + $0x8] sm:$0xff] %vm3405, %v3402
        %3408 = vst.msk [vmem:[#allocation2 + $0x10] sm:$0xff] %vm3405, %v3403
        %vm3409 = vcmask 125952
        %3410 = vst.msk [vmem:[#allocation2 + $0x18] sm:$0xf] %vm3409, %v3404
        %v3411 = vmax.f32 %v3297, %v3301
        %v3412 = vmax.f32 %v3298, %v3302
        %v3413 = vmax.f32 %v3299, %v3303
        %v3414 = vmax.f32 %v3300, %v3304
        %s3415 = scalar_lea.vmem [#allocation2], 32
        %3416 = vst.msk [vmem:[%s3415] sm:$0xff] %vm3405, %v3411
        %3417 = vst.msk [vmem:[%s3415 + $0x8] sm:$0xff] %vm3405, %v3412
        %3418 = vst.msk [vmem:[%s3415 + $0x10] sm:$0xff] %vm3405, %v3413
        %3419 = vst.msk [vmem:[%s3415 + $0x18] sm:$0xf] %vm3409, %v3414
        %v3420 = vmax.f32 %v3305, %v3309
        %v3421 = vmax.f32 %v3306, %v3310
        %v3422 = vmax.f32 %v3307, %v3311
        %v3423 = vmax.f32 %v3308, %v3312
        %s3424 = scalar_lea.vmem [#allocation2], 64
        %3425 = vst.msk [vmem:[%s3424] sm:$0xff] %vm3405, %v3420
        %3426 = vst.msk [vmem:[%s3424 + $0x8] sm:$0xff] %vm3405, %v3421
        %3427 = vst.msk [vmem:[%s3424 + $0x10] sm:$0xff] %vm3405, %v3422
        %3428 = vst.msk [vmem:[%s3424 + $0x18] sm:$0xf] %vm3409, %v3423
        %v3429 = vmax.f32 %v3313, %v3317
        %v3430 = vmax.f32 %v3314, %v3318
        %v3431 = vmax.f32 %v3315, %v3319
        %v3432 = vmax.f32 %v3316, %v3320
        %s3433 = scalar_lea.vmem [#allocation2], 96
        %3434 = vst.msk [vmem:[%s3433] sm:$0xff] %vm3405, %v3429
        %3435 = vst.msk [vmem:[%s3433 + $0x8] sm:$0xff] %vm3405, %v3430
        %3436 = vst.msk [vmem:[%s3433 + $0x10] sm:$0xff] %vm3405, %v3431
        %3437 = vst.msk [vmem:[%s3433 + $0x18] sm:$0xf] %vm3409, %v3432
        %v3438 = vmax.f32 %v3321, %v3325
        %v3439 = vmax.f32 %v3322, %v3326
        %v3440 = vmax.f32 %v3323, %v3327
        %v3441 = vmax.f32 %v3324, %v3328
        %s3442 = scalar_lea.vmem [#allocation2], 128
        %3443 = vst.msk [vmem:[%s3442] sm:$0xff] %vm3405, %v3438
        %3444 = vst.msk [vmem:[%s3442 + $0x8] sm:$0xff] %vm3405, %v3439
        %3445 = vst.msk [vmem:[%s3442 + $0x10] sm:$0xff] %vm3405, %v3440
        %3446 = vst.msk [vmem:[%s3442 + $0x18] sm:$0xf] %vm3409, %v3441
        %v3447 = vmax.f32 %v3329, %v3333
        %v3448 = vmax.f32 %v3330, %v3334
        %v3449 = vmax.f32 %v3331, %v3335
        %v3450 = vmax.f32 %v3332, %v3336
        %s3451 = scalar_lea.vmem [#allocation2], 160
        %3452 = vst.msk [vmem:[%s3451] sm:$0xff] %vm3405, %v3447
        %3453 = vst.msk [vmem:[%s3451 + $0x8] sm:$0xff] %vm3405, %v3448
        %3454 = vst.msk [vmem:[%s3451 + $0x10] sm:$0xff] %vm3405, %v3449
        %3455 = vst.msk [vmem:[%s3451 + $0x18] sm:$0xf] %vm3409, %v3450
        %v3456 = vmax.f32 %v3337, %v3341
        %v3457 = vmax.f32 %v3338, %v3342
        %v3458 = vmax.f32 %v3339, %v3343
        %v3459 = vmax.f32 %v3340, %v3344
        %s3460 = scalar_lea.vmem [#allocation2], 192
        %3461 = vst.msk [vmem:[%s3460] sm:$0xff] %vm3405, %v3456
        %3462 = vst.msk [vmem:[%s3460 + $0x8] sm:$0xff] %vm3405, %v3457
        %3463 = vst.msk [vmem:[%s3460 + $0x10] sm:$0xff] %vm3405, %v3458
        %3464 = vst.msk [vmem:[%s3460 + $0x18] sm:$0xf] %vm3409, %v3459
        %v3465 = vmax.f32 %v3345, %v3349
        %v3466 = vmax.f32 %v3346, %v3350
        %v3467 = vmax.f32 %v3347, %v3351
        %v3468 = vmax.f32 %v3348, %v3352
        %s3469 = scalar_lea.vmem [#allocation2], 224
        %3470 = vst.msk [vmem:[%s3469] sm:$0xff] %vm3405, %v3465
        %3471 = vst.msk [vmem:[%s3469 + $0x8] sm:$0xff] %vm3405, %v3466
        %3472 = vst.msk [vmem:[%s3469 + $0x10] sm:$0xff] %vm3405, %v3467
        %3473 = vst.msk [vmem:[%s3469 + $0x18] sm:$0xf] %vm3409, %v3468
        %v3474 = vmax.f32 %v3353, %v3357
        %v3475 = vmax.f32 %v3354, %v3358
        %v3476 = vmax.f32 %v3355, %v3359
        %v3477 = vmax.f32 %v3356, %v3360
        %s3478 = scalar_lea.vmem [#allocation2], 256
        %3479 = vst.msk [vmem:[%s3478] sm:$0xff] %vm3405, %v3474
        %3480 = vst.msk [vmem:[%s3478 + $0x8] sm:$0xff] %vm3405, %v3475
        %3481 = vst.msk [vmem:[%s3478 + $0x10] sm:$0xff] %vm3405, %v3476
        %3482 = vst.msk [vmem:[%s3478 + $0x18] sm:$0xf] %vm3409, %v3477
        %v3483 = vmax.f32 %v3361, %v3365
        %v3484 = vmax.f32 %v3362, %v3366
        %v3485 = vmax.f32 %v3363, %v3367
        %v3486 = vmax.f32 %v3364, %v3368
        %s3487 = scalar_lea.vmem [#allocation2], 288
        %3488 = vst.msk [vmem:[%s3487] sm:$0xff] %vm3405, %v3483
        %3489 = vst.msk [vmem:[%s3487 + $0x8] sm:$0xff] %vm3405, %v3484
        %3490 = vst.msk [vmem:[%s3487 + $0x10] sm:$0xff] %vm3405, %v3485
        %3491 = vst.msk [vmem:[%s3487 + $0x18] sm:$0xf] %vm3409, %v3486
        %v3492 = vmax.f32 %v3369, %v3373
        %v3493 = vmax.f32 %v3370, %v3374
        %v3494 = vmax.f32 %v3371, %v3375
        %v3495 = vmax.f32 %v3372, %v3376
        %s3496 = scalar_lea.vmem [#allocation2], 320
        %3497 = vst.msk [vmem:[%s3496] sm:$0xff] %vm3405, %v3492
        %3498 = vst.msk [vmem:[%s3496 + $0x8] sm:$0xff] %vm3405, %v3493
        %3499 = vst.msk [vmem:[%s3496 + $0x10] sm:$0xff] %vm3405, %v3494
        %3500 = vst.msk [vmem:[%s3496 + $0x18] sm:$0xf] %vm3409, %v3495
        %v3501 = vmax.f32 %v3377, %v3381
        %v3502 = vmax.f32 %v3378, %v3382
        %v3503 = vmax.f32 %v3379, %v3383
        %v3504 = vmax.f32 %v3380, %v3384
        %s3505 = scalar_lea.vmem [#allocation2], 352
        %3506 = vst.msk [vmem:[%s3505] sm:$0xff] %vm3405, %v3501
        %3507 = vst.msk [vmem:[%s3505 + $0x8] sm:$0xff] %vm3405, %v3502
        %3508 = vst.msk [vmem:[%s3505 + $0x10] sm:$0xff] %vm3405, %v3503
        %3509 = vst.msk [vmem:[%s3505 + $0x18] sm:$0xf] %vm3409, %v3504
        %v3510 = vmax.f32 %v3385, %v3389
        %v3511 = vmax.f32 %v3386, %v3390
        %v3512 = vmax.f32 %v3387, %v3391
        %v3513 = vmax.f32 %v3388, %v3392
        %s3514 = scalar_lea.vmem [#allocation2], 384
        %3515 = vst.msk [vmem:[%s3514] sm:$0xff] %vm3405, %v3510
        %3516 = vst.msk [vmem:[%s3514 + $0x8] sm:$0xff] %vm3405, %v3511
        %3517 = vst.msk [vmem:[%s3514 + $0x10] sm:$0xff] %vm3405, %v3512
        %3518 = vst.msk [vmem:[%s3514 + $0x18] sm:$0xf] %vm3409, %v3513
        %v3519 = vmax.f32 %v3393, %v3397
        %v3520 = vmax.f32 %v3394, %v3398
        %v3521 = vmax.f32 %v3395, %v3399
        %v3522 = vmax.f32 %v3396, %v3400
        %s3523 = scalar_lea.vmem [#allocation2], 416
        %3524 = vst.msk [vmem:[%s3523] sm:$0xff] %vm3405, %v3519
        %3525 = vst.msk [vmem:[%s3523 + $0x8] sm:$0xff] %vm3405, %v3520
        %3526 = vst.msk [vmem:[%s3523 + $0x10] sm:$0xff] %vm3405, %v3521
        %3527 = vst.msk [vmem:[%s3523 + $0x18] sm:$0xf] %vm3409, %v3522
        %3528 = vst.msk [vmem:[#allocation3] sm:$0xff] %vm3405, 0.0
        %3529 = vst.msk [vmem:[#allocation3 + $0x8] sm:$0xff] %vm3405, 0.0
        %3530 = vst.msk [vmem:[#allocation3 + $0x10] sm:$0xff] %vm3405, 0.0
        %3531 = vst.msk [vmem:[#allocation3 + $0x18] sm:$0xff] %vm3405, 0.0
        %3532 = vst.msk [vmem:[#allocation3 + $0x20] sm:$0xff] %vm3405, 0.0
        %3533 = vst.msk [vmem:[#allocation3 + $0x28] sm:$0xff] %vm3405, 0.0
        %3534 = vst.msk [vmem:[#allocation3 + $0x30] sm:$0xff] %vm3405, 0.0
        %3535 = vst.msk [vmem:[#allocation3 + $0x38] sm:$0xff] %vm3405, 0.0
        %3536 = vst.msk [vmem:[#allocation3 + $0x40] sm:$0xff] %vm3405, 0.0
        %3537 = vst.msk [vmem:[#allocation3 + $0x48] sm:$0xff] %vm3405, 0.0
        %3538 = vst.msk [vmem:[#allocation3 + $0x50] sm:$0xff] %vm3405, 0.0
        %3539 = vst.msk [vmem:[#allocation3 + $0x58] sm:$0xff] %vm3405, 0.0
        %3540 = vst.msk [vmem:[#allocation3 + $0x60] sm:$0xff] %vm3405, 0.0
        %3541 = vst.msk [vmem:[#allocation3 + $0x68] sm:$0xff] %vm3405, 0.0
        %3542 = vst.msk [vmem:[#allocation3 + $0x70] sm:$0xff] %vm3405, 0.0
        %3543 = vst.msk [vmem:[#allocation3 + $0x78] sm:$0xff] %vm3405, 0.0
        %3544 = vst.msk [vmem:[#allocation3 + $0x80] sm:$0xff] %vm3405, 0.0
        %3545 = vst.msk [vmem:[#allocation3 + $0x88] sm:$0xff] %vm3405, 0.0
        %3546 = vst.msk [vmem:[#allocation3 + $0x90] sm:$0xff] %vm3405, 0.0
        %3547 = vst.msk [vmem:[#allocation3 + $0x98] sm:$0xff] %vm3405, 0.0
        %3548 = vst.msk [vmem:[#allocation3 + $0xa0] sm:$0xff] %vm3405, 0.0
        %3549 = vst.msk [vmem:[#allocation3 + $0xa8] sm:$0xff] %vm3405, 0.0
        %3550 = vst.msk [vmem:[#allocation3 + $0xb0] sm:$0xff] %vm3405, 0.0
        %3551 = vst.msk [vmem:[#allocation3 + $0xb8] sm:$0xff] %vm3405, 0.0
        %3552 = vst.msk [vmem:[#allocation3 + $0xc0] sm:$0xff] %vm3405, 0.0
        %3553 = vst.msk [vmem:[#allocation3 + $0xc8] sm:$0xff] %vm3405, 0.0
        %3554 = vst.msk [vmem:[#allocation3 + $0xd0] sm:$0xff] %vm3405, 0.0
        %3555 = vst.msk [vmem:[#allocation3 + $0xd8] sm:$0xff] %vm3405, 0.0
        %3556 = vst.msk [vmem:[#allocation3 + $0xe0] sm:$0xff] %vm3405, 0.0
        %3557 = vst.msk [vmem:[#allocation3 + $0xe8] sm:$0xff] %vm3405, 0.0
        %3558 = vst.msk [vmem:[#allocation3 + $0xf0] sm:$0xff] %vm3405, 0.0
        %3559 = vst.msk [vmem:[#allocation3 + $0xf8] sm:$0xff] %vm3405, 0.0
        %v3560 = vld [vmem:[#allocation2] sm:$0x1]
        %v3561 = vld [vmem:[#allocation2 + $0x20] sm:$0x1]
        %v3562 = vld [vmem:[#allocation2 + $0x40] sm:$0x1]
        %v3563 = vld [vmem:[#allocation2 + $0x60] sm:$0x1]
        %v3564 = vld [vmem:[#allocation2 + $0x80] sm:$0x1]
        %v3565 = vld [vmem:[#allocation2 + $0xa0] sm:$0x1]
        %v3566 = vld [vmem:[#allocation2 + $0xc0] sm:$0x1]
        %v3567 = vld [vmem:[#allocation2 + $0xe0] sm:$0x1]
        %v3568 = vld [vmem:[#allocation2 + $0x100] sm:$0x1]
        %v3569 = vld [vmem:[#allocation2 + $0x120] sm:$0x1]
        %v3570 = vld [vmem:[#allocation2 + $0x140] sm:$0x1]
        %v3571 = vld [vmem:[#allocation2 + $0x160] sm:$0x1]
        %v3572 = vld [vmem:[#allocation2 + $0x180] sm:$0x1]
        %v3573 = vld [vmem:[#allocation2 + $0x1a0] sm:$0x1]
        %v3574 = vld [vmem:[#allocation2 + $0x1] sm:$0x1]
        %v3575 = vld [vmem:[#allocation2 + $0x21] sm:$0x1]
        %v3576 = vld [vmem:[#allocation2 + $0x41] sm:$0x1]
        %v3577 = vld [vmem:[#allocation2 + $0x61] sm:$0x1]
        %v3578 = vld [vmem:[#allocation2 + $0x81] sm:$0x1]
        %v3579 = vld [vmem:[#allocation2 + $0xa1] sm:$0x1]
        %v3580 = vld [vmem:[#allocation2 + $0xc1] sm:$0x1]
        %v3581 = vld [vmem:[#allocation2 + $0xe1] sm:$0x1]
        %v3582 = vld [vmem:[#allocation2 + $0x101] sm:$0x1]
        %v3583 = vld [vmem:[#allocation2 + $0x121] sm:$0x1]
        %v3584 = vld [vmem:[#allocation2 + $0x141] sm:$0x1]
        %v3585 = vld [vmem:[#allocation2 + $0x161] sm:$0x1]
        %v3586 = vld [vmem:[#allocation2 + $0x181] sm:$0x1]
        %v3587 = vld [vmem:[#allocation2 + $0x1a1] sm:$0x1]
        %v3588 = vmax.f32 %v3560, %v3574
        %v3589 = vmax.f32 %v3561, %v3575
        %v3590 = vmax.f32 %v3562, %v3576
        %v3591 = vmax.f32 %v3563, %v3577
        %v3592 = vmax.f32 %v3564, %v3578
        %v3593 = vmax.f32 %v3565, %v3579
        %v3594 = vmax.f32 %v3566, %v3580
        %v3595 = vmax.f32 %v3567, %v3581
        %v3596 = vmax.f32 %v3568, %v3582
        %v3597 = vmax.f32 %v3569, %v3583
        %v3598 = vmax.f32 %v3570, %v3584
        %v3599 = vmax.f32 %v3571, %v3585
        %v3600 = vmax.f32 %v3572, %v3586
        %v3601 = vmax.f32 %v3573, %v3587
        %s3602 = scalar_lea.vmem [#allocation3], 16
        %vm3603 = vcmask 122880
        %3604 = vst.msk [vmem:[%s3602 + $0x1] sm:$0x1] %vm3603, %v3588
        %3605 = vst.msk [vmem:[%s3602 + $0x11] sm:$0x1] %vm3603, %v3589
        %3606 = vst.msk [vmem:[%s3602 + $0x21] sm:$0x1] %vm3603, %v3590
        %3607 = vst.msk [vmem:[%s3602 + $0x31] sm:$0x1] %vm3603, %v3591
        %3608 = vst.msk [vmem:[%s3602 + $0x41] sm:$0x1] %vm3603, %v3592
        %3609 = vst.msk [vmem:[%s3602 + $0x51] sm:$0x1] %vm3603, %v3593
        %3610 = vst.msk [vmem:[%s3602 + $0x61] sm:$0x1] %vm3603, %v3594
        %3611 = vst.msk [vmem:[%s3602 + $0x71] sm:$0x1] %vm3603, %v3595
        %3612 = vst.msk [vmem:[%s3602 + $0x81] sm:$0x1] %vm3603, %v3596
        %3613 = vst.msk [vmem:[%s3602 + $0x91] sm:$0x1] %vm3603, %v3597
        %3614 = vst.msk [vmem:[%s3602 + $0xa1] sm:$0x1] %vm3603, %v3598
        %3615 = vst.msk [vmem:[%s3602 + $0xb1] sm:$0x1] %vm3603, %v3599
        %3616 = vst.msk [vmem:[%s3602 + $0xc1] sm:$0x1] %vm3603, %v3600
        %3617 = vst.msk [vmem:[%s3602 + $0xd1] sm:$0x1] %vm3603, %v3601
        %v3618 = vld [vmem:[#allocation2 + $0x2] sm:$0x1]
        %v3619 = vld [vmem:[#allocation2 + $0x22] sm:$0x1]
        %v3620 = vld [vmem:[#allocation2 + $0x42] sm:$0x1]
        %v3621 = vld [vmem:[#allocation2 + $0x62] sm:$0x1]
        %v3622 = vld [vmem:[#allocation2 + $0x82] sm:$0x1]
        %v3623 = vld [vmem:[#allocation2 + $0xa2] sm:$0x1]
        %v3624 = vld [vmem:[#allocation2 + $0xc2] sm:$0x1]
        %v3625 = vld [vmem:[#allocation2 + $0xe2] sm:$0x1]
        %v3626 = vld [vmem:[#allocation2 + $0x102] sm:$0x1]
        %v3627 = vld [vmem:[#allocation2 + $0x122] sm:$0x1]
        %v3628 = vld [vmem:[#allocation2 + $0x142] sm:$0x1]
        %v3629 = vld [vmem:[#allocation2 + $0x162] sm:$0x1]
        %v3630 = vld [vmem:[#allocation2 + $0x182] sm:$0x1]
        %v3631 = vld [vmem:[#allocation2 + $0x1a2] sm:$0x1]
        %v3632 = vld [vmem:[#allocation2 + $0x3] sm:$0x1]
        %v3633 = vld [vmem:[#allocation2 + $0x23] sm:$0x1]
        %v3634 = vld [vmem:[#allocation2 + $0x43] sm:$0x1]
        %v3635 = vld [vmem:[#allocation2 + $0x63] sm:$0x1]
        %v3636 = vld [vmem:[#allocation2 + $0x83] sm:$0x1]
        %v3637 = vld [vmem:[#allocation2 + $0xa3] sm:$0x1]
        %v3638 = vld [vmem:[#allocation2 + $0xc3] sm:$0x1]
        %v3639 = vld [vmem:[#allocation2 + $0xe3] sm:$0x1]
        %v3640 = vld [vmem:[#allocation2 + $0x103] sm:$0x1]
        %v3641 = vld [vmem:[#allocation2 + $0x123] sm:$0x1]
        %v3642 = vld [vmem:[#allocation2 + $0x143] sm:$0x1]
        %v3643 = vld [vmem:[#allocation2 + $0x163] sm:$0x1]
        %v3644 = vld [vmem:[#allocation2 + $0x183] sm:$0x1]
        %v3645 = vld [vmem:[#allocation2 + $0x1a3] sm:$0x1]
        %v3646 = vmax.f32 %v3618, %v3632
        %v3647 = vmax.f32 %v3619, %v3633
        %v3648 = vmax.f32 %v3620, %v3634
        %v3649 = vmax.f32 %v3621, %v3635
        %v3650 = vmax.f32 %v3622, %v3636
        %v3651 = vmax.f32 %v3623, %v3637
        %v3652 = vmax.f32 %v3624, %v3638
        %v3653 = vmax.f32 %v3625, %v3639
        %v3654 = vmax.f32 %v3626, %v3640
        %v3655 = vmax.f32 %v3627, %v3641
        %v3656 = vmax.f32 %v3628, %v3642
        %v3657 = vmax.f32 %v3629, %v3643
        %v3658 = vmax.f32 %v3630, %v3644
        %v3659 = vmax.f32 %v3631, %v3645
        %3660 = vst.msk [vmem:[%s3602 + $0x2] sm:$0x1] %vm3603, %v3646
        %3661 = vst.msk [vmem:[%s3602 + $0x12] sm:$0x1] %vm3603, %v3647
        %3662 = vst.msk [vmem:[%s3602 + $0x22] sm:$0x1] %vm3603, %v3648
        %3663 = vst.msk [vmem:[%s3602 + $0x32] sm:$0x1] %vm3603, %v3649
        %3664 = vst.msk [vmem:[%s3602 + $0x42] sm:$0x1] %vm3603, %v3650
        %3665 = vst.msk [vmem:[%s3602 + $0x52] sm:$0x1] %vm3603, %v3651
        %3666 = vst.msk [vmem:[%s3602 + $0x62] sm:$0x1] %vm3603, %v3652
        %3667 = vst.msk [vmem:[%s3602 + $0x72] sm:$0x1] %vm3603, %v3653
        %3668 = vst.msk [vmem:[%s3602 + $0x82] sm:$0x1] %vm3603, %v3654
        %3669 = vst.msk [vmem:[%s3602 + $0x92] sm:$0x1] %vm3603, %v3655
        %3670 = vst.msk [vmem:[%s3602 + $0xa2] sm:$0x1] %vm3603, %v3656
        %3671 = vst.msk [vmem:[%s3602 + $0xb2] sm:$0x1] %vm3603, %v3657
        %3672 = vst.msk [vmem:[%s3602 + $0xc2] sm:$0x1] %vm3603, %v3658
        %3673 = vst.msk [vmem:[%s3602 + $0xd2] sm:$0x1] %vm3603, %v3659
        %v3674 = vld [vmem:[#allocation2 + $0x4] sm:$0x1]
        %v3675 = vld [vmem:[#allocation2 + $0x24] sm:$0x1]
        %v3676 = vld [vmem:[#allocation2 + $0x44] sm:$0x1]
        %v3677 = vld [vmem:[#allocation2 + $0x64] sm:$0x1]
        %v3678 = vld [vmem:[#allocation2 + $0x84] sm:$0x1]
        %v3679 = vld [vmem:[#allocation2 + $0xa4] sm:$0x1]
        %v3680 = vld [vmem:[#allocation2 + $0xc4] sm:$0x1]
        %v3681 = vld [vmem:[#allocation2 + $0xe4] sm:$0x1]
        %v3682 = vld [vmem:[#allocation2 + $0x104] sm:$0x1]
        %v3683 = vld [vmem:[#allocation2 + $0x124] sm:$0x1]
        %v3684 = vld [vmem:[#allocation2 + $0x144] sm:$0x1]
        %v3685 = vld [vmem:[#allocation2 + $0x164] sm:$0x1]
        %v3686 = vld [vmem:[#allocation2 + $0x184] sm:$0x1]
        %v3687 = vld [vmem:[#allocation2 + $0x1a4] sm:$0x1]
        %v3688 = vld [vmem:[#allocation2 + $0x5] sm:$0x1]
        %v3689 = vld [vmem:[#allocation2 + $0x25] sm:$0x1]
        %v3690 = vld [vmem:[#allocation2 + $0x45] sm:$0x1]
        %v3691 = vld [vmem:[#allocation2 + $0x65] sm:$0x1]
        %v3692 = vld [vmem:[#allocation2 + $0x85] sm:$0x1]
        %v3693 = vld [vmem:[#allocation2 + $0xa5] sm:$0x1]
        %v3694 = vld [vmem:[#allocation2 + $0xc5] sm:$0x1]
        %v3695 = vld [vmem:[#allocation2 + $0xe5] sm:$0x1]
        %v3696 = vld [vmem:[#allocation2 + $0x105] sm:$0x1]
        %v3697 = vld [vmem:[#allocation2 + $0x125] sm:$0x1]
        %v3698 = vld [vmem:[#allocation2 + $0x145] sm:$0x1]
        %v3699 = vld [vmem:[#allocation2 + $0x165] sm:$0x1]
        %v3700 = vld [vmem:[#allocation2 + $0x185] sm:$0x1]
        %v3701 = vld [vmem:[#allocation2 + $0x1a5] sm:$0x1]
        %v3702 = vmax.f32 %v3674, %v3688
        %v3703 = vmax.f32 %v3675, %v3689
        %v3704 = vmax.f32 %v3676, %v3690
        %v3705 = vmax.f32 %v3677, %v3691
        %v3706 = vmax.f32 %v3678, %v3692
        %v3707 = vmax.f32 %v3679, %v3693
        %v3708 = vmax.f32 %v3680, %v3694
        %v3709 = vmax.f32 %v3681, %v3695
        %v3710 = vmax.f32 %v3682, %v3696
        %v3711 = vmax.f32 %v3683, %v3697
        %v3712 = vmax.f32 %v3684, %v3698
        %v3713 = vmax.f32 %v3685, %v3699
        %v3714 = vmax.f32 %v3686, %v3700
        %v3715 = vmax.f32 %v3687, %v3701
        %3716 = vst.msk [vmem:[%s3602 + $0x3] sm:$0x1] %vm3603, %v3702
        %3717 = vst.msk [vmem:[%s3602 + $0x13] sm:$0x1] %vm3603, %v3703
        %3718 = vst.msk [vmem:[%s3602 + $0x23] sm:$0x1] %vm3603, %v3704
        %3719 = vst.msk [vmem:[%s3602 + $0x33] sm:$0x1] %vm3603, %v3705
        %3720 = vst.msk [vmem:[%s3602 + $0x43] sm:$0x1] %vm3603, %v3706
        %3721 = vst.msk [vmem:[%s3602 + $0x53] sm:$0x1] %vm3603, %v3707
        %3722 = vst.msk [vmem:[%s3602 + $0x63] sm:$0x1] %vm3603, %v3708
        %3723 = vst.msk [vmem:[%s3602 + $0x73] sm:$0x1] %vm3603, %v3709
        %3724 = vst.msk [vmem:[%s3602 + $0x83] sm:$0x1] %vm3603, %v3710
        %3725 = vst.msk [vmem:[%s3602 + $0x93] sm:$0x1] %vm3603, %v3711
        %3726 = vst.msk [vmem:[%s3602 + $0xa3] sm:$0x1] %vm3603, %v3712
        %3727 = vst.msk [vmem:[%s3602 + $0xb3] sm:$0x1] %vm3603, %v3713
        %3728 = vst.msk [vmem:[%s3602 + $0xc3] sm:$0x1] %vm3603, %v3714
        %3729 = vst.msk [vmem:[%s3602 + $0xd3] sm:$0x1] %vm3603, %v3715
        %v3730 = vld [vmem:[#allocation2 + $0x6] sm:$0x1]
        %v3731 = vld [vmem:[#allocation2 + $0x26] sm:$0x1]
        %v3732 = vld [vmem:[#allocation2 + $0x46] sm:$0x1]
        %v3733 = vld [vmem:[#allocation2 + $0x66] sm:$0x1]
        %v3734 = vld [vmem:[#allocation2 + $0x86] sm:$0x1]
        %v3735 = vld [vmem:[#allocation2 + $0xa6] sm:$0x1]
        %v3736 = vld [vmem:[#allocation2 + $0xc6] sm:$0x1]
        %v3737 = vld [vmem:[#allocation2 + $0xe6] sm:$0x1]
        %v3738 = vld [vmem:[#allocation2 + $0x106] sm:$0x1]
        %v3739 = vld [vmem:[#allocation2 + $0x126] sm:$0x1]
        %v3740 = vld [vmem:[#allocation2 + $0x146] sm:$0x1]
        %v3741 = vld [vmem:[#allocation2 + $0x166] sm:$0x1]
        %v3742 = vld [vmem:[#allocation2 + $0x186] sm:$0x1]
        %v3743 = vld [vmem:[#allocation2 + $0x1a6] sm:$0x1]
        %v3744 = vld [vmem:[#allocation2 + $0x7] sm:$0x1]
        %v3745 = vld [vmem:[#allocation2 + $0x27] sm:$0x1]
        %v3746 = vld [vmem:[#allocation2 + $0x47] sm:$0x1]
        %v3747 = vld [vmem:[#allocation2 + $0x67] sm:$0x1]
        %v3748 = vld [vmem:[#allocation2 + $0x87] sm:$0x1]
        %v3749 = vld [vmem:[#allocation2 + $0xa7] sm:$0x1]
        %v3750 = vld [vmem:[#allocation2 + $0xc7] sm:$0x1]
        %v3751 = vld [vmem:[#allocation2 + $0xe7] sm:$0x1]
        %v3752 = vld [vmem:[#allocation2 + $0x107] sm:$0x1]
        %v3753 = vld [vmem:[#allocation2 + $0x127] sm:$0x1]
        %v3754 = vld [vmem:[#allocation2 + $0x147] sm:$0x1]
        %v3755 = vld [vmem:[#allocation2 + $0x167] sm:$0x1]
        %v3756 = vld [vmem:[#allocation2 + $0x187] sm:$0x1]
        %v3757 = vld [vmem:[#allocation2 + $0x1a7] sm:$0x1]
        %v3758 = vmax.f32 %v3730, %v3744
        %v3759 = vmax.f32 %v3731, %v3745
        %v3760 = vmax.f32 %v3732, %v3746
        %v3761 = vmax.f32 %v3733, %v3747
        %v3762 = vmax.f32 %v3734, %v3748
        %v3763 = vmax.f32 %v3735, %v3749
        %v3764 = vmax.f32 %v3736, %v3750
        %v3765 = vmax.f32 %v3737, %v3751
        %v3766 = vmax.f32 %v3738, %v3752
        %v3767 = vmax.f32 %v3739, %v3753
        %v3768 = vmax.f32 %v3740, %v3754
        %v3769 = vmax.f32 %v3741, %v3755
        %v3770 = vmax.f32 %v3742, %v3756
        %v3771 = vmax.f32 %v3743, %v3757
        %3772 = vst.msk [vmem:[%s3602 + $0x4] sm:$0x1] %vm3603, %v3758
        %3773 = vst.msk [vmem:[%s3602 + $0x14] sm:$0x1] %vm3603, %v3759
        %3774 = vst.msk [vmem:[%s3602 + $0x24] sm:$0x1] %vm3603, %v3760
        %3775 = vst.msk [vmem:[%s3602 + $0x34] sm:$0x1] %vm3603, %v3761
        %3776 = vst.msk [vmem:[%s3602 + $0x44] sm:$0x1] %vm3603, %v3762
        %3777 = vst.msk [vmem:[%s3602 + $0x54] sm:$0x1] %vm3603, %v3763
        %3778 = vst.msk [vmem:[%s3602 + $0x64] sm:$0x1] %vm3603, %v3764
        %3779 = vst.msk [vmem:[%s3602 + $0x74] sm:$0x1] %vm3603, %v3765
        %3780 = vst.msk [vmem:[%s3602 + $0x84] sm:$0x1] %vm3603, %v3766
        %3781 = vst.msk [vmem:[%s3602 + $0x94] sm:$0x1] %vm3603, %v3767
        %3782 = vst.msk [vmem:[%s3602 + $0xa4] sm:$0x1] %vm3603, %v3768
        %3783 = vst.msk [vmem:[%s3602 + $0xb4] sm:$0x1] %vm3603, %v3769
        %3784 = vst.msk [vmem:[%s3602 + $0xc4] sm:$0x1] %vm3603, %v3770
        %3785 = vst.msk [vmem:[%s3602 + $0xd4] sm:$0x1] %vm3603, %v3771
        %v3786 = vld [vmem:[#allocation2 + $0x8] sm:$0x1]
        %v3787 = vld [vmem:[#allocation2 + $0x28] sm:$0x1]
        %v3788 = vld [vmem:[#allocation2 + $0x48] sm:$0x1]
        %v3789 = vld [vmem:[#allocation2 + $0x68] sm:$0x1]
        %v3790 = vld [vmem:[#allocation2 + $0x88] sm:$0x1]
        %v3791 = vld [vmem:[#allocation2 + $0xa8] sm:$0x1]
        %v3792 = vld [vmem:[#allocation2 + $0xc8] sm:$0x1]
        %v3793 = vld [vmem:[#allocation2 + $0xe8] sm:$0x1]
        %v3794 = vld [vmem:[#allocation2 + $0x108] sm:$0x1]
        %v3795 = vld [vmem:[#allocation2 + $0x128] sm:$0x1]
        %v3796 = vld [vmem:[#allocation2 + $0x148] sm:$0x1]
        %v3797 = vld [vmem:[#allocation2 + $0x168] sm:$0x1]
        %v3798 = vld [vmem:[#allocation2 + $0x188] sm:$0x1]
        %v3799 = vld [vmem:[#allocation2 + $0x1a8] sm:$0x1]
        %v3800 = vld [vmem:[#allocation2 + $0x9] sm:$0x1]
        %v3801 = vld [vmem:[#allocation2 + $0x29] sm:$0x1]
        %v3802 = vld [vmem:[#allocation2 + $0x49] sm:$0x1]
        %v3803 = vld [vmem:[#allocation2 + $0x69] sm:$0x1]
        %v3804 = vld [vmem:[#allocation2 + $0x89] sm:$0x1]
        %v3805 = vld [vmem:[#allocation2 + $0xa9] sm:$0x1]
        %v3806 = vld [vmem:[#allocation2 + $0xc9] sm:$0x1]
        %v3807 = vld [vmem:[#allocation2 + $0xe9] sm:$0x1]
        %v3808 = vld [vmem:[#allocation2 + $0x109] sm:$0x1]
        %v3809 = vld [vmem:[#allocation2 + $0x129] sm:$0x1]
        %v3810 = vld [vmem:[#allocation2 + $0x149] sm:$0x1]
        %v3811 = vld [vmem:[#allocation2 + $0x169] sm:$0x1]
        %v3812 = vld [vmem:[#allocation2 + $0x189] sm:$0x1]
        %v3813 = vld [vmem:[#allocation2 + $0x1a9] sm:$0x1]
        %v3814 = vmax.f32 %v3786, %v3800
        %v3815 = vmax.f32 %v3787, %v3801
        %v3816 = vmax.f32 %v3788, %v3802
        %v3817 = vmax.f32 %v3789, %v3803
        %v3818 = vmax.f32 %v3790, %v3804
        %v3819 = vmax.f32 %v3791, %v3805
        %v3820 = vmax.f32 %v3792, %v3806
        %v3821 = vmax.f32 %v3793, %v3807
        %v3822 = vmax.f32 %v3794, %v3808
        %v3823 = vmax.f32 %v3795, %v3809
        %v3824 = vmax.f32 %v3796, %v3810
        %v3825 = vmax.f32 %v3797, %v3811
        %v3826 = vmax.f32 %v3798, %v3812
        %v3827 = vmax.f32 %v3799, %v3813
        %3828 = vst.msk [vmem:[%s3602 + $0x5] sm:$0x1] %vm3603, %v3814
        %3829 = vst.msk [vmem:[%s3602 + $0x15] sm:$0x1] %vm3603, %v3815
        %3830 = vst.msk [vmem:[%s3602 + $0x25] sm:$0x1] %vm3603, %v3816
        %3831 = vst.msk [vmem:[%s3602 + $0x35] sm:$0x1] %vm3603, %v3817
        %3832 = vst.msk [vmem:[%s3602 + $0x45] sm:$0x1] %vm3603, %v3818
        %3833 = vst.msk [vmem:[%s3602 + $0x55] sm:$0x1] %vm3603, %v3819
        %3834 = vst.msk [vmem:[%s3602 + $0x65] sm:$0x1] %vm3603, %v3820
        %3835 = vst.msk [vmem:[%s3602 + $0x75] sm:$0x1] %vm3603, %v3821
        %3836 = vst.msk [vmem:[%s3602 + $0x85] sm:$0x1] %vm3603, %v3822
        %3837 = vst.msk [vmem:[%s3602 + $0x95] sm:$0x1] %vm3603, %v3823
        %3838 = vst.msk [vmem:[%s3602 + $0xa5] sm:$0x1] %vm3603, %v3824
        %3839 = vst.msk [vmem:[%s3602 + $0xb5] sm:$0x1] %vm3603, %v3825
        %3840 = vst.msk [vmem:[%s3602 + $0xc5] sm:$0x1] %vm3603, %v3826
        %3841 = vst.msk [vmem:[%s3602 + $0xd5] sm:$0x1] %vm3603, %v3827
        %v3842 = vld [vmem:[#allocation2 + $0xa] sm:$0x1]
        %v3843 = vld [vmem:[#allocation2 + $0x2a] sm:$0x1]
        %v3844 = vld [vmem:[#allocation2 + $0x4a] sm:$0x1]
        %v3845 = vld [vmem:[#allocation2 + $0x6a] sm:$0x1]
        %v3846 = vld [vmem:[#allocation2 + $0x8a] sm:$0x1]
        %v3847 = vld [vmem:[#allocation2 + $0xaa] sm:$0x1]
        %v3848 = vld [vmem:[#allocation2 + $0xca] sm:$0x1]
        %v3849 = vld [vmem:[#allocation2 + $0xea] sm:$0x1]
        %v3850 = vld [vmem:[#allocation2 + $0x10a] sm:$0x1]
        %v3851 = vld [vmem:[#allocation2 + $0x12a] sm:$0x1]
        %v3852 = vld [vmem:[#allocation2 + $0x14a] sm:$0x1]
        %v3853 = vld [vmem:[#allocation2 + $0x16a] sm:$0x1]
        %v3854 = vld [vmem:[#allocation2 + $0x18a] sm:$0x1]
        %v3855 = vld [vmem:[#allocation2 + $0x1aa] sm:$0x1]
        %v3856 = vld [vmem:[#allocation2 + $0xb] sm:$0x1]
        %v3857 = vld [vmem:[#allocation2 + $0x2b] sm:$0x1]
        %v3858 = vld [vmem:[#allocation2 + $0x4b] sm:$0x1]
        %v3859 = vld [vmem:[#allocation2 + $0x6b] sm:$0x1]
        %v3860 = vld [vmem:[#allocation2 + $0x8b] sm:$0x1]
        %v3861 = vld [vmem:[#allocation2 + $0xab] sm:$0x1]
        %v3862 = vld [vmem:[#allocation2 + $0xcb] sm:$0x1]
        %v3863 = vld [vmem:[#allocation2 + $0xeb] sm:$0x1]
        %v3864 = vld [vmem:[#allocation2 + $0x10b] sm:$0x1]
        %v3865 = vld [vmem:[#allocation2 + $0x12b] sm:$0x1]
        %v3866 = vld [vmem:[#allocation2 + $0x14b] sm:$0x1]
        %v3867 = vld [vmem:[#allocation2 + $0x16b] sm:$0x1]
        %v3868 = vld [vmem:[#allocation2 + $0x18b] sm:$0x1]
        %v3869 = vld [vmem:[#allocation2 + $0x1ab] sm:$0x1]
        %v3870 = vmax.f32 %v3842, %v3856
        %v3871 = vmax.f32 %v3843, %v3857
        %v3872 = vmax.f32 %v3844, %v3858
        %v3873 = vmax.f32 %v3845, %v3859
        %v3874 = vmax.f32 %v3846, %v3860
        %v3875 = vmax.f32 %v3847, %v3861
        %v3876 = vmax.f32 %v3848, %v3862
        %v3877 = vmax.f32 %v3849, %v3863
        %v3878 = vmax.f32 %v3850, %v3864
        %v3879 = vmax.f32 %v3851, %v3865
        %v3880 = vmax.f32 %v3852, %v3866
        %v3881 = vmax.f32 %v3853, %v3867
        %v3882 = vmax.f32 %v3854, %v3868
        %v3883 = vmax.f32 %v3855, %v3869
        %3884 = vst.msk [vmem:[%s3602 + $0x6] sm:$0x1] %vm3603, %v3870
        %3885 = vst.msk [vmem:[%s3602 + $0x16] sm:$0x1] %vm3603, %v3871
        %3886 = vst.msk [vmem:[%s3602 + $0x26] sm:$0x1] %vm3603, %v3872
        %3887 = vst.msk [vmem:[%s3602 + $0x36] sm:$0x1] %vm3603, %v3873
        %3888 = vst.msk [vmem:[%s3602 + $0x46] sm:$0x1] %vm3603, %v3874
        %3889 = vst.msk [vmem:[%s3602 + $0x56] sm:$0x1] %vm3603, %v3875
        %3890 = vst.msk [vmem:[%s3602 + $0x66] sm:$0x1] %vm3603, %v3876
        %3891 = vst.msk [vmem:[%s3602 + $0x76] sm:$0x1] %vm3603, %v3877
        %3892 = vst.msk [vmem:[%s3602 + $0x86] sm:$0x1] %vm3603, %v3878
        %3893 = vst.msk [vmem:[%s3602 + $0x96] sm:$0x1] %vm3603, %v3879
        %3894 = vst.msk [vmem:[%s3602 + $0xa6] sm:$0x1] %vm3603, %v3880
        %3895 = vst.msk [vmem:[%s3602 + $0xb6] sm:$0x1] %vm3603, %v3881
        %3896 = vst.msk [vmem:[%s3602 + $0xc6] sm:$0x1] %vm3603, %v3882
        %3897 = vst.msk [vmem:[%s3602 + $0xd6] sm:$0x1] %vm3603, %v3883
        %v3898 = vld [vmem:[#allocation2 + $0xc] sm:$0x1]
        %v3899 = vld [vmem:[#allocation2 + $0x2c] sm:$0x1]
        %v3900 = vld [vmem:[#allocation2 + $0x4c] sm:$0x1]
        %v3901 = vld [vmem:[#allocation2 + $0x6c] sm:$0x1]
        %v3902 = vld [vmem:[#allocation2 + $0x8c] sm:$0x1]
        %v3903 = vld [vmem:[#allocation2 + $0xac] sm:$0x1]
        %v3904 = vld [vmem:[#allocation2 + $0xcc] sm:$0x1]
        %v3905 = vld [vmem:[#allocation2 + $0xec] sm:$0x1]
        %v3906 = vld [vmem:[#allocation2 + $0x10c] sm:$0x1]
        %v3907 = vld [vmem:[#allocation2 + $0x12c] sm:$0x1]
        %v3908 = vld [vmem:[#allocation2 + $0x14c] sm:$0x1]
        %v3909 = vld [vmem:[#allocation2 + $0x16c] sm:$0x1]
        %v3910 = vld [vmem:[#allocation2 + $0x18c] sm:$0x1]
        %v3911 = vld [vmem:[#allocation2 + $0x1ac] sm:$0x1]
        %v3912 = vld [vmem:[#allocation2 + $0xd] sm:$0x1]
        %v3913 = vld [vmem:[#allocation2 + $0x2d] sm:$0x1]
        %v3914 = vld [vmem:[#allocation2 + $0x4d] sm:$0x1]
        %v3915 = vld [vmem:[#allocation2 + $0x6d] sm:$0x1]
        %v3916 = vld [vmem:[#allocation2 + $0x8d] sm:$0x1]
        %v3917 = vld [vmem:[#allocation2 + $0xad] sm:$0x1]
        %v3918 = vld [vmem:[#allocation2 + $0xcd] sm:$0x1]
        %v3919 = vld [vmem:[#allocation2 + $0xed] sm:$0x1]
        %v3920 = vld [vmem:[#allocation2 + $0x10d] sm:$0x1]
        %v3921 = vld [vmem:[#allocation2 + $0x12d] sm:$0x1]
        %v3922 = vld [vmem:[#allocation2 + $0x14d] sm:$0x1]
        %v3923 = vld [vmem:[#allocation2 + $0x16d] sm:$0x1]
        %v3924 = vld [vmem:[#allocation2 + $0x18d] sm:$0x1]
        %v3925 = vld [vmem:[#allocation2 + $0x1ad] sm:$0x1]
        %v3926 = vmax.f32 %v3898, %v3912
        %v3927 = vmax.f32 %v3899, %v3913
        %v3928 = vmax.f32 %v3900, %v3914
        %v3929 = vmax.f32 %v3901, %v3915
        %v3930 = vmax.f32 %v3902, %v3916
        %v3931 = vmax.f32 %v3903, %v3917
        %v3932 = vmax.f32 %v3904, %v3918
        %v3933 = vmax.f32 %v3905, %v3919
        %v3934 = vmax.f32 %v3906, %v3920
        %v3935 = vmax.f32 %v3907, %v3921
        %v3936 = vmax.f32 %v3908, %v3922
        %v3937 = vmax.f32 %v3909, %v3923
        %v3938 = vmax.f32 %v3910, %v3924
        %v3939 = vmax.f32 %v3911, %v3925
        %3940 = vst.msk [vmem:[%s3602 + $0x7] sm:$0x1] %vm3603, %v3926
        %3941 = vst.msk [vmem:[%s3602 + $0x17] sm:$0x1] %vm3603, %v3927
        %3942 = vst.msk [vmem:[%s3602 + $0x27] sm:$0x1] %vm3603, %v3928
        %3943 = vst.msk [vmem:[%s3602 + $0x37] sm:$0x1] %vm3603, %v3929
        %3944 = vst.msk [vmem:[%s3602 + $0x47] sm:$0x1] %vm3603, %v3930
        %3945 = vst.msk [vmem:[%s3602 + $0x57] sm:$0x1] %vm3603, %v3931
        %3946 = vst.msk [vmem:[%s3602 + $0x67] sm:$0x1] %vm3603, %v3932
        %3947 = vst.msk [vmem:[%s3602 + $0x77] sm:$0x1] %vm3603, %v3933
        %3948 = vst.msk [vmem:[%s3602 + $0x87] sm:$0x1] %vm3603, %v3934
        %3949 = vst.msk [vmem:[%s3602 + $0x97] sm:$0x1] %vm3603, %v3935
        %3950 = vst.msk [vmem:[%s3602 + $0xa7] sm:$0x1] %vm3603, %v3936
        %3951 = vst.msk [vmem:[%s3602 + $0xb7] sm:$0x1] %vm3603, %v3937
        %3952 = vst.msk [vmem:[%s3602 + $0xc7] sm:$0x1] %vm3603, %v3938
        %3953 = vst.msk [vmem:[%s3602 + $0xd7] sm:$0x1] %vm3603, %v3939
        %v3954 = vld [vmem:[#allocation2 + $0xe] sm:$0x1]
        %v3955 = vld [vmem:[#allocation2 + $0x2e] sm:$0x1]
        %v3956 = vld [vmem:[#allocation2 + $0x4e] sm:$0x1]
        %v3957 = vld [vmem:[#allocation2 + $0x6e] sm:$0x1]
        %v3958 = vld [vmem:[#allocation2 + $0x8e] sm:$0x1]
        %v3959 = vld [vmem:[#allocation2 + $0xae] sm:$0x1]
        %v3960 = vld [vmem:[#allocation2 + $0xce] sm:$0x1]
        %v3961 = vld [vmem:[#allocation2 + $0xee] sm:$0x1]
        %v3962 = vld [vmem:[#allocation2 + $0x10e] sm:$0x1]
        %v3963 = vld [vmem:[#allocation2 + $0x12e] sm:$0x1]
        %v3964 = vld [vmem:[#allocation2 + $0x14e] sm:$0x1]
        %v3965 = vld [vmem:[#allocation2 + $0x16e] sm:$0x1]
        %v3966 = vld [vmem:[#allocation2 + $0x18e] sm:$0x1]
        %v3967 = vld [vmem:[#allocation2 + $0x1ae] sm:$0x1]
        %v3968 = vld [vmem:[#allocation2 + $0xf] sm:$0x1]
        %v3969 = vld [vmem:[#allocation2 + $0x2f] sm:$0x1]
        %v3970 = vld [vmem:[#allocation2 + $0x4f] sm:$0x1]
        %v3971 = vld [vmem:[#allocation2 + $0x6f] sm:$0x1]
        %v3972 = vld [vmem:[#allocation2 + $0x8f] sm:$0x1]
        %v3973 = vld [vmem:[#allocation2 + $0xaf] sm:$0x1]
        %v3974 = vld [vmem:[#allocation2 + $0xcf] sm:$0x1]
        %v3975 = vld [vmem:[#allocation2 + $0xef] sm:$0x1]
        %v3976 = vld [vmem:[#allocation2 + $0x10f] sm:$0x1]
        %v3977 = vld [vmem:[#allocation2 + $0x12f] sm:$0x1]
        %v3978 = vld [vmem:[#allocation2 + $0x14f] sm:$0x1]
        %v3979 = vld [vmem:[#allocation2 + $0x16f] sm:$0x1]
        %v3980 = vld [vmem:[#allocation2 + $0x18f] sm:$0x1]
        %v3981 = vld [vmem:[#allocation2 + $0x1af] sm:$0x1]
        %v3982 = vmax.f32 %v3954, %v3968
        %v3983 = vmax.f32 %v3955, %v3969
        %v3984 = vmax.f32 %v3956, %v3970
        %v3985 = vmax.f32 %v3957, %v3971
        %v3986 = vmax.f32 %v3958, %v3972
        %v3987 = vmax.f32 %v3959, %v3973
        %v3988 = vmax.f32 %v3960, %v3974
        %v3989 = vmax.f32 %v3961, %v3975
        %v3990 = vmax.f32 %v3962, %v3976
        %v3991 = vmax.f32 %v3963, %v3977
        %v3992 = vmax.f32 %v3964, %v3978
        %v3993 = vmax.f32 %v3965, %v3979
        %v3994 = vmax.f32 %v3966, %v3980
        %v3995 = vmax.f32 %v3967, %v3981
        %3996 = vst.msk [vmem:[%s3602 + $0x8] sm:$0x1] %vm3603, %v3982
        %3997 = vst.msk [vmem:[%s3602 + $0x18] sm:$0x1] %vm3603, %v3983
        %3998 = vst.msk [vmem:[%s3602 + $0x28] sm:$0x1] %vm3603, %v3984
        %3999 = vst.msk [vmem:[%s3602 + $0x38] sm:$0x1] %vm3603, %v3985
        %4000 = vst.msk [vmem:[%s3602 + $0x48] sm:$0x1] %vm3603, %v3986
        %4001 = vst.msk [vmem:[%s3602 + $0x58] sm:$0x1] %vm3603, %v3987
        %4002 = vst.msk [vmem:[%s3602 + $0x68] sm:$0x1] %vm3603, %v3988
        %4003 = vst.msk [vmem:[%s3602 + $0x78] sm:$0x1] %vm3603, %v3989
        %4004 = vst.msk [vmem:[%s3602 + $0x88] sm:$0x1] %vm3603, %v3990
        %4005 = vst.msk [vmem:[%s3602 + $0x98] sm:$0x1] %vm3603, %v3991
        %4006 = vst.msk [vmem:[%s3602 + $0xa8] sm:$0x1] %vm3603, %v3992
        %4007 = vst.msk [vmem:[%s3602 + $0xb8] sm:$0x1] %vm3603, %v3993
        %4008 = vst.msk [vmem:[%s3602 + $0xc8] sm:$0x1] %vm3603, %v3994
        %4009 = vst.msk [vmem:[%s3602 + $0xd8] sm:$0x1] %vm3603, %v3995
        %v4010 = vld [vmem:[#allocation2 + $0x10] sm:$0x1]
        %v4011 = vld [vmem:[#allocation2 + $0x30] sm:$0x1]
        %v4012 = vld [vmem:[#allocation2 + $0x50] sm:$0x1]
        %v4013 = vld [vmem:[#allocation2 + $0x70] sm:$0x1]
        %v4014 = vld [vmem:[#allocation2 + $0x90] sm:$0x1]
        %v4015 = vld [vmem:[#allocation2 + $0xb0] sm:$0x1]
        %v4016 = vld [vmem:[#allocation2 + $0xd0] sm:$0x1]
        %v4017 = vld [vmem:[#allocation2 + $0xf0] sm:$0x1]
        %v4018 = vld [vmem:[#allocation2 + $0x110] sm:$0x1]
        %v4019 = vld [vmem:[#allocation2 + $0x130] sm:$0x1]
        %v4020 = vld [vmem:[#allocation2 + $0x150] sm:$0x1]
        %v4021 = vld [vmem:[#allocation2 + $0x170] sm:$0x1]
        %v4022 = vld [vmem:[#allocation2 + $0x190] sm:$0x1]
        %v4023 = vld [vmem:[#allocation2 + $0x1b0] sm:$0x1]
        %v4024 = vld [vmem:[#allocation2 + $0x11] sm:$0x1]
        %v4025 = vld [vmem:[#allocation2 + $0x31] sm:$0x1]
        %v4026 = vld [vmem:[#allocation2 + $0x51] sm:$0x1]
        %v4027 = vld [vmem:[#allocation2 + $0x71] sm:$0x1]
        %v4028 = vld [vmem:[#allocation2 + $0x91] sm:$0x1]
        %v4029 = vld [vmem:[#allocation2 + $0xb1] sm:$0x1]
        %v4030 = vld [vmem:[#allocation2 + $0xd1] sm:$0x1]
        %v4031 = vld [vmem:[#allocation2 + $0xf1] sm:$0x1]
        %v4032 = vld [vmem:[#allocation2 + $0x111] sm:$0x1]
        %v4033 = vld [vmem:[#allocation2 + $0x131] sm:$0x1]
        %v4034 = vld [vmem:[#allocation2 + $0x151] sm:$0x1]
        %v4035 = vld [vmem:[#allocation2 + $0x171] sm:$0x1]
        %v4036 = vld [vmem:[#allocation2 + $0x191] sm:$0x1]
        %v4037 = vld [vmem:[#allocation2 + $0x1b1] sm:$0x1]
        %v4038 = vmax.f32 %v4010, %v4024
        %v4039 = vmax.f32 %v4011, %v4025
        %v4040 = vmax.f32 %v4012, %v4026
        %v4041 = vmax.f32 %v4013, %v4027
        %v4042 = vmax.f32 %v4014, %v4028
        %v4043 = vmax.f32 %v4015, %v4029
        %v4044 = vmax.f32 %v4016, %v4030
        %v4045 = vmax.f32 %v4017, %v4031
        %v4046 = vmax.f32 %v4018, %v4032
        %v4047 = vmax.f32 %v4019, %v4033
        %v4048 = vmax.f32 %v4020, %v4034
        %v4049 = vmax.f32 %v4021, %v4035
        %v4050 = vmax.f32 %v4022, %v4036
        %v4051 = vmax.f32 %v4023, %v4037
        %4052 = vst.msk [vmem:[%s3602 + $0x9] sm:$0x1] %vm3603, %v4038
        %4053 = vst.msk [vmem:[%s3602 + $0x19] sm:$0x1] %vm3603, %v4039
        %4054 = vst.msk [vmem:[%s3602 + $0x29] sm:$0x1] %vm3603, %v4040
        %4055 = vst.msk [vmem:[%s3602 + $0x39] sm:$0x1] %vm3603, %v4041
        %4056 = vst.msk [vmem:[%s3602 + $0x49] sm:$0x1] %vm3603, %v4042
        %4057 = vst.msk [vmem:[%s3602 + $0x59] sm:$0x1] %vm3603, %v4043
        %4058 = vst.msk [vmem:[%s3602 + $0x69] sm:$0x1] %vm3603, %v4044
        %4059 = vst.msk [vmem:[%s3602 + $0x79] sm:$0x1] %vm3603, %v4045
        %4060 = vst.msk [vmem:[%s3602 + $0x89] sm:$0x1] %vm3603, %v4046
        %4061 = vst.msk [vmem:[%s3602 + $0x99] sm:$0x1] %vm3603, %v4047
        %4062 = vst.msk [vmem:[%s3602 + $0xa9] sm:$0x1] %vm3603, %v4048
        %4063 = vst.msk [vmem:[%s3602 + $0xb9] sm:$0x1] %vm3603, %v4049
        %4064 = vst.msk [vmem:[%s3602 + $0xc9] sm:$0x1] %vm3603, %v4050
        %4065 = vst.msk [vmem:[%s3602 + $0xd9] sm:$0x1] %vm3603, %v4051
        %v4066 = vld [vmem:[#allocation2 + $0x12] sm:$0x1]
        %v4067 = vld [vmem:[#allocation2 + $0x32] sm:$0x1]
        %v4068 = vld [vmem:[#allocation2 + $0x52] sm:$0x1]
        %v4069 = vld [vmem:[#allocation2 + $0x72] sm:$0x1]
        %v4070 = vld [vmem:[#allocation2 + $0x92] sm:$0x1]
        %v4071 = vld [vmem:[#allocation2 + $0xb2] sm:$0x1]
        %v4072 = vld [vmem:[#allocation2 + $0xd2] sm:$0x1]
        %v4073 = vld [vmem:[#allocation2 + $0xf2] sm:$0x1]
        %v4074 = vld [vmem:[#allocation2 + $0x112] sm:$0x1]
        %v4075 = vld [vmem:[#allocation2 + $0x132] sm:$0x1]
        %v4076 = vld [vmem:[#allocation2 + $0x152] sm:$0x1]
        %v4077 = vld [vmem:[#allocation2 + $0x172] sm:$0x1]
        %v4078 = vld [vmem:[#allocation2 + $0x192] sm:$0x1]
        %v4079 = vld [vmem:[#allocation2 + $0x1b2] sm:$0x1]
        %v4080 = vld [vmem:[#allocation2 + $0x13] sm:$0x1]
        %v4081 = vld [vmem:[#allocation2 + $0x33] sm:$0x1]
        %v4082 = vld [vmem:[#allocation2 + $0x53] sm:$0x1]
        %v4083 = vld [vmem:[#allocation2 + $0x73] sm:$0x1]
        %v4084 = vld [vmem:[#allocation2 + $0x93] sm:$0x1]
        %v4085 = vld [vmem:[#allocation2 + $0xb3] sm:$0x1]
        %v4086 = vld [vmem:[#allocation2 + $0xd3] sm:$0x1]
        %v4087 = vld [vmem:[#allocation2 + $0xf3] sm:$0x1]
        %v4088 = vld [vmem:[#allocation2 + $0x113] sm:$0x1]
        %v4089 = vld [vmem:[#allocation2 + $0x133] sm:$0x1]
        %v4090 = vld [vmem:[#allocation2 + $0x153] sm:$0x1]
        %v4091 = vld [vmem:[#allocation2 + $0x173] sm:$0x1]
        %v4092 = vld [vmem:[#allocation2 + $0x193] sm:$0x1]
        %v4093 = vld [vmem:[#allocation2 + $0x1b3] sm:$0x1]
        %v4094 = vmax.f32 %v4066, %v4080
        %v4095 = vmax.f32 %v4067, %v4081
        %v4096 = vmax.f32 %v4068, %v4082
        %v4097 = vmax.f32 %v4069, %v4083
        %v4098 = vmax.f32 %v4070, %v4084
        %v4099 = vmax.f32 %v4071, %v4085
        %v4100 = vmax.f32 %v4072, %v4086
        %v4101 = vmax.f32 %v4073, %v4087
        %v4102 = vmax.f32 %v4074, %v4088
        %v4103 = vmax.f32 %v4075, %v4089
        %v4104 = vmax.f32 %v4076, %v4090
        %v4105 = vmax.f32 %v4077, %v4091
        %v4106 = vmax.f32 %v4078, %v4092
        %v4107 = vmax.f32 %v4079, %v4093
        %4108 = vst.msk [vmem:[%s3602 + $0xa] sm:$0x1] %vm3603, %v4094
        %4109 = vst.msk [vmem:[%s3602 + $0x1a] sm:$0x1] %vm3603, %v4095
        %4110 = vst.msk [vmem:[%s3602 + $0x2a] sm:$0x1] %vm3603, %v4096
        %4111 = vst.msk [vmem:[%s3602 + $0x3a] sm:$0x1] %vm3603, %v4097
        %4112 = vst.msk [vmem:[%s3602 + $0x4a] sm:$0x1] %vm3603, %v4098
        %4113 = vst.msk [vmem:[%s3602 + $0x5a] sm:$0x1] %vm3603, %v4099
        %4114 = vst.msk [vmem:[%s3602 + $0x6a] sm:$0x1] %vm3603, %v4100
        %4115 = vst.msk [vmem:[%s3602 + $0x7a] sm:$0x1] %vm3603, %v4101
        %4116 = vst.msk [vmem:[%s3602 + $0x8a] sm:$0x1] %vm3603, %v4102
        %4117 = vst.msk [vmem:[%s3602 + $0x9a] sm:$0x1] %vm3603, %v4103
        %4118 = vst.msk [vmem:[%s3602 + $0xaa] sm:$0x1] %vm3603, %v4104
        %4119 = vst.msk [vmem:[%s3602 + $0xba] sm:$0x1] %vm3603, %v4105
        %4120 = vst.msk [vmem:[%s3602 + $0xca] sm:$0x1] %vm3603, %v4106
        %4121 = vst.msk [vmem:[%s3602 + $0xda] sm:$0x1] %vm3603, %v4107
        %v4122 = vld [vmem:[#allocation2 + $0x14] sm:$0x1]
        %v4123 = vld [vmem:[#allocation2 + $0x34] sm:$0x1]
        %v4124 = vld [vmem:[#allocation2 + $0x54] sm:$0x1]
        %v4125 = vld [vmem:[#allocation2 + $0x74] sm:$0x1]
        %v4126 = vld [vmem:[#allocation2 + $0x94] sm:$0x1]
        %v4127 = vld [vmem:[#allocation2 + $0xb4] sm:$0x1]
        %v4128 = vld [vmem:[#allocation2 + $0xd4] sm:$0x1]
        %v4129 = vld [vmem:[#allocation2 + $0xf4] sm:$0x1]
        %v4130 = vld [vmem:[#allocation2 + $0x114] sm:$0x1]
        %v4131 = vld [vmem:[#allocation2 + $0x134] sm:$0x1]
        %v4132 = vld [vmem:[#allocation2 + $0x154] sm:$0x1]
        %v4133 = vld [vmem:[#allocation2 + $0x174] sm:$0x1]
        %v4134 = vld [vmem:[#allocation2 + $0x194] sm:$0x1]
        %v4135 = vld [vmem:[#allocation2 + $0x1b4] sm:$0x1]
        %v4136 = vld [vmem:[#allocation2 + $0x15] sm:$0x1]
        %v4137 = vld [vmem:[#allocation2 + $0x35] sm:$0x1]
        %v4138 = vld [vmem:[#allocation2 + $0x55] sm:$0x1]
        %v4139 = vld [vmem:[#allocation2 + $0x75] sm:$0x1]
        %v4140 = vld [vmem:[#allocation2 + $0x95] sm:$0x1]
        %v4141 = vld [vmem:[#allocation2 + $0xb5] sm:$0x1]
        %v4142 = vld [vmem:[#allocation2 + $0xd5] sm:$0x1]
        %v4143 = vld [vmem:[#allocation2 + $0xf5] sm:$0x1]
        %v4144 = vld [vmem:[#allocation2 + $0x115] sm:$0x1]
        %v4145 = vld [vmem:[#allocation2 + $0x135] sm:$0x1]
        %v4146 = vld [vmem:[#allocation2 + $0x155] sm:$0x1]
        %v4147 = vld [vmem:[#allocation2 + $0x175] sm:$0x1]
        %v4148 = vld [vmem:[#allocation2 + $0x195] sm:$0x1]
        %v4149 = vld [vmem:[#allocation2 + $0x1b5] sm:$0x1]
        %v4150 = vmax.f32 %v4122, %v4136
        %v4151 = vmax.f32 %v4123, %v4137
        %v4152 = vmax.f32 %v4124, %v4138
        %v4153 = vmax.f32 %v4125, %v4139
        %v4154 = vmax.f32 %v4126, %v4140
        %v4155 = vmax.f32 %v4127, %v4141
        %v4156 = vmax.f32 %v4128, %v4142
        %v4157 = vmax.f32 %v4129, %v4143
        %v4158 = vmax.f32 %v4130, %v4144
        %v4159 = vmax.f32 %v4131, %v4145
        %v4160 = vmax.f32 %v4132, %v4146
        %v4161 = vmax.f32 %v4133, %v4147
        %v4162 = vmax.f32 %v4134, %v4148
        %v4163 = vmax.f32 %v4135, %v4149
        %4164 = vst.msk [vmem:[%s3602 + $0xb] sm:$0x1] %vm3603, %v4150
        %4165 = vst.msk [vmem:[%s3602 + $0x1b] sm:$0x1] %vm3603, %v4151
        %4166 = vst.msk [vmem:[%s3602 + $0x2b] sm:$0x1] %vm3603, %v4152
        %4167 = vst.msk [vmem:[%s3602 + $0x3b] sm:$0x1] %vm3603, %v4153
        %4168 = vst.msk [vmem:[%s3602 + $0x4b] sm:$0x1] %vm3603, %v4154
        %4169 = vst.msk [vmem:[%s3602 + $0x5b] sm:$0x1] %vm3603, %v4155
        %4170 = vst.msk [vmem:[%s3602 + $0x6b] sm:$0x1] %vm3603, %v4156
        %4171 = vst.msk [vmem:[%s3602 + $0x7b] sm:$0x1] %vm3603, %v4157
        %4172 = vst.msk [vmem:[%s3602 + $0x8b] sm:$0x1] %vm3603, %v4158
        %4173 = vst.msk [vmem:[%s3602 + $0x9b] sm:$0x1] %vm3603, %v4159
        %4174 = vst.msk [vmem:[%s3602 + $0xab] sm:$0x1] %vm3603, %v4160
        %4175 = vst.msk [vmem:[%s3602 + $0xbb] sm:$0x1] %vm3603, %v4161
        %4176 = vst.msk [vmem:[%s3602 + $0xcb] sm:$0x1] %vm3603, %v4162
        %4177 = vst.msk [vmem:[%s3602 + $0xdb] sm:$0x1] %vm3603, %v4163
        %v4178 = vld [vmem:[#allocation2 + $0x16] sm:$0x1]
        %v4179 = vld [vmem:[#allocation2 + $0x36] sm:$0x1]
        %v4180 = vld [vmem:[#allocation2 + $0x56] sm:$0x1]
        %v4181 = vld [vmem:[#allocation2 + $0x76] sm:$0x1]
        %v4182 = vld [vmem:[#allocation2 + $0x96] sm:$0x1]
        %v4183 = vld [vmem:[#allocation2 + $0xb6] sm:$0x1]
        %v4184 = vld [vmem:[#allocation2 + $0xd6] sm:$0x1]
        %v4185 = vld [vmem:[#allocation2 + $0xf6] sm:$0x1]
        %v4186 = vld [vmem:[#allocation2 + $0x116] sm:$0x1]
        %v4187 = vld [vmem:[#allocation2 + $0x136] sm:$0x1]
        %v4188 = vld [vmem:[#allocation2 + $0x156] sm:$0x1]
        %v4189 = vld [vmem:[#allocation2 + $0x176] sm:$0x1]
        %v4190 = vld [vmem:[#allocation2 + $0x196] sm:$0x1]
        %v4191 = vld [vmem:[#allocation2 + $0x1b6] sm:$0x1]
        %v4192 = vld [vmem:[#allocation2 + $0x17] sm:$0x1]
        %v4193 = vld [vmem:[#allocation2 + $0x37] sm:$0x1]
        %v4194 = vld [vmem:[#allocation2 + $0x57] sm:$0x1]
        %v4195 = vld [vmem:[#allocation2 + $0x77] sm:$0x1]
        %v4196 = vld [vmem:[#allocation2 + $0x97] sm:$0x1]
        %v4197 = vld [vmem:[#allocation2 + $0xb7] sm:$0x1]
        %v4198 = vld [vmem:[#allocation2 + $0xd7] sm:$0x1]
        %v4199 = vld [vmem:[#allocation2 + $0xf7] sm:$0x1]
        %v4200 = vld [vmem:[#allocation2 + $0x117] sm:$0x1]
        %v4201 = vld [vmem:[#allocation2 + $0x137] sm:$0x1]
        %v4202 = vld [vmem:[#allocation2 + $0x157] sm:$0x1]
        %v4203 = vld [vmem:[#allocation2 + $0x177] sm:$0x1]
        %v4204 = vld [vmem:[#allocation2 + $0x197] sm:$0x1]
        %v4205 = vld [vmem:[#allocation2 + $0x1b7] sm:$0x1]
        %v4206 = vmax.f32 %v4178, %v4192
        %v4207 = vmax.f32 %v4179, %v4193
        %v4208 = vmax.f32 %v4180, %v4194
        %v4209 = vmax.f32 %v4181, %v4195
        %v4210 = vmax.f32 %v4182, %v4196
        %v4211 = vmax.f32 %v4183, %v4197
        %v4212 = vmax.f32 %v4184, %v4198
        %v4213 = vmax.f32 %v4185, %v4199
        %v4214 = vmax.f32 %v4186, %v4200
        %v4215 = vmax.f32 %v4187, %v4201
        %v4216 = vmax.f32 %v4188, %v4202
        %v4217 = vmax.f32 %v4189, %v4203
        %v4218 = vmax.f32 %v4190, %v4204
        %v4219 = vmax.f32 %v4191, %v4205
        %4220 = vst.msk [vmem:[%s3602 + $0xc] sm:$0x1] %vm3603, %v4206
        %4221 = vst.msk [vmem:[%s3602 + $0x1c] sm:$0x1] %vm3603, %v4207
        %4222 = vst.msk [vmem:[%s3602 + $0x2c] sm:$0x1] %vm3603, %v4208
        %4223 = vst.msk [vmem:[%s3602 + $0x3c] sm:$0x1] %vm3603, %v4209
        %4224 = vst.msk [vmem:[%s3602 + $0x4c] sm:$0x1] %vm3603, %v4210
        %4225 = vst.msk [vmem:[%s3602 + $0x5c] sm:$0x1] %vm3603, %v4211
        %4226 = vst.msk [vmem:[%s3602 + $0x6c] sm:$0x1] %vm3603, %v4212
        %4227 = vst.msk [vmem:[%s3602 + $0x7c] sm:$0x1] %vm3603, %v4213
        %4228 = vst.msk [vmem:[%s3602 + $0x8c] sm:$0x1] %vm3603, %v4214
        %4229 = vst.msk [vmem:[%s3602 + $0x9c] sm:$0x1] %vm3603, %v4215
        %4230 = vst.msk [vmem:[%s3602 + $0xac] sm:$0x1] %vm3603, %v4216
        %4231 = vst.msk [vmem:[%s3602 + $0xbc] sm:$0x1] %vm3603, %v4217
        %4232 = vst.msk [vmem:[%s3602 + $0xcc] sm:$0x1] %vm3603, %v4218
        %4233 = vst.msk [vmem:[%s3602 + $0xdc] sm:$0x1] %vm3603, %v4219
        %v4234 = vld [vmem:[#allocation2 + $0x18] sm:$0x1]
        %v4235 = vld [vmem:[#allocation2 + $0x38] sm:$0x1]
        %v4236 = vld [vmem:[#allocation2 + $0x58] sm:$0x1]
        %v4237 = vld [vmem:[#allocation2 + $0x78] sm:$0x1]
        %v4238 = vld [vmem:[#allocation2 + $0x98] sm:$0x1]
        %v4239 = vld [vmem:[#allocation2 + $0xb8] sm:$0x1]
        %v4240 = vld [vmem:[#allocation2 + $0xd8] sm:$0x1]
        %v4241 = vld [vmem:[#allocation2 + $0xf8] sm:$0x1]
        %v4242 = vld [vmem:[#allocation2 + $0x118] sm:$0x1]
        %v4243 = vld [vmem:[#allocation2 + $0x138] sm:$0x1]
        %v4244 = vld [vmem:[#allocation2 + $0x158] sm:$0x1]
        %v4245 = vld [vmem:[#allocation2 + $0x178] sm:$0x1]
        %v4246 = vld [vmem:[#allocation2 + $0x198] sm:$0x1]
        %v4247 = vld [vmem:[#allocation2 + $0x1b8] sm:$0x1]
        %v4248 = vld [vmem:[#allocation2 + $0x19] sm:$0x1]
        %v4249 = vld [vmem:[#allocation2 + $0x39] sm:$0x1]
        %v4250 = vld [vmem:[#allocation2 + $0x59] sm:$0x1]
        %v4251 = vld [vmem:[#allocation2 + $0x79] sm:$0x1]
        %v4252 = vld [vmem:[#allocation2 + $0x99] sm:$0x1]
        %v4253 = vld [vmem:[#allocation2 + $0xb9] sm:$0x1]
        %v4254 = vld [vmem:[#allocation2 + $0xd9] sm:$0x1]
        %v4255 = vld [vmem:[#allocation2 + $0xf9] sm:$0x1]
        %v4256 = vld [vmem:[#allocation2 + $0x119] sm:$0x1]
        %v4257 = vld [vmem:[#allocation2 + $0x139] sm:$0x1]
        %v4258 = vld [vmem:[#allocation2 + $0x159] sm:$0x1]
        %v4259 = vld [vmem:[#allocation2 + $0x179] sm:$0x1]
        %v4260 = vld [vmem:[#allocation2 + $0x199] sm:$0x1]
        %v4261 = vld [vmem:[#allocation2 + $0x1b9] sm:$0x1]
        %v4262 = vmax.f32 %v4234, %v4248
        %v4263 = vmax.f32 %v4235, %v4249
        %v4264 = vmax.f32 %v4236, %v4250
        %v4265 = vmax.f32 %v4237, %v4251
        %v4266 = vmax.f32 %v4238, %v4252
        %v4267 = vmax.f32 %v4239, %v4253
        %v4268 = vmax.f32 %v4240, %v4254
        %v4269 = vmax.f32 %v4241, %v4255
        %v4270 = vmax.f32 %v4242, %v4256
        %v4271 = vmax.f32 %v4243, %v4257
        %v4272 = vmax.f32 %v4244, %v4258
        %v4273 = vmax.f32 %v4245, %v4259
        %v4274 = vmax.f32 %v4246, %v4260
        %v4275 = vmax.f32 %v4247, %v4261
        %4276 = vst.msk [vmem:[%s3602 + $0xd] sm:$0x1] %vm3603, %v4262
        %4277 = vst.msk [vmem:[%s3602 + $0x1d] sm:$0x1] %vm3603, %v4263
        %4278 = vst.msk [vmem:[%s3602 + $0x2d] sm:$0x1] %vm3603, %v4264
        %4279 = vst.msk [vmem:[%s3602 + $0x3d] sm:$0x1] %vm3603, %v4265
        %4280 = vst.msk [vmem:[%s3602 + $0x4d] sm:$0x1] %vm3603, %v4266
        %4281 = vst.msk [vmem:[%s3602 + $0x5d] sm:$0x1] %vm3603, %v4267
        %4282 = vst.msk [vmem:[%s3602 + $0x6d] sm:$0x1] %vm3603, %v4268
        %4283 = vst.msk [vmem:[%s3602 + $0x7d] sm:$0x1] %vm3603, %v4269
        %4284 = vst.msk [vmem:[%s3602 + $0x8d] sm:$0x1] %vm3603, %v4270
        %4285 = vst.msk [vmem:[%s3602 + $0x9d] sm:$0x1] %vm3603, %v4271
        %4286 = vst.msk [vmem:[%s3602 + $0xad] sm:$0x1] %vm3603, %v4272
        %4287 = vst.msk [vmem:[%s3602 + $0xbd] sm:$0x1] %vm3603, %v4273
        %4288 = vst.msk [vmem:[%s3602 + $0xcd] sm:$0x1] %vm3603, %v4274
        %4289 = vst.msk [vmem:[%s3602 + $0xdd] sm:$0x1] %vm3603, %v4275
        %v4290 = vld [vmem:[#allocation2 + $0x1a] sm:$0x1]
        %v4291 = vld [vmem:[#allocation2 + $0x3a] sm:$0x1]
        %v4292 = vld [vmem:[#allocation2 + $0x5a] sm:$0x1]
        %v4293 = vld [vmem:[#allocation2 + $0x7a] sm:$0x1]
        %v4294 = vld [vmem:[#allocation2 + $0x9a] sm:$0x1]
        %v4295 = vld [vmem:[#allocation2 + $0xba] sm:$0x1]
        %v4296 = vld [vmem:[#allocation2 + $0xda] sm:$0x1]
        %v4297 = vld [vmem:[#allocation2 + $0xfa] sm:$0x1]
        %v4298 = vld [vmem:[#allocation2 + $0x11a] sm:$0x1]
        %v4299 = vld [vmem:[#allocation2 + $0x13a] sm:$0x1]
        %v4300 = vld [vmem:[#allocation2 + $0x15a] sm:$0x1]
        %v4301 = vld [vmem:[#allocation2 + $0x17a] sm:$0x1]
        %v4302 = vld [vmem:[#allocation2 + $0x19a] sm:$0x1]
        %v4303 = vld [vmem:[#allocation2 + $0x1ba] sm:$0x1]
        %v4304 = vld [vmem:[#allocation2 + $0x1b] sm:$0x1]
        %v4305 = vld [vmem:[#allocation2 + $0x3b] sm:$0x1]
        %v4306 = vld [vmem:[#allocation2 + $0x5b] sm:$0x1]
        %v4307 = vld [vmem:[#allocation2 + $0x7b] sm:$0x1]
        %v4308 = vld [vmem:[#allocation2 + $0x9b] sm:$0x1]
        %v4309 = vld [vmem:[#allocation2 + $0xbb] sm:$0x1]
        %v4310 = vld [vmem:[#allocation2 + $0xdb] sm:$0x1]
        %v4311 = vld [vmem:[#allocation2 + $0xfb] sm:$0x1]
        %v4312 = vld [vmem:[#allocation2 + $0x11b] sm:$0x1]
        %v4313 = vld [vmem:[#allocation2 + $0x13b] sm:$0x1]
        %v4314 = vld [vmem:[#allocation2 + $0x15b] sm:$0x1]
        %v4315 = vld [vmem:[#allocation2 + $0x17b] sm:$0x1]
        %v4316 = vld [vmem:[#allocation2 + $0x19b] sm:$0x1]
        %v4317 = vld [vmem:[#allocation2 + $0x1bb] sm:$0x1]
        %v4318 = vmax.f32 %v4290, %v4304
        %v4319 = vmax.f32 %v4291, %v4305
        %v4320 = vmax.f32 %v4292, %v4306
        %v4321 = vmax.f32 %v4293, %v4307
        %v4322 = vmax.f32 %v4294, %v4308
        %v4323 = vmax.f32 %v4295, %v4309
        %v4324 = vmax.f32 %v4296, %v4310
        %v4325 = vmax.f32 %v4297, %v4311
        %v4326 = vmax.f32 %v4298, %v4312
        %v4327 = vmax.f32 %v4299, %v4313
        %v4328 = vmax.f32 %v4300, %v4314
        %v4329 = vmax.f32 %v4301, %v4315
        %v4330 = vmax.f32 %v4302, %v4316
        %v4331 = vmax.f32 %v4303, %v4317
        %4332 = vst.msk [vmem:[%s3602 + $0xe] sm:$0x1] %vm3603, %v4318
        %4333 = vst.msk [vmem:[%s3602 + $0x1e] sm:$0x1] %vm3603, %v4319
        %4334 = vst.msk [vmem:[%s3602 + $0x2e] sm:$0x1] %vm3603, %v4320
        %4335 = vst.msk [vmem:[%s3602 + $0x3e] sm:$0x1] %vm3603, %v4321
        %4336 = vst.msk [vmem:[%s3602 + $0x4e] sm:$0x1] %vm3603, %v4322
        %4337 = vst.msk [vmem:[%s3602 + $0x5e] sm:$0x1] %vm3603, %v4323
        %4338 = vst.msk [vmem:[%s3602 + $0x6e] sm:$0x1] %vm3603, %v4324
        %4339 = vst.msk [vmem:[%s3602 + $0x7e] sm:$0x1] %vm3603, %v4325
        %4340 = vst.msk [vmem:[%s3602 + $0x8e] sm:$0x1] %vm3603, %v4326
        %4341 = vst.msk [vmem:[%s3602 + $0x9e] sm:$0x1] %vm3603, %v4327
        %4342 = vst.msk [vmem:[%s3602 + $0xae] sm:$0x1] %vm3603, %v4328
        %4343 = vst.msk [vmem:[%s3602 + $0xbe] sm:$0x1] %vm3603, %v4329
        %4344 = vst.msk [vmem:[%s3602 + $0xce] sm:$0x1] %vm3603, %v4330
        %4345 = vst.msk [vmem:[%s3602 + $0xde] sm:$0x1] %vm3603, %v4331
        %v4346 = vld [vmem:[%s3] sm:$0xff]
        %v4347 = vld [vmem:[%s3 + $0x8] sm:$0xff]
        %v4348 = vld [vmem:[%s3 + $0x10] sm:$0xff]
        %v4349 = vld [vmem:[%s3 + $0x18] sm:$0xff]
        %v4350 = vld [vmem:[%s3 + $0x20] sm:$0xff]
        %v4351 = vld [vmem:[%s3 + $0x28] sm:$0xff]
        %v4352 = vld [vmem:[%s3 + $0x30] sm:$0xff]
        %v4353 = vld [vmem:[%s3 + $0x38] sm:$0xff]
        %v4354 = vld [vmem:[%s3 + $0x40] sm:$0xff]
        %v4355 = vld [vmem:[%s3 + $0x48] sm:$0xff]
        %v4356 = vld [vmem:[%s3 + $0x50] sm:$0xff]
        %v4357 = vld [vmem:[%s3 + $0x58] sm:$0xff]
        %v4358 = vld [vmem:[%s3 + $0x60] sm:$0xff]
        %v4359 = vld [vmem:[%s3 + $0x68] sm:$0xff]
        %v4360 = vld [vmem:[%s3 + $0x70] sm:$0xff]
        %v4361 = vld [vmem:[%s3 + $0x78] sm:$0xff]
        %v4362 = vld [vmem:[%s3 + $0x80] sm:$0xff]
        %v4363 = vld [vmem:[%s3 + $0x88] sm:$0xff]
        %v4364 = vld [vmem:[#allocation3] sm:$0xff]
        %v4365 = vld [vmem:[#allocation3 + $0x8] sm:$0x3f]
        %v4366 = vld [vmem:[#allocation3 + $0x1] sm:$0xff]
        %v4367 = vld [vmem:[#allocation3 + $0x9] sm:$0x3f]
        %v4368 = vld [vmem:[#allocation3 + $0x2] sm:$0xff]
        %v4369 = vld [vmem:[#allocation3 + $0xa] sm:$0x3f]
        %v4370 = vld [vmem:[%s3602] sm:$0xff]
        %v4371 = vld [vmem:[%s3602 + $0x8] sm:$0x3f]
        %v4372 = vld [vmem:[%s3602 + $0x1] sm:$0xff]
        %v4373 = vld [vmem:[%s3602 + $0x9] sm:$0x3f]
        %v4374 = vld [vmem:[%s3602 + $0x2] sm:$0xff]
        %v4375 = vld [vmem:[%s3602 + $0xa] sm:$0x3f]
        %s4376 = scalar_lea.vmem [#allocation3], 32
        %v4377 = vld [vmem:[%s4376] sm:$0xff]
        %v4378 = vld [vmem:[%s4376 + $0x8] sm:$0x3f]
        %v4379 = vld [vmem:[%s4376 + $0x1] sm:$0xff]
        %v4380 = vld [vmem:[%s4376 + $0x9] sm:$0x3f]
        %v4381 = vld [vmem:[%s4376 + $0x2] sm:$0xff]
        %v4382 = vld [vmem:[%s4376 + $0xa] sm:$0x3f]
        %4385 = vrot.lane.b32.xlu0 %v4366, 16
        %v4386 = vpop.permute.xlu0 %4385
        %4387 = vrot.lane.b32.xlu0 %v4367, 16
        %v4388 = vpop.permute.xlu0 %4387
        %4393 = vrot.lane.b32.xlu0 %v4368, 32
        %v4394 = vpop.permute.xlu0 %4393
        %4395 = vrot.lane.b32.xlu0 %v4369, 32
        %v4396 = vpop.permute.xlu0 %4395
        %4401 = vrot.lane.b32.xlu0 %v4370, 48
        %v4402 = vpop.permute.xlu0 %4401
        %4403 = vrot.lane.b32.xlu0 %v4371, 48
        %v4404 = vpop.permute.xlu0 %4403
        %4409 = vrot.lane.b32.xlu0 %v4372, 64
        %v4410 = vpop.permute.xlu0 %4409
        %4411 = vrot.lane.b32.xlu0 %v4373, 64
        %v4412 = vpop.permute.xlu0 %4411
        %4417 = vrot.lane.b32.xlu0 %v4374, 80
        %v4418 = vpop.permute.xlu0 %4417
        %4419 = vrot.lane.b32.xlu0 %v4375, 80
        %v4420 = vpop.permute.xlu0 %4419
        %4425 = vrot.lane.b32.xlu0 %v4377, 96
        %v4426 = vpop.permute.xlu0 %4425
        %4427 = vrot.lane.b32.xlu0 %v4378, 96
        %v4428 = vpop.permute.xlu0 %4427
        %4433 = vrot.lane.b32.xlu0 %v4379, 112
        %v4434 = vpop.permute.xlu0 %4433
        %4435 = vrot.lane.b32.xlu0 %v4380, 112
        %v4436 = vpop.permute.xlu0 %4435
        %v4439 = vsel %vm3405, %v4364, %v4386
        %v4440 = vsel %vm3405, %v4365, %v4388
        %vm4441 = vcmask 261120
        %v4442 = vsel %vm4441, %v4439, %v4394
        %v4443 = vsel %vm4441, %v4440, %v4396
        %vm4444 = vcmask 392192
        %v4445 = vsel %vm4444, %v4442, %v4402
        %v4446 = vsel %vm4444, %v4443, %v4404
        %vm4447 = vcmask 523264
        %v4448 = vsel %vm4447, %v4445, %v4410
        %v4449 = vsel %vm4447, %v4446, %v4412
        %vm4450 = vcmask 654336
        %v4451 = vsel %vm4450, %v4448, %v4418
        %v4452 = vsel %vm4450, %v4449, %v4420
        %vm4453 = vcmask 785408
        %v4454 = vsel %vm4453, %v4451, %v4426
        %v4455 = vsel %vm4453, %v4452, %v4428
        %vm4456 = vcmask 916480
        %v4457 = vsel %vm4456, %v4454, %v4434
        %v4458 = vsel %vm4456, %v4455, %v4436
        %v4460 = vsel %vm3405, %v4381, 0
        %v4463 = vsel %vm3405, %v4382, 0
        %4465 = vmatprep.subr.mxu0 0.0
        %4466 = vmatpush1.msra.mxu0 %v4361
        %4467 = vmatprep.subr.mxu0 0.0
        %4468 = vmatpush1.msra.mxu0 %v4360
        %4469 = vmatprep.subr.mxu0 0.0
        %4470 = vmatpush1.msra.mxu0 %v4359
        %4471 = vmatprep.subr.mxu0 0.0
        %4472 = vmatpush1.msra.mxu0 %v4358
        %4473 = vmatprep.subr.mxu0 0.0
        %4474 = vmatpush1.msra.mxu0 %v4357
        %4475 = vmatprep.subr.mxu0 0.0
        %4476 = vmatpush1.msra.mxu0 %v4356
        %4477 = vmatprep.subr.mxu0 0.0
        %4478 = vmatpush1.msra.mxu0 %v4355
        %4479 = vmatprep.subr.mxu0 0.0
        %4480 = vmatpush1.msra.mxu0 %v4354
        %4481 = vmatprep.subr.mxu0 0.0
        %4482 = vmatpush1.msra.mxu0 %v4353
        %4483 = vmatprep.subr.mxu0 0.0
        %4484 = vmatpush1.msra.mxu0 %v4352
        %4485 = vmatprep.subr.mxu0 0.0
        %4486 = vmatpush1.msra.mxu0 %v4351
        %4487 = vmatprep.subr.mxu0 0.0
        %4488 = vmatpush1.msra.mxu0 %v4350
        %4489 = vmatprep.subr.mxu0 0.0
        %4490 = vmatpush1.msra.mxu0 %v4349
        %4491 = vmatprep.subr.mxu0 0.0
        %4492 = vmatpush1.msra.mxu0 %v4348
        %4493 = vmatprep.subr.mxu0 0.0
        %4494 = vmatpush1.msra.mxu0 %v4347
        %4495 = vmatprep.subr.mxu0 0.0
        %4496 = vmatpush1.msra.mxu0 %v4346
        %4497 = vmatprep.subr.mxu0 0.0
        %4498 = vmatpush2.msra.mxu0 0.0
        %4499 = vmatprep.subr.mxu0 0.0
        %4500 = vmatpush2.msra.mxu0 0.0
        %4501 = vmatprep.subr.mxu0 0.0
        %4502 = vmatpush2.msra.mxu0 0.0
        %4503 = vmatprep.subr.mxu0 0.0
        %4504 = vmatpush2.msra.mxu0 0.0
        %4505 = vmatprep.subr.mxu0 0.0
        %4506 = vmatpush2.msra.mxu0 0.0
        %4507 = vmatprep.subr.mxu0 0.0
        %4508 = vmatpush2.msra.mxu0 0.0
        %4509 = vmatprep.subr.mxu0 0.0
        %4510 = vmatpush2.msra.mxu0 0.0
        %4511 = vmatprep.subr.mxu0 0.0
        %4512 = vmatpush2.msra.mxu0 0.0
        %4513 = vmatprep.subr.mxu0 0.0
        %4514 = vmatpush2.msra.mxu0 0.0
        %4515 = vmatprep.subr.mxu0 0.0
        %4516 = vmatpush2.msra.mxu0 0.0
        %4517 = vmatprep.subr.mxu0 0.0
        %4518 = vmatpush2.msra.mxu0 0.0
        %4519 = vmatprep.subr.mxu0 0.0
        %4520 = vmatpush2.msra.mxu0 0.0
        %4521 = vmatprep.subr.mxu0 0.0
        %4522 = vmatpush2.msra.mxu0 0.0
        %4523 = vmatprep.subr.mxu0 0.0
        %4524 = vmatpush2.msra.mxu0 0.0
        %4525 = vmatprep.subr.mxu0 0.0
        %4526 = vmatpush2.msra.mxu0 %v4363
        %4527 = vmatprep.subr.mxu0 0.0
        %4528 = vmatpush2.msra.mxu0 %v4362
        %4529 = vmatprep.mubr.f32.mxu0 %v4460
        %4530 = vmatmul.mubr.f32.gmra.mxu0 %v4457
        %v4531 = vpop.f32.mrf.mxu0
        %v4532 = vadd.f32 0.0, %v4531
        %v4533 = vpop.f32.mrf.mxu0
        %4534 = vmatprep.mubr.f32.mxu0 %v4463
        %4535 = vmatmul.mubr.f32.gmra.mxu0 %v4458
        %v4536 = vpop.f32.mrf.mxu0
        %v4537 = vadd.f32 0.0, %v4536
        %v4538 = vpop.f32.mrf.mxu0
        %4539 = vdwg.mxu0
        %s4540 = scalar_lea.vmem [#allocation3], 48
        %v4541 = vld [vmem:[%s4540] sm:$0xff]
        %v4542 = vld [vmem:[%s4540 + $0x8] sm:$0x3f]
        %v4543 = vld [vmem:[%s4540 + $0x1] sm:$0xff]
        %v4544 = vld [vmem:[%s4540 + $0x9] sm:$0x3f]
        %v4545 = vld [vmem:[%s4540 + $0x2] sm:$0xff]
        %v4546 = vld [vmem:[%s4540 + $0xa] sm:$0x3f]
        %4547 = vrot.lane.b32.xlu0 %v4372, 16
        %v4548 = vpop.permute.xlu0 %4547
        %4549 = vrot.lane.b32.xlu0 %v4373, 16
        %v4550 = vpop.permute.xlu0 %4549
        %4553 = vrot.lane.b32.xlu0 %v4374, 32
        %v4554 = vpop.permute.xlu0 %4553
        %4555 = vrot.lane.b32.xlu0 %v4375, 32
        %v4556 = vpop.permute.xlu0 %4555
        %4559 = vrot.lane.b32.xlu0 %v4377, 48
        %v4560 = vpop.permute.xlu0 %4559
        %4561 = vrot.lane.b32.xlu0 %v4378, 48
        %v4562 = vpop.permute.xlu0 %4561
        %4565 = vrot.lane.b32.xlu0 %v4379, 64
        %v4566 = vpop.permute.xlu0 %4565
        %4567 = vrot.lane.b32.xlu0 %v4380, 64
        %v4568 = vpop.permute.xlu0 %4567
        %4571 = vrot.lane.b32.xlu0 %v4381, 80
        %v4572 = vpop.permute.xlu0 %4571
        %4573 = vrot.lane.b32.xlu0 %v4382, 80
        %v4574 = vpop.permute.xlu0 %4573
        %4579 = vrot.lane.b32.xlu0 %v4541, 96
        %v4580 = vpop.permute.xlu0 %4579
        %4581 = vrot.lane.b32.xlu0 %v4542, 96
        %v4582 = vpop.permute.xlu0 %4581
        %4587 = vrot.lane.b32.xlu0 %v4543, 112
        %v4588 = vpop.permute.xlu0 %4587
        %4589 = vrot.lane.b32.xlu0 %v4544, 112
        %v4590 = vpop.permute.xlu0 %4589
        %v4593 = vsel %vm3405, %v4370, %v4548
        %v4594 = vsel %vm3405, %v4371, %v4550
        %v4595 = vsel %vm4441, %v4593, %v4554
        %v4596 = vsel %vm4441, %v4594, %v4556
        %v4597 = vsel %vm4444, %v4595, %v4560
        %v4598 = vsel %vm4444, %v4596, %v4562
        %v4599 = vsel %vm4447, %v4597, %v4566
        %v4600 = vsel %vm4447, %v4598, %v4568
        %v4601 = vsel %vm4450, %v4599, %v4572
        %v4602 = vsel %vm4450, %v4600, %v4574
        %v4603 = vsel %vm4453, %v4601, %v4580
        %v4604 = vsel %vm4453, %v4602, %v4582
        %v4605 = vsel %vm4456, %v4603, %v4588
        %v4606 = vsel %vm4456, %v4604, %v4590
        %v4608 = vsel %vm3405, %v4545, 0
        %v4611 = vsel %vm3405, %v4546, 0
        %4613 = vmatprep.subr.mxu0 0.0
        %4614 = vmatpush1.msra.mxu0 %v4361
        %4615 = vmatprep.subr.mxu0 0.0
        %4616 = vmatpush1.msra.mxu0 %v4360
        %4617 = vmatprep.subr.mxu0 0.0
        %4618 = vmatpush1.msra.mxu0 %v4359
        %4619 = vmatprep.subr.mxu0 0.0
        %4620 = vmatpush1.msra.mxu0 %v4358
        %4621 = vmatprep.subr.mxu0 0.0
        %4622 = vmatpush1.msra.mxu0 %v4357
        %4623 = vmatprep.subr.mxu0 0.0
        %4624 = vmatpush1.msra.mxu0 %v4356
        %4625 = vmatprep.subr.mxu0 0.0
        %4626 = vmatpush1.msra.mxu0 %v4355
        %4627 = vmatprep.subr.mxu0 0.0
        %4628 = vmatpush1.msra.mxu0 %v4354
        %4629 = vmatprep.subr.mxu0 0.0
        %4630 = vmatpush1.msra.mxu0 %v4353
        %4631 = vmatprep.subr.mxu0 0.0
        %4632 = vmatpush1.msra.mxu0 %v4352
        %4633 = vmatprep.subr.mxu0 0.0
        %4634 = vmatpush1.msra.mxu0 %v4351
        %4635 = vmatprep.subr.mxu0 0.0
        %4636 = vmatpush1.msra.mxu0 %v4350
        %4637 = vmatprep.subr.mxu0 0.0
        %4638 = vmatpush1.msra.mxu0 %v4349
        %4639 = vmatprep.subr.mxu0 0.0
        %4640 = vmatpush1.msra.mxu0 %v4348
        %4641 = vmatprep.subr.mxu0 0.0
        %4642 = vmatpush1.msra.mxu0 %v4347
        %4643 = vmatprep.subr.mxu0 0.0
        %4644 = vmatpush1.msra.mxu0 %v4346
        %4645 = vmatprep.subr.mxu0 0.0
        %4646 = vmatpush2.msra.mxu0 0.0
        %4647 = vmatprep.subr.mxu0 0.0
        %4648 = vmatpush2.msra.mxu0 0.0
        %4649 = vmatprep.subr.mxu0 0.0
        %4650 = vmatpush2.msra.mxu0 0.0
        %4651 = vmatprep.subr.mxu0 0.0
        %4652 = vmatpush2.msra.mxu0 0.0
        %4653 = vmatprep.subr.mxu0 0.0
        %4654 = vmatpush2.msra.mxu0 0.0
        %4655 = vmatprep.subr.mxu0 0.0
        %4656 = vmatpush2.msra.mxu0 0.0
        %4657 = vmatprep.subr.mxu0 0.0
        %4658 = vmatpush2.msra.mxu0 0.0
        %4659 = vmatprep.subr.mxu0 0.0
        %4660 = vmatpush2.msra.mxu0 0.0
        %4661 = vmatprep.subr.mxu0 0.0
        %4662 = vmatpush2.msra.mxu0 0.0
        %4663 = vmatprep.subr.mxu0 0.0
        %4664 = vmatpush2.msra.mxu0 0.0
        %4665 = vmatprep.subr.mxu0 0.0
        %4666 = vmatpush2.msra.mxu0 0.0
        %4667 = vmatprep.subr.mxu0 0.0
        %4668 = vmatpush2.msra.mxu0 0.0
        %4669 = vmatprep.subr.mxu0 0.0
        %4670 = vmatpush2.msra.mxu0 0.0
        %4671 = vmatprep.subr.mxu0 0.0
        %4672 = vmatpush2.msra.mxu0 0.0
        %4673 = vmatprep.subr.mxu0 0.0
        %4674 = vmatpush2.msra.mxu0 %v4363
        %4675 = vmatprep.subr.mxu0 0.0
        %4676 = vmatpush2.msra.mxu0 %v4362
        %4677 = vmatprep.mubr.f32.mxu0 %v4608
        %4678 = vmatmul.mubr.f32.gmra.mxu0 %v4605
        %v4679 = vpop.f32.mrf.mxu0
        %v4680 = vadd.f32 0.0, %v4679
        %v4681 = vpop.f32.mrf.mxu0
        %4682 = vmatprep.mubr.f32.mxu0 %v4611
        %4683 = vmatmul.mubr.f32.gmra.mxu0 %v4606
        %v4684 = vpop.f32.mrf.mxu0
        %v4685 = vadd.f32 0.0, %v4684
        %v4686 = vpop.f32.mrf.mxu0
        %4687 = vdwg.mxu0
        %v4688 = vmax.f32 %v4532, %v4680
        %v4689 = vmax.f32 %v4537, %v4685
        %v4690 = vld [vmem:[%s4] sm:$0x1]
        %v4692 = vlaneseq
        %v4693 = vshrl.u32 %v4692, 7
        %v4694 = vsub.s32 0, %v4693
        %v4695 = vrot.slane %v4690, %v4694
        %v4697 = vadd.f32 %v4688, %v4695
        %v4698 = vadd.f32 %v4689, %v4695
        %4699 = vst.msk [vmem:[#allocation4] sm:$0xff] %vm4441, %v4697
        %vm4700 = vcmask 259072
        %4701 = vst.msk [vmem:[#allocation4 + $0x8] sm:$0x3f] %vm4700, %v4698
        %v4702 = vld [vmem:[%s4376] sm:$0xff]
        %v4703 = vld [vmem:[%s4376 + $0x8] sm:$0x3f]
        %v4704 = vld [vmem:[%s4376 + $0x1] sm:$0xff]
        %v4705 = vld [vmem:[%s4376 + $0x9] sm:$0x3f]
        %v4706 = vld [vmem:[%s4376 + $0x2] sm:$0xff]
        %v4707 = vld [vmem:[%s4376 + $0xa] sm:$0x3f]
        %v4708 = vld [vmem:[%s4540] sm:$0xff]
        %v4709 = vld [vmem:[%s4540 + $0x8] sm:$0x3f]
        %v4710 = vld [vmem:[%s4540 + $0x1] sm:$0xff]
        %v4711 = vld [vmem:[%s4540 + $0x9] sm:$0x3f]
        %v4712 = vld [vmem:[%s4540 + $0x2] sm:$0xff]
        %v4713 = vld [vmem:[%s4540 + $0xa] sm:$0x3f]
        %s4714 = scalar_lea.vmem [#allocation3], 64
        %v4715 = vld [vmem:[%s4714] sm:$0xff]
        %v4716 = vld [vmem:[%s4714 + $0x8] sm:$0x3f]
        %v4717 = vld [vmem:[%s4714 + $0x1] sm:$0xff]
        %v4718 = vld [vmem:[%s4714 + $0x9] sm:$0x3f]
        %v4719 = vld [vmem:[%s4714 + $0x2] sm:$0xff]
        %v4720 = vld [vmem:[%s4714 + $0xa] sm:$0x3f]
        %4723 = vrot.lane.b32.xlu0 %v4704, 16
        %v4724 = vpop.permute.xlu0 %4723
        %4725 = vrot.lane.b32.xlu0 %v4705, 16
        %v4726 = vpop.permute.xlu0 %4725
        %4731 = vrot.lane.b32.xlu0 %v4706, 32
        %v4732 = vpop.permute.xlu0 %4731
        %4733 = vrot.lane.b32.xlu0 %v4707, 32
        %v4734 = vpop.permute.xlu0 %4733
        %4739 = vrot.lane.b32.xlu0 %v4708, 48
        %v4740 = vpop.permute.xlu0 %4739
        %4741 = vrot.lane.b32.xlu0 %v4709, 48
        %v4742 = vpop.permute.xlu0 %4741
        %4747 = vrot.lane.b32.xlu0 %v4710, 64
        %v4748 = vpop.permute.xlu0 %4747
        %4749 = vrot.lane.b32.xlu0 %v4711, 64
        %v4750 = vpop.permute.xlu0 %4749
        %4755 = vrot.lane.b32.xlu0 %v4712, 80
        %v4756 = vpop.permute.xlu0 %4755
        %4757 = vrot.lane.b32.xlu0 %v4713, 80
        %v4758 = vpop.permute.xlu0 %4757
        %4763 = vrot.lane.b32.xlu0 %v4715, 96
        %v4764 = vpop.permute.xlu0 %4763
        %4765 = vrot.lane.b32.xlu0 %v4716, 96
        %v4766 = vpop.permute.xlu0 %4765
        %4771 = vrot.lane.b32.xlu0 %v4717, 112
        %v4772 = vpop.permute.xlu0 %4771
        %4773 = vrot.lane.b32.xlu0 %v4718, 112
        %v4774 = vpop.permute.xlu0 %4773
        %v4777 = vsel %vm3405, %v4702, %v4724
        %v4778 = vsel %vm3405, %v4703, %v4726
        %v4779 = vsel %vm4441, %v4777, %v4732
        %v4780 = vsel %vm4441, %v4778, %v4734
        %v4781 = vsel %vm4444, %v4779, %v4740
        %v4782 = vsel %vm4444, %v4780, %v4742
        %v4783 = vsel %vm4447, %v4781, %v4748
        %v4784 = vsel %vm4447, %v4782, %v4750
        %v4785 = vsel %vm4450, %v4783, %v4756
        %v4786 = vsel %vm4450, %v4784, %v4758
        %v4787 = vsel %vm4453, %v4785, %v4764
        %v4788 = vsel %vm4453, %v4786, %v4766
        %v4789 = vsel %vm4456, %v4787, %v4772
        %v4790 = vsel %vm4456, %v4788, %v4774
        %v4792 = vsel %vm3405, %v4719, 0
        %v4795 = vsel %vm3405, %v4720, 0
        %4797 = vmatprep.subr.mxu0 0.0
        %4798 = vmatpush1.msra.mxu0 %v4361
        %4799 = vmatprep.subr.mxu0 0.0
        %4800 = vmatpush1.msra.mxu0 %v4360
        %4801 = vmatprep.subr.mxu0 0.0
        %4802 = vmatpush1.msra.mxu0 %v4359
        %4803 = vmatprep.subr.mxu0 0.0
        %4804 = vmatpush1.msra.mxu0 %v4358
        %4805 = vmatprep.subr.mxu0 0.0
        %4806 = vmatpush1.msra.mxu0 %v4357
        %4807 = vmatprep.subr.mxu0 0.0
        %4808 = vmatpush1.msra.mxu0 %v4356
        %4809 = vmatprep.subr.mxu0 0.0
        %4810 = vmatpush1.msra.mxu0 %v4355
        %4811 = vmatprep.subr.mxu0 0.0
        %4812 = vmatpush1.msra.mxu0 %v4354
        %4813 = vmatprep.subr.mxu0 0.0
        %4814 = vmatpush1.msra.mxu0 %v4353
        %4815 = vmatprep.subr.mxu0 0.0
        %4816 = vmatpush1.msra.mxu0 %v4352
        %4817 = vmatprep.subr.mxu0 0.0
        %4818 = vmatpush1.msra.mxu0 %v4351
        %4819 = vmatprep.subr.mxu0 0.0
        %4820 = vmatpush1.msra.mxu0 %v4350
        %4821 = vmatprep.subr.mxu0 0.0
        %4822 = vmatpush1.msra.mxu0 %v4349
        %4823 = vmatprep.subr.mxu0 0.0
        %4824 = vmatpush1.msra.mxu0 %v4348
        %4825 = vmatprep.subr.mxu0 0.0
        %4826 = vmatpush1.msra.mxu0 %v4347
        %4827 = vmatprep.subr.mxu0 0.0
        %4828 = vmatpush1.msra.mxu0 %v4346
        %4829 = vmatprep.subr.mxu0 0.0
        %4830 = vmatpush2.msra.mxu0 0.0
        %4831 = vmatprep.subr.mxu0 0.0
        %4832 = vmatpush2.msra.mxu0 0.0
        %4833 = vmatprep.subr.mxu0 0.0
        %4834 = vmatpush2.msra.mxu0 0.0
        %4835 = vmatprep.subr.mxu0 0.0
        %4836 = vmatpush2.msra.mxu0 0.0
        %4837 = vmatprep.subr.mxu0 0.0
        %4838 = vmatpush2.msra.mxu0 0.0
        %4839 = vmatprep.subr.mxu0 0.0
        %4840 = vmatpush2.msra.mxu0 0.0
        %4841 = vmatprep.subr.mxu0 0.0
        %4842 = vmatpush2.msra.mxu0 0.0
        %4843 = vmatprep.subr.mxu0 0.0
        %4844 = vmatpush2.msra.mxu0 0.0
        %4845 = vmatprep.subr.mxu0 0.0
        %4846 = vmatpush2.msra.mxu0 0.0
        %4847 = vmatprep.subr.mxu0 0.0
        %4848 = vmatpush2.msra.mxu0 0.0
        %4849 = vmatprep.subr.mxu0 0.0
        %4850 = vmatpush2.msra.mxu0 0.0
        %4851 = vmatprep.subr.mxu0 0.0
        %4852 = vmatpush2.msra.mxu0 0.0
        %4853 = vmatprep.subr.mxu0 0.0
        %4854 = vmatpush2.msra.mxu0 0.0
        %4855 = vmatprep.subr.mxu0 0.0
        %4856 = vmatpush2.msra.mxu0 0.0
        %4857 = vmatprep.subr.mxu0 0.0
        %4858 = vmatpush2.msra.mxu0 %v4363
        %4859 = vmatprep.subr.mxu0 0.0
        %4860 = vmatpush2.msra.mxu0 %v4362
        %4861 = vmatprep.mubr.f32.mxu0 %v4792
        %4862 = vmatmul.mubr.f32.gmra.mxu0 %v4789
        %v4863 = vpop.f32.mrf.mxu0
        %v4864 = vadd.f32 0.0, %v4863
        %v4865 = vpop.f32.mrf.mxu0
        %4866 = vmatprep.mubr.f32.mxu0 %v4795
        %4867 = vmatmul.mubr.f32.gmra.mxu0 %v4790
        %v4868 = vpop.f32.mrf.mxu0
        %v4869 = vadd.f32 0.0, %v4868
        %v4870 = vpop.f32.mrf.mxu0
        %4871 = vdwg.mxu0
        %s4872 = scalar_lea.vmem [#allocation3], 80
        %v4873 = vld [vmem:[%s4872] sm:$0xff]
        %v4874 = vld [vmem:[%s4872 + $0x8] sm:$0x3f]
        %v4875 = vld [vmem:[%s4872 + $0x1] sm:$0xff]
        %v4876 = vld [vmem:[%s4872 + $0x9] sm:$0x3f]
        %v4877 = vld [vmem:[%s4872 + $0x2] sm:$0xff]
        %v4878 = vld [vmem:[%s4872 + $0xa] sm:$0x3f]
        %4879 = vrot.lane.b32.xlu0 %v4710, 16
        %v4880 = vpop.permute.xlu0 %4879
        %4881 = vrot.lane.b32.xlu0 %v4711, 16
        %v4882 = vpop.permute.xlu0 %4881
        %4885 = vrot.lane.b32.xlu0 %v4712, 32
        %v4886 = vpop.permute.xlu0 %4885
        %4887 = vrot.lane.b32.xlu0 %v4713, 32
        %v4888 = vpop.permute.xlu0 %4887
        %4891 = vrot.lane.b32.xlu0 %v4715, 48
        %v4892 = vpop.permute.xlu0 %4891
        %4893 = vrot.lane.b32.xlu0 %v4716, 48
        %v4894 = vpop.permute.xlu0 %4893
        %4897 = vrot.lane.b32.xlu0 %v4717, 64
        %v4898 = vpop.permute.xlu0 %4897
        %4899 = vrot.lane.b32.xlu0 %v4718, 64
        %v4900 = vpop.permute.xlu0 %4899
        %4903 = vrot.lane.b32.xlu0 %v4719, 80
        %v4904 = vpop.permute.xlu0 %4903
        %4905 = vrot.lane.b32.xlu0 %v4720, 80
        %v4906 = vpop.permute.xlu0 %4905
        %4911 = vrot.lane.b32.xlu0 %v4873, 96
        %v4912 = vpop.permute.xlu0 %4911
        %4913 = vrot.lane.b32.xlu0 %v4874, 96
        %v4914 = vpop.permute.xlu0 %4913
        %4919 = vrot.lane.b32.xlu0 %v4875, 112
        %v4920 = vpop.permute.xlu0 %4919
        %4921 = vrot.lane.b32.xlu0 %v4876, 112
        %v4922 = vpop.permute.xlu0 %4921
        %v4925 = vsel %vm3405, %v4708, %v4880
        %v4926 = vsel %vm3405, %v4709, %v4882
        %v4927 = vsel %vm4441, %v4925, %v4886
        %v4928 = vsel %vm4441, %v4926, %v4888
        %v4929 = vsel %vm4444, %v4927, %v4892
        %v4930 = vsel %vm4444, %v4928, %v4894
        %v4931 = vsel %vm4447, %v4929, %v4898
        %v4932 = vsel %vm4447, %v4930, %v4900
        %v4933 = vsel %vm4450, %v4931, %v4904
        %v4934 = vsel %vm4450, %v4932, %v4906
        %v4935 = vsel %vm4453, %v4933, %v4912
        %v4936 = vsel %vm4453, %v4934, %v4914
        %v4937 = vsel %vm4456, %v4935, %v4920
        %v4938 = vsel %vm4456, %v4936, %v4922
        %v4940 = vsel %vm3405, %v4877, 0
        %v4943 = vsel %vm3405, %v4878, 0
        %4945 = vmatprep.subr.mxu0 0.0
        %4946 = vmatpush1.msra.mxu0 %v4361
        %4947 = vmatprep.subr.mxu0 0.0
        %4948 = vmatpush1.msra.mxu0 %v4360
        %4949 = vmatprep.subr.mxu0 0.0
        %4950 = vmatpush1.msra.mxu0 %v4359
        %4951 = vmatprep.subr.mxu0 0.0
        %4952 = vmatpush1.msra.mxu0 %v4358
        %4953 = vmatprep.subr.mxu0 0.0
        %4954 = vmatpush1.msra.mxu0 %v4357
        %4955 = vmatprep.subr.mxu0 0.0
        %4956 = vmatpush1.msra.mxu0 %v4356
        %4957 = vmatprep.subr.mxu0 0.0
        %4958 = vmatpush1.msra.mxu0 %v4355
        %4959 = vmatprep.subr.mxu0 0.0
        %4960 = vmatpush1.msra.mxu0 %v4354
        %4961 = vmatprep.subr.mxu0 0.0
        %4962 = vmatpush1.msra.mxu0 %v4353
        %4963 = vmatprep.subr.mxu0 0.0
        %4964 = vmatpush1.msra.mxu0 %v4352
        %4965 = vmatprep.subr.mxu0 0.0
        %4966 = vmatpush1.msra.mxu0 %v4351
        %4967 = vmatprep.subr.mxu0 0.0
        %4968 = vmatpush1.msra.mxu0 %v4350
        %4969 = vmatprep.subr.mxu0 0.0
        %4970 = vmatpush1.msra.mxu0 %v4349
        %4971 = vmatprep.subr.mxu0 0.0
        %4972 = vmatpush1.msra.mxu0 %v4348
        %4973 = vmatprep.subr.mxu0 0.0
        %4974 = vmatpush1.msra.mxu0 %v4347
        %4975 = vmatprep.subr.mxu0 0.0
        %4976 = vmatpush1.msra.mxu0 %v4346
        %4977 = vmatprep.subr.mxu0 0.0
        %4978 = vmatpush2.msra.mxu0 0.0
        %4979 = vmatprep.subr.mxu0 0.0
        %4980 = vmatpush2.msra.mxu0 0.0
        %4981 = vmatprep.subr.mxu0 0.0
        %4982 = vmatpush2.msra.mxu0 0.0
        %4983 = vmatprep.subr.mxu0 0.0
        %4984 = vmatpush2.msra.mxu0 0.0
        %4985 = vmatprep.subr.mxu0 0.0
        %4986 = vmatpush2.msra.mxu0 0.0
        %4987 = vmatprep.subr.mxu0 0.0
        %4988 = vmatpush2.msra.mxu0 0.0
        %4989 = vmatprep.subr.mxu0 0.0
        %4990 = vmatpush2.msra.mxu0 0.0
        %4991 = vmatprep.subr.mxu0 0.0
        %4992 = vmatpush2.msra.mxu0 0.0
        %4993 = vmatprep.subr.mxu0 0.0
        %4994 = vmatpush2.msra.mxu0 0.0
        %4995 = vmatprep.subr.mxu0 0.0
        %4996 = vmatpush2.msra.mxu0 0.0
        %4997 = vmatprep.subr.mxu0 0.0
        %4998 = vmatpush2.msra.mxu0 0.0
        %4999 = vmatprep.subr.mxu0 0.0
        %5000 = vmatpush2.msra.mxu0 0.0
        %5001 = vmatprep.subr.mxu0 0.0
        %5002 = vmatpush2.msra.mxu0 0.0
        %5003 = vmatprep.subr.mxu0 0.0
        %5004 = vmatpush2.msra.mxu0 0.0
        %5005 = vmatprep.subr.mxu0 0.0
        %5006 = vmatpush2.msra.mxu0 %v4363
        %5007 = vmatprep.subr.mxu0 0.0
        %5008 = vmatpush2.msra.mxu0 %v4362
        %5009 = vmatprep.mubr.f32.mxu0 %v4940
        %5010 = vmatmul.mubr.f32.gmra.mxu0 %v4937
        %v5011 = vpop.f32.mrf.mxu0
        %v5012 = vadd.f32 0.0, %v5011
        %v5013 = vpop.f32.mrf.mxu0
        %5014 = vmatprep.mubr.f32.mxu0 %v4943
        %5015 = vmatmul.mubr.f32.gmra.mxu0 %v4938
        %v5016 = vpop.f32.mrf.mxu0
        %v5017 = vadd.f32 0.0, %v5016
        %v5018 = vpop.f32.mrf.mxu0
        %5019 = vdwg.mxu0
        %v5020 = vmax.f32 %v4864, %v5012
        %v5021 = vmax.f32 %v4869, %v5017
        %v5022 = vld [vmem:[%s4] sm:$0x1]
        %v5024 = vlaneseq
        %v5025 = vshrl.u32 %v5024, 7
        %v5026 = vsub.s32 0, %v5025
        %v5027 = vrot.slane %v5022, %v5026
        %v5029 = vadd.f32 %v5020, %v5027
        %v5030 = vadd.f32 %v5021, %v5027
        %s5031 = scalar_lea.vmem [#allocation4], 16
        %5032 = vst.msk [vmem:[%s5031] sm:$0xff] %vm4441, %v5029
        %5033 = vst.msk [vmem:[%s5031 + $0x8] sm:$0x3f] %vm4700, %v5030
        %v5034 = vld [vmem:[%s4714] sm:$0xff]
        %v5035 = vld [vmem:[%s4714 + $0x8] sm:$0x3f]
        %v5036 = vld [vmem:[%s4714 + $0x1] sm:$0xff]
        %v5037 = vld [vmem:[%s4714 + $0x9] sm:$0x3f]
        %v5038 = vld [vmem:[%s4714 + $0x2] sm:$0xff]
        %v5039 = vld [vmem:[%s4714 + $0xa] sm:$0x3f]
        %v5040 = vld [vmem:[%s4872] sm:$0xff]
        %v5041 = vld [vmem:[%s4872 + $0x8] sm:$0x3f]
        %v5042 = vld [vmem:[%s4872 + $0x1] sm:$0xff]
        %v5043 = vld [vmem:[%s4872 + $0x9] sm:$0x3f]
        %v5044 = vld [vmem:[%s4872 + $0x2] sm:$0xff]
        %v5045 = vld [vmem:[%s4872 + $0xa] sm:$0x3f]
        %s5046 = scalar_lea.vmem [#allocation3], 96
        %v5047 = vld [vmem:[%s5046] sm:$0xff]
        %v5048 = vld [vmem:[%s5046 + $0x8] sm:$0x3f]
        %v5049 = vld [vmem:[%s5046 + $0x1] sm:$0xff]
        %v5050 = vld [vmem:[%s5046 + $0x9] sm:$0x3f]
        %v5051 = vld [vmem:[%s5046 + $0x2] sm:$0xff]
        %v5052 = vld [vmem:[%s5046 + $0xa] sm:$0x3f]
        %5055 = vrot.lane.b32.xlu0 %v5036, 16
        %v5056 = vpop.permute.xlu0 %5055
        %5057 = vrot.lane.b32.xlu0 %v5037, 16
        %v5058 = vpop.permute.xlu0 %5057
        %5063 = vrot.lane.b32.xlu0 %v5038, 32
        %v5064 = vpop.permute.xlu0 %5063
        %5065 = vrot.lane.b32.xlu0 %v5039, 32
        %v5066 = vpop.permute.xlu0 %5065
        %5071 = vrot.lane.b32.xlu0 %v5040, 48
        %v5072 = vpop.permute.xlu0 %5071
        %5073 = vrot.lane.b32.xlu0 %v5041, 48
        %v5074 = vpop.permute.xlu0 %5073
        %5079 = vrot.lane.b32.xlu0 %v5042, 64
        %v5080 = vpop.permute.xlu0 %5079
        %5081 = vrot.lane.b32.xlu0 %v5043, 64
        %v5082 = vpop.permute.xlu0 %5081
        %5087 = vrot.lane.b32.xlu0 %v5044, 80
        %v5088 = vpop.permute.xlu0 %5087
        %5089 = vrot.lane.b32.xlu0 %v5045, 80
        %v5090 = vpop.permute.xlu0 %5089
        %5095 = vrot.lane.b32.xlu0 %v5047, 96
        %v5096 = vpop.permute.xlu0 %5095
        %5097 = vrot.lane.b32.xlu0 %v5048, 96
        %v5098 = vpop.permute.xlu0 %5097
        %5103 = vrot.lane.b32.xlu0 %v5049, 112
        %v5104 = vpop.permute.xlu0 %5103
        %5105 = vrot.lane.b32.xlu0 %v5050, 112
        %v5106 = vpop.permute.xlu0 %5105
        %v5109 = vsel %vm3405, %v5034, %v5056
        %v5110 = vsel %vm3405, %v5035, %v5058
        %v5111 = vsel %vm4441, %v5109, %v5064
        %v5112 = vsel %vm4441, %v5110, %v5066
        %v5113 = vsel %vm4444, %v5111, %v5072
        %v5114 = vsel %vm4444, %v5112, %v5074
        %v5115 = vsel %vm4447, %v5113, %v5080
        %v5116 = vsel %vm4447, %v5114, %v5082
        %v5117 = vsel %vm4450, %v5115, %v5088
        %v5118 = vsel %vm4450, %v5116, %v5090
        %v5119 = vsel %vm4453, %v5117, %v5096
        %v5120 = vsel %vm4453, %v5118, %v5098
        %v5121 = vsel %vm4456, %v5119, %v5104
        %v5122 = vsel %vm4456, %v5120, %v5106
        %v5124 = vsel %vm3405, %v5051, 0
        %v5127 = vsel %vm3405, %v5052, 0
        %5129 = vmatprep.subr.mxu0 0.0
        %5130 = vmatpush1.msra.mxu0 %v4361
        %5131 = vmatprep.subr.mxu0 0.0
        %5132 = vmatpush1.msra.mxu0 %v4360
        %5133 = vmatprep.subr.mxu0 0.0
        %5134 = vmatpush1.msra.mxu0 %v4359
        %5135 = vmatprep.subr.mxu0 0.0
        %5136 = vmatpush1.msra.mxu0 %v4358
        %5137 = vmatprep.subr.mxu0 0.0
        %5138 = vmatpush1.msra.mxu0 %v4357
        %5139 = vmatprep.subr.mxu0 0.0
        %5140 = vmatpush1.msra.mxu0 %v4356
        %5141 = vmatprep.subr.mxu0 0.0
        %5142 = vmatpush1.msra.mxu0 %v4355
        %5143 = vmatprep.subr.mxu0 0.0
        %5144 = vmatpush1.msra.mxu0 %v4354
        %5145 = vmatprep.subr.mxu0 0.0
        %5146 = vmatpush1.msra.mxu0 %v4353
        %5147 = vmatprep.subr.mxu0 0.0
        %5148 = vmatpush1.msra.mxu0 %v4352
        %5149 = vmatprep.subr.mxu0 0.0
        %5150 = vmatpush1.msra.mxu0 %v4351
        %5151 = vmatprep.subr.mxu0 0.0
        %5152 = vmatpush1.msra.mxu0 %v4350
        %5153 = vmatprep.subr.mxu0 0.0
        %5154 = vmatpush1.msra.mxu0 %v4349
        %5155 = vmatprep.subr.mxu0 0.0
        %5156 = vmatpush1.msra.mxu0 %v4348
        %5157 = vmatprep.subr.mxu0 0.0
        %5158 = vmatpush1.msra.mxu0 %v4347
        %5159 = vmatprep.subr.mxu0 0.0
        %5160 = vmatpush1.msra.mxu0 %v4346
        %5161 = vmatprep.subr.mxu0 0.0
        %5162 = vmatpush2.msra.mxu0 0.0
        %5163 = vmatprep.subr.mxu0 0.0
        %5164 = vmatpush2.msra.mxu0 0.0
        %5165 = vmatprep.subr.mxu0 0.0
        %5166 = vmatpush2.msra.mxu0 0.0
        %5167 = vmatprep.subr.mxu0 0.0
        %5168 = vmatpush2.msra.mxu0 0.0
        %5169 = vmatprep.subr.mxu0 0.0
        %5170 = vmatpush2.msra.mxu0 0.0
        %5171 = vmatprep.subr.mxu0 0.0
        %5172 = vmatpush2.msra.mxu0 0.0
        %5173 = vmatprep.subr.mxu0 0.0
        %5174 = vmatpush2.msra.mxu0 0.0
        %5175 = vmatprep.subr.mxu0 0.0
        %5176 = vmatpush2.msra.mxu0 0.0
        %5177 = vmatprep.subr.mxu0 0.0
        %5178 = vmatpush2.msra.mxu0 0.0
        %5179 = vmatprep.subr.mxu0 0.0
        %5180 = vmatpush2.msra.mxu0 0.0
        %5181 = vmatprep.subr.mxu0 0.0
        %5182 = vmatpush2.msra.mxu0 0.0
        %5183 = vmatprep.subr.mxu0 0.0
        %5184 = vmatpush2.msra.mxu0 0.0
        %5185 = vmatprep.subr.mxu0 0.0
        %5186 = vmatpush2.msra.mxu0 0.0
        %5187 = vmatprep.subr.mxu0 0.0
        %5188 = vmatpush2.msra.mxu0 0.0
        %5189 = vmatprep.subr.mxu0 0.0
        %5190 = vmatpush2.msra.mxu0 %v4363
        %5191 = vmatprep.subr.mxu0 0.0
        %5192 = vmatpush2.msra.mxu0 %v4362
        %5193 = vmatprep.mubr.f32.mxu0 %v5124
        %5194 = vmatmul.mubr.f32.gmra.mxu0 %v5121
        %v5195 = vpop.f32.mrf.mxu0
        %v5196 = vadd.f32 0.0, %v5195
        %v5197 = vpop.f32.mrf.mxu0
        %5198 = vmatprep.mubr.f32.mxu0 %v5127
        %5199 = vmatmul.mubr.f32.gmra.mxu0 %v5122
        %v5200 = vpop.f32.mrf.mxu0
        %v5201 = vadd.f32 0.0, %v5200
        %v5202 = vpop.f32.mrf.mxu0
        %5203 = vdwg.mxu0
        %s5204 = scalar_lea.vmem [#allocation3], 112
        %v5205 = vld [vmem:[%s5204] sm:$0xff]
        %v5206 = vld [vmem:[%s5204 + $0x8] sm:$0x3f]
        %v5207 = vld [vmem:[%s5204 + $0x1] sm:$0xff]
        %v5208 = vld [vmem:[%s5204 + $0x9] sm:$0x3f]
        %v5209 = vld [vmem:[%s5204 + $0x2] sm:$0xff]
        %v5210 = vld [vmem:[%s5204 + $0xa] sm:$0x3f]
        %5211 = vrot.lane.b32.xlu0 %v5042, 16
        %v5212 = vpop.permute.xlu0 %5211
        %5213 = vrot.lane.b32.xlu0 %v5043, 16
        %v5214 = vpop.permute.xlu0 %5213
        %5217 = vrot.lane.b32.xlu0 %v5044, 32
        %v5218 = vpop.permute.xlu0 %5217
        %5219 = vrot.lane.b32.xlu0 %v5045, 32
        %v5220 = vpop.permute.xlu0 %5219
        %5223 = vrot.lane.b32.xlu0 %v5047, 48
        %v5224 = vpop.permute.xlu0 %5223
        %5225 = vrot.lane.b32.xlu0 %v5048, 48
        %v5226 = vpop.permute.xlu0 %5225
        %5229 = vrot.lane.b32.xlu0 %v5049, 64
        %v5230 = vpop.permute.xlu0 %5229
        %5231 = vrot.lane.b32.xlu0 %v5050, 64
        %v5232 = vpop.permute.xlu0 %5231
        %5235 = vrot.lane.b32.xlu0 %v5051, 80
        %v5236 = vpop.permute.xlu0 %5235
        %5237 = vrot.lane.b32.xlu0 %v5052, 80
        %v5238 = vpop.permute.xlu0 %5237
        %5243 = vrot.lane.b32.xlu0 %v5205, 96
        %v5244 = vpop.permute.xlu0 %5243
        %5245 = vrot.lane.b32.xlu0 %v5206, 96
        %v5246 = vpop.permute.xlu0 %5245
        %5251 = vrot.lane.b32.xlu0 %v5207, 112
        %v5252 = vpop.permute.xlu0 %5251
        %5253 = vrot.lane.b32.xlu0 %v5208, 112
        %v5254 = vpop.permute.xlu0 %5253
        %v5257 = vsel %vm3405, %v5040, %v5212
        %v5258 = vsel %vm3405, %v5041, %v5214
        %v5259 = vsel %vm4441, %v5257, %v5218
        %v5260 = vsel %vm4441, %v5258, %v5220
        %v5261 = vsel %vm4444, %v5259, %v5224
        %v5262 = vsel %vm4444, %v5260, %v5226
        %v5263 = vsel %vm4447, %v5261, %v5230
        %v5264 = vsel %vm4447, %v5262, %v5232
        %v5265 = vsel %vm4450, %v5263, %v5236
        %v5266 = vsel %vm4450, %v5264, %v5238
        %v5267 = vsel %vm4453, %v5265, %v5244
        %v5268 = vsel %vm4453, %v5266, %v5246
        %v5269 = vsel %vm4456, %v5267, %v5252
        %v5270 = vsel %vm4456, %v5268, %v5254
        %v5272 = vsel %vm3405, %v5209, 0
        %v5275 = vsel %vm3405, %v5210, 0
        %5277 = vmatprep.subr.mxu0 0.0
        %5278 = vmatpush1.msra.mxu0 %v4361
        %5279 = vmatprep.subr.mxu0 0.0
        %5280 = vmatpush1.msra.mxu0 %v4360
        %5281 = vmatprep.subr.mxu0 0.0
        %5282 = vmatpush1.msra.mxu0 %v4359
        %5283 = vmatprep.subr.mxu0 0.0
        %5284 = vmatpush1.msra.mxu0 %v4358
        %5285 = vmatprep.subr.mxu0 0.0
        %5286 = vmatpush1.msra.mxu0 %v4357
        %5287 = vmatprep.subr.mxu0 0.0
        %5288 = vmatpush1.msra.mxu0 %v4356
        %5289 = vmatprep.subr.mxu0 0.0
        %5290 = vmatpush1.msra.mxu0 %v4355
        %5291 = vmatprep.subr.mxu0 0.0
        %5292 = vmatpush1.msra.mxu0 %v4354
        %5293 = vmatprep.subr.mxu0 0.0
        %5294 = vmatpush1.msra.mxu0 %v4353
        %5295 = vmatprep.subr.mxu0 0.0
        %5296 = vmatpush1.msra.mxu0 %v4352
        %5297 = vmatprep.subr.mxu0 0.0
        %5298 = vmatpush1.msra.mxu0 %v4351
        %5299 = vmatprep.subr.mxu0 0.0
        %5300 = vmatpush1.msra.mxu0 %v4350
        %5301 = vmatprep.subr.mxu0 0.0
        %5302 = vmatpush1.msra.mxu0 %v4349
        %5303 = vmatprep.subr.mxu0 0.0
        %5304 = vmatpush1.msra.mxu0 %v4348
        %5305 = vmatprep.subr.mxu0 0.0
        %5306 = vmatpush1.msra.mxu0 %v4347
        %5307 = vmatprep.subr.mxu0 0.0
        %5308 = vmatpush1.msra.mxu0 %v4346
        %5309 = vmatprep.subr.mxu0 0.0
        %5310 = vmatpush2.msra.mxu0 0.0
        %5311 = vmatprep.subr.mxu0 0.0
        %5312 = vmatpush2.msra.mxu0 0.0
        %5313 = vmatprep.subr.mxu0 0.0
        %5314 = vmatpush2.msra.mxu0 0.0
        %5315 = vmatprep.subr.mxu0 0.0
        %5316 = vmatpush2.msra.mxu0 0.0
        %5317 = vmatprep.subr.mxu0 0.0
        %5318 = vmatpush2.msra.mxu0 0.0
        %5319 = vmatprep.subr.mxu0 0.0
        %5320 = vmatpush2.msra.mxu0 0.0
        %5321 = vmatprep.subr.mxu0 0.0
        %5322 = vmatpush2.msra.mxu0 0.0
        %5323 = vmatprep.subr.mxu0 0.0
        %5324 = vmatpush2.msra.mxu0 0.0
        %5325 = vmatprep.subr.mxu0 0.0
        %5326 = vmatpush2.msra.mxu0 0.0
        %5327 = vmatprep.subr.mxu0 0.0
        %5328 = vmatpush2.msra.mxu0 0.0
        %5329 = vmatprep.subr.mxu0 0.0
        %5330 = vmatpush2.msra.mxu0 0.0
        %5331 = vmatprep.subr.mxu0 0.0
        %5332 = vmatpush2.msra.mxu0 0.0
        %5333 = vmatprep.subr.mxu0 0.0
        %5334 = vmatpush2.msra.mxu0 0.0
        %5335 = vmatprep.subr.mxu0 0.0
        %5336 = vmatpush2.msra.mxu0 0.0
        %5337 = vmatprep.subr.mxu0 0.0
        %5338 = vmatpush2.msra.mxu0 %v4363
        %5339 = vmatprep.subr.mxu0 0.0
        %5340 = vmatpush2.msra.mxu0 %v4362
        %5341 = vmatprep.mubr.f32.mxu0 %v5272
        %5342 = vmatmul.mubr.f32.gmra.mxu0 %v5269
        %v5343 = vpop.f32.mrf.mxu0
        %v5344 = vadd.f32 0.0, %v5343
        %v5345 = vpop.f32.mrf.mxu0
        %5346 = vmatprep.mubr.f32.mxu0 %v5275
        %5347 = vmatmul.mubr.f32.gmra.mxu0 %v5270
        %v5348 = vpop.f32.mrf.mxu0
        %v5349 = vadd.f32 0.0, %v5348
        %v5350 = vpop.f32.mrf.mxu0
        %5351 = vdwg.mxu0
        %v5352 = vmax.f32 %v5196, %v5344
        %v5353 = vmax.f32 %v5201, %v5349
        %v5354 = vld [vmem:[%s4] sm:$0x1]
        %v5356 = vlaneseq
        %v5357 = vshrl.u32 %v5356, 7
        %v5358 = vsub.s32 0, %v5357
        %v5359 = vrot.slane %v5354, %v5358
        %v5361 = vadd.f32 %v5352, %v5359
        %v5362 = vadd.f32 %v5353, %v5359
        %s5363 = scalar_lea.vmem [#allocation4], 32
        %5364 = vst.msk [vmem:[%s5363] sm:$0xff] %vm4441, %v5361
        %5365 = vst.msk [vmem:[%s5363 + $0x8] sm:$0x3f] %vm4700, %v5362
        %v5366 = vld [vmem:[%s5046] sm:$0xff]
        %v5367 = vld [vmem:[%s5046 + $0x8] sm:$0x3f]
        %v5368 = vld [vmem:[%s5046 + $0x1] sm:$0xff]
        %v5369 = vld [vmem:[%s5046 + $0x9] sm:$0x3f]
        %v5370 = vld [vmem:[%s5046 + $0x2] sm:$0xff]
        %v5371 = vld [vmem:[%s5046 + $0xa] sm:$0x3f]
        %v5372 = vld [vmem:[%s5204] sm:$0xff]
        %v5373 = vld [vmem:[%s5204 + $0x8] sm:$0x3f]
        %v5374 = vld [vmem:[%s5204 + $0x1] sm:$0xff]
        %v5375 = vld [vmem:[%s5204 + $0x9] sm:$0x3f]
        %v5376 = vld [vmem:[%s5204 + $0x2] sm:$0xff]
        %v5377 = vld [vmem:[%s5204 + $0xa] sm:$0x3f]
        %s5378 = scalar_lea.vmem [#allocation3], 128
        %v5379 = vld [vmem:[%s5378] sm:$0xff]
        %v5380 = vld [vmem:[%s5378 + $0x8] sm:$0x3f]
        %v5381 = vld [vmem:[%s5378 + $0x1] sm:$0xff]
        %v5382 = vld [vmem:[%s5378 + $0x9] sm:$0x3f]
        %v5383 = vld [vmem:[%s5378 + $0x2] sm:$0xff]
        %v5384 = vld [vmem:[%s5378 + $0xa] sm:$0x3f]
        %5387 = vrot.lane.b32.xlu0 %v5368, 16
        %v5388 = vpop.permute.xlu0 %5387
        %5389 = vrot.lane.b32.xlu0 %v5369, 16
        %v5390 = vpop.permute.xlu0 %5389
        %5395 = vrot.lane.b32.xlu0 %v5370, 32
        %v5396 = vpop.permute.xlu0 %5395
        %5397 = vrot.lane.b32.xlu0 %v5371, 32
        %v5398 = vpop.permute.xlu0 %5397
        %5403 = vrot.lane.b32.xlu0 %v5372, 48
        %v5404 = vpop.permute.xlu0 %5403
        %5405 = vrot.lane.b32.xlu0 %v5373, 48
        %v5406 = vpop.permute.xlu0 %5405
        %5411 = vrot.lane.b32.xlu0 %v5374, 64
        %v5412 = vpop.permute.xlu0 %5411
        %5413 = vrot.lane.b32.xlu0 %v5375, 64
        %v5414 = vpop.permute.xlu0 %5413
        %5419 = vrot.lane.b32.xlu0 %v5376, 80
        %v5420 = vpop.permute.xlu0 %5419
        %5421 = vrot.lane.b32.xlu0 %v5377, 80
        %v5422 = vpop.permute.xlu0 %5421
        %5427 = vrot.lane.b32.xlu0 %v5379, 96
        %v5428 = vpop.permute.xlu0 %5427
        %5429 = vrot.lane.b32.xlu0 %v5380, 96
        %v5430 = vpop.permute.xlu0 %5429
        %5435 = vrot.lane.b32.xlu0 %v5381, 112
        %v5436 = vpop.permute.xlu0 %5435
        %5437 = vrot.lane.b32.xlu0 %v5382, 112
        %v5438 = vpop.permute.xlu0 %5437
        %v5441 = vsel %vm3405, %v5366, %v5388
        %v5442 = vsel %vm3405, %v5367, %v5390
        %v5443 = vsel %vm4441, %v5441, %v5396
        %v5444 = vsel %vm4441, %v5442, %v5398
        %v5445 = vsel %vm4444, %v5443, %v5404
        %v5446 = vsel %vm4444, %v5444, %v5406
        %v5447 = vsel %vm4447, %v5445, %v5412
        %v5448 = vsel %vm4447, %v5446, %v5414
        %v5449 = vsel %vm4450, %v5447, %v5420
        %v5450 = vsel %vm4450, %v5448, %v5422
        %v5451 = vsel %vm4453, %v5449, %v5428
        %v5452 = vsel %vm4453, %v5450, %v5430
        %v5453 = vsel %vm4456, %v5451, %v5436
        %v5454 = vsel %vm4456, %v5452, %v5438
        %v5456 = vsel %vm3405, %v5383, 0
        %v5459 = vsel %vm3405, %v5384, 0
        %5461 = vmatprep.subr.mxu0 0.0
        %5462 = vmatpush1.msra.mxu0 %v4361
        %5463 = vmatprep.subr.mxu0 0.0
        %5464 = vmatpush1.msra.mxu0 %v4360
        %5465 = vmatprep.subr.mxu0 0.0
        %5466 = vmatpush1.msra.mxu0 %v4359
        %5467 = vmatprep.subr.mxu0 0.0
        %5468 = vmatpush1.msra.mxu0 %v4358
        %5469 = vmatprep.subr.mxu0 0.0
        %5470 = vmatpush1.msra.mxu0 %v4357
        %5471 = vmatprep.subr.mxu0 0.0
        %5472 = vmatpush1.msra.mxu0 %v4356
        %5473 = vmatprep.subr.mxu0 0.0
        %5474 = vmatpush1.msra.mxu0 %v4355
        %5475 = vmatprep.subr.mxu0 0.0
        %5476 = vmatpush1.msra.mxu0 %v4354
        %5477 = vmatprep.subr.mxu0 0.0
        %5478 = vmatpush1.msra.mxu0 %v4353
        %5479 = vmatprep.subr.mxu0 0.0
        %5480 = vmatpush1.msra.mxu0 %v4352
        %5481 = vmatprep.subr.mxu0 0.0
        %5482 = vmatpush1.msra.mxu0 %v4351
        %5483 = vmatprep.subr.mxu0 0.0
        %5484 = vmatpush1.msra.mxu0 %v4350
        %5485 = vmatprep.subr.mxu0 0.0
        %5486 = vmatpush1.msra.mxu0 %v4349
        %5487 = vmatprep.subr.mxu0 0.0
        %5488 = vmatpush1.msra.mxu0 %v4348
        %5489 = vmatprep.subr.mxu0 0.0
        %5490 = vmatpush1.msra.mxu0 %v4347
        %5491 = vmatprep.subr.mxu0 0.0
        %5492 = vmatpush1.msra.mxu0 %v4346
        %5493 = vmatprep.subr.mxu0 0.0
        %5494 = vmatpush2.msra.mxu0 0.0
        %5495 = vmatprep.subr.mxu0 0.0
        %5496 = vmatpush2.msra.mxu0 0.0
        %5497 = vmatprep.subr.mxu0 0.0
        %5498 = vmatpush2.msra.mxu0 0.0
        %5499 = vmatprep.subr.mxu0 0.0
        %5500 = vmatpush2.msra.mxu0 0.0
        %5501 = vmatprep.subr.mxu0 0.0
        %5502 = vmatpush2.msra.mxu0 0.0
        %5503 = vmatprep.subr.mxu0 0.0
        %5504 = vmatpush2.msra.mxu0 0.0
        %5505 = vmatprep.subr.mxu0 0.0
        %5506 = vmatpush2.msra.mxu0 0.0
        %5507 = vmatprep.subr.mxu0 0.0
        %5508 = vmatpush2.msra.mxu0 0.0
        %5509 = vmatprep.subr.mxu0 0.0
        %5510 = vmatpush2.msra.mxu0 0.0
        %5511 = vmatprep.subr.mxu0 0.0
        %5512 = vmatpush2.msra.mxu0 0.0
        %5513 = vmatprep.subr.mxu0 0.0
        %5514 = vmatpush2.msra.mxu0 0.0
        %5515 = vmatprep.subr.mxu0 0.0
        %5516 = vmatpush2.msra.mxu0 0.0
        %5517 = vmatprep.subr.mxu0 0.0
        %5518 = vmatpush2.msra.mxu0 0.0
        %5519 = vmatprep.subr.mxu0 0.0
        %5520 = vmatpush2.msra.mxu0 0.0
        %5521 = vmatprep.subr.mxu0 0.0
        %5522 = vmatpush2.msra.mxu0 %v4363
        %5523 = vmatprep.subr.mxu0 0.0
        %5524 = vmatpush2.msra.mxu0 %v4362
        %5525 = vmatprep.mubr.f32.mxu0 %v5456
        %5526 = vmatmul.mubr.f32.gmra.mxu0 %v5453
        %v5527 = vpop.f32.mrf.mxu0
        %v5528 = vadd.f32 0.0, %v5527
        %v5529 = vpop.f32.mrf.mxu0
        %5530 = vmatprep.mubr.f32.mxu0 %v5459
        %5531 = vmatmul.mubr.f32.gmra.mxu0 %v5454
        %v5532 = vpop.f32.mrf.mxu0
        %v5533 = vadd.f32 0.0, %v5532
        %v5534 = vpop.f32.mrf.mxu0
        %5535 = vdwg.mxu0
        %s5536 = scalar_lea.vmem [#allocation3], 144
        %v5537 = vld [vmem:[%s5536] sm:$0xff]
        %v5538 = vld [vmem:[%s5536 + $0x8] sm:$0x3f]
        %v5539 = vld [vmem:[%s5536 + $0x1] sm:$0xff]
        %v5540 = vld [vmem:[%s5536 + $0x9] sm:$0x3f]
        %v5541 = vld [vmem:[%s5536 + $0x2] sm:$0xff]
        %v5542 = vld [vmem:[%s5536 + $0xa] sm:$0x3f]
        %5543 = vrot.lane.b32.xlu0 %v5374, 16
        %v5544 = vpop.permute.xlu0 %5543
        %5545 = vrot.lane.b32.xlu0 %v5375, 16
        %v5546 = vpop.permute.xlu0 %5545
        %5549 = vrot.lane.b32.xlu0 %v5376, 32
        %v5550 = vpop.permute.xlu0 %5549
        %5551 = vrot.lane.b32.xlu0 %v5377, 32
        %v5552 = vpop.permute.xlu0 %5551
        %5555 = vrot.lane.b32.xlu0 %v5379, 48
        %v5556 = vpop.permute.xlu0 %5555
        %5557 = vrot.lane.b32.xlu0 %v5380, 48
        %v5558 = vpop.permute.xlu0 %5557
        %5561 = vrot.lane.b32.xlu0 %v5381, 64
        %v5562 = vpop.permute.xlu0 %5561
        %5563 = vrot.lane.b32.xlu0 %v5382, 64
        %v5564 = vpop.permute.xlu0 %5563
        %5567 = vrot.lane.b32.xlu0 %v5383, 80
        %v5568 = vpop.permute.xlu0 %5567
        %5569 = vrot.lane.b32.xlu0 %v5384, 80
        %v5570 = vpop.permute.xlu0 %5569
        %5575 = vrot.lane.b32.xlu0 %v5537, 96
        %v5576 = vpop.permute.xlu0 %5575
        %5577 = vrot.lane.b32.xlu0 %v5538, 96
        %v5578 = vpop.permute.xlu0 %5577
        %5583 = vrot.lane.b32.xlu0 %v5539, 112
        %v5584 = vpop.permute.xlu0 %5583
        %5585 = vrot.lane.b32.xlu0 %v5540, 112
        %v5586 = vpop.permute.xlu0 %5585
        %v5589 = vsel %vm3405, %v5372, %v5544
        %v5590 = vsel %vm3405, %v5373, %v5546
        %v5591 = vsel %vm4441, %v5589, %v5550
        %v5592 = vsel %vm4441, %v5590, %v5552
        %v5593 = vsel %vm4444, %v5591, %v5556
        %v5594 = vsel %vm4444, %v5592, %v5558
        %v5595 = vsel %vm4447, %v5593, %v5562
        %v5596 = vsel %vm4447, %v5594, %v5564
        %v5597 = vsel %vm4450, %v5595, %v5568
        %v5598 = vsel %vm4450, %v5596, %v5570
        %v5599 = vsel %vm4453, %v5597, %v5576
        %v5600 = vsel %vm4453, %v5598, %v5578
        %v5601 = vsel %vm4456, %v5599, %v5584
        %v5602 = vsel %vm4456, %v5600, %v5586
        %v5604 = vsel %vm3405, %v5541, 0
        %v5607 = vsel %vm3405, %v5542, 0
        %5609 = vmatprep.subr.mxu0 0.0
        %5610 = vmatpush1.msra.mxu0 %v4361
        %5611 = vmatprep.subr.mxu0 0.0
        %5612 = vmatpush1.msra.mxu0 %v4360
        %5613 = vmatprep.subr.mxu0 0.0
        %5614 = vmatpush1.msra.mxu0 %v4359
        %5615 = vmatprep.subr.mxu0 0.0
        %5616 = vmatpush1.msra.mxu0 %v4358
        %5617 = vmatprep.subr.mxu0 0.0
        %5618 = vmatpush1.msra.mxu0 %v4357
        %5619 = vmatprep.subr.mxu0 0.0
        %5620 = vmatpush1.msra.mxu0 %v4356
        %5621 = vmatprep.subr.mxu0 0.0
        %5622 = vmatpush1.msra.mxu0 %v4355
        %5623 = vmatprep.subr.mxu0 0.0
        %5624 = vmatpush1.msra.mxu0 %v4354
        %5625 = vmatprep.subr.mxu0 0.0
        %5626 = vmatpush1.msra.mxu0 %v4353
        %5627 = vmatprep.subr.mxu0 0.0
        %5628 = vmatpush1.msra.mxu0 %v4352
        %5629 = vmatprep.subr.mxu0 0.0
        %5630 = vmatpush1.msra.mxu0 %v4351
        %5631 = vmatprep.subr.mxu0 0.0
        %5632 = vmatpush1.msra.mxu0 %v4350
        %5633 = vmatprep.subr.mxu0 0.0
        %5634 = vmatpush1.msra.mxu0 %v4349
        %5635 = vmatprep.subr.mxu0 0.0
        %5636 = vmatpush1.msra.mxu0 %v4348
        %5637 = vmatprep.subr.mxu0 0.0
        %5638 = vmatpush1.msra.mxu0 %v4347
        %5639 = vmatprep.subr.mxu0 0.0
        %5640 = vmatpush1.msra.mxu0 %v4346
        %5641 = vmatprep.subr.mxu0 0.0
        %5642 = vmatpush2.msra.mxu0 0.0
        %5643 = vmatprep.subr.mxu0 0.0
        %5644 = vmatpush2.msra.mxu0 0.0
        %5645 = vmatprep.subr.mxu0 0.0
        %5646 = vmatpush2.msra.mxu0 0.0
        %5647 = vmatprep.subr.mxu0 0.0
        %5648 = vmatpush2.msra.mxu0 0.0
        %5649 = vmatprep.subr.mxu0 0.0
        %5650 = vmatpush2.msra.mxu0 0.0
        %5651 = vmatprep.subr.mxu0 0.0
        %5652 = vmatpush2.msra.mxu0 0.0
        %5653 = vmatprep.subr.mxu0 0.0
        %5654 = vmatpush2.msra.mxu0 0.0
        %5655 = vmatprep.subr.mxu0 0.0
        %5656 = vmatpush2.msra.mxu0 0.0
        %5657 = vmatprep.subr.mxu0 0.0
        %5658 = vmatpush2.msra.mxu0 0.0
        %5659 = vmatprep.subr.mxu0 0.0
        %5660 = vmatpush2.msra.mxu0 0.0
        %5661 = vmatprep.subr.mxu0 0.0
        %5662 = vmatpush2.msra.mxu0 0.0
        %5663 = vmatprep.subr.mxu0 0.0
        %5664 = vmatpush2.msra.mxu0 0.0
        %5665 = vmatprep.subr.mxu0 0.0
        %5666 = vmatpush2.msra.mxu0 0.0
        %5667 = vmatprep.subr.mxu0 0.0
        %5668 = vmatpush2.msra.mxu0 0.0
        %5669 = vmatprep.subr.mxu0 0.0
        %5670 = vmatpush2.msra.mxu0 %v4363
        %5671 = vmatprep.subr.mxu0 0.0
        %5672 = vmatpush2.msra.mxu0 %v4362
        %5673 = vmatprep.mubr.f32.mxu0 %v5604
        %5674 = vmatmul.mubr.f32.gmra.mxu0 %v5601
        %v5675 = vpop.f32.mrf.mxu0
        %v5676 = vadd.f32 0.0, %v5675
        %v5677 = vpop.f32.mrf.mxu0
        %5678 = vmatprep.mubr.f32.mxu0 %v5607
        %5679 = vmatmul.mubr.f32.gmra.mxu0 %v5602
        %v5680 = vpop.f32.mrf.mxu0
        %v5681 = vadd.f32 0.0, %v5680
        %v5682 = vpop.f32.mrf.mxu0
        %5683 = vdwg.mxu0
        %v5684 = vmax.f32 %v5528, %v5676
        %v5685 = vmax.f32 %v5533, %v5681
        %v5686 = vld [vmem:[%s4] sm:$0x1]
        %v5688 = vlaneseq
        %v5689 = vshrl.u32 %v5688, 7
        %v5690 = vsub.s32 0, %v5689
        %v5691 = vrot.slane %v5686, %v5690
        %v5693 = vadd.f32 %v5684, %v5691
        %v5694 = vadd.f32 %v5685, %v5691
        %s5695 = scalar_lea.vmem [#allocation4], 48
        %5696 = vst.msk [vmem:[%s5695] sm:$0xff] %vm4441, %v5693
        %5697 = vst.msk [vmem:[%s5695 + $0x8] sm:$0x3f] %vm4700, %v5694
        %v5698 = vld [vmem:[%s5378] sm:$0xff]
        %v5699 = vld [vmem:[%s5378 + $0x8] sm:$0x3f]
        %v5700 = vld [vmem:[%s5378 + $0x1] sm:$0xff]
        %v5701 = vld [vmem:[%s5378 + $0x9] sm:$0x3f]
        %v5702 = vld [vmem:[%s5378 + $0x2] sm:$0xff]
        %v5703 = vld [vmem:[%s5378 + $0xa] sm:$0x3f]
        %v5704 = vld [vmem:[%s5536] sm:$0xff]
        %v5705 = vld [vmem:[%s5536 + $0x8] sm:$0x3f]
        %v5706 = vld [vmem:[%s5536 + $0x1] sm:$0xff]
        %v5707 = vld [vmem:[%s5536 + $0x9] sm:$0x3f]
        %v5708 = vld [vmem:[%s5536 + $0x2] sm:$0xff]
        %v5709 = vld [vmem:[%s5536 + $0xa] sm:$0x3f]
        %s5710 = scalar_lea.vmem [#allocation3], 160
        %v5711 = vld [vmem:[%s5710] sm:$0xff]
        %v5712 = vld [vmem:[%s5710 + $0x8] sm:$0x3f]
        %v5713 = vld [vmem:[%s5710 + $0x1] sm:$0xff]
        %v5714 = vld [vmem:[%s5710 + $0x9] sm:$0x3f]
        %v5715 = vld [vmem:[%s5710 + $0x2] sm:$0xff]
        %v5716 = vld [vmem:[%s5710 + $0xa] sm:$0x3f]
        %5719 = vrot.lane.b32.xlu0 %v5700, 16
        %v5720 = vpop.permute.xlu0 %5719
        %5721 = vrot.lane.b32.xlu0 %v5701, 16
        %v5722 = vpop.permute.xlu0 %5721
        %5727 = vrot.lane.b32.xlu0 %v5702, 32
        %v5728 = vpop.permute.xlu0 %5727
        %5729 = vrot.lane.b32.xlu0 %v5703, 32
        %v5730 = vpop.permute.xlu0 %5729
        %5735 = vrot.lane.b32.xlu0 %v5704, 48
        %v5736 = vpop.permute.xlu0 %5735
        %5737 = vrot.lane.b32.xlu0 %v5705, 48
        %v5738 = vpop.permute.xlu0 %5737
        %5743 = vrot.lane.b32.xlu0 %v5706, 64
        %v5744 = vpop.permute.xlu0 %5743
        %5745 = vrot.lane.b32.xlu0 %v5707, 64
        %v5746 = vpop.permute.xlu0 %5745
        %5751 = vrot.lane.b32.xlu0 %v5708, 80
        %v5752 = vpop.permute.xlu0 %5751
        %5753 = vrot.lane.b32.xlu0 %v5709, 80
        %v5754 = vpop.permute.xlu0 %5753
        %5759 = vrot.lane.b32.xlu0 %v5711, 96
        %v5760 = vpop.permute.xlu0 %5759
        %5761 = vrot.lane.b32.xlu0 %v5712, 96
        %v5762 = vpop.permute.xlu0 %5761
        %5767 = vrot.lane.b32.xlu0 %v5713, 112
        %v5768 = vpop.permute.xlu0 %5767
        %5769 = vrot.lane.b32.xlu0 %v5714, 112
        %v5770 = vpop.permute.xlu0 %5769
        %v5773 = vsel %vm3405, %v5698, %v5720
        %v5774 = vsel %vm3405, %v5699, %v5722
        %v5775 = vsel %vm4441, %v5773, %v5728
        %v5776 = vsel %vm4441, %v5774, %v5730
        %v5777 = vsel %vm4444, %v5775, %v5736
        %v5778 = vsel %vm4444, %v5776, %v5738
        %v5779 = vsel %vm4447, %v5777, %v5744
        %v5780 = vsel %vm4447, %v5778, %v5746
        %v5781 = vsel %vm4450, %v5779, %v5752
        %v5782 = vsel %vm4450, %v5780, %v5754
        %v5783 = vsel %vm4453, %v5781, %v5760
        %v5784 = vsel %vm4453, %v5782, %v5762
        %v5785 = vsel %vm4456, %v5783, %v5768
        %v5786 = vsel %vm4456, %v5784, %v5770
        %v5788 = vsel %vm3405, %v5715, 0
        %v5791 = vsel %vm3405, %v5716, 0
        %5793 = vmatprep.subr.mxu0 0.0
        %5794 = vmatpush1.msra.mxu0 %v4361
        %5795 = vmatprep.subr.mxu0 0.0
        %5796 = vmatpush1.msra.mxu0 %v4360
        %5797 = vmatprep.subr.mxu0 0.0
        %5798 = vmatpush1.msra.mxu0 %v4359
        %5799 = vmatprep.subr.mxu0 0.0
        %5800 = vmatpush1.msra.mxu0 %v4358
        %5801 = vmatprep.subr.mxu0 0.0
        %5802 = vmatpush1.msra.mxu0 %v4357
        %5803 = vmatprep.subr.mxu0 0.0
        %5804 = vmatpush1.msra.mxu0 %v4356
        %5805 = vmatprep.subr.mxu0 0.0
        %5806 = vmatpush1.msra.mxu0 %v4355
        %5807 = vmatprep.subr.mxu0 0.0
        %5808 = vmatpush1.msra.mxu0 %v4354
        %5809 = vmatprep.subr.mxu0 0.0
        %5810 = vmatpush1.msra.mxu0 %v4353
        %5811 = vmatprep.subr.mxu0 0.0
        %5812 = vmatpush1.msra.mxu0 %v4352
        %5813 = vmatprep.subr.mxu0 0.0
        %5814 = vmatpush1.msra.mxu0 %v4351
        %5815 = vmatprep.subr.mxu0 0.0
        %5816 = vmatpush1.msra.mxu0 %v4350
        %5817 = vmatprep.subr.mxu0 0.0
        %5818 = vmatpush1.msra.mxu0 %v4349
        %5819 = vmatprep.subr.mxu0 0.0
        %5820 = vmatpush1.msra.mxu0 %v4348
        %5821 = vmatprep.subr.mxu0 0.0
        %5822 = vmatpush1.msra.mxu0 %v4347
        %5823 = vmatprep.subr.mxu0 0.0
        %5824 = vmatpush1.msra.mxu0 %v4346
        %5825 = vmatprep.subr.mxu0 0.0
        %5826 = vmatpush2.msra.mxu0 0.0
        %5827 = vmatprep.subr.mxu0 0.0
        %5828 = vmatpush2.msra.mxu0 0.0
        %5829 = vmatprep.subr.mxu0 0.0
        %5830 = vmatpush2.msra.mxu0 0.0
        %5831 = vmatprep.subr.mxu0 0.0
        %5832 = vmatpush2.msra.mxu0 0.0
        %5833 = vmatprep.subr.mxu0 0.0
        %5834 = vmatpush2.msra.mxu0 0.0
        %5835 = vmatprep.subr.mxu0 0.0
        %5836 = vmatpush2.msra.mxu0 0.0
        %5837 = vmatprep.subr.mxu0 0.0
        %5838 = vmatpush2.msra.mxu0 0.0
        %5839 = vmatprep.subr.mxu0 0.0
        %5840 = vmatpush2.msra.mxu0 0.0
        %5841 = vmatprep.subr.mxu0 0.0
        %5842 = vmatpush2.msra.mxu0 0.0
        %5843 = vmatprep.subr.mxu0 0.0
        %5844 = vmatpush2.msra.mxu0 0.0
        %5845 = vmatprep.subr.mxu0 0.0
        %5846 = vmatpush2.msra.mxu0 0.0
        %5847 = vmatprep.subr.mxu0 0.0
        %5848 = vmatpush2.msra.mxu0 0.0
        %5849 = vmatprep.subr.mxu0 0.0
        %5850 = vmatpush2.msra.mxu0 0.0
        %5851 = vmatprep.subr.mxu0 0.0
        %5852 = vmatpush2.msra.mxu0 0.0
        %5853 = vmatprep.subr.mxu0 0.0
        %5854 = vmatpush2.msra.mxu0 %v4363
        %5855 = vmatprep.subr.mxu0 0.0
        %5856 = vmatpush2.msra.mxu0 %v4362
        %5857 = vmatprep.mubr.f32.mxu0 %v5788
        %5858 = vmatmul.mubr.f32.gmra.mxu0 %v5785
        %v5859 = vpop.f32.mrf.mxu0
        %v5860 = vadd.f32 0.0, %v5859
        %v5861 = vpop.f32.mrf.mxu0
        %5862 = vmatprep.mubr.f32.mxu0 %v5791
        %5863 = vmatmul.mubr.f32.gmra.mxu0 %v5786
        %v5864 = vpop.f32.mrf.mxu0
        %v5865 = vadd.f32 0.0, %v5864
        %v5866 = vpop.f32.mrf.mxu0
        %5867 = vdwg.mxu0
        %s5868 = scalar_lea.vmem [#allocation3], 176
        %v5869 = vld [vmem:[%s5868] sm:$0xff]
        %v5870 = vld [vmem:[%s5868 + $0x8] sm:$0x3f]
        %v5871 = vld [vmem:[%s5868 + $0x1] sm:$0xff]
        %v5872 = vld [vmem:[%s5868 + $0x9] sm:$0x3f]
        %v5873 = vld [vmem:[%s5868 + $0x2] sm:$0xff]
        %v5874 = vld [vmem:[%s5868 + $0xa] sm:$0x3f]
        %5875 = vrot.lane.b32.xlu0 %v5706, 16
        %v5876 = vpop.permute.xlu0 %5875
        %5877 = vrot.lane.b32.xlu0 %v5707, 16
        %v5878 = vpop.permute.xlu0 %5877
        %5881 = vrot.lane.b32.xlu0 %v5708, 32
        %v5882 = vpop.permute.xlu0 %5881
        %5883 = vrot.lane.b32.xlu0 %v5709, 32
        %v5884 = vpop.permute.xlu0 %5883
        %5887 = vrot.lane.b32.xlu0 %v5711, 48
        %v5888 = vpop.permute.xlu0 %5887
        %5889 = vrot.lane.b32.xlu0 %v5712, 48
        %v5890 = vpop.permute.xlu0 %5889
        %5893 = vrot.lane.b32.xlu0 %v5713, 64
        %v5894 = vpop.permute.xlu0 %5893
        %5895 = vrot.lane.b32.xlu0 %v5714, 64
        %v5896 = vpop.permute.xlu0 %5895
        %5899 = vrot.lane.b32.xlu0 %v5715, 80
        %v5900 = vpop.permute.xlu0 %5899
        %5901 = vrot.lane.b32.xlu0 %v5716, 80
        %v5902 = vpop.permute.xlu0 %5901
        %5907 = vrot.lane.b32.xlu0 %v5869, 96
        %v5908 = vpop.permute.xlu0 %5907
        %5909 = vrot.lane.b32.xlu0 %v5870, 96
        %v5910 = vpop.permute.xlu0 %5909
        %5915 = vrot.lane.b32.xlu0 %v5871, 112
        %v5916 = vpop.permute.xlu0 %5915
        %5917 = vrot.lane.b32.xlu0 %v5872, 112
        %v5918 = vpop.permute.xlu0 %5917
        %v5921 = vsel %vm3405, %v5704, %v5876
        %v5922 = vsel %vm3405, %v5705, %v5878
        %v5923 = vsel %vm4441, %v5921, %v5882
        %v5924 = vsel %vm4441, %v5922, %v5884
        %v5925 = vsel %vm4444, %v5923, %v5888
        %v5926 = vsel %vm4444, %v5924, %v5890
        %v5927 = vsel %vm4447, %v5925, %v5894
        %v5928 = vsel %vm4447, %v5926, %v5896
        %v5929 = vsel %vm4450, %v5927, %v5900
        %v5930 = vsel %vm4450, %v5928, %v5902
        %v5931 = vsel %vm4453, %v5929, %v5908
        %v5932 = vsel %vm4453, %v5930, %v5910
        %v5933 = vsel %vm4456, %v5931, %v5916
        %v5934 = vsel %vm4456, %v5932, %v5918
        %v5936 = vsel %vm3405, %v5873, 0
        %v5939 = vsel %vm3405, %v5874, 0
        %5941 = vmatprep.subr.mxu0 0.0
        %5942 = vmatpush1.msra.mxu0 %v4361
        %5943 = vmatprep.subr.mxu0 0.0
        %5944 = vmatpush1.msra.mxu0 %v4360
        %5945 = vmatprep.subr.mxu0 0.0
        %5946 = vmatpush1.msra.mxu0 %v4359
        %5947 = vmatprep.subr.mxu0 0.0
        %5948 = vmatpush1.msra.mxu0 %v4358
        %5949 = vmatprep.subr.mxu0 0.0
        %5950 = vmatpush1.msra.mxu0 %v4357
        %5951 = vmatprep.subr.mxu0 0.0
        %5952 = vmatpush1.msra.mxu0 %v4356
        %5953 = vmatprep.subr.mxu0 0.0
        %5954 = vmatpush1.msra.mxu0 %v4355
        %5955 = vmatprep.subr.mxu0 0.0
        %5956 = vmatpush1.msra.mxu0 %v4354
        %5957 = vmatprep.subr.mxu0 0.0
        %5958 = vmatpush1.msra.mxu0 %v4353
        %5959 = vmatprep.subr.mxu0 0.0
        %5960 = vmatpush1.msra.mxu0 %v4352
        %5961 = vmatprep.subr.mxu0 0.0
        %5962 = vmatpush1.msra.mxu0 %v4351
        %5963 = vmatprep.subr.mxu0 0.0
        %5964 = vmatpush1.msra.mxu0 %v4350
        %5965 = vmatprep.subr.mxu0 0.0
        %5966 = vmatpush1.msra.mxu0 %v4349
        %5967 = vmatprep.subr.mxu0 0.0
        %5968 = vmatpush1.msra.mxu0 %v4348
        %5969 = vmatprep.subr.mxu0 0.0
        %5970 = vmatpush1.msra.mxu0 %v4347
        %5971 = vmatprep.subr.mxu0 0.0
        %5972 = vmatpush1.msra.mxu0 %v4346
        %5973 = vmatprep.subr.mxu0 0.0
        %5974 = vmatpush2.msra.mxu0 0.0
        %5975 = vmatprep.subr.mxu0 0.0
        %5976 = vmatpush2.msra.mxu0 0.0
        %5977 = vmatprep.subr.mxu0 0.0
        %5978 = vmatpush2.msra.mxu0 0.0
        %5979 = vmatprep.subr.mxu0 0.0
        %5980 = vmatpush2.msra.mxu0 0.0
        %5981 = vmatprep.subr.mxu0 0.0
        %5982 = vmatpush2.msra.mxu0 0.0
        %5983 = vmatprep.subr.mxu0 0.0
        %5984 = vmatpush2.msra.mxu0 0.0
        %5985 = vmatprep.subr.mxu0 0.0
        %5986 = vmatpush2.msra.mxu0 0.0
        %5987 = vmatprep.subr.mxu0 0.0
        %5988 = vmatpush2.msra.mxu0 0.0
        %5989 = vmatprep.subr.mxu0 0.0
        %5990 = vmatpush2.msra.mxu0 0.0
        %5991 = vmatprep.subr.mxu0 0.0
        %5992 = vmatpush2.msra.mxu0 0.0
        %5993 = vmatprep.subr.mxu0 0.0
        %5994 = vmatpush2.msra.mxu0 0.0
        %5995 = vmatprep.subr.mxu0 0.0
        %5996 = vmatpush2.msra.mxu0 0.0
        %5997 = vmatprep.subr.mxu0 0.0
        %5998 = vmatpush2.msra.mxu0 0.0
        %5999 = vmatprep.subr.mxu0 0.0
        %6000 = vmatpush2.msra.mxu0 0.0
        %6001 = vmatprep.subr.mxu0 0.0
        %6002 = vmatpush2.msra.mxu0 %v4363
        %6003 = vmatprep.subr.mxu0 0.0
        %6004 = vmatpush2.msra.mxu0 %v4362
        %6005 = vmatprep.mubr.f32.mxu0 %v5936
        %6006 = vmatmul.mubr.f32.gmra.mxu0 %v5933
        %v6007 = vpop.f32.mrf.mxu0
        %v6008 = vadd.f32 0.0, %v6007
        %v6009 = vpop.f32.mrf.mxu0
        %6010 = vmatprep.mubr.f32.mxu0 %v5939
        %6011 = vmatmul.mubr.f32.gmra.mxu0 %v5934
        %v6012 = vpop.f32.mrf.mxu0
        %v6013 = vadd.f32 0.0, %v6012
        %v6014 = vpop.f32.mrf.mxu0
        %6015 = vdwg.mxu0
        %v6016 = vmax.f32 %v5860, %v6008
        %v6017 = vmax.f32 %v5865, %v6013
        %v6018 = vld [vmem:[%s4] sm:$0x1]
        %v6020 = vlaneseq
        %v6021 = vshrl.u32 %v6020, 7
        %v6022 = vsub.s32 0, %v6021
        %v6023 = vrot.slane %v6018, %v6022
        %v6025 = vadd.f32 %v6016, %v6023
        %v6026 = vadd.f32 %v6017, %v6023
        %s6027 = scalar_lea.vmem [#allocation4], 64
        %6028 = vst.msk [vmem:[%s6027] sm:$0xff] %vm4441, %v6025
        %6029 = vst.msk [vmem:[%s6027 + $0x8] sm:$0x3f] %vm4700, %v6026
        %v6030 = vld [vmem:[%s5710] sm:$0xff]
        %v6031 = vld [vmem:[%s5710 + $0x8] sm:$0x3f]
        %v6032 = vld [vmem:[%s5710 + $0x1] sm:$0xff]
        %v6033 = vld [vmem:[%s5710 + $0x9] sm:$0x3f]
        %v6034 = vld [vmem:[%s5710 + $0x2] sm:$0xff]
        %v6035 = vld [vmem:[%s5710 + $0xa] sm:$0x3f]
        %v6036 = vld [vmem:[%s5868] sm:$0xff]
        %v6037 = vld [vmem:[%s5868 + $0x8] sm:$0x3f]
        %v6038 = vld [vmem:[%s5868 + $0x1] sm:$0xff]
        %v6039 = vld [vmem:[%s5868 + $0x9] sm:$0x3f]
        %v6040 = vld [vmem:[%s5868 + $0x2] sm:$0xff]
        %v6041 = vld [vmem:[%s5868 + $0xa] sm:$0x3f]
        %s6042 = scalar_lea.vmem [#allocation3], 192
        %v6043 = vld [vmem:[%s6042] sm:$0xff]
        %v6044 = vld [vmem:[%s6042 + $0x8] sm:$0x3f]
        %v6045 = vld [vmem:[%s6042 + $0x1] sm:$0xff]
        %v6046 = vld [vmem:[%s6042 + $0x9] sm:$0x3f]
        %v6047 = vld [vmem:[%s6042 + $0x2] sm:$0xff]
        %v6048 = vld [vmem:[%s6042 + $0xa] sm:$0x3f]
        %6051 = vrot.lane.b32.xlu0 %v6032, 16
        %v6052 = vpop.permute.xlu0 %6051
        %6053 = vrot.lane.b32.xlu0 %v6033, 16
        %v6054 = vpop.permute.xlu0 %6053
        %6059 = vrot.lane.b32.xlu0 %v6034, 32
        %v6060 = vpop.permute.xlu0 %6059
        %6061 = vrot.lane.b32.xlu0 %v6035, 32
        %v6062 = vpop.permute.xlu0 %6061
        %6067 = vrot.lane.b32.xlu0 %v6036, 48
        %v6068 = vpop.permute.xlu0 %6067
        %6069 = vrot.lane.b32.xlu0 %v6037, 48
        %v6070 = vpop.permute.xlu0 %6069
        %6075 = vrot.lane.b32.xlu0 %v6038, 64
        %v6076 = vpop.permute.xlu0 %6075
        %6077 = vrot.lane.b32.xlu0 %v6039, 64
        %v6078 = vpop.permute.xlu0 %6077
        %6083 = vrot.lane.b32.xlu0 %v6040, 80
        %v6084 = vpop.permute.xlu0 %6083
        %6085 = vrot.lane.b32.xlu0 %v6041, 80
        %v6086 = vpop.permute.xlu0 %6085
        %6091 = vrot.lane.b32.xlu0 %v6043, 96
        %v6092 = vpop.permute.xlu0 %6091
        %6093 = vrot.lane.b32.xlu0 %v6044, 96
        %v6094 = vpop.permute.xlu0 %6093
        %6099 = vrot.lane.b32.xlu0 %v6045, 112
        %v6100 = vpop.permute.xlu0 %6099
        %6101 = vrot.lane.b32.xlu0 %v6046, 112
        %v6102 = vpop.permute.xlu0 %6101
        %v6105 = vsel %vm3405, %v6030, %v6052
        %v6106 = vsel %vm3405, %v6031, %v6054
        %v6107 = vsel %vm4441, %v6105, %v6060
        %v6108 = vsel %vm4441, %v6106, %v6062
        %v6109 = vsel %vm4444, %v6107, %v6068
        %v6110 = vsel %vm4444, %v6108, %v6070
        %v6111 = vsel %vm4447, %v6109, %v6076
        %v6112 = vsel %vm4447, %v6110, %v6078
        %v6113 = vsel %vm4450, %v6111, %v6084
        %v6114 = vsel %vm4450, %v6112, %v6086
        %v6115 = vsel %vm4453, %v6113, %v6092
        %v6116 = vsel %vm4453, %v6114, %v6094
        %v6117 = vsel %vm4456, %v6115, %v6100
        %v6118 = vsel %vm4456, %v6116, %v6102
        %v6120 = vsel %vm3405, %v6047, 0
        %v6123 = vsel %vm3405, %v6048, 0
        %6125 = vmatprep.subr.mxu0 0.0
        %6126 = vmatpush1.msra.mxu0 %v4361
        %6127 = vmatprep.subr.mxu0 0.0
        %6128 = vmatpush1.msra.mxu0 %v4360
        %6129 = vmatprep.subr.mxu0 0.0
        %6130 = vmatpush1.msra.mxu0 %v4359
        %6131 = vmatprep.subr.mxu0 0.0
        %6132 = vmatpush1.msra.mxu0 %v4358
        %6133 = vmatprep.subr.mxu0 0.0
        %6134 = vmatpush1.msra.mxu0 %v4357
        %6135 = vmatprep.subr.mxu0 0.0
        %6136 = vmatpush1.msra.mxu0 %v4356
        %6137 = vmatprep.subr.mxu0 0.0
        %6138 = vmatpush1.msra.mxu0 %v4355
        %6139 = vmatprep.subr.mxu0 0.0
        %6140 = vmatpush1.msra.mxu0 %v4354
        %6141 = vmatprep.subr.mxu0 0.0
        %6142 = vmatpush1.msra.mxu0 %v4353
        %6143 = vmatprep.subr.mxu0 0.0
        %6144 = vmatpush1.msra.mxu0 %v4352
        %6145 = vmatprep.subr.mxu0 0.0
        %6146 = vmatpush1.msra.mxu0 %v4351
        %6147 = vmatprep.subr.mxu0 0.0
        %6148 = vmatpush1.msra.mxu0 %v4350
        %6149 = vmatprep.subr.mxu0 0.0
        %6150 = vmatpush1.msra.mxu0 %v4349
        %6151 = vmatprep.subr.mxu0 0.0
        %6152 = vmatpush1.msra.mxu0 %v4348
        %6153 = vmatprep.subr.mxu0 0.0
        %6154 = vmatpush1.msra.mxu0 %v4347
        %6155 = vmatprep.subr.mxu0 0.0
        %6156 = vmatpush1.msra.mxu0 %v4346
        %6157 = vmatprep.subr.mxu0 0.0
        %6158 = vmatpush2.msra.mxu0 0.0
        %6159 = vmatprep.subr.mxu0 0.0
        %6160 = vmatpush2.msra.mxu0 0.0
        %6161 = vmatprep.subr.mxu0 0.0
        %6162 = vmatpush2.msra.mxu0 0.0
        %6163 = vmatprep.subr.mxu0 0.0
        %6164 = vmatpush2.msra.mxu0 0.0
        %6165 = vmatprep.subr.mxu0 0.0
        %6166 = vmatpush2.msra.mxu0 0.0
        %6167 = vmatprep.subr.mxu0 0.0
        %6168 = vmatpush2.msra.mxu0 0.0
        %6169 = vmatprep.subr.mxu0 0.0
        %6170 = vmatpush2.msra.mxu0 0.0
        %6171 = vmatprep.subr.mxu0 0.0
        %6172 = vmatpush2.msra.mxu0 0.0
        %6173 = vmatprep.subr.mxu0 0.0
        %6174 = vmatpush2.msra.mxu0 0.0
        %6175 = vmatprep.subr.mxu0 0.0
        %6176 = vmatpush2.msra.mxu0 0.0
        %6177 = vmatprep.subr.mxu0 0.0
        %6178 = vmatpush2.msra.mxu0 0.0
        %6179 = vmatprep.subr.mxu0 0.0
        %6180 = vmatpush2.msra.mxu0 0.0
        %6181 = vmatprep.subr.mxu0 0.0
        %6182 = vmatpush2.msra.mxu0 0.0
        %6183 = vmatprep.subr.mxu0 0.0
        %6184 = vmatpush2.msra.mxu0 0.0
        %6185 = vmatprep.subr.mxu0 0.0
        %6186 = vmatpush2.msra.mxu0 %v4363
        %6187 = vmatprep.subr.mxu0 0.0
        %6188 = vmatpush2.msra.mxu0 %v4362
        %6189 = vmatprep.mubr.f32.mxu0 %v6120
        %6190 = vmatmul.mubr.f32.gmra.mxu0 %v6117
        %v6191 = vpop.f32.mrf.mxu0
        %v6192 = vadd.f32 0.0, %v6191
        %v6193 = vpop.f32.mrf.mxu0
        %6194 = vmatprep.mubr.f32.mxu0 %v6123
        %6195 = vmatmul.mubr.f32.gmra.mxu0 %v6118
        %v6196 = vpop.f32.mrf.mxu0
        %v6197 = vadd.f32 0.0, %v6196
        %v6198 = vpop.f32.mrf.mxu0
        %6199 = vdwg.mxu0
        %s6200 = scalar_lea.vmem [#allocation3], 208
        %v6201 = vld [vmem:[%s6200] sm:$0xff]
        %v6202 = vld [vmem:[%s6200 + $0x8] sm:$0x3f]
        %v6203 = vld [vmem:[%s6200 + $0x1] sm:$0xff]
        %v6204 = vld [vmem:[%s6200 + $0x9] sm:$0x3f]
        %v6205 = vld [vmem:[%s6200 + $0x2] sm:$0xff]
        %v6206 = vld [vmem:[%s6200 + $0xa] sm:$0x3f]
        %6207 = vrot.lane.b32.xlu0 %v6038, 16
        %v6208 = vpop.permute.xlu0 %6207
        %6209 = vrot.lane.b32.xlu0 %v6039, 16
        %v6210 = vpop.permute.xlu0 %6209
        %6213 = vrot.lane.b32.xlu0 %v6040, 32
        %v6214 = vpop.permute.xlu0 %6213
        %6215 = vrot.lane.b32.xlu0 %v6041, 32
        %v6216 = vpop.permute.xlu0 %6215
        %6219 = vrot.lane.b32.xlu0 %v6043, 48
        %v6220 = vpop.permute.xlu0 %6219
        %6221 = vrot.lane.b32.xlu0 %v6044, 48
        %v6222 = vpop.permute.xlu0 %6221
        %6225 = vrot.lane.b32.xlu0 %v6045, 64
        %v6226 = vpop.permute.xlu0 %6225
        %6227 = vrot.lane.b32.xlu0 %v6046, 64
        %v6228 = vpop.permute.xlu0 %6227
        %6231 = vrot.lane.b32.xlu0 %v6047, 80
        %v6232 = vpop.permute.xlu0 %6231
        %6233 = vrot.lane.b32.xlu0 %v6048, 80
        %v6234 = vpop.permute.xlu0 %6233
        %6239 = vrot.lane.b32.xlu0 %v6201, 96
        %v6240 = vpop.permute.xlu0 %6239
        %6241 = vrot.lane.b32.xlu0 %v6202, 96
        %v6242 = vpop.permute.xlu0 %6241
        %6247 = vrot.lane.b32.xlu0 %v6203, 112
        %v6248 = vpop.permute.xlu0 %6247
        %6249 = vrot.lane.b32.xlu0 %v6204, 112
        %v6250 = vpop.permute.xlu0 %6249
        %v6253 = vsel %vm3405, %v6036, %v6208
        %v6254 = vsel %vm3405, %v6037, %v6210
        %v6255 = vsel %vm4441, %v6253, %v6214
        %v6256 = vsel %vm4441, %v6254, %v6216
        %v6257 = vsel %vm4444, %v6255, %v6220
        %v6258 = vsel %vm4444, %v6256, %v6222
        %v6259 = vsel %vm4447, %v6257, %v6226
        %v6260 = vsel %vm4447, %v6258, %v6228
        %v6261 = vsel %vm4450, %v6259, %v6232
        %v6262 = vsel %vm4450, %v6260, %v6234
        %v6263 = vsel %vm4453, %v6261, %v6240
        %v6264 = vsel %vm4453, %v6262, %v6242
        %v6265 = vsel %vm4456, %v6263, %v6248
        %v6266 = vsel %vm4456, %v6264, %v6250
        %v6268 = vsel %vm3405, %v6205, 0
        %v6271 = vsel %vm3405, %v6206, 0
        %6273 = vmatprep.subr.mxu0 0.0
        %6274 = vmatpush1.msra.mxu0 %v4361
        %6275 = vmatprep.subr.mxu0 0.0
        %6276 = vmatpush1.msra.mxu0 %v4360
        %6277 = vmatprep.subr.mxu0 0.0
        %6278 = vmatpush1.msra.mxu0 %v4359
        %6279 = vmatprep.subr.mxu0 0.0
        %6280 = vmatpush1.msra.mxu0 %v4358
        %6281 = vmatprep.subr.mxu0 0.0
        %6282 = vmatpush1.msra.mxu0 %v4357
        %6283 = vmatprep.subr.mxu0 0.0
        %6284 = vmatpush1.msra.mxu0 %v4356
        %6285 = vmatprep.subr.mxu0 0.0
        %6286 = vmatpush1.msra.mxu0 %v4355
        %6287 = vmatprep.subr.mxu0 0.0
        %6288 = vmatpush1.msra.mxu0 %v4354
        %6289 = vmatprep.subr.mxu0 0.0
        %6290 = vmatpush1.msra.mxu0 %v4353
        %6291 = vmatprep.subr.mxu0 0.0
        %6292 = vmatpush1.msra.mxu0 %v4352
        %6293 = vmatprep.subr.mxu0 0.0
        %6294 = vmatpush1.msra.mxu0 %v4351
        %6295 = vmatprep.subr.mxu0 0.0
        %6296 = vmatpush1.msra.mxu0 %v4350
        %6297 = vmatprep.subr.mxu0 0.0
        %6298 = vmatpush1.msra.mxu0 %v4349
        %6299 = vmatprep.subr.mxu0 0.0
        %6300 = vmatpush1.msra.mxu0 %v4348
        %6301 = vmatprep.subr.mxu0 0.0
        %6302 = vmatpush1.msra.mxu0 %v4347
        %6303 = vmatprep.subr.mxu0 0.0
        %6304 = vmatpush1.msra.mxu0 %v4346
        %6305 = vmatprep.subr.mxu0 0.0
        %6306 = vmatpush2.msra.mxu0 0.0
        %6307 = vmatprep.subr.mxu0 0.0
        %6308 = vmatpush2.msra.mxu0 0.0
        %6309 = vmatprep.subr.mxu0 0.0
        %6310 = vmatpush2.msra.mxu0 0.0
        %6311 = vmatprep.subr.mxu0 0.0
        %6312 = vmatpush2.msra.mxu0 0.0
        %6313 = vmatprep.subr.mxu0 0.0
        %6314 = vmatpush2.msra.mxu0 0.0
        %6315 = vmatprep.subr.mxu0 0.0
        %6316 = vmatpush2.msra.mxu0 0.0
        %6317 = vmatprep.subr.mxu0 0.0
        %6318 = vmatpush2.msra.mxu0 0.0
        %6319 = vmatprep.subr.mxu0 0.0
        %6320 = vmatpush2.msra.mxu0 0.0
        %6321 = vmatprep.subr.mxu0 0.0
        %6322 = vmatpush2.msra.mxu0 0.0
        %6323 = vmatprep.subr.mxu0 0.0
        %6324 = vmatpush2.msra.mxu0 0.0
        %6325 = vmatprep.subr.mxu0 0.0
        %6326 = vmatpush2.msra.mxu0 0.0
        %6327 = vmatprep.subr.mxu0 0.0
        %6328 = vmatpush2.msra.mxu0 0.0
        %6329 = vmatprep.subr.mxu0 0.0
        %6330 = vmatpush2.msra.mxu0 0.0
        %6331 = vmatprep.subr.mxu0 0.0
        %6332 = vmatpush2.msra.mxu0 0.0
        %6333 = vmatprep.subr.mxu0 0.0
        %6334 = vmatpush2.msra.mxu0 %v4363
        %6335 = vmatprep.subr.mxu0 0.0
        %6336 = vmatpush2.msra.mxu0 %v4362
        %6337 = vmatprep.mubr.f32.mxu0 %v6268
        %6338 = vmatmul.mubr.f32.gmra.mxu0 %v6265
        %v6339 = vpop.f32.mrf.mxu0
        %v6340 = vadd.f32 0.0, %v6339
        %v6341 = vpop.f32.mrf.mxu0
        %6342 = vmatprep.mubr.f32.mxu0 %v6271
        %6343 = vmatmul.mubr.f32.gmra.mxu0 %v6266
        %v6344 = vpop.f32.mrf.mxu0
        %v6345 = vadd.f32 0.0, %v6344
        %v6346 = vpop.f32.mrf.mxu0
        %6347 = vdwg.mxu0
        %v6348 = vmax.f32 %v6192, %v6340
        %v6349 = vmax.f32 %v6197, %v6345
        %v6350 = vld [vmem:[%s4] sm:$0x1]
        %v6352 = vlaneseq
        %v6353 = vshrl.u32 %v6352, 7
        %v6354 = vsub.s32 0, %v6353
        %v6355 = vrot.slane %v6350, %v6354
        %v6357 = vadd.f32 %v6348, %v6355
        %v6358 = vadd.f32 %v6349, %v6355
        %s6359 = scalar_lea.vmem [#allocation4], 80
        %6360 = vst.msk [vmem:[%s6359] sm:$0xff] %vm4441, %v6357
        %6361 = vst.msk [vmem:[%s6359 + $0x8] sm:$0x3f] %vm4700, %v6358
        %v6362 = vld [vmem:[%s6042] sm:$0xff]
        %v6363 = vld [vmem:[%s6042 + $0x8] sm:$0x3f]
        %v6364 = vld [vmem:[%s6042 + $0x1] sm:$0xff]
        %v6365 = vld [vmem:[%s6042 + $0x9] sm:$0x3f]
        %v6366 = vld [vmem:[%s6042 + $0x2] sm:$0xff]
        %v6367 = vld [vmem:[%s6042 + $0xa] sm:$0x3f]
        %v6368 = vld [vmem:[%s6200] sm:$0xff]
        %v6369 = vld [vmem:[%s6200 + $0x8] sm:$0x3f]
        %v6370 = vld [vmem:[%s6200 + $0x1] sm:$0xff]
        %v6371 = vld [vmem:[%s6200 + $0x9] sm:$0x3f]
        %v6372 = vld [vmem:[%s6200 + $0x2] sm:$0xff]
        %v6373 = vld [vmem:[%s6200 + $0xa] sm:$0x3f]
        %s6374 = scalar_lea.vmem [#allocation3], 224
        %v6375 = vld [vmem:[%s6374] sm:$0xff]
        %v6376 = vld [vmem:[%s6374 + $0x8] sm:$0x3f]
        %v6377 = vld [vmem:[%s6374 + $0x1] sm:$0xff]
        %v6378 = vld [vmem:[%s6374 + $0x9] sm:$0x3f]
        %v6379 = vld [vmem:[%s6374 + $0x2] sm:$0xff]
        %v6380 = vld [vmem:[%s6374 + $0xa] sm:$0x3f]
        %6383 = vrot.lane.b32.xlu0 %v6364, 16
        %v6384 = vpop.permute.xlu0 %6383
        %6385 = vrot.lane.b32.xlu0 %v6365, 16
        %v6386 = vpop.permute.xlu0 %6385
        %6391 = vrot.lane.b32.xlu0 %v6366, 32
        %v6392 = vpop.permute.xlu0 %6391
        %6393 = vrot.lane.b32.xlu0 %v6367, 32
        %v6394 = vpop.permute.xlu0 %6393
        %6399 = vrot.lane.b32.xlu0 %v6368, 48
        %v6400 = vpop.permute.xlu0 %6399
        %6401 = vrot.lane.b32.xlu0 %v6369, 48
        %v6402 = vpop.permute.xlu0 %6401
        %6407 = vrot.lane.b32.xlu0 %v6370, 64
        %v6408 = vpop.permute.xlu0 %6407
        %6409 = vrot.lane.b32.xlu0 %v6371, 64
        %v6410 = vpop.permute.xlu0 %6409
        %6415 = vrot.lane.b32.xlu0 %v6372, 80
        %v6416 = vpop.permute.xlu0 %6415
        %6417 = vrot.lane.b32.xlu0 %v6373, 80
        %v6418 = vpop.permute.xlu0 %6417
        %6423 = vrot.lane.b32.xlu0 %v6375, 96
        %v6424 = vpop.permute.xlu0 %6423
        %6425 = vrot.lane.b32.xlu0 %v6376, 96
        %v6426 = vpop.permute.xlu0 %6425
        %6431 = vrot.lane.b32.xlu0 %v6377, 112
        %v6432 = vpop.permute.xlu0 %6431
        %6433 = vrot.lane.b32.xlu0 %v6378, 112
        %v6434 = vpop.permute.xlu0 %6433
        %v6437 = vsel %vm3405, %v6362, %v6384
        %v6438 = vsel %vm3405, %v6363, %v6386
        %v6439 = vsel %vm4441, %v6437, %v6392
        %v6440 = vsel %vm4441, %v6438, %v6394
        %v6441 = vsel %vm4444, %v6439, %v6400
        %v6442 = vsel %vm4444, %v6440, %v6402
        %v6443 = vsel %vm4447, %v6441, %v6408
        %v6444 = vsel %vm4447, %v6442, %v6410
        %v6445 = vsel %vm4450, %v6443, %v6416
        %v6446 = vsel %vm4450, %v6444, %v6418
        %v6447 = vsel %vm4453, %v6445, %v6424
        %v6448 = vsel %vm4453, %v6446, %v6426
        %v6449 = vsel %vm4456, %v6447, %v6432
        %v6450 = vsel %vm4456, %v6448, %v6434
        %v6452 = vsel %vm3405, %v6379, 0
        %v6455 = vsel %vm3405, %v6380, 0
        %6457 = vmatprep.subr.mxu0 0.0
        %6458 = vmatpush1.msra.mxu0 %v4361
        %6459 = vmatprep.subr.mxu0 0.0
        %6460 = vmatpush1.msra.mxu0 %v4360
        %6461 = vmatprep.subr.mxu0 0.0
        %6462 = vmatpush1.msra.mxu0 %v4359
        %6463 = vmatprep.subr.mxu0 0.0
        %6464 = vmatpush1.msra.mxu0 %v4358
        %6465 = vmatprep.subr.mxu0 0.0
        %6466 = vmatpush1.msra.mxu0 %v4357
        %6467 = vmatprep.subr.mxu0 0.0
        %6468 = vmatpush1.msra.mxu0 %v4356
        %6469 = vmatprep.subr.mxu0 0.0
        %6470 = vmatpush1.msra.mxu0 %v4355
        %6471 = vmatprep.subr.mxu0 0.0
        %6472 = vmatpush1.msra.mxu0 %v4354
        %6473 = vmatprep.subr.mxu0 0.0
        %6474 = vmatpush1.msra.mxu0 %v4353
        %6475 = vmatprep.subr.mxu0 0.0
        %6476 = vmatpush1.msra.mxu0 %v4352
        %6477 = vmatprep.subr.mxu0 0.0
        %6478 = vmatpush1.msra.mxu0 %v4351
        %6479 = vmatprep.subr.mxu0 0.0
        %6480 = vmatpush1.msra.mxu0 %v4350
        %6481 = vmatprep.subr.mxu0 0.0
        %6482 = vmatpush1.msra.mxu0 %v4349
        %6483 = vmatprep.subr.mxu0 0.0
        %6484 = vmatpush1.msra.mxu0 %v4348
        %6485 = vmatprep.subr.mxu0 0.0
        %6486 = vmatpush1.msra.mxu0 %v4347
        %6487 = vmatprep.subr.mxu0 0.0
        %6488 = vmatpush1.msra.mxu0 %v4346
        %6489 = vmatprep.subr.mxu0 0.0
        %6490 = vmatpush2.msra.mxu0 0.0
        %6491 = vmatprep.subr.mxu0 0.0
        %6492 = vmatpush2.msra.mxu0 0.0
        %6493 = vmatprep.subr.mxu0 0.0
        %6494 = vmatpush2.msra.mxu0 0.0
        %6495 = vmatprep.subr.mxu0 0.0
        %6496 = vmatpush2.msra.mxu0 0.0
        %6497 = vmatprep.subr.mxu0 0.0
        %6498 = vmatpush2.msra.mxu0 0.0
        %6499 = vmatprep.subr.mxu0 0.0
        %6500 = vmatpush2.msra.mxu0 0.0
        %6501 = vmatprep.subr.mxu0 0.0
        %6502 = vmatpush2.msra.mxu0 0.0
        %6503 = vmatprep.subr.mxu0 0.0
        %6504 = vmatpush2.msra.mxu0 0.0
        %6505 = vmatprep.subr.mxu0 0.0
        %6506 = vmatpush2.msra.mxu0 0.0
        %6507 = vmatprep.subr.mxu0 0.0
        %6508 = vmatpush2.msra.mxu0 0.0
        %6509 = vmatprep.subr.mxu0 0.0
        %6510 = vmatpush2.msra.mxu0 0.0
        %6511 = vmatprep.subr.mxu0 0.0
        %6512 = vmatpush2.msra.mxu0 0.0
        %6513 = vmatprep.subr.mxu0 0.0
        %6514 = vmatpush2.msra.mxu0 0.0
        %6515 = vmatprep.subr.mxu0 0.0
        %6516 = vmatpush2.msra.mxu0 0.0
        %6517 = vmatprep.subr.mxu0 0.0
        %6518 = vmatpush2.msra.mxu0 %v4363
        %6519 = vmatprep.subr.mxu0 0.0
        %6520 = vmatpush2.msra.mxu0 %v4362
        %6521 = vmatprep.mubr.f32.mxu0 %v6452
        %6522 = vmatmul.mubr.f32.gmra.mxu0 %v6449
        %v6523 = vpop.f32.mrf.mxu0
        %v6524 = vadd.f32 0.0, %v6523
        %v6525 = vpop.f32.mrf.mxu0
        %6526 = vmatprep.mubr.f32.mxu0 %v6455
        %6527 = vmatmul.mubr.f32.gmra.mxu0 %v6450
        %v6528 = vpop.f32.mrf.mxu0
        %v6529 = vadd.f32 0.0, %v6528
        %v6530 = vpop.f32.mrf.mxu0
        %6531 = vdwg.mxu0
        %s6532 = scalar_lea.vmem [#allocation3], 240
        %v6533 = vld [vmem:[%s6532] sm:$0xff]
        %v6534 = vld [vmem:[%s6532 + $0x8] sm:$0x3f]
        %v6535 = vld [vmem:[%s6532 + $0x1] sm:$0xff]
        %v6536 = vld [vmem:[%s6532 + $0x9] sm:$0x3f]
        %v6537 = vld [vmem:[%s6532 + $0x2] sm:$0xff]
        %v6538 = vld [vmem:[%s6532 + $0xa] sm:$0x3f]
        %6539 = vrot.lane.b32.xlu0 %v6370, 16
        %v6540 = vpop.permute.xlu0 %6539
        %6541 = vrot.lane.b32.xlu0 %v6371, 16
        %v6542 = vpop.permute.xlu0 %6541
        %6545 = vrot.lane.b32.xlu0 %v6372, 32
        %v6546 = vpop.permute.xlu0 %6545
        %6547 = vrot.lane.b32.xlu0 %v6373, 32
        %v6548 = vpop.permute.xlu0 %6547
        %6551 = vrot.lane.b32.xlu0 %v6375, 48
        %v6552 = vpop.permute.xlu0 %6551
        %6553 = vrot.lane.b32.xlu0 %v6376, 48
        %v6554 = vpop.permute.xlu0 %6553
        %6557 = vrot.lane.b32.xlu0 %v6377, 64
        %v6558 = vpop.permute.xlu0 %6557
        %6559 = vrot.lane.b32.xlu0 %v6378, 64
        %v6560 = vpop.permute.xlu0 %6559
        %6563 = vrot.lane.b32.xlu0 %v6379, 80
        %v6564 = vpop.permute.xlu0 %6563
        %6565 = vrot.lane.b32.xlu0 %v6380, 80
        %v6566 = vpop.permute.xlu0 %6565
        %6571 = vrot.lane.b32.xlu0 %v6533, 96
        %v6572 = vpop.permute.xlu0 %6571
        %6573 = vrot.lane.b32.xlu0 %v6534, 96
        %v6574 = vpop.permute.xlu0 %6573
        %6579 = vrot.lane.b32.xlu0 %v6535, 112
        %v6580 = vpop.permute.xlu0 %6579
        %6581 = vrot.lane.b32.xlu0 %v6536, 112
        %v6582 = vpop.permute.xlu0 %6581
        %v6585 = vsel %vm3405, %v6368, %v6540
        %v6586 = vsel %vm3405, %v6369, %v6542
        %v6587 = vsel %vm4441, %v6585, %v6546
        %v6588 = vsel %vm4441, %v6586, %v6548
        %v6589 = vsel %vm4444, %v6587, %v6552
        %v6590 = vsel %vm4444, %v6588, %v6554
        %v6591 = vsel %vm4447, %v6589, %v6558
        %v6592 = vsel %vm4447, %v6590, %v6560
        %v6593 = vsel %vm4450, %v6591, %v6564
        %v6594 = vsel %vm4450, %v6592, %v6566
        %v6595 = vsel %vm4453, %v6593, %v6572
        %v6596 = vsel %vm4453, %v6594, %v6574
        %v6597 = vsel %vm4456, %v6595, %v6580
        %v6598 = vsel %vm4456, %v6596, %v6582
        %v6600 = vsel %vm3405, %v6537, 0
        %v6603 = vsel %vm3405, %v6538, 0
        %6605 = vmatprep.subr.mxu0 0.0
        %6606 = vmatpush1.msra.mxu0 %v4361
        %6607 = vmatprep.subr.mxu0 0.0
        %6608 = vmatpush1.msra.mxu0 %v4360
        %6609 = vmatprep.subr.mxu0 0.0
        %6610 = vmatpush1.msra.mxu0 %v4359
        %6611 = vmatprep.subr.mxu0 0.0
        %6612 = vmatpush1.msra.mxu0 %v4358
        %6613 = vmatprep.subr.mxu0 0.0
        %6614 = vmatpush1.msra.mxu0 %v4357
        %6615 = vmatprep.subr.mxu0 0.0
        %6616 = vmatpush1.msra.mxu0 %v4356
        %6617 = vmatprep.subr.mxu0 0.0
        %6618 = vmatpush1.msra.mxu0 %v4355
        %6619 = vmatprep.subr.mxu0 0.0
        %6620 = vmatpush1.msra.mxu0 %v4354
        %6621 = vmatprep.subr.mxu0 0.0
        %6622 = vmatpush1.msra.mxu0 %v4353
        %6623 = vmatprep.subr.mxu0 0.0
        %6624 = vmatpush1.msra.mxu0 %v4352
        %6625 = vmatprep.subr.mxu0 0.0
        %6626 = vmatpush1.msra.mxu0 %v4351
        %6627 = vmatprep.subr.mxu0 0.0
        %6628 = vmatpush1.msra.mxu0 %v4350
        %6629 = vmatprep.subr.mxu0 0.0
        %6630 = vmatpush1.msra.mxu0 %v4349
        %6631 = vmatprep.subr.mxu0 0.0
        %6632 = vmatpush1.msra.mxu0 %v4348
        %6633 = vmatprep.subr.mxu0 0.0
        %6634 = vmatpush1.msra.mxu0 %v4347
        %6635 = vmatprep.subr.mxu0 0.0
        %6636 = vmatpush1.msra.mxu0 %v4346
        %6637 = vmatprep.subr.mxu0 0.0
        %6638 = vmatpush2.msra.mxu0 0.0
        %6639 = vmatprep.subr.mxu0 0.0
        %6640 = vmatpush2.msra.mxu0 0.0
        %6641 = vmatprep.subr.mxu0 0.0
        %6642 = vmatpush2.msra.mxu0 0.0
        %6643 = vmatprep.subr.mxu0 0.0
        %6644 = vmatpush2.msra.mxu0 0.0
        %6645 = vmatprep.subr.mxu0 0.0
        %6646 = vmatpush2.msra.mxu0 0.0
        %6647 = vmatprep.subr.mxu0 0.0
        %6648 = vmatpush2.msra.mxu0 0.0
        %6649 = vmatprep.subr.mxu0 0.0
        %6650 = vmatpush2.msra.mxu0 0.0
        %6651 = vmatprep.subr.mxu0 0.0
        %6652 = vmatpush2.msra.mxu0 0.0
        %6653 = vmatprep.subr.mxu0 0.0
        %6654 = vmatpush2.msra.mxu0 0.0
        %6655 = vmatprep.subr.mxu0 0.0
        %6656 = vmatpush2.msra.mxu0 0.0
        %6657 = vmatprep.subr.mxu0 0.0
        %6658 = vmatpush2.msra.mxu0 0.0
        %6659 = vmatprep.subr.mxu0 0.0
        %6660 = vmatpush2.msra.mxu0 0.0
        %6661 = vmatprep.subr.mxu0 0.0
        %6662 = vmatpush2.msra.mxu0 0.0
        %6663 = vmatprep.subr.mxu0 0.0
        %6664 = vmatpush2.msra.mxu0 0.0
        %6665 = vmatprep.subr.mxu0 0.0
        %6666 = vmatpush2.msra.mxu0 %v4363
        %6667 = vmatprep.subr.mxu0 0.0
        %6668 = vmatpush2.msra.mxu0 %v4362
        %6669 = vmatprep.mubr.f32.mxu0 %v6600
        %6670 = vmatmul.mubr.f32.gmra.mxu0 %v6597
        %v6671 = vpop.f32.mrf.mxu0
        %v6672 = vadd.f32 0.0, %v6671
        %v6673 = vpop.f32.mrf.mxu0
        %6674 = vmatprep.mubr.f32.mxu0 %v6603
        %6675 = vmatmul.mubr.f32.gmra.mxu0 %v6598
        %v6676 = vpop.f32.mrf.mxu0
        %v6677 = vadd.f32 0.0, %v6676
        %v6678 = vpop.f32.mrf.mxu0
        %6679 = vdwg.mxu0
        %v6680 = vmax.f32 %v6524, %v6672
        %v6681 = vmax.f32 %v6529, %v6677
        %v6682 = vld [vmem:[%s4] sm:$0x1]
        %v6684 = vlaneseq
        %v6685 = vshrl.u32 %v6684, 7
        %v6686 = vsub.s32 0, %v6685
        %v6687 = vrot.slane %v6682, %v6686
        %v6689 = vadd.f32 %v6680, %v6687
        %v6690 = vadd.f32 %v6681, %v6687
        %s6691 = scalar_lea.vmem [#allocation4], 96
        %6692 = vst.msk [vmem:[%s6691] sm:$0xff] %vm4441, %v6689
        %6693 = vst.msk [vmem:[%s6691 + $0x8] sm:$0x3f] %vm4700, %v6690
        %v6694 = vld [vmem:[#allocation4] sm:$0x1]
        %v6695 = vld [vmem:[#allocation4 + $0x10] sm:$0x1]
        %v6696 = vld [vmem:[#allocation4 + $0x20] sm:$0x1]
        %v6697 = vld [vmem:[#allocation4 + $0x30] sm:$0x1]
        %v6698 = vld [vmem:[#allocation4 + $0x40] sm:$0x1]
        %v6699 = vld [vmem:[#allocation4 + $0x50] sm:$0x1]
        %v6700 = vld [vmem:[#allocation4 + $0x60] sm:$0x1]
        %v6701 = vld [vmem:[#allocation4 + $0x1] sm:$0x1]
        %v6702 = vld [vmem:[#allocation4 + $0x11] sm:$0x1]
        %v6703 = vld [vmem:[#allocation4 + $0x21] sm:$0x1]
        %v6704 = vld [vmem:[#allocation4 + $0x31] sm:$0x1]
        %v6705 = vld [vmem:[#allocation4 + $0x41] sm:$0x1]
        %v6706 = vld [vmem:[#allocation4 + $0x51] sm:$0x1]
        %v6707 = vld [vmem:[#allocation4 + $0x61] sm:$0x1]
        %v6708 = vmax.f32 %v6694, %v6701
        %v6709 = vmax.f32 %v6695, %v6702
        %v6710 = vmax.f32 %v6696, %v6703
        %v6711 = vmax.f32 %v6697, %v6704
        %v6712 = vmax.f32 %v6698, %v6705
        %v6713 = vmax.f32 %v6699, %v6706
        %v6714 = vmax.f32 %v6700, %v6707
        %v6722 = vrot.slane %v6709, 7
        %vm6723 = vcmask 1041409
        %v6724 = vsel %vm6723, %v6722, %v6708
        %v6725 = vrot.slane %v6710, 6
        %vm6726 = vcmask 1042434
        %v6727 = vsel %vm6726, %v6725, %v6724
        %v6728 = vrot.slane %v6711, 5
        %vm6729 = vcmask 1043459
        %v6730 = vsel %vm6729, %v6728, %v6727
        %v6731 = vrot.slane %v6712, 4
        %vm6732 = vcmask 1044484
        %v6733 = vsel %vm6732, %v6731, %v6730
        %v6734 = vrot.slane %v6713, 3
        %vm6735 = vcmask 1045509
        %v6736 = vsel %vm6735, %v6734, %v6733
        %v6737 = vrot.slane %v6714, 2
        %vm6738 = vcmask 1046534
        %v6739 = vsel %vm6738, %v6737, %v6736
        %vm6741 = vcmask 260096
        %6742 = vst.msk [vmem:[#allocation5] sm:$0x7f] %vm6741, %v6739
        %v6743 = vld [vmem:[#allocation4 + $0x2] sm:$0x1]
        %v6744 = vld [vmem:[#allocation4 + $0x12] sm:$0x1]
        %v6745 = vld [vmem:[#allocation4 + $0x22] sm:$0x1]
        %v6746 = vld [vmem:[#allocation4 + $0x32] sm:$0x1]
        %v6747 = vld [vmem:[#allocation4 + $0x42] sm:$0x1]
        %v6748 = vld [vmem:[#allocation4 + $0x52] sm:$0x1]
        %v6749 = vld [vmem:[#allocation4 + $0x62] sm:$0x1]
        %v6750 = vld [vmem:[#allocation4 + $0x3] sm:$0x1]
        %v6751 = vld [vmem:[#allocation4 + $0x13] sm:$0x1]
        %v6752 = vld [vmem:[#allocation4 + $0x23] sm:$0x1]
        %v6753 = vld [vmem:[#allocation4 + $0x33] sm:$0x1]
        %v6754 = vld [vmem:[#allocation4 + $0x43] sm:$0x1]
        %v6755 = vld [vmem:[#allocation4 + $0x53] sm:$0x1]
        %v6756 = vld [vmem:[#allocation4 + $0x63] sm:$0x1]
        %v6757 = vmax.f32 %v6743, %v6750
        %v6758 = vmax.f32 %v6744, %v6751
        %v6759 = vmax.f32 %v6745, %v6752
        %v6760 = vmax.f32 %v6746, %v6753
        %v6761 = vmax.f32 %v6747, %v6754
        %v6762 = vmax.f32 %v6748, %v6755
        %v6763 = vmax.f32 %v6749, %v6756
        %v6771 = vrot.slane %v6758, 7
        %v6772 = vsel %vm6723, %v6771, %v6757
        %v6773 = vrot.slane %v6759, 6
        %v6774 = vsel %vm6726, %v6773, %v6772
        %v6775 = vrot.slane %v6760, 5
        %v6776 = vsel %vm6729, %v6775, %v6774
        %v6777 = vrot.slane %v6761, 4
        %v6778 = vsel %vm6732, %v6777, %v6776
        %v6779 = vrot.slane %v6762, 3
        %v6780 = vsel %vm6735, %v6779, %v6778
        %v6781 = vrot.slane %v6763, 2
        %v6782 = vsel %vm6738, %v6781, %v6780
        %6783 = vrot.lane.b32.xlu0 %v6782, 32
        %v6784 = vpop.permute.xlu0 %6783
        %vm6786 = vcmask 522496
        %6787 = vst.msk [vmem:[#allocation5] sm:$0x7f] %vm6786, %v6784
        %v6788 = vld [vmem:[#allocation4 + $0x4] sm:$0x1]
        %v6789 = vld [vmem:[#allocation4 + $0x14] sm:$0x1]
        %v6790 = vld [vmem:[#allocation4 + $0x24] sm:$0x1]
        %v6791 = vld [vmem:[#allocation4 + $0x34] sm:$0x1]
        %v6792 = vld [vmem:[#allocation4 + $0x44] sm:$0x1]
        %v6793 = vld [vmem:[#allocation4 + $0x54] sm:$0x1]
        %v6794 = vld [vmem:[#allocation4 + $0x64] sm:$0x1]
        %v6795 = vld [vmem:[#allocation4 + $0x5] sm:$0x1]
        %v6796 = vld [vmem:[#allocation4 + $0x15] sm:$0x1]
        %v6797 = vld [vmem:[#allocation4 + $0x25] sm:$0x1]
        %v6798 = vld [vmem:[#allocation4 + $0x35] sm:$0x1]
        %v6799 = vld [vmem:[#allocation4 + $0x45] sm:$0x1]
        %v6800 = vld [vmem:[#allocation4 + $0x55] sm:$0x1]
        %v6801 = vld [vmem:[#allocation4 + $0x65] sm:$0x1]
        %v6802 = vmax.f32 %v6788, %v6795
        %v6803 = vmax.f32 %v6789, %v6796
        %v6804 = vmax.f32 %v6790, %v6797
        %v6805 = vmax.f32 %v6791, %v6798
        %v6806 = vmax.f32 %v6792, %v6799
        %v6807 = vmax.f32 %v6793, %v6800
        %v6808 = vmax.f32 %v6794, %v6801
        %v6816 = vrot.slane %v6803, 7
        %v6817 = vsel %vm6723, %v6816, %v6802
        %v6818 = vrot.slane %v6804, 6
        %v6819 = vsel %vm6726, %v6818, %v6817
        %v6820 = vrot.slane %v6805, 5
        %v6821 = vsel %vm6729, %v6820, %v6819
        %v6822 = vrot.slane %v6806, 4
        %v6823 = vsel %vm6732, %v6822, %v6821
        %v6824 = vrot.slane %v6807, 3
        %v6825 = vsel %vm6735, %v6824, %v6823
        %v6826 = vrot.slane %v6808, 2
        %v6827 = vsel %vm6738, %v6826, %v6825
        %6828 = vrot.lane.b32.xlu0 %v6827, 64
        %v6829 = vpop.permute.xlu0 %6828
        %vm6831 = vcmask 784896
        %6832 = vst.msk [vmem:[#allocation5] sm:$0x7f] %vm6831, %v6829
        %v6833 = vld [vmem:[#allocation4 + $0x6] sm:$0x1]
        %v6834 = vld [vmem:[#allocation4 + $0x16] sm:$0x1]
        %v6835 = vld [vmem:[#allocation4 + $0x26] sm:$0x1]
        %v6836 = vld [vmem:[#allocation4 + $0x36] sm:$0x1]
        %v6837 = vld [vmem:[#allocation4 + $0x46] sm:$0x1]
        %v6838 = vld [vmem:[#allocation4 + $0x56] sm:$0x1]
        %v6839 = vld [vmem:[#allocation4 + $0x66] sm:$0x1]
        %v6840 = vld [vmem:[#allocation4 + $0x7] sm:$0x1]
        %v6841 = vld [vmem:[#allocation4 + $0x17] sm:$0x1]
        %v6842 = vld [vmem:[#allocation4 + $0x27] sm:$0x1]
        %v6843 = vld [vmem:[#allocation4 + $0x37] sm:$0x1]
        %v6844 = vld [vmem:[#allocation4 + $0x47] sm:$0x1]
        %v6845 = vld [vmem:[#allocation4 + $0x57] sm:$0x1]
        %v6846 = vld [vmem:[#allocation4 + $0x67] sm:$0x1]
        %v6847 = vmax.f32 %v6833, %v6840
        %v6848 = vmax.f32 %v6834, %v6841
        %v6849 = vmax.f32 %v6835, %v6842
        %v6850 = vmax.f32 %v6836, %v6843
        %v6851 = vmax.f32 %v6837, %v6844
        %v6852 = vmax.f32 %v6838, %v6845
        %v6853 = vmax.f32 %v6839, %v6846
        %v6861 = vrot.slane %v6848, 7
        %v6862 = vsel %vm6723, %v6861, %v6847
        %v6863 = vrot.slane %v6849, 6
        %v6864 = vsel %vm6726, %v6863, %v6862
        %v6865 = vrot.slane %v6850, 5
        %v6866 = vsel %vm6729, %v6865, %v6864
        %v6867 = vrot.slane %v6851, 4
        %v6868 = vsel %vm6732, %v6867, %v6866
        %v6869 = vrot.slane %v6852, 3
        %v6870 = vsel %vm6735, %v6869, %v6868
        %v6871 = vrot.slane %v6853, 2
        %v6872 = vsel %vm6738, %v6871, %v6870
        %6873 = vrot.lane.b32.xlu0 %v6872, 96
        %v6874 = vpop.permute.xlu0 %6873
        %vm6876 = vcmask 1047296
        %6877 = vst.msk [vmem:[#allocation5] sm:$0x7f] %vm6876, %v6874
        %v6878 = vld [vmem:[#allocation4 + $0x8] sm:$0x1]
        %v6879 = vld [vmem:[#allocation4 + $0x18] sm:$0x1]
        %v6880 = vld [vmem:[#allocation4 + $0x28] sm:$0x1]
        %v6881 = vld [vmem:[#allocation4 + $0x38] sm:$0x1]
        %v6882 = vld [vmem:[#allocation4 + $0x48] sm:$0x1]
        %v6883 = vld [vmem:[#allocation4 + $0x58] sm:$0x1]
        %v6884 = vld [vmem:[#allocation4 + $0x68] sm:$0x1]
        %v6885 = vld [vmem:[#allocation4 + $0x9] sm:$0x1]
        %v6886 = vld [vmem:[#allocation4 + $0x19] sm:$0x1]
        %v6887 = vld [vmem:[#allocation4 + $0x29] sm:$0x1]
        %v6888 = vld [vmem:[#allocation4 + $0x39] sm:$0x1]
        %v6889 = vld [vmem:[#allocation4 + $0x49] sm:$0x1]
        %v6890 = vld [vmem:[#allocation4 + $0x59] sm:$0x1]
        %v6891 = vld [vmem:[#allocation4 + $0x69] sm:$0x1]
        %v6892 = vmax.f32 %v6878, %v6885
        %v6893 = vmax.f32 %v6879, %v6886
        %v6894 = vmax.f32 %v6880, %v6887
        %v6895 = vmax.f32 %v6881, %v6888
        %v6896 = vmax.f32 %v6882, %v6889
        %v6897 = vmax.f32 %v6883, %v6890
        %v6898 = vmax.f32 %v6884, %v6891
        %v6906 = vrot.slane %v6893, 7
        %v6907 = vsel %vm6723, %v6906, %v6892
        %v6908 = vrot.slane %v6894, 6
        %v6909 = vsel %vm6726, %v6908, %v6907
        %v6910 = vrot.slane %v6895, 5
        %v6911 = vsel %vm6729, %v6910, %v6909
        %v6912 = vrot.slane %v6896, 4
        %v6913 = vsel %vm6732, %v6912, %v6911
        %v6914 = vrot.slane %v6897, 3
        %v6915 = vsel %vm6735, %v6914, %v6913
        %v6916 = vrot.slane %v6898, 2
        %v6917 = vsel %vm6738, %v6916, %v6915
        %6919 = vst.msk [vmem:[#allocation5 + $0x8] sm:$0x7f] %vm6741, %v6917
        %v6920 = vld [vmem:[#allocation4 + $0xa] sm:$0x1]
        %v6921 = vld [vmem:[#allocation4 + $0x1a] sm:$0x1]
        %v6922 = vld [vmem:[#allocation4 + $0x2a] sm:$0x1]
        %v6923 = vld [vmem:[#allocation4 + $0x3a] sm:$0x1]
        %v6924 = vld [vmem:[#allocation4 + $0x4a] sm:$0x1]
        %v6925 = vld [vmem:[#allocation4 + $0x5a] sm:$0x1]
        %v6926 = vld [vmem:[#allocation4 + $0x6a] sm:$0x1]
        %v6927 = vld [vmem:[#allocation4 + $0xb] sm:$0x1]
        %v6928 = vld [vmem:[#allocation4 + $0x1b] sm:$0x1]
        %v6929 = vld [vmem:[#allocation4 + $0x2b] sm:$0x1]
        %v6930 = vld [vmem:[#allocation4 + $0x3b] sm:$0x1]
        %v6931 = vld [vmem:[#allocation4 + $0x4b] sm:$0x1]
        %v6932 = vld [vmem:[#allocation4 + $0x5b] sm:$0x1]
        %v6933 = vld [vmem:[#allocation4 + $0x6b] sm:$0x1]
        %v6934 = vmax.f32 %v6920, %v6927
        %v6935 = vmax.f32 %v6921, %v6928
        %v6936 = vmax.f32 %v6922, %v6929
        %v6937 = vmax.f32 %v6923, %v6930
        %v6938 = vmax.f32 %v6924, %v6931
        %v6939 = vmax.f32 %v6925, %v6932
        %v6940 = vmax.f32 %v6926, %v6933
        %v6948 = vrot.slane %v6935, 7
        %v6949 = vsel %vm6723, %v6948, %v6934
        %v6950 = vrot.slane %v6936, 6
        %v6951 = vsel %vm6726, %v6950, %v6949
        %v6952 = vrot.slane %v6937, 5
        %v6953 = vsel %vm6729, %v6952, %v6951
        %v6954 = vrot.slane %v6938, 4
        %v6955 = vsel %vm6732, %v6954, %v6953
        %v6956 = vrot.slane %v6939, 3
        %v6957 = vsel %vm6735, %v6956, %v6955
        %v6958 = vrot.slane %v6940, 2
        %v6959 = vsel %vm6738, %v6958, %v6957
        %6960 = vrot.lane.b32.xlu0 %v6959, 32
        %v6961 = vpop.permute.xlu0 %6960
        %6963 = vst.msk [vmem:[#allocation5 + $0x8] sm:$0x7f] %vm6786, %v6961
        %v6964 = vld [vmem:[#allocation4 + $0xc] sm:$0x1]
        %v6965 = vld [vmem:[#allocation4 + $0x1c] sm:$0x1]
        %v6966 = vld [vmem:[#allocation4 + $0x2c] sm:$0x1]
        %v6967 = vld [vmem:[#allocation4 + $0x3c] sm:$0x1]
        %v6968 = vld [vmem:[#allocation4 + $0x4c] sm:$0x1]
        %v6969 = vld [vmem:[#allocation4 + $0x5c] sm:$0x1]
        %v6970 = vld [vmem:[#allocation4 + $0x6c] sm:$0x1]
        %v6971 = vld [vmem:[#allocation4 + $0xd] sm:$0x1]
        %v6972 = vld [vmem:[#allocation4 + $0x1d] sm:$0x1]
        %v6973 = vld [vmem:[#allocation4 + $0x2d] sm:$0x1]
        %v6974 = vld [vmem:[#allocation4 + $0x3d] sm:$0x1]
        %v6975 = vld [vmem:[#allocation4 + $0x4d] sm:$0x1]
        %v6976 = vld [vmem:[#allocation4 + $0x5d] sm:$0x1]
        %v6977 = vld [vmem:[#allocation4 + $0x6d] sm:$0x1]
        %v6978 = vmax.f32 %v6964, %v6971
        %v6979 = vmax.f32 %v6965, %v6972
        %v6980 = vmax.f32 %v6966, %v6973
        %v6981 = vmax.f32 %v6967, %v6974
        %v6982 = vmax.f32 %v6968, %v6975
        %v6983 = vmax.f32 %v6969, %v6976
        %v6984 = vmax.f32 %v6970, %v6977
        %v6992 = vrot.slane %v6979, 7
        %v6993 = vsel %vm6723, %v6992, %v6978
        %v6994 = vrot.slane %v6980, 6
        %v6995 = vsel %vm6726, %v6994, %v6993
        %v6996 = vrot.slane %v6981, 5
        %v6997 = vsel %vm6729, %v6996, %v6995
        %v6998 = vrot.slane %v6982, 4
        %v6999 = vsel %vm6732, %v6998, %v6997
        %v7000 = vrot.slane %v6983, 3
        %v7001 = vsel %vm6735, %v7000, %v6999
        %v7002 = vrot.slane %v6984, 2
        %v7003 = vsel %vm6738, %v7002, %v7001
        %7004 = vrot.lane.b32.xlu0 %v7003, 64
        %v7005 = vpop.permute.xlu0 %7004
        %7007 = vst.msk [vmem:[#allocation5 + $0x8] sm:$0x7f] %vm6831, %v7005
        %v7008 = vld [vmem:[%s6] sm:$0x1]
        %v7009 = vld [vmem:[#allocation5] ss:$8 sm:$0x3]
        %v7010 = vld [vmem:[%s5] sm:$0xff]
        %v7011 = vld [vmem:[%s5 + $0x8] sm:$0xff]
        %v7012 = vld [vmem:[%s5 + $0x10] sm:$0xff]
        %v7013 = vld [vmem:[%s5 + $0x18] sm:$0xff]
        %v7014 = vld [vmem:[%s5 + $0x20] sm:$0xff]
        %v7015 = vld [vmem:[%s5 + $0x28] sm:$0xff]
        %v7016 = vld [vmem:[%s5 + $0x30] sm:$0xff]
        %v7017 = vld [vmem:[%s5 + $0x38] sm:$0xff]
        %v7018 = vld [vmem:[%s5 + $0x40] sm:$0xff]
        %v7019 = vld [vmem:[%s5 + $0x48] sm:$0xff]
        %v7020 = vld [vmem:[%s5 + $0x50] sm:$0xff]
        %v7021 = vld [vmem:[%s5 + $0x58] sm:$0xff]
        %v7022 = vld [vmem:[%s5 + $0x60] sm:$0xff]
        %v7023 = vld [vmem:[%s5 + $0x68] sm:$0xff]
        %v7024 = vld [vmem:[%s5 + $0x70] sm:$0xff]
        %v7025 = vld [vmem:[%s5 + $0x78] sm:$0xff]
        %v7026 = vld [vmem:[%s5 + $0x80] sm:$0xff]
        %v7027 = vld [vmem:[%s5 + $0x88] sm:$0xff]
        %v7028 = vld [vmem:[%s5 + $0x90] sm:$0xff]
        %v7029 = vld [vmem:[%s5 + $0x98] sm:$0xff]
        %v7030 = vld [vmem:[%s5 + $0xa0] sm:$0xff]
        %v7031 = vld [vmem:[%s5 + $0xa8] sm:$0xff]
        %v7032 = vld [vmem:[%s5 + $0xb0] sm:$0xff]
        %v7033 = vld [vmem:[%s5 + $0xb8] sm:$0xff]
        %v7034 = vld [vmem:[%s5 + $0xc0] sm:$0xff]
        %v7035 = vld [vmem:[%s5 + $0xc8] sm:$0xff]
        %v7036 = vld [vmem:[%s5 + $0xd0] sm:$0xff]
        %v7037 = vld [vmem:[%s5 + $0xd8] sm:$0xff]
        %v7039 = vlaneseq
        %v7040 = vshrl.u32 %v7039, 7
        %v7041 = vsub.s32 0, %v7040
        %v7042 = vrot.slane %v7009, %v7041
        %v7043 = vlaneseq
        %v7044 = vshrl.u32 %v7043, 7
        %v7045 = vsub.s32 1, %v7044
        %v7046 = vrot.slane %v7009, %v7045
        %v7048 = vsel %vm4453, %v7046, 0
        %7050 = vmatprep.subr.mxu0 0.0
        %7051 = vmatpush1.msra.mxu0 %v7025
        %7052 = vmatprep.subr.mxu0 0.0
        %7053 = vmatpush1.msra.mxu0 %v7024
        %7054 = vmatprep.subr.mxu0 0.0
        %7055 = vmatpush1.msra.mxu0 %v7023
        %7056 = vmatprep.subr.mxu0 0.0
        %7057 = vmatpush1.msra.mxu0 %v7022
        %7058 = vmatprep.subr.mxu0 0.0
        %7059 = vmatpush1.msra.mxu0 %v7021
        %7060 = vmatprep.subr.mxu0 0.0
        %7061 = vmatpush1.msra.mxu0 %v7020
        %7062 = vmatprep.subr.mxu0 0.0
        %7063 = vmatpush1.msra.mxu0 %v7019
        %7064 = vmatprep.subr.mxu0 0.0
        %7065 = vmatpush1.msra.mxu0 %v7018
        %7066 = vmatprep.subr.mxu0 0.0
        %7067 = vmatpush1.msra.mxu0 %v7017
        %7068 = vmatprep.subr.mxu0 0.0
        %7069 = vmatpush1.msra.mxu0 %v7016
        %7070 = vmatprep.subr.mxu0 0.0
        %7071 = vmatpush1.msra.mxu0 %v7015
        %7072 = vmatprep.subr.mxu0 0.0
        %7073 = vmatpush1.msra.mxu0 %v7014
        %7074 = vmatprep.subr.mxu0 0.0
        %7075 = vmatpush1.msra.mxu0 %v7013
        %7076 = vmatprep.subr.mxu0 0.0
        %7077 = vmatpush1.msra.mxu0 %v7012
        %7078 = vmatprep.subr.mxu0 0.0
        %7079 = vmatpush1.msra.mxu0 %v7011
        %7080 = vmatprep.subr.mxu0 0.0
        %7081 = vmatpush1.msra.mxu0 %v7010
        %7082 = vmatprep.subr.mxu0 0.0
        %7083 = vmatpush2.msra.mxu0 0.0
        %7084 = vmatprep.subr.mxu0 0.0
        %7085 = vmatpush2.msra.mxu0 0.0
        %7086 = vmatprep.subr.mxu0 0.0
        %7087 = vmatpush2.msra.mxu0 0.0
        %7088 = vmatprep.subr.mxu0 0.0
        %7089 = vmatpush2.msra.mxu0 0.0
        %7090 = vmatprep.subr.mxu0 0.0
        %7091 = vmatpush2.msra.mxu0 %v7037
        %7092 = vmatprep.subr.mxu0 0.0
        %7093 = vmatpush2.msra.mxu0 %v7036
        %7094 = vmatprep.subr.mxu0 0.0
        %7095 = vmatpush2.msra.mxu0 %v7035
        %7096 = vmatprep.subr.mxu0 0.0
        %7097 = vmatpush2.msra.mxu0 %v7034
        %7098 = vmatprep.subr.mxu0 0.0
        %7099 = vmatpush2.msra.mxu0 %v7033
        %7100 = vmatprep.subr.mxu0 0.0
        %7101 = vmatpush2.msra.mxu0 %v7032
        %7102 = vmatprep.subr.mxu0 0.0
        %7103 = vmatpush2.msra.mxu0 %v7031
        %7104 = vmatprep.subr.mxu0 0.0
        %7105 = vmatpush2.msra.mxu0 %v7030
        %7106 = vmatprep.subr.mxu0 0.0
        %7107 = vmatpush2.msra.mxu0 %v7029
        %7108 = vmatprep.subr.mxu0 0.0
        %7109 = vmatpush2.msra.mxu0 %v7028
        %7110 = vmatprep.subr.mxu0 0.0
        %7111 = vmatpush2.msra.mxu0 %v7027
        %7112 = vmatprep.subr.mxu0 0.0
        %7113 = vmatpush2.msra.mxu0 %v7026
        %7114 = vmatprep.mubr.f32.mxu0 %v7048
        %7115 = vmatmul.mubr.f32.gmra.mxu0 %v7042
        %v7116 = vpop.f32.mrf.mxu0
        %v7117 = vadd.f32 0.0, %v7116
        %v7118 = vpop.f32.mrf.mxu0
        %7119 = vdwg.mxu0
        %v7120 = vadd.f32 %v7008, %v7117
        %s7121 = scalar_lea.vmem [#allocation5], 1
        %v7122 = vld [vmem:[%s7121] ss:$8 sm:$0x3]
        %s7123 = scalar_lea.vmem %s5, 224
        %v7124 = vld [vmem:[%s7123] sm:$0xff]
        %v7125 = vld [vmem:[%s7123 + $0x8] sm:$0xff]
        %v7126 = vld [vmem:[%s7123 + $0x10] sm:$0xff]
        %v7127 = vld [vmem:[%s7123 + $0x18] sm:$0xff]
        %v7128 = vld [vmem:[%s7123 + $0x20] sm:$0xff]
        %v7129 = vld [vmem:[%s7123 + $0x28] sm:$0xff]
        %v7130 = vld [vmem:[%s7123 + $0x30] sm:$0xff]
        %v7131 = vld [vmem:[%s7123 + $0x38] sm:$0xff]
        %v7132 = vld [vmem:[%s7123 + $0x40] sm:$0xff]
        %v7133 = vld [vmem:[%s7123 + $0x48] sm:$0xff]
        %v7134 = vld [vmem:[%s7123 + $0x50] sm:$0xff]
        %v7135 = vld [vmem:[%s7123 + $0x58] sm:$0xff]
        %v7136 = vld [vmem:[%s7123 + $0x60] sm:$0xff]
        %v7137 = vld [vmem:[%s7123 + $0x68] sm:$0xff]
        %v7138 = vld [vmem:[%s7123 + $0x70] sm:$0xff]
        %v7139 = vld [vmem:[%s7123 + $0x78] sm:$0xff]
        %v7140 = vld [vmem:[%s7123 + $0x80] sm:$0xff]
        %v7141 = vld [vmem:[%s7123 + $0x88] sm:$0xff]
        %v7142 = vld [vmem:[%s7123 + $0x90] sm:$0xff]
        %v7143 = vld [vmem:[%s7123 + $0x98] sm:$0xff]
        %v7144 = vld [vmem:[%s7123 + $0xa0] sm:$0xff]
        %v7145 = vld [vmem:[%s7123 + $0xa8] sm:$0xff]
        %v7146 = vld [vmem:[%s7123 + $0xb0] sm:$0xff]
        %v7147 = vld [vmem:[%s7123 + $0xb8] sm:$0xff]
        %v7148 = vld [vmem:[%s7123 + $0xc0] sm:$0xff]
        %v7149 = vld [vmem:[%s7123 + $0xc8] sm:$0xff]
        %v7150 = vld [vmem:[%s7123 + $0xd0] sm:$0xff]
        %v7151 = vld [vmem:[%s7123 + $0xd8] sm:$0xff]
        %v7153 = vlaneseq
        %v7154 = vshrl.u32 %v7153, 7
        %v7155 = vsub.s32 0, %v7154
        %v7156 = vrot.slane %v7122, %v7155
        %v7157 = vlaneseq
        %v7158 = vshrl.u32 %v7157, 7
        %v7159 = vsub.s32 1, %v7158
        %v7160 = vrot.slane %v7122, %v7159
        %v7162 = vsel %vm4453, %v7160, 0
        %7164 = vmatprep.subr.mxu0 0.0
        %7165 = vmatpush1.msra.mxu0 %v7139
        %7166 = vmatprep.subr.mxu0 0.0
        %7167 = vmatpush1.msra.mxu0 %v7138
        %7168 = vmatprep.subr.mxu0 0.0
        %7169 = vmatpush1.msra.mxu0 %v7137
        %7170 = vmatprep.subr.mxu0 0.0
        %7171 = vmatpush1.msra.mxu0 %v7136
        %7172 = vmatprep.subr.mxu0 0.0
        %7173 = vmatpush1.msra.mxu0 %v7135
        %7174 = vmatprep.subr.mxu0 0.0
        %7175 = vmatpush1.msra.mxu0 %v7134
        %7176 = vmatprep.subr.mxu0 0.0
        %7177 = vmatpush1.msra.mxu0 %v7133
        %7178 = vmatprep.subr.mxu0 0.0
        %7179 = vmatpush1.msra.mxu0 %v7132
        %7180 = vmatprep.subr.mxu0 0.0
        %7181 = vmatpush1.msra.mxu0 %v7131
        %7182 = vmatprep.subr.mxu0 0.0
        %7183 = vmatpush1.msra.mxu0 %v7130
        %7184 = vmatprep.subr.mxu0 0.0
        %7185 = vmatpush1.msra.mxu0 %v7129
        %7186 = vmatprep.subr.mxu0 0.0
        %7187 = vmatpush1.msra.mxu0 %v7128
        %7188 = vmatprep.subr.mxu0 0.0
        %7189 = vmatpush1.msra.mxu0 %v7127
        %7190 = vmatprep.subr.mxu0 0.0
        %7191 = vmatpush1.msra.mxu0 %v7126
        %7192 = vmatprep.subr.mxu0 0.0
        %7193 = vmatpush1.msra.mxu0 %v7125
        %7194 = vmatprep.subr.mxu0 0.0
        %7195 = vmatpush1.msra.mxu0 %v7124
        %7196 = vmatprep.subr.mxu0 0.0
        %7197 = vmatpush2.msra.mxu0 0.0
        %7198 = vmatprep.subr.mxu0 0.0
        %7199 = vmatpush2.msra.mxu0 0.0
        %7200 = vmatprep.subr.mxu0 0.0
        %7201 = vmatpush2.msra.mxu0 0.0
        %7202 = vmatprep.subr.mxu0 0.0
        %7203 = vmatpush2.msra.mxu0 0.0
        %7204 = vmatprep.subr.mxu0 0.0
        %7205 = vmatpush2.msra.mxu0 %v7151
        %7206 = vmatprep.subr.mxu0 0.0
        %7207 = vmatpush2.msra.mxu0 %v7150
        %7208 = vmatprep.subr.mxu0 0.0
        %7209 = vmatpush2.msra.mxu0 %v7149
        %7210 = vmatprep.subr.mxu0 0.0
        %7211 = vmatpush2.msra.mxu0 %v7148
        %7212 = vmatprep.subr.mxu0 0.0
        %7213 = vmatpush2.msra.mxu0 %v7147
        %7214 = vmatprep.subr.mxu0 0.0
        %7215 = vmatpush2.msra.mxu0 %v7146
        %7216 = vmatprep.subr.mxu0 0.0
        %7217 = vmatpush2.msra.mxu0 %v7145
        %7218 = vmatprep.subr.mxu0 0.0
        %7219 = vmatpush2.msra.mxu0 %v7144
        %7220 = vmatprep.subr.mxu0 0.0
        %7221 = vmatpush2.msra.mxu0 %v7143
        %7222 = vmatprep.subr.mxu0 0.0
        %7223 = vmatpush2.msra.mxu0 %v7142
        %7224 = vmatprep.subr.mxu0 0.0
        %7225 = vmatpush2.msra.mxu0 %v7141
        %7226 = vmatprep.subr.mxu0 0.0
        %7227 = vmatpush2.msra.mxu0 %v7140
        %7228 = vmatprep.mubr.f32.mxu0 %v7162
        %7229 = vmatmul.mubr.f32.gmra.mxu0 %v7156
        %v7230 = vpop.f32.mrf.mxu0
        %v7231 = vadd.f32 0.0, %v7230
        %v7232 = vpop.f32.mrf.mxu0
        %7233 = vdwg.mxu0
        %v7234 = vadd.f32 %v7120, %v7231
        %s7235 = scalar_lea.vmem [#allocation5], 2
        %v7236 = vld [vmem:[%s7235] ss:$8 sm:$0x3]
        %s7237 = scalar_lea.vmem %s5, 448
        %v7238 = vld [vmem:[%s7237] sm:$0xff]
        %v7239 = vld [vmem:[%s7237 + $0x8] sm:$0xff]
        %v7240 = vld [vmem:[%s7237 + $0x10] sm:$0xff]
        %v7241 = vld [vmem:[%s7237 + $0x18] sm:$0xff]
        %v7242 = vld [vmem:[%s7237 + $0x20] sm:$0xff]
        %v7243 = vld [vmem:[%s7237 + $0x28] sm:$0xff]
        %v7244 = vld [vmem:[%s7237 + $0x30] sm:$0xff]
        %v7245 = vld [vmem:[%s7237 + $0x38] sm:$0xff]
        %v7246 = vld [vmem:[%s7237 + $0x40] sm:$0xff]
        %v7247 = vld [vmem:[%s7237 + $0x48] sm:$0xff]
        %v7248 = vld [vmem:[%s7237 + $0x50] sm:$0xff]
        %v7249 = vld [vmem:[%s7237 + $0x58] sm:$0xff]
        %v7250 = vld [vmem:[%s7237 + $0x60] sm:$0xff]
        %v7251 = vld [vmem:[%s7237 + $0x68] sm:$0xff]
        %v7252 = vld [vmem:[%s7237 + $0x70] sm:$0xff]
        %v7253 = vld [vmem:[%s7237 + $0x78] sm:$0xff]
        %v7254 = vld [vmem:[%s7237 + $0x80] sm:$0xff]
        %v7255 = vld [vmem:[%s7237 + $0x88] sm:$0xff]
        %v7256 = vld [vmem:[%s7237 + $0x90] sm:$0xff]
        %v7257 = vld [vmem:[%s7237 + $0x98] sm:$0xff]
        %v7258 = vld [vmem:[%s7237 + $0xa0] sm:$0xff]
        %v7259 = vld [vmem:[%s7237 + $0xa8] sm:$0xff]
        %v7260 = vld [vmem:[%s7237 + $0xb0] sm:$0xff]
        %v7261 = vld [vmem:[%s7237 + $0xb8] sm:$0xff]
        %v7262 = vld [vmem:[%s7237 + $0xc0] sm:$0xff]
        %v7263 = vld [vmem:[%s7237 + $0xc8] sm:$0xff]
        %v7264 = vld [vmem:[%s7237 + $0xd0] sm:$0xff]
        %v7265 = vld [vmem:[%s7237 + $0xd8] sm:$0xff]
        %v7267 = vlaneseq
        %v7268 = vshrl.u32 %v7267, 7
        %v7269 = vsub.s32 0, %v7268
        %v7270 = vrot.slane %v7236, %v7269
        %v7271 = vlaneseq
        %v7272 = vshrl.u32 %v7271, 7
        %v7273 = vsub.s32 1, %v7272
        %v7274 = vrot.slane %v7236, %v7273
        %v7276 = vsel %vm4453, %v7274, 0
        %7278 = vmatprep.subr.mxu0 0.0
        %7279 = vmatpush1.msra.mxu0 %v7253
        %7280 = vmatprep.subr.mxu0 0.0
        %7281 = vmatpush1.msra.mxu0 %v7252
        %7282 = vmatprep.subr.mxu0 0.0
        %7283 = vmatpush1.msra.mxu0 %v7251
        %7284 = vmatprep.subr.mxu0 0.0
        %7285 = vmatpush1.msra.mxu0 %v7250
        %7286 = vmatprep.subr.mxu0 0.0
        %7287 = vmatpush1.msra.mxu0 %v7249
        %7288 = vmatprep.subr.mxu0 0.0
        %7289 = vmatpush1.msra.mxu0 %v7248
        %7290 = vmatprep.subr.mxu0 0.0
        %7291 = vmatpush1.msra.mxu0 %v7247
        %7292 = vmatprep.subr.mxu0 0.0
        %7293 = vmatpush1.msra.mxu0 %v7246
        %7294 = vmatprep.subr.mxu0 0.0
        %7295 = vmatpush1.msra.mxu0 %v7245
        %7296 = vmatprep.subr.mxu0 0.0
        %7297 = vmatpush1.msra.mxu0 %v7244
        %7298 = vmatprep.subr.mxu0 0.0
        %7299 = vmatpush1.msra.mxu0 %v7243
        %7300 = vmatprep.subr.mxu0 0.0
        %7301 = vmatpush1.msra.mxu0 %v7242
        %7302 = vmatprep.subr.mxu0 0.0
        %7303 = vmatpush1.msra.mxu0 %v7241
        %7304 = vmatprep.subr.mxu0 0.0
        %7305 = vmatpush1.msra.mxu0 %v7240
        %7306 = vmatprep.subr.mxu0 0.0
        %7307 = vmatpush1.msra.mxu0 %v7239
        %7308 = vmatprep.subr.mxu0 0.0
        %7309 = vmatpush1.msra.mxu0 %v7238
        %7310 = vmatprep.subr.mxu0 0.0
        %7311 = vmatpush2.msra.mxu0 0.0
        %7312 = vmatprep.subr.mxu0 0.0
        %7313 = vmatpush2.msra.mxu0 0.0
        %7314 = vmatprep.subr.mxu0 0.0
        %7315 = vmatpush2.msra.mxu0 0.0
        %7316 = vmatprep.subr.mxu0 0.0
        %7317 = vmatpush2.msra.mxu0 0.0
        %7318 = vmatprep.subr.mxu0 0.0
        %7319 = vmatpush2.msra.mxu0 %v7265
        %7320 = vmatprep.subr.mxu0 0.0
        %7321 = vmatpush2.msra.mxu0 %v7264
        %7322 = vmatprep.subr.mxu0 0.0
        %7323 = vmatpush2.msra.mxu0 %v7263
        %7324 = vmatprep.subr.mxu0 0.0
        %7325 = vmatpush2.msra.mxu0 %v7262
        %7326 = vmatprep.subr.mxu0 0.0
        %7327 = vmatpush2.msra.mxu0 %v7261
        %7328 = vmatprep.subr.mxu0 0.0
        %7329 = vmatpush2.msra.mxu0 %v7260
        %7330 = vmatprep.subr.mxu0 0.0
        %7331 = vmatpush2.msra.mxu0 %v7259
        %7332 = vmatprep.subr.mxu0 0.0
        %7333 = vmatpush2.msra.mxu0 %v7258
        %7334 = vmatprep.subr.mxu0 0.0
        %7335 = vmatpush2.msra.mxu0 %v7257
        %7336 = vmatprep.subr.mxu0 0.0
        %7337 = vmatpush2.msra.mxu0 %v7256
        %7338 = vmatprep.subr.mxu0 0.0
        %7339 = vmatpush2.msra.mxu0 %v7255
        %7340 = vmatprep.subr.mxu0 0.0
        %7341 = vmatpush2.msra.mxu0 %v7254
        %7342 = vmatprep.mubr.f32.mxu0 %v7276
        %7343 = vmatmul.mubr.f32.gmra.mxu0 %v7270
        %v7344 = vpop.f32.mrf.mxu0
        %v7345 = vadd.f32 0.0, %v7344
        %v7346 = vpop.f32.mrf.mxu0
        %7347 = vdwg.mxu0
        %v7348 = vadd.f32 %v7234, %v7345
        %s7349 = scalar_lea.vmem [#allocation5], 3
        %v7350 = vld [vmem:[%s7349] ss:$8 sm:$0x3]
        %s7351 = scalar_lea.vmem %s5, 672
        %v7352 = vld [vmem:[%s7351] sm:$0xff]
        %v7353 = vld [vmem:[%s7351 + $0x8] sm:$0xff]
        %v7354 = vld [vmem:[%s7351 + $0x10] sm:$0xff]
        %v7355 = vld [vmem:[%s7351 + $0x18] sm:$0xff]
        %v7356 = vld [vmem:[%s7351 + $0x20] sm:$0xff]
        %v7357 = vld [vmem:[%s7351 + $0x28] sm:$0xff]
        %v7358 = vld [vmem:[%s7351 + $0x30] sm:$0xff]
        %v7359 = vld [vmem:[%s7351 + $0x38] sm:$0xff]
        %v7360 = vld [vmem:[%s7351 + $0x40] sm:$0xff]
        %v7361 = vld [vmem:[%s7351 + $0x48] sm:$0xff]
        %v7362 = vld [vmem:[%s7351 + $0x50] sm:$0xff]
        %v7363 = vld [vmem:[%s7351 + $0x58] sm:$0xff]
        %v7364 = vld [vmem:[%s7351 + $0x60] sm:$0xff]
        %v7365 = vld [vmem:[%s7351 + $0x68] sm:$0xff]
        %v7366 = vld [vmem:[%s7351 + $0x70] sm:$0xff]
        %v7367 = vld [vmem:[%s7351 + $0x78] sm:$0xff]
        %v7368 = vld [vmem:[%s7351 + $0x80] sm:$0xff]
        %v7369 = vld [vmem:[%s7351 + $0x88] sm:$0xff]
        %v7370 = vld [vmem:[%s7351 + $0x90] sm:$0xff]
        %v7371 = vld [vmem:[%s7351 + $0x98] sm:$0xff]
        %v7372 = vld [vmem:[%s7351 + $0xa0] sm:$0xff]
        %v7373 = vld [vmem:[%s7351 + $0xa8] sm:$0xff]
        %v7374 = vld [vmem:[%s7351 + $0xb0] sm:$0xff]
        %v7375 = vld [vmem:[%s7351 + $0xb8] sm:$0xff]
        %v7376 = vld [vmem:[%s7351 + $0xc0] sm:$0xff]
        %v7377 = vld [vmem:[%s7351 + $0xc8] sm:$0xff]
        %v7378 = vld [vmem:[%s7351 + $0xd0] sm:$0xff]
        %v7379 = vld [vmem:[%s7351 + $0xd8] sm:$0xff]
        %v7381 = vlaneseq
        %v7382 = vshrl.u32 %v7381, 7
        %v7383 = vsub.s32 0, %v7382
        %v7384 = vrot.slane %v7350, %v7383
        %v7385 = vlaneseq
        %v7386 = vshrl.u32 %v7385, 7
        %v7387 = vsub.s32 1, %v7386
        %v7388 = vrot.slane %v7350, %v7387
        %v7390 = vsel %vm4453, %v7388, 0
        %7392 = vmatprep.subr.mxu0 0.0
        %7393 = vmatpush1.msra.mxu0 %v7367
        %7394 = vmatprep.subr.mxu0 0.0
        %7395 = vmatpush1.msra.mxu0 %v7366
        %7396 = vmatprep.subr.mxu0 0.0
        %7397 = vmatpush1.msra.mxu0 %v7365
        %7398 = vmatprep.subr.mxu0 0.0
        %7399 = vmatpush1.msra.mxu0 %v7364
        %7400 = vmatprep.subr.mxu0 0.0
        %7401 = vmatpush1.msra.mxu0 %v7363
        %7402 = vmatprep.subr.mxu0 0.0
        %7403 = vmatpush1.msra.mxu0 %v7362
        %7404 = vmatprep.subr.mxu0 0.0
        %7405 = vmatpush1.msra.mxu0 %v7361
        %7406 = vmatprep.subr.mxu0 0.0
        %7407 = vmatpush1.msra.mxu0 %v7360
        %7408 = vmatprep.subr.mxu0 0.0
        %7409 = vmatpush1.msra.mxu0 %v7359
        %7410 = vmatprep.subr.mxu0 0.0
        %7411 = vmatpush1.msra.mxu0 %v7358
        %7412 = vmatprep.subr.mxu0 0.0
        %7413 = vmatpush1.msra.mxu0 %v7357
        %7414 = vmatprep.subr.mxu0 0.0
        %7415 = vmatpush1.msra.mxu0 %v7356
        %7416 = vmatprep.subr.mxu0 0.0
        %7417 = vmatpush1.msra.mxu0 %v7355
        %7418 = vmatprep.subr.mxu0 0.0
        %7419 = vmatpush1.msra.mxu0 %v7354
        %7420 = vmatprep.subr.mxu0 0.0
        %7421 = vmatpush1.msra.mxu0 %v7353
        %7422 = vmatprep.subr.mxu0 0.0
        %7423 = vmatpush1.msra.mxu0 %v7352
        %7424 = vmatprep.subr.mxu0 0.0
        %7425 = vmatpush2.msra.mxu0 0.0
        %7426 = vmatprep.subr.mxu0 0.0
        %7427 = vmatpush2.msra.mxu0 0.0
        %7428 = vmatprep.subr.mxu0 0.0
        %7429 = vmatpush2.msra.mxu0 0.0
        %7430 = vmatprep.subr.mxu0 0.0
        %7431 = vmatpush2.msra.mxu0 0.0
        %7432 = vmatprep.subr.mxu0 0.0
        %7433 = vmatpush2.msra.mxu0 %v7379
        %7434 = vmatprep.subr.mxu0 0.0
        %7435 = vmatpush2.msra.mxu0 %v7378
        %7436 = vmatprep.subr.mxu0 0.0
        %7437 = vmatpush2.msra.mxu0 %v7377
        %7438 = vmatprep.subr.mxu0 0.0
        %7439 = vmatpush2.msra.mxu0 %v7376
        %7440 = vmatprep.subr.mxu0 0.0
        %7441 = vmatpush2.msra.mxu0 %v7375
        %7442 = vmatprep.subr.mxu0 0.0
        %7443 = vmatpush2.msra.mxu0 %v7374
        %7444 = vmatprep.subr.mxu0 0.0
        %7445 = vmatpush2.msra.mxu0 %v7373
        %7446 = vmatprep.subr.mxu0 0.0
        %7447 = vmatpush2.msra.mxu0 %v7372
        %7448 = vmatprep.subr.mxu0 0.0
        %7449 = vmatpush2.msra.mxu0 %v7371
        %7450 = vmatprep.subr.mxu0 0.0
        %7451 = vmatpush2.msra.mxu0 %v7370
        %7452 = vmatprep.subr.mxu0 0.0
        %7453 = vmatpush2.msra.mxu0 %v7369
        %7454 = vmatprep.subr.mxu0 0.0
        %7455 = vmatpush2.msra.mxu0 %v7368
        %7456 = vmatprep.mubr.f32.mxu0 %v7390
        %7457 = vmatmul.mubr.f32.gmra.mxu0 %v7384
        %v7458 = vpop.f32.mrf.mxu0
        %v7459 = vadd.f32 0.0, %v7458
        %v7460 = vpop.f32.mrf.mxu0
        %7461 = vdwg.mxu0
        %v7462 = vadd.f32 %v7348, %v7459
        %s7463 = scalar_lea.vmem [#allocation5], 4
        %v7464 = vld [vmem:[%s7463] ss:$8 sm:$0x3]
        %s7465 = scalar_lea.vmem %s5, 896
        %v7466 = vld [vmem:[%s7465] sm:$0xff]
        %v7467 = vld [vmem:[%s7465 + $0x8] sm:$0xff]
        %v7468 = vld [vmem:[%s7465 + $0x10] sm:$0xff]
        %v7469 = vld [vmem:[%s7465 + $0x18] sm:$0xff]
        %v7470 = vld [vmem:[%s7465 + $0x20] sm:$0xff]
        %v7471 = vld [vmem:[%s7465 + $0x28] sm:$0xff]
        %v7472 = vld [vmem:[%s7465 + $0x30] sm:$0xff]
        %v7473 = vld [vmem:[%s7465 + $0x38] sm:$0xff]
        %v7474 = vld [vmem:[%s7465 + $0x40] sm:$0xff]
        %v7475 = vld [vmem:[%s7465 + $0x48] sm:$0xff]
        %v7476 = vld [vmem:[%s7465 + $0x50] sm:$0xff]
        %v7477 = vld [vmem:[%s7465 + $0x58] sm:$0xff]
        %v7478 = vld [vmem:[%s7465 + $0x60] sm:$0xff]
        %v7479 = vld [vmem:[%s7465 + $0x68] sm:$0xff]
        %v7480 = vld [vmem:[%s7465 + $0x70] sm:$0xff]
        %v7481 = vld [vmem:[%s7465 + $0x78] sm:$0xff]
        %v7482 = vld [vmem:[%s7465 + $0x80] sm:$0xff]
        %v7483 = vld [vmem:[%s7465 + $0x88] sm:$0xff]
        %v7484 = vld [vmem:[%s7465 + $0x90] sm:$0xff]
        %v7485 = vld [vmem:[%s7465 + $0x98] sm:$0xff]
        %v7486 = vld [vmem:[%s7465 + $0xa0] sm:$0xff]
        %v7487 = vld [vmem:[%s7465 + $0xa8] sm:$0xff]
        %v7488 = vld [vmem:[%s7465 + $0xb0] sm:$0xff]
        %v7489 = vld [vmem:[%s7465 + $0xb8] sm:$0xff]
        %v7490 = vld [vmem:[%s7465 + $0xc0] sm:$0xff]
        %v7491 = vld [vmem:[%s7465 + $0xc8] sm:$0xff]
        %v7492 = vld [vmem:[%s7465 + $0xd0] sm:$0xff]
        %v7493 = vld [vmem:[%s7465 + $0xd8] sm:$0xff]
        %v7495 = vlaneseq
        %v7496 = vshrl.u32 %v7495, 7
        %v7497 = vsub.s32 0, %v7496
        %v7498 = vrot.slane %v7464, %v7497
        %v7499 = vlaneseq
        %v7500 = vshrl.u32 %v7499, 7
        %v7501 = vsub.s32 1, %v7500
        %v7502 = vrot.slane %v7464, %v7501
        %v7504 = vsel %vm4453, %v7502, 0
        %7506 = vmatprep.subr.mxu0 0.0
        %7507 = vmatpush1.msra.mxu0 %v7481
        %7508 = vmatprep.subr.mxu0 0.0
        %7509 = vmatpush1.msra.mxu0 %v7480
        %7510 = vmatprep.subr.mxu0 0.0
        %7511 = vmatpush1.msra.mxu0 %v7479
        %7512 = vmatprep.subr.mxu0 0.0
        %7513 = vmatpush1.msra.mxu0 %v7478
        %7514 = vmatprep.subr.mxu0 0.0
        %7515 = vmatpush1.msra.mxu0 %v7477
        %7516 = vmatprep.subr.mxu0 0.0
        %7517 = vmatpush1.msra.mxu0 %v7476
        %7518 = vmatprep.subr.mxu0 0.0
        %7519 = vmatpush1.msra.mxu0 %v7475
        %7520 = vmatprep.subr.mxu0 0.0
        %7521 = vmatpush1.msra.mxu0 %v7474
        %7522 = vmatprep.subr.mxu0 0.0
        %7523 = vmatpush1.msra.mxu0 %v7473
        %7524 = vmatprep.subr.mxu0 0.0
        %7525 = vmatpush1.msra.mxu0 %v7472
        %7526 = vmatprep.subr.mxu0 0.0
        %7527 = vmatpush1.msra.mxu0 %v7471
        %7528 = vmatprep.subr.mxu0 0.0
        %7529 = vmatpush1.msra.mxu0 %v7470
        %7530 = vmatprep.subr.mxu0 0.0
        %7531 = vmatpush1.msra.mxu0 %v7469
        %7532 = vmatprep.subr.mxu0 0.0
        %7533 = vmatpush1.msra.mxu0 %v7468
        %7534 = vmatprep.subr.mxu0 0.0
        %7535 = vmatpush1.msra.mxu0 %v7467
        %7536 = vmatprep.subr.mxu0 0.0
        %7537 = vmatpush1.msra.mxu0 %v7466
        %7538 = vmatprep.subr.mxu0 0.0
        %7539 = vmatpush2.msra.mxu0 0.0
        %7540 = vmatprep.subr.mxu0 0.0
        %7541 = vmatpush2.msra.mxu0 0.0
        %7542 = vmatprep.subr.mxu0 0.0
        %7543 = vmatpush2.msra.mxu0 0.0
        %7544 = vmatprep.subr.mxu0 0.0
        %7545 = vmatpush2.msra.mxu0 0.0
        %7546 = vmatprep.subr.mxu0 0.0
        %7547 = vmatpush2.msra.mxu0 %v7493
        %7548 = vmatprep.subr.mxu0 0.0
        %7549 = vmatpush2.msra.mxu0 %v7492
        %7550 = vmatprep.subr.mxu0 0.0
        %7551 = vmatpush2.msra.mxu0 %v7491
        %7552 = vmatprep.subr.mxu0 0.0
        %7553 = vmatpush2.msra.mxu0 %v7490
        %7554 = vmatprep.subr.mxu0 0.0
        %7555 = vmatpush2.msra.mxu0 %v7489
        %7556 = vmatprep.subr.mxu0 0.0
        %7557 = vmatpush2.msra.mxu0 %v7488
        %7558 = vmatprep.subr.mxu0 0.0
        %7559 = vmatpush2.msra.mxu0 %v7487
        %7560 = vmatprep.subr.mxu0 0.0
        %7561 = vmatpush2.msra.mxu0 %v7486
        %7562 = vmatprep.subr.mxu0 0.0
        %7563 = vmatpush2.msra.mxu0 %v7485
        %7564 = vmatprep.subr.mxu0 0.0
        %7565 = vmatpush2.msra.mxu0 %v7484
        %7566 = vmatprep.subr.mxu0 0.0
        %7567 = vmatpush2.msra.mxu0 %v7483
        %7568 = vmatprep.subr.mxu0 0.0
        %7569 = vmatpush2.msra.mxu0 %v7482
        %7570 = vmatprep.mubr.f32.mxu0 %v7504
        %7571 = vmatmul.mubr.f32.gmra.mxu0 %v7498
        %v7572 = vpop.f32.mrf.mxu0
        %v7573 = vadd.f32 0.0, %v7572
        %v7574 = vpop.f32.mrf.mxu0
        %7575 = vdwg.mxu0
        %v7576 = vadd.f32 %v7462, %v7573
        %s7577 = scalar_lea.vmem [#allocation5], 5
        %v7578 = vld [vmem:[%s7577] ss:$8 sm:$0x3]
        %s7579 = scalar_lea.vmem %s5, 1120
        %v7580 = vld [vmem:[%s7579] sm:$0xff]
        %v7581 = vld [vmem:[%s7579 + $0x8] sm:$0xff]
        %v7582 = vld [vmem:[%s7579 + $0x10] sm:$0xff]
        %v7583 = vld [vmem:[%s7579 + $0x18] sm:$0xff]
        %v7584 = vld [vmem:[%s7579 + $0x20] sm:$0xff]
        %v7585 = vld [vmem:[%s7579 + $0x28] sm:$0xff]
        %v7586 = vld [vmem:[%s7579 + $0x30] sm:$0xff]
        %v7587 = vld [vmem:[%s7579 + $0x38] sm:$0xff]
        %v7588 = vld [vmem:[%s7579 + $0x40] sm:$0xff]
        %v7589 = vld [vmem:[%s7579 + $0x48] sm:$0xff]
        %v7590 = vld [vmem:[%s7579 + $0x50] sm:$0xff]
        %v7591 = vld [vmem:[%s7579 + $0x58] sm:$0xff]
        %v7592 = vld [vmem:[%s7579 + $0x60] sm:$0xff]
        %v7593 = vld [vmem:[%s7579 + $0x68] sm:$0xff]
        %v7594 = vld [vmem:[%s7579 + $0x70] sm:$0xff]
        %v7595 = vld [vmem:[%s7579 + $0x78] sm:$0xff]
        %v7596 = vld [vmem:[%s7579 + $0x80] sm:$0xff]
        %v7597 = vld [vmem:[%s7579 + $0x88] sm:$0xff]
        %v7598 = vld [vmem:[%s7579 + $0x90] sm:$0xff]
        %v7599 = vld [vmem:[%s7579 + $0x98] sm:$0xff]
        %v7600 = vld [vmem:[%s7579 + $0xa0] sm:$0xff]
        %v7601 = vld [vmem:[%s7579 + $0xa8] sm:$0xff]
        %v7602 = vld [vmem:[%s7579 + $0xb0] sm:$0xff]
        %v7603 = vld [vmem:[%s7579 + $0xb8] sm:$0xff]
        %v7604 = vld [vmem:[%s7579 + $0xc0] sm:$0xff]
        %v7605 = vld [vmem:[%s7579 + $0xc8] sm:$0xff]
        %v7606 = vld [vmem:[%s7579 + $0xd0] sm:$0xff]
        %v7607 = vld [vmem:[%s7579 + $0xd8] sm:$0xff]
        %v7609 = vlaneseq
        %v7610 = vshrl.u32 %v7609, 7
        %v7611 = vsub.s32 0, %v7610
        %v7612 = vrot.slane %v7578, %v7611
        %v7613 = vlaneseq
        %v7614 = vshrl.u32 %v7613, 7
        %v7615 = vsub.s32 1, %v7614
        %v7616 = vrot.slane %v7578, %v7615
        %v7618 = vsel %vm4453, %v7616, 0
        %7620 = vmatprep.subr.mxu0 0.0
        %7621 = vmatpush1.msra.mxu0 %v7595
        %7622 = vmatprep.subr.mxu0 0.0
        %7623 = vmatpush1.msra.mxu0 %v7594
        %7624 = vmatprep.subr.mxu0 0.0
        %7625 = vmatpush1.msra.mxu0 %v7593
        %7626 = vmatprep.subr.mxu0 0.0
        %7627 = vmatpush1.msra.mxu0 %v7592
        %7628 = vmatprep.subr.mxu0 0.0
        %7629 = vmatpush1.msra.mxu0 %v7591
        %7630 = vmatprep.subr.mxu0 0.0
        %7631 = vmatpush1.msra.mxu0 %v7590
        %7632 = vmatprep.subr.mxu0 0.0
        %7633 = vmatpush1.msra.mxu0 %v7589
        %7634 = vmatprep.subr.mxu0 0.0
        %7635 = vmatpush1.msra.mxu0 %v7588
        %7636 = vmatprep.subr.mxu0 0.0
        %7637 = vmatpush1.msra.mxu0 %v7587
        %7638 = vmatprep.subr.mxu0 0.0
        %7639 = vmatpush1.msra.mxu0 %v7586
        %7640 = vmatprep.subr.mxu0 0.0
        %7641 = vmatpush1.msra.mxu0 %v7585
        %7642 = vmatprep.subr.mxu0 0.0
        %7643 = vmatpush1.msra.mxu0 %v7584
        %7644 = vmatprep.subr.mxu0 0.0
        %7645 = vmatpush1.msra.mxu0 %v7583
        %7646 = vmatprep.subr.mxu0 0.0
        %7647 = vmatpush1.msra.mxu0 %v7582
        %7648 = vmatprep.subr.mxu0 0.0
        %7649 = vmatpush1.msra.mxu0 %v7581
        %7650 = vmatprep.subr.mxu0 0.0
        %7651 = vmatpush1.msra.mxu0 %v7580
        %7652 = vmatprep.subr.mxu0 0.0
        %7653 = vmatpush2.msra.mxu0 0.0
        %7654 = vmatprep.subr.mxu0 0.0
        %7655 = vmatpush2.msra.mxu0 0.0
        %7656 = vmatprep.subr.mxu0 0.0
        %7657 = vmatpush2.msra.mxu0 0.0
        %7658 = vmatprep.subr.mxu0 0.0
        %7659 = vmatpush2.msra.mxu0 0.0
        %7660 = vmatprep.subr.mxu0 0.0
        %7661 = vmatpush2.msra.mxu0 %v7607
        %7662 = vmatprep.subr.mxu0 0.0
        %7663 = vmatpush2.msra.mxu0 %v7606
        %7664 = vmatprep.subr.mxu0 0.0
        %7665 = vmatpush2.msra.mxu0 %v7605
        %7666 = vmatprep.subr.mxu0 0.0
        %7667 = vmatpush2.msra.mxu0 %v7604
        %7668 = vmatprep.subr.mxu0 0.0
        %7669 = vmatpush2.msra.mxu0 %v7603
        %7670 = vmatprep.subr.mxu0 0.0
        %7671 = vmatpush2.msra.mxu0 %v7602
        %7672 = vmatprep.subr.mxu0 0.0
        %7673 = vmatpush2.msra.mxu0 %v7601
        %7674 = vmatprep.subr.mxu0 0.0
        %7675 = vmatpush2.msra.mxu0 %v7600
        %7676 = vmatprep.subr.mxu0 0.0
        %7677 = vmatpush2.msra.mxu0 %v7599
        %7678 = vmatprep.subr.mxu0 0.0
        %7679 = vmatpush2.msra.mxu0 %v7598
        %7680 = vmatprep.subr.mxu0 0.0
        %7681 = vmatpush2.msra.mxu0 %v7597
        %7682 = vmatprep.subr.mxu0 0.0
        %7683 = vmatpush2.msra.mxu0 %v7596
        %7684 = vmatprep.mubr.f32.mxu0 %v7618
        %7685 = vmatmul.mubr.f32.gmra.mxu0 %v7612
        %v7686 = vpop.f32.mrf.mxu0
        %v7687 = vadd.f32 0.0, %v7686
        %v7688 = vpop.f32.mrf.mxu0
        %7689 = vdwg.mxu0
        %v7690 = vadd.f32 %v7576, %v7687
        %s7691 = scalar_lea.vmem [#allocation5], 6
        %v7692 = vld [vmem:[%s7691] ss:$8 sm:$0x3]
        %s7693 = scalar_lea.vmem %s5, 1344
        %v7694 = vld [vmem:[%s7693] sm:$0xff]
        %v7695 = vld [vmem:[%s7693 + $0x8] sm:$0xff]
        %v7696 = vld [vmem:[%s7693 + $0x10] sm:$0xff]
        %v7697 = vld [vmem:[%s7693 + $0x18] sm:$0xff]
        %v7698 = vld [vmem:[%s7693 + $0x20] sm:$0xff]
        %v7699 = vld [vmem:[%s7693 + $0x28] sm:$0xff]
        %v7700 = vld [vmem:[%s7693 + $0x30] sm:$0xff]
        %v7701 = vld [vmem:[%s7693 + $0x38] sm:$0xff]
        %v7702 = vld [vmem:[%s7693 + $0x40] sm:$0xff]
        %v7703 = vld [vmem:[%s7693 + $0x48] sm:$0xff]
        %v7704 = vld [vmem:[%s7693 + $0x50] sm:$0xff]
        %v7705 = vld [vmem:[%s7693 + $0x58] sm:$0xff]
        %v7706 = vld [vmem:[%s7693 + $0x60] sm:$0xff]
        %v7707 = vld [vmem:[%s7693 + $0x68] sm:$0xff]
        %v7708 = vld [vmem:[%s7693 + $0x70] sm:$0xff]
        %v7709 = vld [vmem:[%s7693 + $0x78] sm:$0xff]
        %v7710 = vld [vmem:[%s7693 + $0x80] sm:$0xff]
        %v7711 = vld [vmem:[%s7693 + $0x88] sm:$0xff]
        %v7712 = vld [vmem:[%s7693 + $0x90] sm:$0xff]
        %v7713 = vld [vmem:[%s7693 + $0x98] sm:$0xff]
        %v7714 = vld [vmem:[%s7693 + $0xa0] sm:$0xff]
        %v7715 = vld [vmem:[%s7693 + $0xa8] sm:$0xff]
        %v7716 = vld [vmem:[%s7693 + $0xb0] sm:$0xff]
        %v7717 = vld [vmem:[%s7693 + $0xb8] sm:$0xff]
        %v7718 = vld [vmem:[%s7693 + $0xc0] sm:$0xff]
        %v7719 = vld [vmem:[%s7693 + $0xc8] sm:$0xff]
        %v7720 = vld [vmem:[%s7693 + $0xd0] sm:$0xff]
        %v7721 = vld [vmem:[%s7693 + $0xd8] sm:$0xff]
        %v7723 = vlaneseq
        %v7724 = vshrl.u32 %v7723, 7
        %v7725 = vsub.s32 0, %v7724
        %v7726 = vrot.slane %v7692, %v7725
        %v7727 = vlaneseq
        %v7728 = vshrl.u32 %v7727, 7
        %v7729 = vsub.s32 1, %v7728
        %v7730 = vrot.slane %v7692, %v7729
        %v7732 = vsel %vm4453, %v7730, 0
        %7734 = vmatprep.subr.mxu0 0.0
        %7735 = vmatpush1.msra.mxu0 %v7709
        %7736 = vmatprep.subr.mxu0 0.0
        %7737 = vmatpush1.msra.mxu0 %v7708
        %7738 = vmatprep.subr.mxu0 0.0
        %7739 = vmatpush1.msra.mxu0 %v7707
        %7740 = vmatprep.subr.mxu0 0.0
        %7741 = vmatpush1.msra.mxu0 %v7706
        %7742 = vmatprep.subr.mxu0 0.0
        %7743 = vmatpush1.msra.mxu0 %v7705
        %7744 = vmatprep.subr.mxu0 0.0
        %7745 = vmatpush1.msra.mxu0 %v7704
        %7746 = vmatprep.subr.mxu0 0.0
        %7747 = vmatpush1.msra.mxu0 %v7703
        %7748 = vmatprep.subr.mxu0 0.0
        %7749 = vmatpush1.msra.mxu0 %v7702
        %7750 = vmatprep.subr.mxu0 0.0
        %7751 = vmatpush1.msra.mxu0 %v7701
        %7752 = vmatprep.subr.mxu0 0.0
        %7753 = vmatpush1.msra.mxu0 %v7700
        %7754 = vmatprep.subr.mxu0 0.0
        %7755 = vmatpush1.msra.mxu0 %v7699
        %7756 = vmatprep.subr.mxu0 0.0
        %7757 = vmatpush1.msra.mxu0 %v7698
        %7758 = vmatprep.subr.mxu0 0.0
        %7759 = vmatpush1.msra.mxu0 %v7697
        %7760 = vmatprep.subr.mxu0 0.0
        %7761 = vmatpush1.msra.mxu0 %v7696
        %7762 = vmatprep.subr.mxu0 0.0
        %7763 = vmatpush1.msra.mxu0 %v7695
        %7764 = vmatprep.subr.mxu0 0.0
        %7765 = vmatpush1.msra.mxu0 %v7694
        %7766 = vmatprep.subr.mxu0 0.0
        %7767 = vmatpush2.msra.mxu0 0.0
        %7768 = vmatprep.subr.mxu0 0.0
        %7769 = vmatpush2.msra.mxu0 0.0
        %7770 = vmatprep.subr.mxu0 0.0
        %7771 = vmatpush2.msra.mxu0 0.0
        %7772 = vmatprep.subr.mxu0 0.0
        %7773 = vmatpush2.msra.mxu0 0.0
        %7774 = vmatprep.subr.mxu0 0.0
        %7775 = vmatpush2.msra.mxu0 %v7721
        %7776 = vmatprep.subr.mxu0 0.0
        %7777 = vmatpush2.msra.mxu0 %v7720
        %7778 = vmatprep.subr.mxu0 0.0
        %7779 = vmatpush2.msra.mxu0 %v7719
        %7780 = vmatprep.subr.mxu0 0.0
        %7781 = vmatpush2.msra.mxu0 %v7718
        %7782 = vmatprep.subr.mxu0 0.0
        %7783 = vmatpush2.msra.mxu0 %v7717
        %7784 = vmatprep.subr.mxu0 0.0
        %7785 = vmatpush2.msra.mxu0 %v7716
        %7786 = vmatprep.subr.mxu0 0.0
        %7787 = vmatpush2.msra.mxu0 %v7715
        %7788 = vmatprep.subr.mxu0 0.0
        %7789 = vmatpush2.msra.mxu0 %v7714
        %7790 = vmatprep.subr.mxu0 0.0
        %7791 = vmatpush2.msra.mxu0 %v7713
        %7792 = vmatprep.subr.mxu0 0.0
        %7793 = vmatpush2.msra.mxu0 %v7712
        %7794 = vmatprep.subr.mxu0 0.0
        %7795 = vmatpush2.msra.mxu0 %v7711
        %7796 = vmatprep.subr.mxu0 0.0
        %7797 = vmatpush2.msra.mxu0 %v7710
        %7798 = vmatprep.mubr.f32.mxu0 %v7732
        %7799 = vmatmul.mubr.f32.gmra.mxu0 %v7726
        %v7800 = vpop.f32.mrf.mxu0
        %v7801 = vadd.f32 0.0, %v7800
        %v7802 = vpop.f32.mrf.mxu0
        %7803 = vdwg.mxu0
        %v7804 = vadd.f32 %v7690, %v7801
        %v7805 = vmax.f32 %v7804, 0.0
        %v7806 = vld [vmem:[%s7] sm:$0xff]
        %v7807 = vld [vmem:[%s7 + $0x8] sm:$0xff]
        %v7808 = vld [vmem:[%s8] sm:$0x1]
        %v7810 = vsel %vm3405, %v7805, 0
        %7812 = vmatprep.subr.mxu0 0.0
        %7813 = vmatpush1.msra.mxu0 0.0
        %7814 = vmatprep.subr.mxu0 0.0
        %7815 = vmatpush1.msra.mxu0 0.0
        %7816 = vmatprep.subr.mxu0 0.0
        %7817 = vmatpush1.msra.mxu0 0.0
        %7818 = vmatprep.subr.mxu0 0.0
        %7819 = vmatpush1.msra.mxu0 0.0
        %7820 = vmatprep.subr.mxu0 0.0
        %7821 = vmatpush1.msra.mxu0 0.0
        %7822 = vmatprep.subr.mxu0 0.0
        %7823 = vmatpush1.msra.mxu0 0.0
        %7824 = vmatprep.subr.mxu0 0.0
        %7825 = vmatpush1.msra.mxu0 0.0
        %7826 = vmatprep.subr.mxu0 0.0
        %7827 = vmatpush1.msra.mxu0 0.0
        %7828 = vmatprep.subr.mxu0 0.0
        %7829 = vmatpush1.msra.mxu0 0.0
        %7830 = vmatprep.subr.mxu0 0.0
        %7831 = vmatpush1.msra.mxu0 0.0
        %7832 = vmatprep.subr.mxu0 0.0
        %7833 = vmatpush1.msra.mxu0 0.0
        %7834 = vmatprep.subr.mxu0 0.0
        %7835 = vmatpush1.msra.mxu0 0.0
        %7836 = vmatprep.subr.mxu0 0.0
        %7837 = vmatpush1.msra.mxu0 0.0
        %7838 = vmatprep.subr.mxu0 0.0
        %7839 = vmatpush1.msra.mxu0 0.0
        %7840 = vmatprep.subr.mxu0 0.0
        %7841 = vmatpush1.msra.mxu0 %v7807
        %7842 = vmatprep.subr.mxu0 0.0
        %7843 = vmatpush1.msra.mxu0 %v7806
        %7844 = vmatprep.subr.mxu0 0.0
        %7845 = vmatpush2.msra.mxu0 0.0
        %7846 = vmatprep.subr.mxu0 0.0
        %7847 = vmatpush2.msra.mxu0 0.0
        %7848 = vmatprep.subr.mxu0 0.0
        %7849 = vmatpush2.msra.mxu0 0.0
        %7850 = vmatprep.subr.mxu0 0.0
        %7851 = vmatpush2.msra.mxu0 0.0
        %7852 = vmatprep.subr.mxu0 0.0
        %7853 = vmatpush2.msra.mxu0 0.0
        %7854 = vmatprep.subr.mxu0 0.0
        %7855 = vmatpush2.msra.mxu0 0.0
        %7856 = vmatprep.subr.mxu0 0.0
        %7857 = vmatpush2.msra.mxu0 0.0
        %7858 = vmatprep.subr.mxu0 0.0
        %7859 = vmatpush2.msra.mxu0 0.0
        %7860 = vmatprep.subr.mxu0 0.0
        %7861 = vmatpush2.msra.mxu0 0.0
        %7862 = vmatprep.subr.mxu0 0.0
        %7863 = vmatpush2.msra.mxu0 0.0
        %7864 = vmatprep.subr.mxu0 0.0
        %7865 = vmatpush2.msra.mxu0 0.0
        %7866 = vmatprep.subr.mxu0 0.0
        %7867 = vmatpush2.msra.mxu0 0.0
        %7868 = vmatprep.subr.mxu0 0.0
        %7869 = vmatpush2.msra.mxu0 0.0
        %7870 = vmatprep.subr.mxu0 0.0
        %7871 = vmatpush2.msra.mxu0 0.0
        %7872 = vmatprep.subr.mxu0 0.0
        %7873 = vmatpush2.msra.mxu0 0.0
        %7874 = vmatprep.subr.mxu0 0.0
        %7875 = vmatpush2.msra.mxu0 0.0
        %7876 = vmatprep.mubr.f32.mxu0 0.0
        %7877 = vmatmul.mubr.f32.gmra.mxu0 %v7810
        %v7878 = vpop.f32.mrf.mxu0
        %v7879 = vadd.f32 %v7808, %v7878
        %v7880 = vpop.f32.mrf.mxu0
        %7881 = vdwg.mxu0
        %vm7882 = vcmask 73728
        %7883 = vst.msk [vmem:[%s324] sm:$0x1] %vm7882, %v7879
        %s7884 = sand.u32 %s225, 1
        %s7885 = scalar_lea.sflag [#allocation7], %s7884
        %s7886 = sand.u32 %s225, 1
        %s7887 = scalar_lea.vmem [#allocation6], %s7886
        // Predicated region
        $region57: #{cnn_forward.1} parent=55 // pred_check
          %p7888 = pneg %p235
        $region58: #{cnn_forward.1} parent=55 // pred_check_branch
          %7890 = sbr.rel (%p7888) target = $region60
        $region59: #{cnn_forward.1} parent=55 // pred_region
          %s7892 = ssub.s32 16, 16
          %7893 = vsyncadd %s7885, %s7892
          %s7894 = smul.addr %s23, 16
          %s7895 = scalar_lea.hbm %s9, %s7894
          %s7897 = sshll.u32 %s7887, 4
          %s7898 = int_to_ptr.vmem [resolvable:$true] %s7897
          %7900 = dma.vmem_to_hbm [thread:$0]  %s7898, 16, %s7895, %s7885
        $region60: #{cnn_forward.1} parent=55 // pred_fallthru
          _
      $region56: #{cnn_forward.1} parent=5 // pred_fallthru
        _
      %p7901 = scmp.le.s32.totalorder 2, %s18
      // Predicated region
      $region61: #{cnn_forward.1} parent=5 // pred_check
        %p7902 = pneg %p7901
      $region62: #{cnn_forward.1} parent=5 // pred_check_branch
        %7904 = sbr.rel (%p7902) target = $region64
      $region63: #{cnn_forward.1} parent=5 // pred_region
        %s7905 = ssub.s32 %s18, 2
        // Predicated region
        $region65: #{cnn_forward.1} parent=63 // pred_check
          %p7906 = pneg %p241
        $region66: #{cnn_forward.1} parent=63 // pred_check_branch
          %7908 = sbr.rel (%p7906) target = $region68
        $region67: #{cnn_forward.1} parent=63 // pred_region
          %s7909 = sand.u32 %s226, 1
          %s7910 = scalar_lea.sflag [#allocation7], %s7909
          %s7911 = sand.u32 %s226, 1
          %s7912 = scalar_lea.vmem [#allocation6], %s7911
          %7913 = dma.done %s7910, 16
        $region68: #{cnn_forward.1} parent=63 // pred_fallthru
          _
      $region64: #{cnn_forward.1} parent=5 // pred_fallthru
        _
    $region6: #{cnn_forward.1} parent=1 // loop_footer
      %s22 = sadd.s32 1, %s18
    $region7: #{cnn_forward.1} parent=1 // loop_footer_branch
      %17 = sbr.rel target = $region3
    $region8: #{cnn_forward.1} parent=1 // loop_exit
      _
    %7914 = vsyncpa [#allocation7], 1
    %s7915 = scalar_lea.sflag [#allocation7], 1
    %7916 = vsyncpa %s7915, 1

</llo_original>
